<compile_context>
chip_gen: v7x
topology: tpu7x:2x2x1
jax: 0.10.0
libtpu: 0.0.40
codegen_flags: <defaults>
</compile_context>

<pallas_src>
import jax
import jax.numpy as jnp
from jax import lax
from jax.experimental import pallas as pl
from jax.experimental.pallas import tpu as pltpu

DIM = 8            # reference module uses 64 (scaled down for the demo run)
NLAT = 16          # reference module uses 256
NUM_CHANNELS = 3
BN_EPS = 1e-5

# (kernel, stride, pad, Cin, Cout, has_bn_relu)
LAYER_CFG = [
    (4, 2, 1, NUM_CHANNELS, DIM,      True),
    (4, 2, 1, DIM,          DIM * 2,  True),
    (4, 2, 1, DIM * 2,      DIM * 4,  True),
    (4, 2, 1, DIM * 4,      DIM * 8,  True),
    (5, 2, 2, DIM * 8,      DIM * 8,  True),
    (3, 2, 1, DIM * 8,      DIM * 16, True),
    (4, 1, 0, DIM * 16,     DIM * 16, False),   # Conv7: no BN / ReLU / bias
    (1, 1, 0, DIM * 16,     NLAT,     False),   # Out:  1x1 conv with bias
]

PALLAS_MIN_M = 256   # below this, a pallas_call is pure launch overhead -> jnp


def _detect_vmem_bytes():
    """Best-effort per-core VMEM capacity (falls back to the v7x 64 MiB)."""
    try:
        cap = int(getattr(pltpu.get_tpu_info(), "vmem_capacity_bytes", 0))
        if cap > 0:
            return cap
    except Exception:
        pass
    return 64 * 1024 * 1024


_VMEM_CAP = _detect_vmem_bytes()
_BIG_VMEM = _VMEM_CAP >= 100 * 1024 * 1024           # v5e / v6e (128 MiB VMEM)
TM_MAX = 16384 if _BIG_VMEM else 8192                # lane columns per M tile
VMEM_STEP_BUDGET = (28 if _BIG_VMEM else 10) * 1024 * 1024
VMEM_LIMIT = (64 if _BIG_VMEM else 48) * 1024 * 1024

_COMPILER_PARAMS = pltpu.CompilerParams(
    dimension_semantics=("parallel",),
    vmem_limit_bytes=VMEM_LIMIT,
)


# ------------------------------ tiling helpers ------------------------------

def _pick_tm(M, col_bytes):
    """Lane-tile (columns) size: VMEM-budgeted, >=2 tiles (v7x megacore),
    always a multiple of 128 so output stores stay unmasked/lane-dense."""
    tm_budget = max(128, (VMEM_STEP_BUDGET // (2 * col_bytes)) // 128 * 128)
    tm_half = ((pl.cdiv(M, 2) + 127) // 128) * 128      # guarantees >= 2 tiles
    return max(128, min(TM_MAX, tm_budget, tm_half))


# ----------------------------- Pallas kernels -------------------------------

def _convcm_kernel(w_ref, p_ref, o_ref):
    """o(Cout, tm) = w(Cout, KKC) @ p(KKC, tm); bf16 inputs, f32 accumulation."""
    o_ref[...] = jnp.dot(w_ref[...], p_ref[...],
                         preferred_element_type=jnp.float32).astype(o_ref.dtype)


def _convcm_bn_kernel(w_ref, p_ref, o_ref, sum_ref, ss_ref):
    """Conv matmul + fused per-tile BatchNorm partial statistics.

    In channel-major layout both reductions are over the lane (M) axis, and
    the per-tile partial outputs mean no cross-step accumulator, so the grid
    axis stays 'parallel' (megacore safe)."""
    acc = jnp.dot(w_ref[...], p_ref[...], preferred_element_type=jnp.float32)
    o_ref[...] = acc.astype(o_ref.dtype)
    sum_ref[0] = jnp.sum(acc, axis=1, keepdims=True)          # (Cout, 1)
    ss_ref[0] = jnp.sum(acc * acc, axis=1, keepdims=True)     # (Cout, 1)


# ------------------------------- wrappers ------------------------------------

def _im2col_cm(x_cm, KH, KW, stride, pad):
    """Channel-major im2col glue (pure slicing, fused by XLA with the preceding
    BN affine): returns (KH*KW*Cin, M) with contraction order (kh, kw, cin)."""
    Cin, N, H, W = x_cm.shape
    xp = jnp.pad(x_cm, ((0, 0), (0, 0), (pad, pad), (pad, pad)))
    Hp, Wp = H + 2 * pad, W + 2 * pad
    OH = (Hp - KH) // stride + 1
    OW = (Wp - KW) // stride + 1
    M = N * OH * OW
    taps = []
    for kh in range(KH):
        for kw in range(KW):
            s = lax.slice(
                xp,
                (0, 0, kh, kw),
                (Cin, N, kh + stride * (OH - 1) + 1, kw + stride * (OW - 1) + 1),
                (1, 1, stride, stride))
            taps.append(s.reshape(Cin, M))
    return jnp.concatenate(taps, axis=0), (N, OH, OW)


def conv2d_cm(x_cm, w_khwc, stride, pad, *, with_stats=False, bias=None,
              out_dtype=jnp.bfloat16):
    """Conv2d on a channel-major (Cin, N, H, W) activation as one CM-GEMM.

    with_stats=True additionally returns BatchNorm batch mean / biased var
    (shape (Cout, 1)).  Tiny-M layers bypass pallas_call entirely."""
    KH, KW, Cin, Cout = w_khwc.shape
    patches, (N, OH, OW) = _im2col_cm(x_cm.astype(jnp.bfloat16),
                                      KH, KW, stride, pad)
    KKC, M = patches.shape
    wmat = w_khwc.reshape(KH * KW * Cin, Cout).T.astype(jnp.bfloat16)   # (Cout, KKC)

    if M < PALLAS_MIN_M:
        # Tail layer (Conv5..Out at demo shapes): plain jnp, identical math.
        acc = jnp.dot(wmat, patches, preferred_element_type=jnp.float32)
        if bias is not None:
            acc = acc + bias.astype(jnp.float32)[:, None]
        y = acc.astype(out_dtype).reshape(Cout, N, OH, OW)
        if with_stats:
            mean = jnp.mean(acc, axis=1, keepdims=True)
            var = jnp.maximum(jnp.mean(acc * acc, axis=1, keepdims=True)
                              - mean * mean, 0.0)
            return y, mean, var
        return y

    col_bytes = KKC * 2 + Cout * jnp.dtype(out_dtype).itemsize
    tm = _pick_tm(M, col_bytes)
    Mp = pl.cdiv(M, tm) * tm
    if Mp != M:
        patches = jnp.pad(patches, ((0, 0), (0, Mp - M)))
    ntiles = Mp // tm

    in_specs = [pl.BlockSpec((Cout, KKC), lambda i: (0, 0)),
                pl.BlockSpec((KKC, tm), lambda i: (0, i))]

    if with_stats:
        kernel = _convcm_bn_kernel
        out_shape = (jax.ShapeDtypeStruct((Cout, Mp), out_dtype),
                     jax.ShapeDtypeStruct((ntiles, Cout, 1), jnp.float32),
                     jax.ShapeDtypeStruct((ntiles, Cout, 1), jnp.float32))
        out_specs = (pl.BlockSpec((Cout, tm), lambda i: (0, i)),
                     pl.BlockSpec((1, Cout, 1), lambda i: (i, 0, 0)),
                     pl.BlockSpec((1, Cout, 1), lambda i: (i, 0, 0)))
    else:
        kernel = _convcm_kernel
        out_shape = jax.ShapeDtypeStruct((Cout, Mp), out_dtype)
        out_specs = pl.BlockSpec((Cout, tm), lambda i: (0, i))

    res = pl.pallas_call(
        kernel,
        out_shape=out_shape,
        grid_spec=pltpu.PrefetchScalarGridSpec(
            num_scalar_prefetch=0,
            grid=(ntiles,),
            in_specs=in_specs,
            out_specs=out_specs),
        compiler_params=_COMPILER_PARAMS,
    )(wmat, patches)

    if with_stats:
        y, psum, pss = res
    else:
        y = res
    y = y[:, :M]
    if bias is not None:
        y = (y.astype(jnp.float32)
             + bias.astype(jnp.float32)[:, None]).astype(out_dtype)
    y = y.reshape(Cout, N, OH, OW)
    if with_stats:
        mean = jnp.sum(psum, axis=0) / M                              # (Cout, 1)
        var = jnp.maximum(jnp.sum(pss, axis=0) / M - mean * mean, 0.0)
        return y, mean, var
    return y


# ----------------------------- module forward --------------------------------

def encoder_forward(x_nchw, params):
    # NCHW -> channel-major (C, N, H, W); bf16 activations between layers.
    x = jnp.transpose(x_nchw, (1, 0, 2, 3)).astype(jnp.bfloat16)
    n_layers = len(LAYER_CFG)
    for li, (K, stride, pad, cin, cout, bn) in enumerate(LAYER_CFG):
        p = params[li]
        last = (li == n_layers - 1)
        if bn:
            y, mean, var = conv2d_cm(x, p["w"], stride, pad,
                                     with_stats=True, out_dtype=jnp.bfloat16)
            scale = p["gamma"][:, None] * lax.rsqrt(var + BN_EPS)     # (Cout, 1)
            shift = p["beta"][:, None] - mean * scale                 # (Cout, 1)
            C, N, OH, OW = y.shape
            # BN normalize + ReLU as plain jnp: XLA fuses this into the next
            # layer's patch-slab construction (no standalone pallas pass).
            a = jnp.maximum(
                y.reshape(C, -1).astype(jnp.float32) * scale + shift, 0.0)
            x = a.astype(jnp.bfloat16).reshape(C, N, OH, OW)
        else:
            x = conv2d_cm(x, p["w"], stride, pad, bias=p.get("bias", None),
                          out_dtype=jnp.float32 if last else jnp.bfloat16)
    # self.shift is None in this instantiation -> no shift addition.
    # channel-major (NLAT, N, 1, 1) -> NCHW (N, NLAT, 1, 1)
    return jnp.transpose(x, (1, 0, 2, 3)).astype(jnp.float32)


# ----------------------- pure-JAX reference (check) ---------------------------

def encoder_reference(x_nchw, params):
    x = jnp.transpose(x_nchw, (0, 2, 3, 1)).astype(jnp.float32)
    for li, (K, stride, pad, cin, cout, bn) in enumerate(LAYER_CFG):
        p = params[li]
        x = lax.conv_general_dilated(
            x, p["w"], (stride, stride), ((pad, pad), (pad, pad)),
            dimension_numbers=("NHWC", "HWIO", "NHWC"),
            precision=lax.Precision.HIGHEST)
        if bn:
            mean = jnp.mean(x, axis=(0, 1, 2))
            var = jnp.var(x, axis=(0, 1, 2))
            x = (x - mean) * lax.rsqrt(var + BN_EPS) * p["gamma"] + p["beta"]
            x = jnp.maximum(x, 0.0)
        elif "bias" in p:
            x = x + p["bias"]
    return jnp.transpose(x, (0, 3, 1, 2))


# ----------------------------- parameter init ---------------------------------

def init_params(key):
    params = []
    for li, (K, stride, pad, cin, cout, bn) in enumerate(LAYER_CFG):
        key, kw, kg, kb = jax.random.split(key, 4)
        p = {"w": 0.05 * jax.random.normal(kw, (K, K, cin, cout), jnp.float32)}
        if bn:
            p["gamma"] = 1.0 + 0.1 * jax.random.normal(kg, (cout,), jnp.float32)
            p["beta"] = 0.1 * jax.random.normal(kb, (cout,), jnp.float32)
        if li == len(LAYER_CFG) - 1:   # Out layer has bias=True in the module
            p["bias"] = 0.1 * jax.random.normal(kb, (cout,), jnp.float32)
        params.append(p)
    return params


if __name__ == "__main__":
    key = jax.random.PRNGKey(0)
    kx, kp = jax.random.split(key)
    params = init_params(kp)
    # batch=2, 3 channels, 256x256 (minimum spatial size the conv stack admits)
    x = jax.random.normal(kx, (2, NUM_CHANNELS, 256, 256), jnp.float32)

    out = jax.block_until_ready(jax.jit(encoder_forward)(x, params))
    ref = jax.block_until_ready(jax.jit(encoder_reference)(x, params))

    assert out.shape == (2, NLAT, 1, 1), out.shape
    err = float(jnp.max(jnp.abs(out - ref)))
    scale = float(jnp.max(jnp.abs(ref))) + 1e-6
    # Tolerance accounts for bf16 matmul inputs / bf16 inter-layer activations
    # vs. the f32 HIGHEST-precision reference.
    assert err <= 4e-2 * scale + 1e-3, f"mismatch: max|diff|={err}, scale={scale}"
    print("KERNEL_OK")
</pallas_src>

<mosaic_0001>
module attributes {stable_mosaic.version = 11 : i64} {
  func.func @_convcm_bn_kernel(%arg0: i32, %arg1: memref<8x48xbf16, #tpu.memory_space<vmem>>, %arg2: memref<48x8192xbf16, #tpu.memory_space<vmem>>, %arg3: memref<8x8192xbf16, #tpu.memory_space<vmem>>, %arg4: memref<1x8x1xf32, #tpu.memory_space<vmem>>, %arg5: memref<1x8x1xf32, #tpu.memory_space<vmem>>) attributes {dimension_semantics = [#tpu.dimension_semantics<parallel>], iteration_bounds = array<i64: 4>, scalar_prefetch = 0 : i64, scratch_operands = 0 : i64, tpu.core_type = #tpu.core_type<tc>, window_params = [{pipeline_mode = #tpu.pipeline_mode<synchronous>, transform_indices = @transform_0, window_bounds = array<i64: 8, 48>}, {transform_indices = @transform_1, window_bounds = array<i64: 48, 8192>}, {transform_indices = @transform_2, window_bounds = array<i64: 8, 8192>}, {transform_indices = @transform_3, window_bounds = array<i64: 1, 8, 1>}, {transform_indices = @transform_4, window_bounds = array<i64: 1, 8, 1>}]} {
    %c0 = arith.constant 0 : index
    %c0_0 = arith.constant 0 : index
    %0 = vector.load %arg1[%c0, %c0_0] : memref<8x48xbf16, #tpu.memory_space<vmem>>, vector<8x48xbf16>
    %c0_1 = arith.constant 0 : index
    %c0_2 = arith.constant 0 : index
    %1 = vector.load %arg2[%c0_1, %c0_2] : memref<48x8192xbf16, #tpu.memory_space<vmem>>, vector<48x8192xbf16>
    %cst = arith.constant dense<0.000000e+00> : vector<8x8192xf32>
    %2 = tpu.matmul %0, %1, %cst {dimension_numbers = #tpu.dot_dimension_numbers<[1], [0], [0], [1], [0, 0, 1, 1], [], []>} : vector<8x48xbf16>, vector<48x8192xbf16>, vector<8x8192xf32> -> vector<8x8192xf32>
    %3 = arith.truncf %2 : vector<8x8192xf32> to vector<8x8192xbf16>
    %c0_3 = arith.constant 0 : index
    %c0_4 = arith.constant 0 : index
    %4 = vector.load %arg3[%c0_3, %c0_4] : memref<8x8192xbf16, #tpu.memory_space<vmem>>, vector<8x8192xbf16>
    tpu.vector_store %arg3[%c0_3, %c0_4], %3 {strides = array<i32>} : memref<8x8192xbf16, #tpu.memory_space<vmem>>, vector<8x8192xbf16>,
    %cst_5 = arith.constant dense<0.000000e+00> : vector<8xf32>
    %5 = vector.multi_reduction <add>, %2, %cst_5 [1] : vector<8x8192xf32> to vector<8xf32>
    %6 = vector.shape_cast %5 : vector<8xf32> to vector<8x1xf32>
    %c0_6 = arith.constant 0 : index
    %c0_7 = arith.constant 0 : index
    %c0_8 = arith.constant 0 : index
    %7 = vector.load %arg4[%c0_6, %c0_7, %c0_8] : memref<1x8x1xf32, #tpu.memory_space<vmem>>, vector<1x8x1xf32>
    %8 = vector.shape_cast %7 : vector<1x8x1xf32> to vector<8x1xf32>
    %9 = vector.shape_cast %6 : vector<8x1xf32> to vector<1x8x1xf32>
    tpu.vector_store %arg4[%c0_6, %c0_7, %c0_8], %9 {strides = array<i32>} : memref<1x8x1xf32, #tpu.memory_space<vmem>>, vector<1x8x1xf32>,
    %10 = arith.mulf %2, %2 : vector<8x8192xf32>
    %cst_9 = arith.constant dense<0.000000e+00> : vector<8xf32>
    %11 = vector.multi_reduction <add>, %10, %cst_9 [1] : vector<8x8192xf32> to vector<8xf32>
    %12 = vector.shape_cast %11 : vector<8xf32> to vector<8x1xf32>
    %c0_10 = arith.constant 0 : index
    %c0_11 = arith.constant 0 : index
    %c0_12 = arith.constant 0 : index
    %13 = vector.load %arg5[%c0_10, %c0_11, %c0_12] : memref<1x8x1xf32, #tpu.memory_space<vmem>>, vector<1x8x1xf32>
    %14 = vector.shape_cast %13 : vector<1x8x1xf32> to vector<8x1xf32>
    %15 = vector.shape_cast %12 : vector<8x1xf32> to vector<1x8x1xf32>
    tpu.vector_store %arg5[%c0_10, %c0_11, %c0_12], %15 {strides = array<i32>} : memref<1x8x1xf32, #tpu.memory_space<vmem>>, vector<1x8x1xf32>,
    return
  }
  func.func @transform_0(%arg0: i32) -> (i32, i32) {
    %c0_i32 = arith.constant 0 : i32
    %c0_i32_0 = arith.constant 0 : i32
    %c0_i32_1 = arith.constant 0 : i32
    return %c0_i32, %c0_i32_0 : i32, i32
  }
  func.func @transform_1(%arg0: i32) -> (i32, i32) {
    %c0_i32 = arith.constant 0 : i32
    %c0_i32_0 = arith.constant 0 : i32
    return %c0_i32, %arg0 : i32, i32
  }
  func.func @transform_2(%arg0: i32) -> (i32, i32) {
    %c0_i32 = arith.constant 0 : i32
    %c0_i32_0 = arith.constant 0 : i32
    return %c0_i32, %arg0 : i32, i32
  }
  func.func @transform_3(%arg0: i32) -> (i32, i32, i32) {
    %c0_i32 = arith.constant 0 : i32
    %c0_i32_0 = arith.constant 0 : i32
    %c0_i32_1 = arith.constant 0 : i32
    return %arg0, %c0_i32, %c0_i32_0 : i32, i32, i32
  }
  func.func @transform_4(%arg0: i32) -> (i32, i32, i32) {
    %c0_i32 = arith.constant 0 : i32
    %c0_i32_0 = arith.constant 0 : i32
    %c0_i32_1 = arith.constant 0 : i32
    return %arg0, %c0_i32, %c0_i32_0 : i32, i32, i32
  }
}

module attributes {stable_mosaic.version = 11 : i64} {
  func.func @_convcm_bn_kernel(%arg0: i32, %arg1: memref<16x128xbf16, #tpu.memory_space<vmem>>, %arg2: memref<128x4096xbf16, #tpu.memory_space<vmem>>, %arg3: memref<16x4096xbf16, #tpu.memory_space<vmem>>, %arg4: memref<1x16x1xf32, #tpu.memory_space<vmem>>, %arg5: memref<1x16x1xf32, #tpu.memory_space<vmem>>) attributes {dimension_semantics = [#tpu.dimension_semantics<parallel>], iteration_bounds = array<i64: 2>, scalar_prefetch = 0 : i64, scratch_operands = 0 : i64, tpu.core_type = #tpu.core_type<tc>, window_params = [{pipeline_mode = #tpu.pipeline_mode<synchronous>, transform_indices = @transform_0, window_bounds = array<i64: 16, 128>}, {transform_indices = @transform_1, window_bounds = array<i64: 128, 4096>}, {transform_indices = @transform_2, window_bounds = array<i64: 16, 4096>}, {transform_indices = @transform_3, window_bounds = array<i64: 1, 16, 1>}, {transform_indices = @transform_4, window_bounds = array<i64: 1, 16, 1>}]} {
    %c0 = arith.constant 0 : index
    %c0_0 = arith.constant 0 : index
    %0 = vector.load %arg1[%c0, %c0_0] : memref<16x128xbf16, #tpu.memory_space<vmem>>, vector<16x128xbf16>
    %c0_1 = arith.constant 0 : index
    %c0_2 = arith.constant 0 : index
    %1 = vector.load %arg2[%c0_1, %c0_2] : memref<128x4096xbf16, #tpu.memory_space<vmem>>, vector<128x4096xbf16>
    %cst = arith.constant dense<0.000000e+00> : vector<16x4096xf32>
    %2 = tpu.matmul %0, %1, %cst {dimension_numbers = #tpu.dot_dimension_numbers<[1], [0], [0], [1], [0, 0, 1, 1], [], []>} : vector<16x128xbf16>, vector<128x4096xbf16>, vector<16x4096xf32> -> vector<16x4096xf32>
    %3 = arith.truncf %2 : vector<16x4096xf32> to vector<16x4096xbf16>
    %c0_3 = arith.constant 0 : index
    %c0_4 = arith.constant 0 : index
    %4 = vector.load %arg3[%c0_3, %c0_4] : memref<16x4096xbf16, #tpu.memory_space<vmem>>, vector<16x4096xbf16>
    tpu.vector_store %arg3[%c0_3, %c0_4], %3 {strides = array<i32>} : memref<16x4096xbf16, #tpu.memory_space<vmem>>, vector<16x4096xbf16>,
    %cst_5 = arith.constant dense<0.000000e+00> : vector<16xf32>
    %5 = vector.multi_reduction <add>, %2, %cst_5 [1] : vector<16x4096xf32> to vector<16xf32>
    %6 = vector.shape_cast %5 : vector<16xf32> to vector<16x1xf32>
    %c0_6 = arith.constant 0 : index
    %c0_7 = arith.constant 0 : index
    %c0_8 = arith.constant 0 : index
    %7 = vector.load %arg4[%c0_6, %c0_7, %c0_8] : memref<1x16x1xf32, #tpu.memory_space<vmem>>, vector<1x16x1xf32>
    %8 = vector.shape_cast %7 : vector<1x16x1xf32> to vector<16x1xf32>
    %9 = vector.shape_cast %6 : vector<16x1xf32> to vector<1x16x1xf32>
    tpu.vector_store %arg4[%c0_6, %c0_7, %c0_8], %9 {strides = array<i32>} : memref<1x16x1xf32, #tpu.memory_space<vmem>>, vector<1x16x1xf32>,
    %10 = arith.mulf %2, %2 : vector<16x4096xf32>
    %cst_9 = arith.constant dense<0.000000e+00> : vector<16xf32>
    %11 = vector.multi_reduction <add>, %10, %cst_9 [1] : vector<16x4096xf32> to vector<16xf32>
    %12 = vector.shape_cast %11 : vector<16xf32> to vector<16x1xf32>
    %c0_10 = arith.constant 0 : index
    %c0_11 = arith.constant 0 : index
    %c0_12 = arith.constant 0 : index
    %13 = vector.load %arg5[%c0_10, %c0_11, %c0_12] : memref<1x16x1xf32, #tpu.memory_space<vmem>>, vector<1x16x1xf32>
    %14 = vector.shape_cast %13 : vector<1x16x1xf32> to vector<16x1xf32>
    %15 = vector.shape_cast %12 : vector<16x1xf32> to vector<1x16x1xf32>
    tpu.vector_store %arg5[%c0_10, %c0_11, %c0_12], %15 {strides = array<i32>} : memref<1x16x1xf32, #tpu.memory_space<vmem>>, vector<1x16x1xf32>,
    return
  }
  func.func @transform_0(%arg0: i32) -> (i32, i32) {
    %c0_i32 = arith.constant 0 : i32
    %c0_i32_0 = arith.constant 0 : i32
    %c0_i32_1 = arith.constant 0 : i32
    return %c0_i32, %c0_i32_0 : i32, i32
  }
  func.func @transform_1(%arg0: i32) -> (i32, i32) {
    %c0_i32 = arith.constant 0 : i32
    %c0_i32_0 = arith.constant 0 : i32
    return %c0_i32, %arg0 : i32, i32
  }
  func.func @transform_2(%arg0: i32) -> (i32, i32) {
    %c0_i32 = arith.constant 0 : i32
    %c0_i32_0 = arith.constant 0 : i32
    return %c0_i32, %arg0 : i32, i32
  }
  func.func @transform_3(%arg0: i32) -> (i32, i32, i32) {
    %c0_i32 = arith.constant 0 : i32
    %c0_i32_0 = arith.constant 0 : i32
    %c0_i32_1 = arith.constant 0 : i32
    return %arg0, %c0_i32, %c0_i32_0 : i32, i32, i32
  }
  func.func @transform_4(%arg0: i32) -> (i32, i32, i32) {
    %c0_i32 = arith.constant 0 : i32
    %c0_i32_0 = arith.constant 0 : i32
    %c0_i32_1 = arith.constant 0 : i32
    return %arg0, %c0_i32, %c0_i32_0 : i32, i32, i32
  }
}

module attributes {stable_mosaic.version = 11 : i64} {
  func.func @_convcm_bn_kernel(%arg0: i32, %arg1: memref<32x256xbf16, #tpu.memory_space<vmem>>, %arg2: memref<256x1024xbf16, #tpu.memory_space<vmem>>, %arg3: memref<32x1024xbf16, #tpu.memory_space<vmem>>, %arg4: memref<1x32x1xf32, #tpu.memory_space<vmem>>, %arg5: memref<1x32x1xf32, #tpu.memory_space<vmem>>) attributes {dimension_semantics = [#tpu.dimension_semantics<parallel>], iteration_bounds = array<i64: 2>, scalar_prefetch = 0 : i64, scratch_operands = 0 : i64, tpu.core_type = #tpu.core_type<tc>, window_params = [{pipeline_mode = #tpu.pipeline_mode<synchronous>, transform_indices = @transform_0, window_bounds = array<i64: 32, 256>}, {transform_indices = @transform_1, window_bounds = array<i64: 256, 1024>}, {transform_indices = @transform_2, window_bounds = array<i64: 32, 1024>}, {transform_indices = @transform_3, window_bounds = array<i64: 1, 32, 1>}, {transform_indices = @transform_4, window_bounds = array<i64: 1, 32, 1>}]} {
    %c0 = arith.constant 0 : index
    %c0_0 = arith.constant 0 : index
    %0 = vector.load %arg1[%c0, %c0_0] : memref<32x256xbf16, #tpu.memory_space<vmem>>, vector<32x256xbf16>
    %c0_1 = arith.constant 0 : index
    %c0_2 = arith.constant 0 : index
    %1 = vector.load %arg2[%c0_1, %c0_2] : memref<256x1024xbf16, #tpu.memory_space<vmem>>, vector<256x1024xbf16>
    %cst = arith.constant dense<0.000000e+00> : vector<32x1024xf32>
    %2 = tpu.matmul %0, %1, %cst {dimension_numbers = #tpu.dot_dimension_numbers<[1], [0], [0], [1], [0, 0, 1, 1], [], []>} : vector<32x256xbf16>, vector<256x1024xbf16>, vector<32x1024xf32> -> vector<32x1024xf32>
    %3 = arith.truncf %2 : vector<32x1024xf32> to vector<32x1024xbf16>
    %c0_3 = arith.constant 0 : index
    %c0_4 = arith.constant 0 : index
    %4 = vector.load %arg3[%c0_3, %c0_4] : memref<32x1024xbf16, #tpu.memory_space<vmem>>, vector<32x1024xbf16>
    tpu.vector_store %arg3[%c0_3, %c0_4], %3 {strides = array<i32>} : memref<32x1024xbf16, #tpu.memory_space<vmem>>, vector<32x1024xbf16>,
    %cst_5 = arith.constant dense<0.000000e+00> : vector<32xf32>
    %5 = vector.multi_reduction <add>, %2, %cst_5 [1] : vector<32x1024xf32> to vector<32xf32>
    %6 = vector.shape_cast %5 : vector<32xf32> to vector<32x1xf32>
    %c0_6 = arith.constant 0 : index
    %c0_7 = arith.constant 0 : index
    %c0_8 = arith.constant 0 : index
    %7 = vector.load %arg4[%c0_6, %c0_7, %c0_8] : memref<1x32x1xf32, #tpu.memory_space<vmem>>, vector<1x32x1xf32>
    %8 = vector.shape_cast %7 : vector<1x32x1xf32> to vector<32x1xf32>
    %9 = vector.shape_cast %6 : vector<32x1xf32> to vector<1x32x1xf32>
    tpu.vector_store %arg4[%c0_6, %c0_7, %c0_8], %9 {strides = array<i32>} : memref<1x32x1xf32, #tpu.memory_space<vmem>>, vector<1x32x1xf32>,
    %10 = arith.mulf %2, %2 : vector<32x1024xf32>
    %cst_9 = arith.constant dense<0.000000e+00> : vector<32xf32>
    %11 = vector.multi_reduction <add>, %10, %cst_9 [1] : vector<32x1024xf32> to vector<32xf32>
    %12 = vector.shape_cast %11 : vector<32xf32> to vector<32x1xf32>
    %c0_10 = arith.constant 0 : index
    %c0_11 = arith.constant 0 : index
    %c0_12 = arith.constant 0 : index
    %13 = vector.load %arg5[%c0_10, %c0_11, %c0_12] : memref<1x32x1xf32, #tpu.memory_space<vmem>>, vector<1x32x1xf32>
    %14 = vector.shape_cast %13 : vector<1x32x1xf32> to vector<32x1xf32>
    %15 = vector.shape_cast %12 : vector<32x1xf32> to vector<1x32x1xf32>
    tpu.vector_store %arg5[%c0_10, %c0_11, %c0_12], %15 {strides = array<i32>} : memref<1x32x1xf32, #tpu.memory_space<vmem>>, vector<1x32x1xf32>,
    return
  }
  func.func @transform_0(%arg0: i32) -> (i32, i32) {
    %c0_i32 = arith.constant 0 : i32
    %c0_i32_0 = arith.constant 0 : i32
    %c0_i32_1 = arith.constant 0 : i32
    return %c0_i32, %c0_i32_0 : i32, i32
  }
  func.func @transform_1(%arg0: i32) -> (i32, i32) {
    %c0_i32 = arith.constant 0 : i32
    %c0_i32_0 = arith.constant 0 : i32
    return %c0_i32, %arg0 : i32, i32
  }
  func.func @transform_2(%arg0: i32) -> (i32, i32) {
    %c0_i32 = arith.constant 0 : i32
    %c0_i32_0 = arith.constant 0 : i32
    return %c0_i32, %arg0 : i32, i32
  }
  func.func @transform_3(%arg0: i32) -> (i32, i32, i32) {
    %c0_i32 = arith.constant 0 : i32
    %c0_i32_0 = arith.constant 0 : i32
    %c0_i32_1 = arith.constant 0 : i32
    return %arg0, %c0_i32, %c0_i32_0 : i32, i32, i32
  }
  func.func @transform_4(%arg0: i32) -> (i32, i32, i32) {
    %c0_i32 = arith.constant 0 : i32
    %c0_i32_0 = arith.constant 0 : i32
    %c0_i32_1 = arith.constant 0 : i32
    return %arg0, %c0_i32, %c0_i32_0 : i32, i32, i32
  }
}

module attributes {stable_mosaic.version = 11 : i64} {
  func.func @_convcm_bn_kernel(%arg0: i32, %arg1: memref<64x512xbf16, #tpu.memory_space<vmem>>, %arg2: memref<512x256xbf16, #tpu.memory_space<vmem>>, %arg3: memref<64x256xbf16, #tpu.memory_space<vmem>>, %arg4: memref<1x64x1xf32, #tpu.memory_space<vmem>>, %arg5: memref<1x64x1xf32, #tpu.memory_space<vmem>>) attributes {dimension_semantics = [#tpu.dimension_semantics<parallel>], iteration_bounds = array<i64: 2>, scalar_prefetch = 0 : i64, scratch_operands = 0 : i64, tpu.core_type = #tpu.core_type<tc>, window_params = [{pipeline_mode = #tpu.pipeline_mode<synchronous>, transform_indices = @transform_0, window_bounds = array<i64: 64, 512>}, {transform_indices = @transform_1, window_bounds = array<i64: 512, 256>}, {transform_indices = @transform_2, window_bounds = array<i64: 64, 256>}, {transform_indices = @transform_3, window_bounds = array<i64: 1, 64, 1>}, {transform_indices = @transform_4, window_bounds = array<i64: 1, 64, 1>}]} {
    %c0 = arith.constant 0 : index
    %c0_0 = arith.constant 0 : index
    %0 = vector.load %arg1[%c0, %c0_0] : memref<64x512xbf16, #tpu.memory_space<vmem>>, vector<64x512xbf16>
    %c0_1 = arith.constant 0 : index
    %c0_2 = arith.constant 0 : index
    %1 = vector.load %arg2[%c0_1, %c0_2] : memref<512x256xbf16, #tpu.memory_space<vmem>>, vector<512x256xbf16>
    %cst = arith.constant dense<0.000000e+00> : vector<64x256xf32>
    %2 = tpu.matmul %0, %1, %cst {dimension_numbers = #tpu.dot_dimension_numbers<[1], [0], [0], [1], [0, 0, 1, 1], [], []>} : vector<64x512xbf16>, vector<512x256xbf16>, vector<64x256xf32> -> vector<64x256xf32>
    %3 = arith.truncf %2 : vector<64x256xf32> to vector<64x256xbf16>
    %c0_3 = arith.constant 0 : index
    %c0_4 = arith.constant 0 : index
    %4 = vector.load %arg3[%c0_3, %c0_4] : memref<64x256xbf16, #tpu.memory_space<vmem>>, vector<64x256xbf16>
    tpu.vector_store %arg3[%c0_3, %c0_4], %3 {strides = array<i32>} : memref<64x256xbf16, #tpu.memory_space<vmem>>, vector<64x256xbf16>,
    %cst_5 = arith.constant dense<0.000000e+00> : vector<64xf32>
    %5 = vector.multi_reduction <add>, %2, %cst_5 [1] : vector<64x256xf32> to vector<64xf32>
    %6 = vector.shape_cast %5 : vector<64xf32> to vector<64x1xf32>
    %c0_6 = arith.constant 0 : index
    %c0_7 = arith.constant 0 : index
    %c0_8 = arith.constant 0 : index
    %7 = vector.load %arg4[%c0_6, %c0_7, %c0_8] : memref<1x64x1xf32, #tpu.memory_space<vmem>>, vector<1x64x1xf32>
    %8 = vector.shape_cast %7 : vector<1x64x1xf32> to vector<64x1xf32>
    %9 = vector.shape_cast %6 : vector<64x1xf32> to vector<1x64x1xf32>
    tpu.vector_store %arg4[%c0_6, %c0_7, %c0_8], %9 {strides = array<i32>} : memref<1x64x1xf32, #tpu.memory_space<vmem>>, vector<1x64x1xf32>,
    %10 = arith.mulf %2, %2 : vector<64x256xf32>
    %cst_9 = arith.constant dense<0.000000e+00> : vector<64xf32>
    %11 = vector.multi_reduction <add>, %10, %cst_9 [1] : vector<64x256xf32> to vector<64xf32>
    %12 = vector.shape_cast %11 : vector<64xf32> to vector<64x1xf32>
    %c0_10 = arith.constant 0 : index
    %c0_11 = arith.constant 0 : index
    %c0_12 = arith.constant 0 : index
    %13 = vector.load %arg5[%c0_10, %c0_11, %c0_12] : memref<1x64x1xf32, #tpu.memory_space<vmem>>, vector<1x64x1xf32>
    %14 = vector.shape_cast %13 : vector<1x64x1xf32> to vector<64x1xf32>
    %15 = vector.shape_cast %12 : vector<64x1xf32> to vector<1x64x1xf32>
    tpu.vector_store %arg5[%c0_10, %c0_11, %c0_12], %15 {strides = array<i32>} : memref<1x64x1xf32, #tpu.memory_space<vmem>>, vector<1x64x1xf32>,
    return
  }
  func.func @transform_0(%arg0: i32) -> (i32, i32) {
    %c0_i32 = arith.constant 0 : i32
    %c0_i32_0 = arith.constant 0 : i32
    %c0_i32_1 = arith.constant 0 : i32
    return %c0_i32, %c0_i32_0 : i32, i32
  }
  func.func @transform_1(%arg0: i32) -> (i32, i32) {
    %c0_i32 = arith.constant 0 : i32
    %c0_i32_0 = arith.constant 0 : i32
    return %c0_i32, %arg0 : i32, i32
  }
  func.func @transform_2(%arg0: i32) -> (i32, i32) {
    %c0_i32 = arith.constant 0 : i32
    %c0_i32_0 = arith.constant 0 : i32
    return %c0_i32, %arg0 : i32, i32
  }
  func.func @transform_3(%arg0: i32) -> (i32, i32, i32) {
    %c0_i32 = arith.constant 0 : i32
    %c0_i32_0 = arith.constant 0 : i32
    %c0_i32_1 = arith.constant 0 : i32
    return %arg0, %c0_i32, %c0_i32_0 : i32, i32, i32
  }
  func.func @transform_4(%arg0: i32) -> (i32, i32, i32) {
    %c0_i32 = arith.constant 0 : i32
    %c0_i32_0 = arith.constant 0 : i32
    %c0_i32_1 = arith.constant 0 : i32
    return %arg0, %c0_i32, %c0_i32_0 : i32, i32, i32
  }
}

</mosaic_0001>

<llo_original>
// kernel: encoder_forward.4
$region0: #{encoder_forward.4}
  #allocation0 [shape = 'u32[]', space=smem, size = 0x4, offset = 0x4, fixed_abs, tag = 'smem constant byte address 0x4 - core index']
  #allocation1 [shape = 'u32[144,128]{1,0:T(1,128)}', space=vmem, size = 0x12000, scoped, tag = 'internal scratch']
  %s0 = inlined_call_operand.vmem [shape: bf16[8,48], index: 0, kind: input, shape index: {}]
  %s1 = inlined_call_operand.vmem [shape: bf16[48,32768], index: 1, kind: input, shape index: {}]
  %s2 = inlined_call_operand.vmem [shape: bf16[8,32768], index: 2, kind: output, shape index: {0}]
  %s3 = inlined_call_operand.vmem [shape: f32[4,8,1], index: 3, kind: output, shape index: {1}]
  %s4 = inlined_call_operand.vmem [shape: f32[4,8,1], index: 4, kind: output, shape index: {2}]
  %5 = xla_tuple %s2, %s3, %s4
  %s6 = sld [smem:[#allocation0]]
  $region80: #{encoder_forward.4} parent=0
    _
  %s8 = ssub.s32 1, %s6
  %s9 = scalar_select 0, %s8, %s6
  $region1: #{encoder_forward.4} parent=0
    #allocation2 [shape = 'u8[1572864]{0}', space=vmem, size = 0x180000, scoped, tag = 'input window, operand 1']
    loop: start=0, step=1, limit=6
    $region2: #{encoder_forward.4} parent=1 // loop_pre_header
      _
    $region3: #{encoder_forward.4} parent=1 // loop_header
      %s11 = sphi 0, %s15
      %p12 = scmp.ge.s32.totalorder %s11, 6
      %s19 = sphi 0, %s19
      %s21 = sphi 0, %s19
      %s22 = sphi 0, %s21
      %s36 = sphi 0, %s22
      %s42 = sphi 0, %s44
      %s45 = sphi 0, %s42
      %s46 = sphi 0, %s45
      %s62 = sphi 0, %s46
      %s68 = sphi 0, %s70
      %s71 = sphi 0, %s68
      %s72 = sphi 0, %s71
      %s88 = sphi 0, %s72
      %s94 = sphi 0, %s96
      %s97 = sphi 0, %s94
      %s98 = sphi 0, %s97
      %s114 = sphi 0, %s98
      %s120 = sphi 0, %s122
      %s123 = sphi 0, %s120
      %s124 = sphi 0, %s123
      %s140 = sphi 0, %s124
    $region4: #{encoder_forward.4} parent=1 // loop_header_branch
      %14 = sbr.rel (%p12) target = $region8
    $region5: #{encoder_forward.4} parent=1 // loop_body
      %s16 = ssub.s32 %s11, 1
      %s17 = ssub.s32 %s11, 2
      %s18 = sadd.s32 %s11, 1
      %s20 = sadd.s32 %s19, 1
      %p23 = scmp.eq.s32.totalorder %s11, 3
      %p24 = scmp.ne.s32.totalorder %s19, %s21
      %p25 = scmp.eq.s32.totalorder %s11, 0
      %p26 = por %p24, %p25
      %p27 = scmp.ne.s32.totalorder %s19, %s21
      %p28 = scmp.eq.s32.totalorder %s16, 3
      %p29 = por %p27, %p28
      %p30 = scmp.ne.s32.totalorder %s21, %s22
      %p31 = scmp.eq.s32.totalorder %s16, 0
      %p32 = por %p30, %p31
      %p33 = scmp.ne.s32.totalorder %s21, %s22
      %p34 = scmp.eq.s32.totalorder %s17, 3
      %p35 = por %p33, %p34
      %p37 = scmp.ne.s32.totalorder %s22, %s36
      %p38 = scmp.eq.s32.totalorder %s17, 0
      %p39 = por %p37, %p38
      %s40 = ssub.s32 %s11, %s18
      %p41 = scmp.eq.s32.totalorder %s40, 0
      %s43 = sadd.s32 %s42, 1
      %s44 = scalar_select %p41, %s42, %s43
      %p47 = pneg %p41
      %p48 = scmp.eq.s32.totalorder %s11, 3
      %p49 = por %p47, %p48
      %p50 = scmp.ne.s32.totalorder %s42, %s45
      %p51 = scmp.eq.s32.totalorder %s11, 0
      %p52 = por %p50, %p51
      %p53 = scmp.ne.s32.totalorder %s42, %s45
      %p54 = scmp.eq.s32.totalorder %s16, 3
      %p55 = por %p53, %p54
      %p56 = scmp.ne.s32.totalorder %s45, %s46
      %p57 = scmp.eq.s32.totalorder %s16, 0
      %p58 = por %p56, %p57
      %p59 = scmp.ne.s32.totalorder %s45, %s46
      %p60 = scmp.eq.s32.totalorder %s17, 3
      %p61 = por %p59, %p60
      %p63 = scmp.ne.s32.totalorder %s46, %s62
      %p64 = scmp.eq.s32.totalorder %s17, 0
      %p65 = por %p63, %p64
      %s66 = ssub.s32 %s11, %s18
      %p67 = scmp.eq.s32.totalorder %s66, 0
      %s69 = sadd.s32 %s68, 1
      %s70 = scalar_select %p67, %s68, %s69
      %p73 = pneg %p67
      %p74 = scmp.eq.s32.totalorder %s11, 3
      %p75 = por %p73, %p74
      %p76 = scmp.ne.s32.totalorder %s68, %s71
      %p77 = scmp.eq.s32.totalorder %s11, 0
      %p78 = por %p76, %p77
      %p79 = scmp.ne.s32.totalorder %s68, %s71
      %p80 = scmp.eq.s32.totalorder %s16, 3
      %p81 = por %p79, %p80
      %p82 = scmp.ne.s32.totalorder %s71, %s72
      %p83 = scmp.eq.s32.totalorder %s16, 0
      %p84 = por %p82, %p83
      %p85 = scmp.ne.s32.totalorder %s71, %s72
      %p86 = scmp.eq.s32.totalorder %s17, 3
      %p87 = por %p85, %p86
      %p89 = scmp.ne.s32.totalorder %s72, %s88
      %p90 = scmp.eq.s32.totalorder %s17, 0
      %p91 = por %p89, %p90
      %s92 = ssub.s32 %s11, %s18
      %p93 = scmp.eq.s32.totalorder %s92, 0
      %s95 = sadd.s32 %s94, 1
      %s96 = scalar_select %p93, %s94, %s95
      %p99 = pneg %p93
      %p100 = scmp.eq.s32.totalorder %s11, 3
      %p101 = por %p99, %p100
      %p102 = scmp.ne.s32.totalorder %s94, %s97
      %p103 = scmp.eq.s32.totalorder %s11, 0
      %p104 = por %p102, %p103
      %p105 = scmp.ne.s32.totalorder %s94, %s97
      %p106 = scmp.eq.s32.totalorder %s16, 3
      %p107 = por %p105, %p106
      %p108 = scmp.ne.s32.totalorder %s97, %s98
      %p109 = scmp.eq.s32.totalorder %s16, 0
      %p110 = por %p108, %p109
      %p111 = scmp.ne.s32.totalorder %s97, %s98
      %p112 = scmp.eq.s32.totalorder %s17, 3
      %p113 = por %p111, %p112
      %p115 = scmp.ne.s32.totalorder %s98, %s114
      %p116 = scmp.eq.s32.totalorder %s17, 0
      %p117 = por %p115, %p116
      %s118 = ssub.s32 %s11, %s18
      %p119 = scmp.eq.s32.totalorder %s118, 0
      %s121 = sadd.s32 %s120, 1
      %s122 = scalar_select %p119, %s120, %s121
      %p125 = pneg %p119
      %p126 = scmp.eq.s32.totalorder %s11, 3
      %p127 = por %p125, %p126
      %p128 = scmp.ne.s32.totalorder %s120, %s123
      %p129 = scmp.eq.s32.totalorder %s11, 0
      %p130 = por %p128, %p129
      %p131 = scmp.ne.s32.totalorder %s120, %s123
      %p132 = scmp.eq.s32.totalorder %s16, 3
      %p133 = por %p131, %p132
      %p134 = scmp.ne.s32.totalorder %s123, %s124
      %p135 = scmp.eq.s32.totalorder %s16, 0
      %p136 = por %p134, %p135
      %p137 = scmp.ne.s32.totalorder %s123, %s124
      %p138 = scmp.eq.s32.totalorder %s17, 3
      %p139 = por %p137, %p138
      %p141 = scmp.ne.s32.totalorder %s124, %s140
      %p142 = scmp.eq.s32.totalorder %s17, 0
      %p143 = por %p141, %p142
      %p144 = scmp.le.s32.totalorder 1, %s11
      %p145 = scmp.lt.s32.totalorder %s11, 5
      %p146 = pnand %p144, %p145
      %p147 = pneg %p146
      // Predicated region
      $region9: #{encoder_forward.4} parent=5 // pred_check
        _
      $region10: #{encoder_forward.4} parent=5 // pred_check_branch
        %149 = sbr.rel (%p146) target = $region12
      $region11: #{encoder_forward.4} parent=5 // pred_region
        %s150 = ssub.s32 %s11, 1
        // Predicated region
        $region13: #{encoder_forward.4} parent=11 // pred_check
          %p151 = pneg %p32
        $region14: #{encoder_forward.4} parent=11 // pred_check_branch
          %153 = sbr.rel (%p151) target = $region16
        $region15: #{encoder_forward.4} parent=11 // pred_region
          _
        $region16: #{encoder_forward.4} parent=11 // pred_fallthru
          _
      $region12: #{encoder_forward.4} parent=5 // pred_fallthru
        _
      %p154 = scmp.lt.s32.totalorder %s11, 4
      // Predicated region
      $region17: #{encoder_forward.4} parent=5 // pred_check
        %p155 = pneg %p154
      $region18: #{encoder_forward.4} parent=5 // pred_check_branch
        %157 = sbr.rel (%p155) target = $region20
      $region19: #{encoder_forward.4} parent=5 // pred_region
        // Predicated region
        $region21: #{encoder_forward.4} parent=19 // pred_check
          %p158 = pneg %p52
        $region22: #{encoder_forward.4} parent=19 // pred_check_branch
          %160 = sbr.rel (%p158) target = $region24
        $region23: #{encoder_forward.4} parent=19 // pred_region
          %s161 = sand.u32 %s42, 1
          %s162 = sand.u32 %s42, 1
          %s163 = smul.addr %s162, 1536
          %s164 = scalar_lea.vmem [#allocation2], %s163
          %s165 = smul.u32 64, %s11
          %s166 = smul.addr %s165, 4
          %s167 = scalar_lea.vmem %s1, %s166
          // Predicated region
          $region25: #{encoder_forward.4} parent=23 // pred_check
            _
          $region26: #{encoder_forward.4} parent=23 // pred_check_branch
            %169 = sbr.rel (0) target = $region28
          $region27: #{encoder_forward.4} parent=23 // pred_region
            // Predicated region
            $region29: #{encoder_forward.4} parent=27 // pred_check
              _
            $region30: #{encoder_forward.4} parent=27 // pred_check_branch
              %171 = sbr.rel (0) target = $region32
            $region31: #{encoder_forward.4} parent=27 // pred_region
              loop: start=0, step=1, limit=1
              $region33: #{encoder_forward.4} parent=31 // loop_pre_header
                _
              $region34: #{encoder_forward.4} parent=31 // loop_header
                %s173 = sphi 0, %s177
                %p174 = scmp.ge.s32.totalorder %s173, 1
                %s178 = sphi %s167, %s167
                %s179 = sphi %s164, %s164
              $region35: #{encoder_forward.4} parent=31 // loop_header_branch
                %176 = sbr.rel (%p174) target = $region39
              $region36: #{encoder_forward.4} parent=31 // loop_body
                %v180 = vld [vmem:[%s178] sm:$0xff]
                %181 = vst [vmem:[%s179] sm:$0xff] %v180
                %v182 = vld [vmem:[%s178 + $0x8] sm:$0xff]
                %183 = vst [vmem:[%s179 + $0x8] sm:$0xff] %v182
                %v184 = vld [vmem:[%s178 + $0x10] sm:$0xff]
                %185 = vst [vmem:[%s179 + $0x10] sm:$0xff] %v184
                %v186 = vld [vmem:[%s178 + $0x18] sm:$0xff]
                %187 = vst [vmem:[%s179 + $0x18] sm:$0xff] %v186
                %v188 = vld [vmem:[%s178 + $0x20] sm:$0xff]
                %189 = vst [vmem:[%s179 + $0x20] sm:$0xff] %v188
                %v190 = vld [vmem:[%s178 + $0x28] sm:$0xff]
                %191 = vst [vmem:[%s179 + $0x28] sm:$0xff] %v190
                %v192 = vld [vmem:[%s178 + $0x30] sm:$0xff]
                %193 = vst [vmem:[%s179 + $0x30] sm:$0xff] %v192
                %v194 = vld [vmem:[%s178 + $0x38] sm:$0xff]
                %195 = vst [vmem:[%s179 + $0x38] sm:$0xff] %v194
                %v196 = vld [vmem:[%s178 + $0x40] sm:$0xff]
                %197 = vst [vmem:[%s179 + $0x40] sm:$0xff] %v196
                %v198 = vld [vmem:[%s178 + $0x48] sm:$0xff]
                %199 = vst [vmem:[%s179 + $0x48] sm:$0xff] %v198
                %v200 = vld [vmem:[%s178 + $0x50] sm:$0xff]
                %201 = vst [vmem:[%s179 + $0x50] sm:$0xff] %v200
                %v202 = vld [vmem:[%s178 + $0x58] sm:$0xff]
                %203 = vst [vmem:[%s179 + $0x58] sm:$0xff] %v202
                %v204 = vld [vmem:[%s178 + $0x60] sm:$0xff]
                %205 = vst [vmem:[%s179 + $0x60] sm:$0xff] %v204
                %v206 = vld [vmem:[%s178 + $0x68] sm:$0xff]
                %207 = vst [vmem:[%s179 + $0x68] sm:$0xff] %v206
                %v208 = vld [vmem:[%s178 + $0x70] sm:$0xff]
                %209 = vst [vmem:[%s179 + $0x70] sm:$0xff] %v208
                %v210 = vld [vmem:[%s178 + $0x78] sm:$0xff]
                %211 = vst [vmem:[%s179 + $0x78] sm:$0xff] %v210
                %v212 = vld [vmem:[%s178 + $0x80] sm:$0xff]
                %213 = vst [vmem:[%s179 + $0x80] sm:$0xff] %v212
                %v214 = vld [vmem:[%s178 + $0x88] sm:$0xff]
                %215 = vst [vmem:[%s179 + $0x88] sm:$0xff] %v214
                %v216 = vld [vmem:[%s178 + $0x90] sm:$0xff]
                %217 = vst [vmem:[%s179 + $0x90] sm:$0xff] %v216
                %v218 = vld [vmem:[%s178 + $0x98] sm:$0xff]
                %219 = vst [vmem:[%s179 + $0x98] sm:$0xff] %v218
                %v220 = vld [vmem:[%s178 + $0xa0] sm:$0xff]
                %221 = vst [vmem:[%s179 + $0xa0] sm:$0xff] %v220
                %v222 = vld [vmem:[%s178 + $0xa8] sm:$0xff]
                %223 = vst [vmem:[%s179 + $0xa8] sm:$0xff] %v222
                %v224 = vld [vmem:[%s178 + $0xb0] sm:$0xff]
                %225 = vst [vmem:[%s179 + $0xb0] sm:$0xff] %v224
                %v226 = vld [vmem:[%s178 + $0xb8] sm:$0xff]
                %227 = vst [vmem:[%s179 + $0xb8] sm:$0xff] %v226
                %v228 = vld [vmem:[%s178 + $0xc0] sm:$0xff]
                %229 = vst [vmem:[%s179 + $0xc0] sm:$0xff] %v228
                %v230 = vld [vmem:[%s178 + $0xc8] sm:$0xff]
                %231 = vst [vmem:[%s179 + $0xc8] sm:$0xff] %v230
                %v232 = vld [vmem:[%s178 + $0xd0] sm:$0xff]
                %233 = vst [vmem:[%s179 + $0xd0] sm:$0xff] %v232
                %v234 = vld [vmem:[%s178 + $0xd8] sm:$0xff]
                %235 = vst [vmem:[%s179 + $0xd8] sm:$0xff] %v234
                %v236 = vld [vmem:[%s178 + $0xe0] sm:$0xff]
                %237 = vst [vmem:[%s179 + $0xe0] sm:$0xff] %v236
                %v238 = vld [vmem:[%s178 + $0xe8] sm:$0xff]
                %239 = vst [vmem:[%s179 + $0xe8] sm:$0xff] %v238
                %v240 = vld [vmem:[%s178 + $0xf0] sm:$0xff]
                %241 = vst [vmem:[%s179 + $0xf0] sm:$0xff] %v240
                %v242 = vld [vmem:[%s178 + $0xf8] sm:$0xff]
                %243 = vst [vmem:[%s179 + $0xf8] sm:$0xff] %v242
                %v244 = vld [vmem:[%s178 + $0x400] sm:$0xff]
                %245 = vst [vmem:[%s179 + $0x100] sm:$0xff] %v244
                %v246 = vld [vmem:[%s178 + $0x408] sm:$0xff]
                %247 = vst [vmem:[%s179 + $0x108] sm:$0xff] %v246
                %v248 = vld [vmem:[%s178 + $0x410] sm:$0xff]
                %249 = vst [vmem:[%s179 + $0x110] sm:$0xff] %v248
                %v250 = vld [vmem:[%s178 + $0x418] sm:$0xff]
                %251 = vst [vmem:[%s179 + $0x118] sm:$0xff] %v250
                %v252 = vld [vmem:[%s178 + $0x420] sm:$0xff]
                %253 = vst [vmem:[%s179 + $0x120] sm:$0xff] %v252
                %v254 = vld [vmem:[%s178 + $0x428] sm:$0xff]
                %255 = vst [vmem:[%s179 + $0x128] sm:$0xff] %v254
                %v256 = vld [vmem:[%s178 + $0x430] sm:$0xff]
                %257 = vst [vmem:[%s179 + $0x130] sm:$0xff] %v256
                %v258 = vld [vmem:[%s178 + $0x438] sm:$0xff]
                %259 = vst [vmem:[%s179 + $0x138] sm:$0xff] %v258
                %v260 = vld [vmem:[%s178 + $0x440] sm:$0xff]
                %261 = vst [vmem:[%s179 + $0x140] sm:$0xff] %v260
                %v262 = vld [vmem:[%s178 + $0x448] sm:$0xff]
                %263 = vst [vmem:[%s179 + $0x148] sm:$0xff] %v262
                %v264 = vld [vmem:[%s178 + $0x450] sm:$0xff]
                %265 = vst [vmem:[%s179 + $0x150] sm:$0xff] %v264
                %v266 = vld [vmem:[%s178 + $0x458] sm:$0xff]
                %267 = vst [vmem:[%s179 + $0x158] sm:$0xff] %v266
                %v268 = vld [vmem:[%s178 + $0x460] sm:$0xff]
                %269 = vst [vmem:[%s179 + $0x160] sm:$0xff] %v268
                %v270 = vld [vmem:[%s178 + $0x468] sm:$0xff]
                %271 = vst [vmem:[%s179 + $0x168] sm:$0xff] %v270
                %v272 = vld [vmem:[%s178 + $0x470] sm:$0xff]
                %273 = vst [vmem:[%s179 + $0x170] sm:$0xff] %v272
                %v274 = vld [vmem:[%s178 + $0x478] sm:$0xff]
                %275 = vst [vmem:[%s179 + $0x178] sm:$0xff] %v274
                %v276 = vld [vmem:[%s178 + $0x480] sm:$0xff]
                %277 = vst [vmem:[%s179 + $0x180] sm:$0xff] %v276
                %v278 = vld [vmem:[%s178 + $0x488] sm:$0xff]
                %279 = vst [vmem:[%s179 + $0x188] sm:$0xff] %v278
                %v280 = vld [vmem:[%s178 + $0x490] sm:$0xff]
                %281 = vst [vmem:[%s179 + $0x190] sm:$0xff] %v280
                %v282 = vld [vmem:[%s178 + $0x498] sm:$0xff]
                %283 = vst [vmem:[%s179 + $0x198] sm:$0xff] %v282
                %v284 = vld [vmem:[%s178 + $0x4a0] sm:$0xff]
                %285 = vst [vmem:[%s179 + $0x1a0] sm:$0xff] %v284
                %v286 = vld [vmem:[%s178 + $0x4a8] sm:$0xff]
                %287 = vst [vmem:[%s179 + $0x1a8] sm:$0xff] %v286
                %v288 = vld [vmem:[%s178 + $0x4b0] sm:$0xff]
                %289 = vst [vmem:[%s179 + $0x1b0] sm:$0xff] %v288
                %v290 = vld [vmem:[%s178 + $0x4b8] sm:$0xff]
                %291 = vst [vmem:[%s179 + $0x1b8] sm:$0xff] %v290
                %v292 = vld [vmem:[%s178 + $0x4c0] sm:$0xff]
                %293 = vst [vmem:[%s179 + $0x1c0] sm:$0xff] %v292
                %v294 = vld [vmem:[%s178 + $0x4c8] sm:$0xff]
                %295 = vst [vmem:[%s179 + $0x1c8] sm:$0xff] %v294
                %v296 = vld [vmem:[%s178 + $0x4d0] sm:$0xff]
                %297 = vst [vmem:[%s179 + $0x1d0] sm:$0xff] %v296
                %v298 = vld [vmem:[%s178 + $0x4d8] sm:$0xff]
                %299 = vst [vmem:[%s179 + $0x1d8] sm:$0xff] %v298
                %v300 = vld [vmem:[%s178 + $0x4e0] sm:$0xff]
                %301 = vst [vmem:[%s179 + $0x1e0] sm:$0xff] %v300
                %v302 = vld [vmem:[%s178 + $0x4e8] sm:$0xff]
                %303 = vst [vmem:[%s179 + $0x1e8] sm:$0xff] %v302
                %v304 = vld [vmem:[%s178 + $0x4f0] sm:$0xff]
                %305 = vst [vmem:[%s179 + $0x1f0] sm:$0xff] %v304
                %v306 = vld [vmem:[%s178 + $0x4f8] sm:$0xff]
                %307 = vst [vmem:[%s179 + $0x1f8] sm:$0xff] %v306
                %v308 = vld [vmem:[%s178 + $0x800] sm:$0xff]
                %309 = vst [vmem:[%s179 + $0x200] sm:$0xff] %v308
                %v310 = vld [vmem:[%s178 + $0x808] sm:$0xff]
                %311 = vst [vmem:[%s179 + $0x208] sm:$0xff] %v310
                %v312 = vld [vmem:[%s178 + $0x810] sm:$0xff]
                %313 = vst [vmem:[%s179 + $0x210] sm:$0xff] %v312
                %v314 = vld [vmem:[%s178 + $0x818] sm:$0xff]
                %315 = vst [vmem:[%s179 + $0x218] sm:$0xff] %v314
                %v316 = vld [vmem:[%s178 + $0x820] sm:$0xff]
                %317 = vst [vmem:[%s179 + $0x220] sm:$0xff] %v316
                %v318 = vld [vmem:[%s178 + $0x828] sm:$0xff]
                %319 = vst [vmem:[%s179 + $0x228] sm:$0xff] %v318
                %v320 = vld [vmem:[%s178 + $0x830] sm:$0xff]
                %321 = vst [vmem:[%s179 + $0x230] sm:$0xff] %v320
                %v322 = vld [vmem:[%s178 + $0x838] sm:$0xff]
                %323 = vst [vmem:[%s179 + $0x238] sm:$0xff] %v322
                %v324 = vld [vmem:[%s178 + $0x840] sm:$0xff]
                %325 = vst [vmem:[%s179 + $0x240] sm:$0xff] %v324
                %v326 = vld [vmem:[%s178 + $0x848] sm:$0xff]
                %327 = vst [vmem:[%s179 + $0x248] sm:$0xff] %v326
                %v328 = vld [vmem:[%s178 + $0x850] sm:$0xff]
                %329 = vst [vmem:[%s179 + $0x250] sm:$0xff] %v328
                %v330 = vld [vmem:[%s178 + $0x858] sm:$0xff]
                %331 = vst [vmem:[%s179 + $0x258] sm:$0xff] %v330
                %v332 = vld [vmem:[%s178 + $0x860] sm:$0xff]
                %333 = vst [vmem:[%s179 + $0x260] sm:$0xff] %v332
                %v334 = vld [vmem:[%s178 + $0x868] sm:$0xff]
                %335 = vst [vmem:[%s179 + $0x268] sm:$0xff] %v334
                %v336 = vld [vmem:[%s178 + $0x870] sm:$0xff]
                %337 = vst [vmem:[%s179 + $0x270] sm:$0xff] %v336
                %v338 = vld [vmem:[%s178 + $0x878] sm:$0xff]
                %339 = vst [vmem:[%s179 + $0x278] sm:$0xff] %v338
                %v340 = vld [vmem:[%s178 + $0x880] sm:$0xff]
                %341 = vst [vmem:[%s179 + $0x280] sm:$0xff] %v340
                %v342 = vld [vmem:[%s178 + $0x888] sm:$0xff]
                %343 = vst [vmem:[%s179 + $0x288] sm:$0xff] %v342
                %v344 = vld [vmem:[%s178 + $0x890] sm:$0xff]
                %345 = vst [vmem:[%s179 + $0x290] sm:$0xff] %v344
                %v346 = vld [vmem:[%s178 + $0x898] sm:$0xff]
                %347 = vst [vmem:[%s179 + $0x298] sm:$0xff] %v346
                %v348 = vld [vmem:[%s178 + $0x8a0] sm:$0xff]
                %349 = vst [vmem:[%s179 + $0x2a0] sm:$0xff] %v348
                %v350 = vld [vmem:[%s178 + $0x8a8] sm:$0xff]
                %351 = vst [vmem:[%s179 + $0x2a8] sm:$0xff] %v350
                %v352 = vld [vmem:[%s178 + $0x8b0] sm:$0xff]
                %353 = vst [vmem:[%s179 + $0x2b0] sm:$0xff] %v352
                %v354 = vld [vmem:[%s178 + $0x8b8] sm:$0xff]
                %355 = vst [vmem:[%s179 + $0x2b8] sm:$0xff] %v354
                %v356 = vld [vmem:[%s178 + $0x8c0] sm:$0xff]
                %357 = vst [vmem:[%s179 + $0x2c0] sm:$0xff] %v356
                %v358 = vld [vmem:[%s178 + $0x8c8] sm:$0xff]
                %359 = vst [vmem:[%s179 + $0x2c8] sm:$0xff] %v358
                %v360 = vld [vmem:[%s178 + $0x8d0] sm:$0xff]
                %361 = vst [vmem:[%s179 + $0x2d0] sm:$0xff] %v360
                %v362 = vld [vmem:[%s178 + $0x8d8] sm:$0xff]
                %363 = vst [vmem:[%s179 + $0x2d8] sm:$0xff] %v362
                %v364 = vld [vmem:[%s178 + $0x8e0] sm:$0xff]
                %365 = vst [vmem:[%s179 + $0x2e0] sm:$0xff] %v364
                %v366 = vld [vmem:[%s178 + $0x8e8] sm:$0xff]
                %367 = vst [vmem:[%s179 + $0x2e8] sm:$0xff] %v366
                %v368 = vld [vmem:[%s178 + $0x8f0] sm:$0xff]
                %369 = vst [vmem:[%s179 + $0x2f0] sm:$0xff] %v368
                %v370 = vld [vmem:[%s178 + $0x8f8] sm:$0xff]
                %371 = vst [vmem:[%s179 + $0x2f8] sm:$0xff] %v370
                %v372 = vld [vmem:[%s178 + $0xc00] sm:$0xff]
                %373 = vst [vmem:[%s179 + $0x300] sm:$0xff] %v372
                %v374 = vld [vmem:[%s178 + $0xc08] sm:$0xff]
                %375 = vst [vmem:[%s179 + $0x308] sm:$0xff] %v374
                %v376 = vld [vmem:[%s178 + $0xc10] sm:$0xff]
                %377 = vst [vmem:[%s179 + $0x310] sm:$0xff] %v376
                %v378 = vld [vmem:[%s178 + $0xc18] sm:$0xff]
                %379 = vst [vmem:[%s179 + $0x318] sm:$0xff] %v378
                %v380 = vld [vmem:[%s178 + $0xc20] sm:$0xff]
                %381 = vst [vmem:[%s179 + $0x320] sm:$0xff] %v380
                %v382 = vld [vmem:[%s178 + $0xc28] sm:$0xff]
                %383 = vst [vmem:[%s179 + $0x328] sm:$0xff] %v382
                %v384 = vld [vmem:[%s178 + $0xc30] sm:$0xff]
                %385 = vst [vmem:[%s179 + $0x330] sm:$0xff] %v384
                %v386 = vld [vmem:[%s178 + $0xc38] sm:$0xff]
                %387 = vst [vmem:[%s179 + $0x338] sm:$0xff] %v386
                %v388 = vld [vmem:[%s178 + $0xc40] sm:$0xff]
                %389 = vst [vmem:[%s179 + $0x340] sm:$0xff] %v388
                %v390 = vld [vmem:[%s178 + $0xc48] sm:$0xff]
                %391 = vst [vmem:[%s179 + $0x348] sm:$0xff] %v390
                %v392 = vld [vmem:[%s178 + $0xc50] sm:$0xff]
                %393 = vst [vmem:[%s179 + $0x350] sm:$0xff] %v392
                %v394 = vld [vmem:[%s178 + $0xc58] sm:$0xff]
                %395 = vst [vmem:[%s179 + $0x358] sm:$0xff] %v394
                %v396 = vld [vmem:[%s178 + $0xc60] sm:$0xff]
                %397 = vst [vmem:[%s179 + $0x360] sm:$0xff] %v396
                %v398 = vld [vmem:[%s178 + $0xc68] sm:$0xff]
                %399 = vst [vmem:[%s179 + $0x368] sm:$0xff] %v398
                %v400 = vld [vmem:[%s178 + $0xc70] sm:$0xff]
                %401 = vst [vmem:[%s179 + $0x370] sm:$0xff] %v400
                %v402 = vld [vmem:[%s178 + $0xc78] sm:$0xff]
                %403 = vst [vmem:[%s179 + $0x378] sm:$0xff] %v402
                %v404 = vld [vmem:[%s178 + $0xc80] sm:$0xff]
                %405 = vst [vmem:[%s179 + $0x380] sm:$0xff] %v404
                %v406 = vld [vmem:[%s178 + $0xc88] sm:$0xff]
                %407 = vst [vmem:[%s179 + $0x388] sm:$0xff] %v406
                %v408 = vld [vmem:[%s178 + $0xc90] sm:$0xff]
                %409 = vst [vmem:[%s179 + $0x390] sm:$0xff] %v408
                %v410 = vld [vmem:[%s178 + $0xc98] sm:$0xff]
                %411 = vst [vmem:[%s179 + $0x398] sm:$0xff] %v410
                %v412 = vld [vmem:[%s178 + $0xca0] sm:$0xff]
                %413 = vst [vmem:[%s179 + $0x3a0] sm:$0xff] %v412
                %v414 = vld [vmem:[%s178 + $0xca8] sm:$0xff]
                %415 = vst [vmem:[%s179 + $0x3a8] sm:$0xff] %v414
                %v416 = vld [vmem:[%s178 + $0xcb0] sm:$0xff]
                %417 = vst [vmem:[%s179 + $0x3b0] sm:$0xff] %v416
                %v418 = vld [vmem:[%s178 + $0xcb8] sm:$0xff]
                %419 = vst [vmem:[%s179 + $0x3b8] sm:$0xff] %v418
                %v420 = vld [vmem:[%s178 + $0xcc0] sm:$0xff]
                %421 = vst [vmem:[%s179 + $0x3c0] sm:$0xff] %v420
                %v422 = vld [vmem:[%s178 + $0xcc8] sm:$0xff]
                %423 = vst [vmem:[%s179 + $0x3c8] sm:$0xff] %v422
                %v424 = vld [vmem:[%s178 + $0xcd0] sm:$0xff]
                %425 = vst [vmem:[%s179 + $0x3d0] sm:$0xff] %v424
                %v426 = vld [vmem:[%s178 + $0xcd8] sm:$0xff]
                %427 = vst [vmem:[%s179 + $0x3d8] sm:$0xff] %v426
                %v428 = vld [vmem:[%s178 + $0xce0] sm:$0xff]
                %429 = vst [vmem:[%s179 + $0x3e0] sm:$0xff] %v428
                %v430 = vld [vmem:[%s178 + $0xce8] sm:$0xff]
                %431 = vst [vmem:[%s179 + $0x3e8] sm:$0xff] %v430
                %v432 = vld [vmem:[%s178 + $0xcf0] sm:$0xff]
                %433 = vst [vmem:[%s179 + $0x3f0] sm:$0xff] %v432
                %v434 = vld [vmem:[%s178 + $0xcf8] sm:$0xff]
                %435 = vst [vmem:[%s179 + $0x3f8] sm:$0xff] %v434
                %v436 = vld [vmem:[%s178 + $0x1000] sm:$0xff]
                %437 = vst [vmem:[%s179 + $0x400] sm:$0xff] %v436
                %v438 = vld [vmem:[%s178 + $0x1008] sm:$0xff]
                %439 = vst [vmem:[%s179 + $0x408] sm:$0xff] %v438
                %v440 = vld [vmem:[%s178 + $0x1010] sm:$0xff]
                %441 = vst [vmem:[%s179 + $0x410] sm:$0xff] %v440
                %v442 = vld [vmem:[%s178 + $0x1018] sm:$0xff]
                %443 = vst [vmem:[%s179 + $0x418] sm:$0xff] %v442
                %v444 = vld [vmem:[%s178 + $0x1020] sm:$0xff]
                %445 = vst [vmem:[%s179 + $0x420] sm:$0xff] %v444
                %v446 = vld [vmem:[%s178 + $0x1028] sm:$0xff]
                %447 = vst [vmem:[%s179 + $0x428] sm:$0xff] %v446
                %v448 = vld [vmem:[%s178 + $0x1030] sm:$0xff]
                %449 = vst [vmem:[%s179 + $0x430] sm:$0xff] %v448
                %v450 = vld [vmem:[%s178 + $0x1038] sm:$0xff]
                %451 = vst [vmem:[%s179 + $0x438] sm:$0xff] %v450
                %v452 = vld [vmem:[%s178 + $0x1040] sm:$0xff]
                %453 = vst [vmem:[%s179 + $0x440] sm:$0xff] %v452
                %v454 = vld [vmem:[%s178 + $0x1048] sm:$0xff]
                %455 = vst [vmem:[%s179 + $0x448] sm:$0xff] %v454
                %v456 = vld [vmem:[%s178 + $0x1050] sm:$0xff]
                %457 = vst [vmem:[%s179 + $0x450] sm:$0xff] %v456
                %v458 = vld [vmem:[%s178 + $0x1058] sm:$0xff]
                %459 = vst [vmem:[%s179 + $0x458] sm:$0xff] %v458
                %v460 = vld [vmem:[%s178 + $0x1060] sm:$0xff]
                %461 = vst [vmem:[%s179 + $0x460] sm:$0xff] %v460
                %v462 = vld [vmem:[%s178 + $0x1068] sm:$0xff]
                %463 = vst [vmem:[%s179 + $0x468] sm:$0xff] %v462
                %v464 = vld [vmem:[%s178 + $0x1070] sm:$0xff]
                %465 = vst [vmem:[%s179 + $0x470] sm:$0xff] %v464
                %v466 = vld [vmem:[%s178 + $0x1078] sm:$0xff]
                %467 = vst [vmem:[%s179 + $0x478] sm:$0xff] %v466
                %v468 = vld [vmem:[%s178 + $0x1080] sm:$0xff]
                %469 = vst [vmem:[%s179 + $0x480] sm:$0xff] %v468
                %v470 = vld [vmem:[%s178 + $0x1088] sm:$0xff]
                %471 = vst [vmem:[%s179 + $0x488] sm:$0xff] %v470
                %v472 = vld [vmem:[%s178 + $0x1090] sm:$0xff]
                %473 = vst [vmem:[%s179 + $0x490] sm:$0xff] %v472
                %v474 = vld [vmem:[%s178 + $0x1098] sm:$0xff]
                %475 = vst [vmem:[%s179 + $0x498] sm:$0xff] %v474
                %v476 = vld [vmem:[%s178 + $0x10a0] sm:$0xff]
                %477 = vst [vmem:[%s179 + $0x4a0] sm:$0xff] %v476
                %v478 = vld [vmem:[%s178 + $0x10a8] sm:$0xff]
                %479 = vst [vmem:[%s179 + $0x4a8] sm:$0xff] %v478
                %v480 = vld [vmem:[%s178 + $0x10b0] sm:$0xff]
                %481 = vst [vmem:[%s179 + $0x4b0] sm:$0xff] %v480
                %v482 = vld [vmem:[%s178 + $0x10b8] sm:$0xff]
                %483 = vst [vmem:[%s179 + $0x4b8] sm:$0xff] %v482
                %v484 = vld [vmem:[%s178 + $0x10c0] sm:$0xff]
                %485 = vst [vmem:[%s179 + $0x4c0] sm:$0xff] %v484
                %v486 = vld [vmem:[%s178 + $0x10c8] sm:$0xff]
                %487 = vst [vmem:[%s179 + $0x4c8] sm:$0xff] %v486
                %v488 = vld [vmem:[%s178 + $0x10d0] sm:$0xff]
                %489 = vst [vmem:[%s179 + $0x4d0] sm:$0xff] %v488
                %v490 = vld [vmem:[%s178 + $0x10d8] sm:$0xff]
                %491 = vst [vmem:[%s179 + $0x4d8] sm:$0xff] %v490
                %v492 = vld [vmem:[%s178 + $0x10e0] sm:$0xff]
                %493 = vst [vmem:[%s179 + $0x4e0] sm:$0xff] %v492
                %v494 = vld [vmem:[%s178 + $0x10e8] sm:$0xff]
                %495 = vst [vmem:[%s179 + $0x4e8] sm:$0xff] %v494
                %v496 = vld [vmem:[%s178 + $0x10f0] sm:$0xff]
                %497 = vst [vmem:[%s179 + $0x4f0] sm:$0xff] %v496
                %v498 = vld [vmem:[%s178 + $0x10f8] sm:$0xff]
                %499 = vst [vmem:[%s179 + $0x4f8] sm:$0xff] %v498
                %v500 = vld [vmem:[%s178 + $0x1400] sm:$0xff]
                %501 = vst [vmem:[%s179 + $0x500] sm:$0xff] %v500
                %v502 = vld [vmem:[%s178 + $0x1408] sm:$0xff]
                %503 = vst [vmem:[%s179 + $0x508] sm:$0xff] %v502
                %v504 = vld [vmem:[%s178 + $0x1410] sm:$0xff]
                %505 = vst [vmem:[%s179 + $0x510] sm:$0xff] %v504
                %v506 = vld [vmem:[%s178 + $0x1418] sm:$0xff]
                %507 = vst [vmem:[%s179 + $0x518] sm:$0xff] %v506
                %v508 = vld [vmem:[%s178 + $0x1420] sm:$0xff]
                %509 = vst [vmem:[%s179 + $0x520] sm:$0xff] %v508
                %v510 = vld [vmem:[%s178 + $0x1428] sm:$0xff]
                %511 = vst [vmem:[%s179 + $0x528] sm:$0xff] %v510
                %v512 = vld [vmem:[%s178 + $0x1430] sm:$0xff]
                %513 = vst [vmem:[%s179 + $0x530] sm:$0xff] %v512
                %v514 = vld [vmem:[%s178 + $0x1438] sm:$0xff]
                %515 = vst [vmem:[%s179 + $0x538] sm:$0xff] %v514
                %v516 = vld [vmem:[%s178 + $0x1440] sm:$0xff]
                %517 = vst [vmem:[%s179 + $0x540] sm:$0xff] %v516
                %v518 = vld [vmem:[%s178 + $0x1448] sm:$0xff]
                %519 = vst [vmem:[%s179 + $0x548] sm:$0xff] %v518
                %v520 = vld [vmem:[%s178 + $0x1450] sm:$0xff]
                %521 = vst [vmem:[%s179 + $0x550] sm:$0xff] %v520
                %v522 = vld [vmem:[%s178 + $0x1458] sm:$0xff]
                %523 = vst [vmem:[%s179 + $0x558] sm:$0xff] %v522
                %v524 = vld [vmem:[%s178 + $0x1460] sm:$0xff]
                %525 = vst [vmem:[%s179 + $0x560] sm:$0xff] %v524
                %v526 = vld [vmem:[%s178 + $0x1468] sm:$0xff]
                %527 = vst [vmem:[%s179 + $0x568] sm:$0xff] %v526
                %v528 = vld [vmem:[%s178 + $0x1470] sm:$0xff]
                %529 = vst [vmem:[%s179 + $0x570] sm:$0xff] %v528
                %v530 = vld [vmem:[%s178 + $0x1478] sm:$0xff]
                %531 = vst [vmem:[%s179 + $0x578] sm:$0xff] %v530
                %v532 = vld [vmem:[%s178 + $0x1480] sm:$0xff]
                %533 = vst [vmem:[%s179 + $0x580] sm:$0xff] %v532
                %v534 = vld [vmem:[%s178 + $0x1488] sm:$0xff]
                %535 = vst [vmem:[%s179 + $0x588] sm:$0xff] %v534
                %v536 = vld [vmem:[%s178 + $0x1490] sm:$0xff]
                %537 = vst [vmem:[%s179 + $0x590] sm:$0xff] %v536
                %v538 = vld [vmem:[%s178 + $0x1498] sm:$0xff]
                %539 = vst [vmem:[%s179 + $0x598] sm:$0xff] %v538
                %v540 = vld [vmem:[%s178 + $0x14a0] sm:$0xff]
                %541 = vst [vmem:[%s179 + $0x5a0] sm:$0xff] %v540
                %v542 = vld [vmem:[%s178 + $0x14a8] sm:$0xff]
                %543 = vst [vmem:[%s179 + $0x5a8] sm:$0xff] %v542
                %v544 = vld [vmem:[%s178 + $0x14b0] sm:$0xff]
                %545 = vst [vmem:[%s179 + $0x5b0] sm:$0xff] %v544
                %v546 = vld [vmem:[%s178 + $0x14b8] sm:$0xff]
                %547 = vst [vmem:[%s179 + $0x5b8] sm:$0xff] %v546
                %v548 = vld [vmem:[%s178 + $0x14c0] sm:$0xff]
                %549 = vst [vmem:[%s179 + $0x5c0] sm:$0xff] %v548
                %v550 = vld [vmem:[%s178 + $0x14c8] sm:$0xff]
                %551 = vst [vmem:[%s179 + $0x5c8] sm:$0xff] %v550
                %v552 = vld [vmem:[%s178 + $0x14d0] sm:$0xff]
                %553 = vst [vmem:[%s179 + $0x5d0] sm:$0xff] %v552
                %v554 = vld [vmem:[%s178 + $0x14d8] sm:$0xff]
                %555 = vst [vmem:[%s179 + $0x5d8] sm:$0xff] %v554
                %v556 = vld [vmem:[%s178 + $0x14e0] sm:$0xff]
                %557 = vst [vmem:[%s179 + $0x5e0] sm:$0xff] %v556
                %v558 = vld [vmem:[%s178 + $0x14e8] sm:$0xff]
                %559 = vst [vmem:[%s179 + $0x5e8] sm:$0xff] %v558
                %v560 = vld [vmem:[%s178 + $0x14f0] sm:$0xff]
                %561 = vst [vmem:[%s179 + $0x5f0] sm:$0xff] %v560
                %v562 = vld [vmem:[%s178 + $0x14f8] sm:$0xff]
                %563 = vst [vmem:[%s179 + $0x5f8] sm:$0xff] %v562
              $region37: #{encoder_forward.4} parent=31 // loop_footer
                %s177 = sadd.s32 1, %s173
              $region38: #{encoder_forward.4} parent=31 // loop_footer_branch
                %172 = sbr.rel target = $region34
              $region39: #{encoder_forward.4} parent=31 // loop_exit
                _
            $region32: #{encoder_forward.4} parent=27 // pred_fallthru
              _
            // Predicated region
            $region40: #{encoder_forward.4} parent=27 // pred_check
              _
            $region41: #{encoder_forward.4} parent=27 // pred_check_branch
              %565 = sbr.rel target = $region43
            $region42: #{encoder_forward.4} parent=27 // pred_region
              _
            $region43: #{encoder_forward.4} parent=27 // pred_fallthru
              _
          $region28: #{encoder_forward.4} parent=23 // pred_fallthru
            _
          %566 = vnop
        $region24: #{encoder_forward.4} parent=19 // pred_fallthru
          _
      $region20: #{encoder_forward.4} parent=5 // pred_fallthru
        _
      %p567 = scmp.le.s32.totalorder 1, %s11
      %p568 = scmp.lt.s32.totalorder %s11, 5
      %p569 = pnand %p567, %p568
      %p570 = pneg %p569
      // Predicated region
      $region44: #{encoder_forward.4} parent=5 // pred_check
        _
      $region45: #{encoder_forward.4} parent=5 // pred_check_branch
        %572 = sbr.rel (%p569) target = $region47
      $region46: #{encoder_forward.4} parent=5 // pred_region
        %s573 = ssub.s32 %s11, 1
        %s574 = sand.u32 %s45, 1
        %s575 = sand.u32 %s45, 1
        %s576 = smul.addr %s575, 1536
        %s577 = scalar_lea.vmem [#allocation2], %s576
        // Predicated region
        $region48: #{encoder_forward.4} parent=46 // pred_check
          %p578 = pneg %p58
        $region49: #{encoder_forward.4} parent=46 // pred_check_branch
          %580 = sbr.rel (%p578) target = $region51
        $region50: #{encoder_forward.4} parent=46 // pred_region
          _
        $region51: #{encoder_forward.4} parent=46 // pred_fallthru
          _
        %p581 = pneg %p32
        %p582 = pneg %p29
        %s583 = sand.u32 %s45, 1
        %s584 = sand.u32 %s45, 1
        %s585 = smul.addr %s584, 1536
        %s586 = scalar_lea.vmem [#allocation2], %s585
        %p587 = pneg %p58
        %p588 = pneg %p55
        %p589 = pneg %p84
        %p590 = pneg %p81
        %s591 = smul.u32 64, %s16
        %p592 = scmp.lt.s32.totalorder %s591, 255
        %s593 = scalar_select %p592, %s591, 255
        %s594 = smul.addr %s593, 4
        %s595 = scalar_lea.vmem %s2, %s594
        %p596 = pneg %p110
        %p597 = pneg %p107
        %p598 = scmp.lt.s32.totalorder %s16, 3
        %s599 = scalar_select %p598, %s16, 3
        %s600 = smul.addr %s599, 8
        %s601 = scalar_lea.vmem %s3, %s600
        %p602 = pneg %p136
        %p603 = pneg %p133
        %p604 = scmp.lt.s32.totalorder %s16, 3
        %s605 = scalar_select %p604, %s16, 3
        %s606 = smul.addr %s605, 8
        %s607 = scalar_lea.vmem %s4, %s606
        %s608 = smul.u32 64, %s16
        %s609 = smul.u32 64, %s16
        %p610 = scmp.lt.s32.totalorder %s609, 255
        %s611 = scalar_select %p610, %s609, 255
        %s612 = smul.addr %s611, 4
        %s613 = scalar_lea.vmem %s2, %s612
        %s614 = smul.u32 64, %s16
        %p615 = scmp.lt.s32.totalorder %s16, 3
        %s616 = scalar_select %p615, %s16, 3
        %s617 = smul.addr %s616, 8
        %s618 = scalar_lea.vmem %s3, %s617
        %p619 = scmp.lt.s32.totalorder %s16, 3
        %s620 = scalar_select %p619, %s16, 3
        %s621 = smul.addr %s620, 8
        %s622 = scalar_lea.vmem %s4, %s621
        %v624 = vld [vmem:[%s0] sm:$0xf]
        %v625 = vld [vmem:[%s577] sm:$0xff]
        %v626 = vld [vmem:[%s577 + $0x8] sm:$0xff]
        %v627 = vld [vmem:[%s577 + $0x10] sm:$0xff]
        %v628 = vld [vmem:[%s577 + $0x18] sm:$0xff]
        %v629 = vld [vmem:[%s577 + $0x20] sm:$0xff]
        %v630 = vld [vmem:[%s577 + $0x28] sm:$0xff]
        %v631 = vld [vmem:[%s577 + $0x30] sm:$0xff]
        %v632 = vld [vmem:[%s577 + $0x38] sm:$0xff]
        %v633 = vld [vmem:[%s577 + $0x40] sm:$0xff]
        %v634 = vld [vmem:[%s577 + $0x48] sm:$0xff]
        %v635 = vld [vmem:[%s577 + $0x50] sm:$0xff]
        %v636 = vld [vmem:[%s577 + $0x58] sm:$0xff]
        %v637 = vld [vmem:[%s577 + $0x60] sm:$0xff]
        %v638 = vld [vmem:[%s577 + $0x68] sm:$0xff]
        %v639 = vld [vmem:[%s577 + $0x70] sm:$0xff]
        %v640 = vld [vmem:[%s577 + $0x78] sm:$0xff]
        %v641 = vld [vmem:[%s577 + $0x80] sm:$0xff]
        %v642 = vld [vmem:[%s577 + $0x88] sm:$0xff]
        %v643 = vld [vmem:[%s577 + $0x90] sm:$0xff]
        %v644 = vld [vmem:[%s577 + $0x98] sm:$0xff]
        %v645 = vld [vmem:[%s577 + $0xa0] sm:$0xff]
        %v646 = vld [vmem:[%s577 + $0xa8] sm:$0xff]
        %v647 = vld [vmem:[%s577 + $0xb0] sm:$0xff]
        %v648 = vld [vmem:[%s577 + $0xb8] sm:$0xff]
        %v649 = vld [vmem:[%s577 + $0xc0] sm:$0xff]
        %v650 = vld [vmem:[%s577 + $0xc8] sm:$0xff]
        %v651 = vld [vmem:[%s577 + $0xd0] sm:$0xff]
        %v652 = vld [vmem:[%s577 + $0xd8] sm:$0xff]
        %v653 = vld [vmem:[%s577 + $0xe0] sm:$0xff]
        %v654 = vld [vmem:[%s577 + $0xe8] sm:$0xff]
        %v655 = vld [vmem:[%s577 + $0xf0] sm:$0xff]
        %v656 = vld [vmem:[%s577 + $0xf8] sm:$0xff]
        %v657 = vld [vmem:[%s577 + $0x100] sm:$0xff]
        %v658 = vld [vmem:[%s577 + $0x108] sm:$0xff]
        %v659 = vld [vmem:[%s577 + $0x110] sm:$0xff]
        %v660 = vld [vmem:[%s577 + $0x118] sm:$0xff]
        %v661 = vld [vmem:[%s577 + $0x120] sm:$0xff]
        %v662 = vld [vmem:[%s577 + $0x128] sm:$0xff]
        %v663 = vld [vmem:[%s577 + $0x130] sm:$0xff]
        %v664 = vld [vmem:[%s577 + $0x138] sm:$0xff]
        %v665 = vld [vmem:[%s577 + $0x140] sm:$0xff]
        %v666 = vld [vmem:[%s577 + $0x148] sm:$0xff]
        %v667 = vld [vmem:[%s577 + $0x150] sm:$0xff]
        %v668 = vld [vmem:[%s577 + $0x158] sm:$0xff]
        %v669 = vld [vmem:[%s577 + $0x160] sm:$0xff]
        %v670 = vld [vmem:[%s577 + $0x168] sm:$0xff]
        %v671 = vld [vmem:[%s577 + $0x170] sm:$0xff]
        %v672 = vld [vmem:[%s577 + $0x178] sm:$0xff]
        %v673 = vld [vmem:[%s577 + $0x180] sm:$0xff]
        %v674 = vld [vmem:[%s577 + $0x188] sm:$0xff]
        %v675 = vld [vmem:[%s577 + $0x190] sm:$0xff]
        %v676 = vld [vmem:[%s577 + $0x198] sm:$0xff]
        %v677 = vld [vmem:[%s577 + $0x1a0] sm:$0xff]
        %v678 = vld [vmem:[%s577 + $0x1a8] sm:$0xff]
        %v679 = vld [vmem:[%s577 + $0x1b0] sm:$0xff]
        %v680 = vld [vmem:[%s577 + $0x1b8] sm:$0xff]
        %v681 = vld [vmem:[%s577 + $0x1c0] sm:$0xff]
        %v682 = vld [vmem:[%s577 + $0x1c8] sm:$0xff]
        %v683 = vld [vmem:[%s577 + $0x1d0] sm:$0xff]
        %v684 = vld [vmem:[%s577 + $0x1d8] sm:$0xff]
        %v685 = vld [vmem:[%s577 + $0x1e0] sm:$0xff]
        %v686 = vld [vmem:[%s577 + $0x1e8] sm:$0xff]
        %v687 = vld [vmem:[%s577 + $0x1f0] sm:$0xff]
        %v688 = vld [vmem:[%s577 + $0x1f8] sm:$0xff]
        %v689 = vld [vmem:[%s577 + $0x200] sm:$0xff]
        %v690 = vld [vmem:[%s577 + $0x208] sm:$0xff]
        %v691 = vld [vmem:[%s577 + $0x210] sm:$0xff]
        %v692 = vld [vmem:[%s577 + $0x218] sm:$0xff]
        %v693 = vld [vmem:[%s577 + $0x220] sm:$0xff]
        %v694 = vld [vmem:[%s577 + $0x228] sm:$0xff]
        %v695 = vld [vmem:[%s577 + $0x230] sm:$0xff]
        %v696 = vld [vmem:[%s577 + $0x238] sm:$0xff]
        %v697 = vld [vmem:[%s577 + $0x240] sm:$0xff]
        %v698 = vld [vmem:[%s577 + $0x248] sm:$0xff]
        %v699 = vld [vmem:[%s577 + $0x250] sm:$0xff]
        %v700 = vld [vmem:[%s577 + $0x258] sm:$0xff]
        %v701 = vld [vmem:[%s577 + $0x260] sm:$0xff]
        %v702 = vld [vmem:[%s577 + $0x268] sm:$0xff]
        %v703 = vld [vmem:[%s577 + $0x270] sm:$0xff]
        %v704 = vld [vmem:[%s577 + $0x278] sm:$0xff]
        %v705 = vld [vmem:[%s577 + $0x280] sm:$0xff]
        %v706 = vld [vmem:[%s577 + $0x288] sm:$0xff]
        %v707 = vld [vmem:[%s577 + $0x290] sm:$0xff]
        %v708 = vld [vmem:[%s577 + $0x298] sm:$0xff]
        %v709 = vld [vmem:[%s577 + $0x2a0] sm:$0xff]
        %v710 = vld [vmem:[%s577 + $0x2a8] sm:$0xff]
        %v711 = vld [vmem:[%s577 + $0x2b0] sm:$0xff]
        %v712 = vld [vmem:[%s577 + $0x2b8] sm:$0xff]
        %v713 = vld [vmem:[%s577 + $0x2c0] sm:$0xff]
        %v714 = vld [vmem:[%s577 + $0x2c8] sm:$0xff]
        %v715 = vld [vmem:[%s577 + $0x2d0] sm:$0xff]
        %v716 = vld [vmem:[%s577 + $0x2d8] sm:$0xff]
        %v717 = vld [vmem:[%s577 + $0x2e0] sm:$0xff]
        %v718 = vld [vmem:[%s577 + $0x2e8] sm:$0xff]
        %v719 = vld [vmem:[%s577 + $0x2f0] sm:$0xff]
        %v720 = vld [vmem:[%s577 + $0x2f8] sm:$0xff]
        %v721 = vld [vmem:[%s577 + $0x300] sm:$0xff]
        %v722 = vld [vmem:[%s577 + $0x308] sm:$0xff]
        %v723 = vld [vmem:[%s577 + $0x310] sm:$0xff]
        %v724 = vld [vmem:[%s577 + $0x318] sm:$0xff]
        %v725 = vld [vmem:[%s577 + $0x320] sm:$0xff]
        %v726 = vld [vmem:[%s577 + $0x328] sm:$0xff]
        %v727 = vld [vmem:[%s577 + $0x330] sm:$0xff]
        %v728 = vld [vmem:[%s577 + $0x338] sm:$0xff]
        %v729 = vld [vmem:[%s577 + $0x340] sm:$0xff]
        %v730 = vld [vmem:[%s577 + $0x348] sm:$0xff]
        %v731 = vld [vmem:[%s577 + $0x350] sm:$0xff]
        %v732 = vld [vmem:[%s577 + $0x358] sm:$0xff]
        %v733 = vld [vmem:[%s577 + $0x360] sm:$0xff]
        %v734 = vld [vmem:[%s577 + $0x368] sm:$0xff]
        %v735 = vld [vmem:[%s577 + $0x370] sm:$0xff]
        %v736 = vld [vmem:[%s577 + $0x378] sm:$0xff]
        %v737 = vld [vmem:[%s577 + $0x380] sm:$0xff]
        %v738 = vld [vmem:[%s577 + $0x388] sm:$0xff]
        %v739 = vld [vmem:[%s577 + $0x390] sm:$0xff]
        %v740 = vld [vmem:[%s577 + $0x398] sm:$0xff]
        %v741 = vld [vmem:[%s577 + $0x3a0] sm:$0xff]
        %v742 = vld [vmem:[%s577 + $0x3a8] sm:$0xff]
        %v743 = vld [vmem:[%s577 + $0x3b0] sm:$0xff]
        %v744 = vld [vmem:[%s577 + $0x3b8] sm:$0xff]
        %v745 = vld [vmem:[%s577 + $0x3c0] sm:$0xff]
        %v746 = vld [vmem:[%s577 + $0x3c8] sm:$0xff]
        %v747 = vld [vmem:[%s577 + $0x3d0] sm:$0xff]
        %v748 = vld [vmem:[%s577 + $0x3d8] sm:$0xff]
        %v749 = vld [vmem:[%s577 + $0x3e0] sm:$0xff]
        %v750 = vld [vmem:[%s577 + $0x3e8] sm:$0xff]
        %v751 = vld [vmem:[%s577 + $0x3f0] sm:$0xff]
        %v752 = vld [vmem:[%s577 + $0x3f8] sm:$0xff]
        %v753 = vld [vmem:[%s577 + $0x400] sm:$0xff]
        %v754 = vld [vmem:[%s577 + $0x408] sm:$0xff]
        %v755 = vld [vmem:[%s577 + $0x410] sm:$0xff]
        %v756 = vld [vmem:[%s577 + $0x418] sm:$0xff]
        %v757 = vld [vmem:[%s577 + $0x420] sm:$0xff]
        %v758 = vld [vmem:[%s577 + $0x428] sm:$0xff]
        %v759 = vld [vmem:[%s577 + $0x430] sm:$0xff]
        %v760 = vld [vmem:[%s577 + $0x438] sm:$0xff]
        %v761 = vld [vmem:[%s577 + $0x440] sm:$0xff]
        %v762 = vld [vmem:[%s577 + $0x448] sm:$0xff]
        %v763 = vld [vmem:[%s577 + $0x450] sm:$0xff]
        %v764 = vld [vmem:[%s577 + $0x458] sm:$0xff]
        %v765 = vld [vmem:[%s577 + $0x460] sm:$0xff]
        %v766 = vld [vmem:[%s577 + $0x468] sm:$0xff]
        %v767 = vld [vmem:[%s577 + $0x470] sm:$0xff]
        %v768 = vld [vmem:[%s577 + $0x478] sm:$0xff]
        %v769 = vld [vmem:[%s577 + $0x480] sm:$0xff]
        %v770 = vld [vmem:[%s577 + $0x488] sm:$0xff]
        %v771 = vld [vmem:[%s577 + $0x490] sm:$0xff]
        %v772 = vld [vmem:[%s577 + $0x498] sm:$0xff]
        %v773 = vld [vmem:[%s577 + $0x4a0] sm:$0xff]
        %v774 = vld [vmem:[%s577 + $0x4a8] sm:$0xff]
        %v775 = vld [vmem:[%s577 + $0x4b0] sm:$0xff]
        %v776 = vld [vmem:[%s577 + $0x4b8] sm:$0xff]
        %v777 = vld [vmem:[%s577 + $0x4c0] sm:$0xff]
        %v778 = vld [vmem:[%s577 + $0x4c8] sm:$0xff]
        %v779 = vld [vmem:[%s577 + $0x4d0] sm:$0xff]
        %v780 = vld [vmem:[%s577 + $0x4d8] sm:$0xff]
        %v781 = vld [vmem:[%s577 + $0x4e0] sm:$0xff]
        %v782 = vld [vmem:[%s577 + $0x4e8] sm:$0xff]
        %v783 = vld [vmem:[%s577 + $0x4f0] sm:$0xff]
        %v784 = vld [vmem:[%s577 + $0x4f8] sm:$0xff]
        %v785 = vld [vmem:[%s577 + $0x500] sm:$0xff]
        %v786 = vld [vmem:[%s577 + $0x508] sm:$0xff]
        %v787 = vld [vmem:[%s577 + $0x510] sm:$0xff]
        %v788 = vld [vmem:[%s577 + $0x518] sm:$0xff]
        %v789 = vld [vmem:[%s577 + $0x520] sm:$0xff]
        %v790 = vld [vmem:[%s577 + $0x528] sm:$0xff]
        %v791 = vld [vmem:[%s577 + $0x530] sm:$0xff]
        %v792 = vld [vmem:[%s577 + $0x538] sm:$0xff]
        %v793 = vld [vmem:[%s577 + $0x540] sm:$0xff]
        %v794 = vld [vmem:[%s577 + $0x548] sm:$0xff]
        %v795 = vld [vmem:[%s577 + $0x550] sm:$0xff]
        %v796 = vld [vmem:[%s577 + $0x558] sm:$0xff]
        %v797 = vld [vmem:[%s577 + $0x560] sm:$0xff]
        %v798 = vld [vmem:[%s577 + $0x568] sm:$0xff]
        %v799 = vld [vmem:[%s577 + $0x570] sm:$0xff]
        %v800 = vld [vmem:[%s577 + $0x578] sm:$0xff]
        %v801 = vld [vmem:[%s577 + $0x580] sm:$0xff]
        %v802 = vld [vmem:[%s577 + $0x588] sm:$0xff]
        %v803 = vld [vmem:[%s577 + $0x590] sm:$0xff]
        %v804 = vld [vmem:[%s577 + $0x598] sm:$0xff]
        %v805 = vld [vmem:[%s577 + $0x5a0] sm:$0xff]
        %v806 = vld [vmem:[%s577 + $0x5a8] sm:$0xff]
        %v807 = vld [vmem:[%s577 + $0x5b0] sm:$0xff]
        %v808 = vld [vmem:[%s577 + $0x5b8] sm:$0xff]
        %v809 = vld [vmem:[%s577 + $0x5c0] sm:$0xff]
        %v810 = vld [vmem:[%s577 + $0x5c8] sm:$0xff]
        %v811 = vld [vmem:[%s577 + $0x5d0] sm:$0xff]
        %v812 = vld [vmem:[%s577 + $0x5d8] sm:$0xff]
        %v813 = vld [vmem:[%s577 + $0x5e0] sm:$0xff]
        %v814 = vld [vmem:[%s577 + $0x5e8] sm:$0xff]
        %v815 = vld [vmem:[%s577 + $0x5f0] sm:$0xff]
        %v816 = vld [vmem:[%s577 + $0x5f8] sm:$0xff]
        %v1009 = vunpack.c.l.b16 %v625
        %v1010 = vunpack.c.h.b16 %v625
        %v1011 = vunpack.c.l.b16 %v626
        %v1012 = vunpack.c.h.b16 %v626
        %v1013 = vunpack.c.l.b16 %v627
        %v1014 = vunpack.c.h.b16 %v627
        %v1015 = vunpack.c.l.b16 %v628
        %v1016 = vunpack.c.h.b16 %v628
        %v1017 = vunpack.c.l.b16 %v629
        %v1018 = vunpack.c.h.b16 %v629
        %v1019 = vunpack.c.l.b16 %v630
        %v1020 = vunpack.c.h.b16 %v630
        %v1021 = vunpack.c.l.b16 %v631
        %v1022 = vunpack.c.h.b16 %v631
        %v1023 = vunpack.c.l.b16 %v632
        %v1024 = vunpack.c.h.b16 %v632
        %v1025 = vunpack.c.l.b16 %v633
        %v1026 = vunpack.c.h.b16 %v633
        %v1027 = vunpack.c.l.b16 %v634
        %v1028 = vunpack.c.h.b16 %v634
        %v1029 = vunpack.c.l.b16 %v635
        %v1030 = vunpack.c.h.b16 %v635
        %v1031 = vunpack.c.l.b16 %v636
        %v1032 = vunpack.c.h.b16 %v636
        %v1033 = vunpack.c.l.b16 %v637
        %v1034 = vunpack.c.h.b16 %v637
        %v1035 = vunpack.c.l.b16 %v638
        %v1036 = vunpack.c.h.b16 %v638
        %v1037 = vunpack.c.l.b16 %v639
        %v1038 = vunpack.c.h.b16 %v639
        %v1039 = vunpack.c.l.b16 %v640
        %v1040 = vunpack.c.h.b16 %v640
        %v1041 = vunpack.c.l.b16 %v641
        %v1042 = vunpack.c.h.b16 %v641
        %v1043 = vunpack.c.l.b16 %v642
        %v1044 = vunpack.c.h.b16 %v642
        %v1045 = vunpack.c.l.b16 %v643
        %v1046 = vunpack.c.h.b16 %v643
        %v1047 = vunpack.c.l.b16 %v644
        %v1048 = vunpack.c.h.b16 %v644
        %v1049 = vunpack.c.l.b16 %v645
        %v1050 = vunpack.c.h.b16 %v645
        %v1051 = vunpack.c.l.b16 %v646
        %v1052 = vunpack.c.h.b16 %v646
        %v1053 = vunpack.c.l.b16 %v647
        %v1054 = vunpack.c.h.b16 %v647
        %v1055 = vunpack.c.l.b16 %v648
        %v1056 = vunpack.c.h.b16 %v648
        %v1057 = vunpack.c.l.b16 %v649
        %v1058 = vunpack.c.h.b16 %v649
        %v1059 = vunpack.c.l.b16 %v650
        %v1060 = vunpack.c.h.b16 %v650
        %v1061 = vunpack.c.l.b16 %v651
        %v1062 = vunpack.c.h.b16 %v651
        %v1063 = vunpack.c.l.b16 %v652
        %v1064 = vunpack.c.h.b16 %v652
        %v1065 = vunpack.c.l.b16 %v653
        %v1066 = vunpack.c.h.b16 %v653
        %v1067 = vunpack.c.l.b16 %v654
        %v1068 = vunpack.c.h.b16 %v654
        %v1069 = vunpack.c.l.b16 %v655
        %v1070 = vunpack.c.h.b16 %v655
        %v1071 = vunpack.c.l.b16 %v656
        %v1072 = vunpack.c.h.b16 %v656
        %v1073 = vunpack.c.l.b16 %v657
        %v1074 = vunpack.c.h.b16 %v657
        %v1075 = vunpack.c.l.b16 %v658
        %v1076 = vunpack.c.h.b16 %v658
        %v1077 = vunpack.c.l.b16 %v659
        %v1078 = vunpack.c.h.b16 %v659
        %v1079 = vunpack.c.l.b16 %v660
        %v1080 = vunpack.c.h.b16 %v660
        %v1081 = vunpack.c.l.b16 %v661
        %v1082 = vunpack.c.h.b16 %v661
        %v1083 = vunpack.c.l.b16 %v662
        %v1084 = vunpack.c.h.b16 %v662
        %v1085 = vunpack.c.l.b16 %v663
        %v1086 = vunpack.c.h.b16 %v663
        %v1087 = vunpack.c.l.b16 %v664
        %v1088 = vunpack.c.h.b16 %v664
        %v1089 = vunpack.c.l.b16 %v665
        %v1090 = vunpack.c.h.b16 %v665
        %v1091 = vunpack.c.l.b16 %v666
        %v1092 = vunpack.c.h.b16 %v666
        %v1093 = vunpack.c.l.b16 %v667
        %v1094 = vunpack.c.h.b16 %v667
        %v1095 = vunpack.c.l.b16 %v668
        %v1096 = vunpack.c.h.b16 %v668
        %v1097 = vunpack.c.l.b16 %v669
        %v1098 = vunpack.c.h.b16 %v669
        %v1099 = vunpack.c.l.b16 %v670
        %v1100 = vunpack.c.h.b16 %v670
        %v1101 = vunpack.c.l.b16 %v671
        %v1102 = vunpack.c.h.b16 %v671
        %v1103 = vunpack.c.l.b16 %v672
        %v1104 = vunpack.c.h.b16 %v672
        %v1105 = vunpack.c.l.b16 %v673
        %v1106 = vunpack.c.h.b16 %v673
        %v1107 = vunpack.c.l.b16 %v674
        %v1108 = vunpack.c.h.b16 %v674
        %v1109 = vunpack.c.l.b16 %v675
        %v1110 = vunpack.c.h.b16 %v675
        %v1111 = vunpack.c.l.b16 %v676
        %v1112 = vunpack.c.h.b16 %v676
        %v1113 = vunpack.c.l.b16 %v677
        %v1114 = vunpack.c.h.b16 %v677
        %v1115 = vunpack.c.l.b16 %v678
        %v1116 = vunpack.c.h.b16 %v678
        %v1117 = vunpack.c.l.b16 %v679
        %v1118 = vunpack.c.h.b16 %v679
        %v1119 = vunpack.c.l.b16 %v680
        %v1120 = vunpack.c.h.b16 %v680
        %v1121 = vunpack.c.l.b16 %v681
        %v1122 = vunpack.c.h.b16 %v681
        %v1123 = vunpack.c.l.b16 %v682
        %v1124 = vunpack.c.h.b16 %v682
        %v1125 = vunpack.c.l.b16 %v683
        %v1126 = vunpack.c.h.b16 %v683
        %v1127 = vunpack.c.l.b16 %v684
        %v1128 = vunpack.c.h.b16 %v684
        %v1129 = vunpack.c.l.b16 %v685
        %v1130 = vunpack.c.h.b16 %v685
        %v1131 = vunpack.c.l.b16 %v686
        %v1132 = vunpack.c.h.b16 %v686
        %v1133 = vunpack.c.l.b16 %v687
        %v1134 = vunpack.c.h.b16 %v687
        %v1135 = vunpack.c.l.b16 %v688
        %v1136 = vunpack.c.h.b16 %v688
        %v1137 = vunpack.c.l.b16 %v689
        %v1138 = vunpack.c.h.b16 %v689
        %v1139 = vunpack.c.l.b16 %v690
        %v1140 = vunpack.c.h.b16 %v690
        %v1141 = vunpack.c.l.b16 %v691
        %v1142 = vunpack.c.h.b16 %v691
        %v1143 = vunpack.c.l.b16 %v692
        %v1144 = vunpack.c.h.b16 %v692
        %v1145 = vunpack.c.l.b16 %v693
        %v1146 = vunpack.c.h.b16 %v693
        %v1147 = vunpack.c.l.b16 %v694
        %v1148 = vunpack.c.h.b16 %v694
        %v1149 = vunpack.c.l.b16 %v695
        %v1150 = vunpack.c.h.b16 %v695
        %v1151 = vunpack.c.l.b16 %v696
        %v1152 = vunpack.c.h.b16 %v696
        %v1153 = vunpack.c.l.b16 %v697
        %v1154 = vunpack.c.h.b16 %v697
        %v1155 = vunpack.c.l.b16 %v698
        %v1156 = vunpack.c.h.b16 %v698
        %v1157 = vunpack.c.l.b16 %v699
        %v1158 = vunpack.c.h.b16 %v699
        %v1159 = vunpack.c.l.b16 %v700
        %v1160 = vunpack.c.h.b16 %v700
        %v1161 = vunpack.c.l.b16 %v701
        %v1162 = vunpack.c.h.b16 %v701
        %v1163 = vunpack.c.l.b16 %v702
        %v1164 = vunpack.c.h.b16 %v702
        %v1165 = vunpack.c.l.b16 %v703
        %v1166 = vunpack.c.h.b16 %v703
        %v1167 = vunpack.c.l.b16 %v704
        %v1168 = vunpack.c.h.b16 %v704
        %v1169 = vunpack.c.l.b16 %v705
        %v1170 = vunpack.c.h.b16 %v705
        %v1171 = vunpack.c.l.b16 %v706
        %v1172 = vunpack.c.h.b16 %v706
        %v1173 = vunpack.c.l.b16 %v707
        %v1174 = vunpack.c.h.b16 %v707
        %v1175 = vunpack.c.l.b16 %v708
        %v1176 = vunpack.c.h.b16 %v708
        %v1177 = vunpack.c.l.b16 %v709
        %v1178 = vunpack.c.h.b16 %v709
        %v1179 = vunpack.c.l.b16 %v710
        %v1180 = vunpack.c.h.b16 %v710
        %v1181 = vunpack.c.l.b16 %v711
        %v1182 = vunpack.c.h.b16 %v711
        %v1183 = vunpack.c.l.b16 %v712
        %v1184 = vunpack.c.h.b16 %v712
        %v1185 = vunpack.c.l.b16 %v713
        %v1186 = vunpack.c.h.b16 %v713
        %v1187 = vunpack.c.l.b16 %v714
        %v1188 = vunpack.c.h.b16 %v714
        %v1189 = vunpack.c.l.b16 %v715
        %v1190 = vunpack.c.h.b16 %v715
        %v1191 = vunpack.c.l.b16 %v716
        %v1192 = vunpack.c.h.b16 %v716
        %v1193 = vunpack.c.l.b16 %v717
        %v1194 = vunpack.c.h.b16 %v717
        %v1195 = vunpack.c.l.b16 %v718
        %v1196 = vunpack.c.h.b16 %v718
        %v1197 = vunpack.c.l.b16 %v719
        %v1198 = vunpack.c.h.b16 %v719
        %v1199 = vunpack.c.l.b16 %v720
        %v1200 = vunpack.c.h.b16 %v720
        %v1201 = vunpack.c.l.b16 %v721
        %v1202 = vunpack.c.h.b16 %v721
        %v1203 = vunpack.c.l.b16 %v722
        %v1204 = vunpack.c.h.b16 %v722
        %v1205 = vunpack.c.l.b16 %v723
        %v1206 = vunpack.c.h.b16 %v723
        %v1207 = vunpack.c.l.b16 %v724
        %v1208 = vunpack.c.h.b16 %v724
        %v1209 = vunpack.c.l.b16 %v725
        %v1210 = vunpack.c.h.b16 %v725
        %v1211 = vunpack.c.l.b16 %v726
        %v1212 = vunpack.c.h.b16 %v726
        %v1213 = vunpack.c.l.b16 %v727
        %v1214 = vunpack.c.h.b16 %v727
        %v1215 = vunpack.c.l.b16 %v728
        %v1216 = vunpack.c.h.b16 %v728
        %v1217 = vunpack.c.l.b16 %v729
        %v1218 = vunpack.c.h.b16 %v729
        %v1219 = vunpack.c.l.b16 %v730
        %v1220 = vunpack.c.h.b16 %v730
        %v1221 = vunpack.c.l.b16 %v731
        %v1222 = vunpack.c.h.b16 %v731
        %v1223 = vunpack.c.l.b16 %v732
        %v1224 = vunpack.c.h.b16 %v732
        %v1225 = vunpack.c.l.b16 %v733
        %v1226 = vunpack.c.h.b16 %v733
        %v1227 = vunpack.c.l.b16 %v734
        %v1228 = vunpack.c.h.b16 %v734
        %v1229 = vunpack.c.l.b16 %v735
        %v1230 = vunpack.c.h.b16 %v735
        %v1231 = vunpack.c.l.b16 %v736
        %v1232 = vunpack.c.h.b16 %v736
        %v1233 = vunpack.c.l.b16 %v737
        %v1234 = vunpack.c.h.b16 %v737
        %v1235 = vunpack.c.l.b16 %v738
        %v1236 = vunpack.c.h.b16 %v738
        %v1237 = vunpack.c.l.b16 %v739
        %v1238 = vunpack.c.h.b16 %v739
        %v1239 = vunpack.c.l.b16 %v740
        %v1240 = vunpack.c.h.b16 %v740
        %v1241 = vunpack.c.l.b16 %v741
        %v1242 = vunpack.c.h.b16 %v741
        %v1243 = vunpack.c.l.b16 %v742
        %v1244 = vunpack.c.h.b16 %v742
        %v1245 = vunpack.c.l.b16 %v743
        %v1246 = vunpack.c.h.b16 %v743
        %v1247 = vunpack.c.l.b16 %v744
        %v1248 = vunpack.c.h.b16 %v744
        %v1249 = vunpack.c.l.b16 %v745
        %v1250 = vunpack.c.h.b16 %v745
        %v1251 = vunpack.c.l.b16 %v746
        %v1252 = vunpack.c.h.b16 %v746
        %v1253 = vunpack.c.l.b16 %v747
        %v1254 = vunpack.c.h.b16 %v747
        %v1255 = vunpack.c.l.b16 %v748
        %v1256 = vunpack.c.h.b16 %v748
        %v1257 = vunpack.c.l.b16 %v749
        %v1258 = vunpack.c.h.b16 %v749
        %v1259 = vunpack.c.l.b16 %v750
        %v1260 = vunpack.c.h.b16 %v750
        %v1261 = vunpack.c.l.b16 %v751
        %v1262 = vunpack.c.h.b16 %v751
        %v1263 = vunpack.c.l.b16 %v752
        %v1264 = vunpack.c.h.b16 %v752
        %v1265 = vunpack.c.l.b16 %v753
        %v1266 = vunpack.c.h.b16 %v753
        %v1267 = vunpack.c.l.b16 %v754
        %v1268 = vunpack.c.h.b16 %v754
        %v1269 = vunpack.c.l.b16 %v755
        %v1270 = vunpack.c.h.b16 %v755
        %v1271 = vunpack.c.l.b16 %v756
        %v1272 = vunpack.c.h.b16 %v756
        %v1273 = vunpack.c.l.b16 %v757
        %v1274 = vunpack.c.h.b16 %v757
        %v1275 = vunpack.c.l.b16 %v758
        %v1276 = vunpack.c.h.b16 %v758
        %v1277 = vunpack.c.l.b16 %v759
        %v1278 = vunpack.c.h.b16 %v759
        %v1279 = vunpack.c.l.b16 %v760
        %v1280 = vunpack.c.h.b16 %v760
        %v1281 = vunpack.c.l.b16 %v761
        %v1282 = vunpack.c.h.b16 %v761
        %v1283 = vunpack.c.l.b16 %v762
        %v1284 = vunpack.c.h.b16 %v762
        %v1285 = vunpack.c.l.b16 %v763
        %v1286 = vunpack.c.h.b16 %v763
        %v1287 = vunpack.c.l.b16 %v764
        %v1288 = vunpack.c.h.b16 %v764
        %v1289 = vunpack.c.l.b16 %v765
        %v1290 = vunpack.c.h.b16 %v765
        %v1291 = vunpack.c.l.b16 %v766
        %v1292 = vunpack.c.h.b16 %v766
        %v1293 = vunpack.c.l.b16 %v767
        %v1294 = vunpack.c.h.b16 %v767
        %v1295 = vunpack.c.l.b16 %v768
        %v1296 = vunpack.c.h.b16 %v768
        %v1297 = vunpack.c.l.b16 %v769
        %v1298 = vunpack.c.h.b16 %v769
        %v1299 = vunpack.c.l.b16 %v770
        %v1300 = vunpack.c.h.b16 %v770
        %v1301 = vunpack.c.l.b16 %v771
        %v1302 = vunpack.c.h.b16 %v771
        %v1303 = vunpack.c.l.b16 %v772
        %v1304 = vunpack.c.h.b16 %v772
        %v1305 = vunpack.c.l.b16 %v773
        %v1306 = vunpack.c.h.b16 %v773
        %v1307 = vunpack.c.l.b16 %v774
        %v1308 = vunpack.c.h.b16 %v774
        %v1309 = vunpack.c.l.b16 %v775
        %v1310 = vunpack.c.h.b16 %v775
        %v1311 = vunpack.c.l.b16 %v776
        %v1312 = vunpack.c.h.b16 %v776
        %v1313 = vunpack.c.l.b16 %v777
        %v1314 = vunpack.c.h.b16 %v777
        %v1315 = vunpack.c.l.b16 %v778
        %v1316 = vunpack.c.h.b16 %v778
        %v1317 = vunpack.c.l.b16 %v779
        %v1318 = vunpack.c.h.b16 %v779
        %v1319 = vunpack.c.l.b16 %v780
        %v1320 = vunpack.c.h.b16 %v780
        %v1321 = vunpack.c.l.b16 %v781
        %v1322 = vunpack.c.h.b16 %v781
        %v1323 = vunpack.c.l.b16 %v782
        %v1324 = vunpack.c.h.b16 %v782
        %v1325 = vunpack.c.l.b16 %v783
        %v1326 = vunpack.c.h.b16 %v783
        %v1327 = vunpack.c.l.b16 %v784
        %v1328 = vunpack.c.h.b16 %v784
        %v1329 = vunpack.c.l.b16 %v785
        %v1330 = vunpack.c.h.b16 %v785
        %v1331 = vunpack.c.l.b16 %v786
        %v1332 = vunpack.c.h.b16 %v786
        %v1333 = vunpack.c.l.b16 %v787
        %v1334 = vunpack.c.h.b16 %v787
        %v1335 = vunpack.c.l.b16 %v788
        %v1336 = vunpack.c.h.b16 %v788
        %v1337 = vunpack.c.l.b16 %v789
        %v1338 = vunpack.c.h.b16 %v789
        %v1339 = vunpack.c.l.b16 %v790
        %v1340 = vunpack.c.h.b16 %v790
        %v1341 = vunpack.c.l.b16 %v791
        %v1342 = vunpack.c.h.b16 %v791
        %v1343 = vunpack.c.l.b16 %v792
        %v1344 = vunpack.c.h.b16 %v792
        %v1345 = vunpack.c.l.b16 %v793
        %v1346 = vunpack.c.h.b16 %v793
        %v1347 = vunpack.c.l.b16 %v794
        %v1348 = vunpack.c.h.b16 %v794
        %v1349 = vunpack.c.l.b16 %v795
        %v1350 = vunpack.c.h.b16 %v795
        %v1351 = vunpack.c.l.b16 %v796
        %v1352 = vunpack.c.h.b16 %v796
        %v1353 = vunpack.c.l.b16 %v797
        %v1354 = vunpack.c.h.b16 %v797
        %v1355 = vunpack.c.l.b16 %v798
        %v1356 = vunpack.c.h.b16 %v798
        %v1357 = vunpack.c.l.b16 %v799
        %v1358 = vunpack.c.h.b16 %v799
        %v1359 = vunpack.c.l.b16 %v800
        %v1360 = vunpack.c.h.b16 %v800
        %v1361 = vunpack.c.l.b16 %v801
        %v1362 = vunpack.c.h.b16 %v801
        %v1363 = vunpack.c.l.b16 %v802
        %v1364 = vunpack.c.h.b16 %v802
        %v1365 = vunpack.c.l.b16 %v803
        %v1366 = vunpack.c.h.b16 %v803
        %v1367 = vunpack.c.l.b16 %v804
        %v1368 = vunpack.c.h.b16 %v804
        %v1369 = vunpack.c.l.b16 %v805
        %v1370 = vunpack.c.h.b16 %v805
        %v1371 = vunpack.c.l.b16 %v806
        %v1372 = vunpack.c.h.b16 %v806
        %v1373 = vunpack.c.l.b16 %v807
        %v1374 = vunpack.c.h.b16 %v807
        %v1375 = vunpack.c.l.b16 %v808
        %v1376 = vunpack.c.h.b16 %v808
        %v1377 = vunpack.c.l.b16 %v809
        %v1378 = vunpack.c.h.b16 %v809
        %v1379 = vunpack.c.l.b16 %v810
        %v1380 = vunpack.c.h.b16 %v810
        %v1381 = vunpack.c.l.b16 %v811
        %v1382 = vunpack.c.h.b16 %v811
        %v1383 = vunpack.c.l.b16 %v812
        %v1384 = vunpack.c.h.b16 %v812
        %v1385 = vunpack.c.l.b16 %v813
        %v1386 = vunpack.c.h.b16 %v813
        %v1387 = vunpack.c.l.b16 %v814
        %v1388 = vunpack.c.h.b16 %v814
        %v1389 = vunpack.c.l.b16 %v815
        %v1390 = vunpack.c.h.b16 %v815
        %v1391 = vunpack.c.l.b16 %v816
        %v1392 = vunpack.c.h.b16 %v816
        %v1393 = vpack.c.b16 %v1073, %v1009
        %v1394 = vpack.c.b16 %v1074, %v1010
        %v1395 = vpack.c.b16 %v1075, %v1011
        %v1396 = vpack.c.b16 %v1076, %v1012
        %v1397 = vpack.c.b16 %v1077, %v1013
        %v1398 = vpack.c.b16 %v1078, %v1014
        %v1399 = vpack.c.b16 %v1079, %v1015
        %v1400 = vpack.c.b16 %v1080, %v1016
        %v1401 = vpack.c.b16 %v1081, %v1017
        %v1402 = vpack.c.b16 %v1082, %v1018
        %v1403 = vpack.c.b16 %v1083, %v1019
        %v1404 = vpack.c.b16 %v1084, %v1020
        %v1405 = vpack.c.b16 %v1085, %v1021
        %v1406 = vpack.c.b16 %v1086, %v1022
        %v1407 = vpack.c.b16 %v1087, %v1023
        %v1408 = vpack.c.b16 %v1088, %v1024
        %v1409 = vpack.c.b16 %v1089, %v1025
        %v1410 = vpack.c.b16 %v1090, %v1026
        %v1411 = vpack.c.b16 %v1091, %v1027
        %v1412 = vpack.c.b16 %v1092, %v1028
        %v1413 = vpack.c.b16 %v1093, %v1029
        %v1414 = vpack.c.b16 %v1094, %v1030
        %v1415 = vpack.c.b16 %v1095, %v1031
        %v1416 = vpack.c.b16 %v1096, %v1032
        %v1417 = vpack.c.b16 %v1097, %v1033
        %v1418 = vpack.c.b16 %v1098, %v1034
        %v1419 = vpack.c.b16 %v1099, %v1035
        %v1420 = vpack.c.b16 %v1100, %v1036
        %v1421 = vpack.c.b16 %v1101, %v1037
        %v1422 = vpack.c.b16 %v1102, %v1038
        %v1423 = vpack.c.b16 %v1103, %v1039
        %v1424 = vpack.c.b16 %v1104, %v1040
        %v1425 = vpack.c.b16 %v1105, %v1041
        %v1426 = vpack.c.b16 %v1106, %v1042
        %v1427 = vpack.c.b16 %v1107, %v1043
        %v1428 = vpack.c.b16 %v1108, %v1044
        %v1429 = vpack.c.b16 %v1109, %v1045
        %v1430 = vpack.c.b16 %v1110, %v1046
        %v1431 = vpack.c.b16 %v1111, %v1047
        %v1432 = vpack.c.b16 %v1112, %v1048
        %v1433 = vpack.c.b16 %v1113, %v1049
        %v1434 = vpack.c.b16 %v1114, %v1050
        %v1435 = vpack.c.b16 %v1115, %v1051
        %v1436 = vpack.c.b16 %v1116, %v1052
        %v1437 = vpack.c.b16 %v1117, %v1053
        %v1438 = vpack.c.b16 %v1118, %v1054
        %v1439 = vpack.c.b16 %v1119, %v1055
        %v1440 = vpack.c.b16 %v1120, %v1056
        %v1441 = vpack.c.b16 %v1121, %v1057
        %v1442 = vpack.c.b16 %v1122, %v1058
        %v1443 = vpack.c.b16 %v1123, %v1059
        %v1444 = vpack.c.b16 %v1124, %v1060
        %v1445 = vpack.c.b16 %v1125, %v1061
        %v1446 = vpack.c.b16 %v1126, %v1062
        %v1447 = vpack.c.b16 %v1127, %v1063
        %v1448 = vpack.c.b16 %v1128, %v1064
        %v1449 = vpack.c.b16 %v1129, %v1065
        %v1450 = vpack.c.b16 %v1130, %v1066
        %v1451 = vpack.c.b16 %v1131, %v1067
        %v1452 = vpack.c.b16 %v1132, %v1068
        %v1453 = vpack.c.b16 %v1133, %v1069
        %v1454 = vpack.c.b16 %v1134, %v1070
        %v1455 = vpack.c.b16 %v1135, %v1071
        %v1456 = vpack.c.b16 %v1136, %v1072
        %v1457 = vpack.c.b16 %v1201, %v1137
        %v1458 = vpack.c.b16 %v1202, %v1138
        %v1459 = vpack.c.b16 %v1203, %v1139
        %v1460 = vpack.c.b16 %v1204, %v1140
        %v1461 = vpack.c.b16 %v1205, %v1141
        %v1462 = vpack.c.b16 %v1206, %v1142
        %v1463 = vpack.c.b16 %v1207, %v1143
        %v1464 = vpack.c.b16 %v1208, %v1144
        %v1465 = vpack.c.b16 %v1209, %v1145
        %v1466 = vpack.c.b16 %v1210, %v1146
        %v1467 = vpack.c.b16 %v1211, %v1147
        %v1468 = vpack.c.b16 %v1212, %v1148
        %v1469 = vpack.c.b16 %v1213, %v1149
        %v1470 = vpack.c.b16 %v1214, %v1150
        %v1471 = vpack.c.b16 %v1215, %v1151
        %v1472 = vpack.c.b16 %v1216, %v1152
        %v1473 = vpack.c.b16 %v1217, %v1153
        %v1474 = vpack.c.b16 %v1218, %v1154
        %v1475 = vpack.c.b16 %v1219, %v1155
        %v1476 = vpack.c.b16 %v1220, %v1156
        %v1477 = vpack.c.b16 %v1221, %v1157
        %v1478 = vpack.c.b16 %v1222, %v1158
        %v1479 = vpack.c.b16 %v1223, %v1159
        %v1480 = vpack.c.b16 %v1224, %v1160
        %v1481 = vpack.c.b16 %v1225, %v1161
        %v1482 = vpack.c.b16 %v1226, %v1162
        %v1483 = vpack.c.b16 %v1227, %v1163
        %v1484 = vpack.c.b16 %v1228, %v1164
        %v1485 = vpack.c.b16 %v1229, %v1165
        %v1486 = vpack.c.b16 %v1230, %v1166
        %v1487 = vpack.c.b16 %v1231, %v1167
        %v1488 = vpack.c.b16 %v1232, %v1168
        %v1489 = vpack.c.b16 %v1233, %v1169
        %v1490 = vpack.c.b16 %v1234, %v1170
        %v1491 = vpack.c.b16 %v1235, %v1171
        %v1492 = vpack.c.b16 %v1236, %v1172
        %v1493 = vpack.c.b16 %v1237, %v1173
        %v1494 = vpack.c.b16 %v1238, %v1174
        %v1495 = vpack.c.b16 %v1239, %v1175
        %v1496 = vpack.c.b16 %v1240, %v1176
        %v1497 = vpack.c.b16 %v1241, %v1177
        %v1498 = vpack.c.b16 %v1242, %v1178
        %v1499 = vpack.c.b16 %v1243, %v1179
        %v1500 = vpack.c.b16 %v1244, %v1180
        %v1501 = vpack.c.b16 %v1245, %v1181
        %v1502 = vpack.c.b16 %v1246, %v1182
        %v1503 = vpack.c.b16 %v1247, %v1183
        %v1504 = vpack.c.b16 %v1248, %v1184
        %v1505 = vpack.c.b16 %v1249, %v1185
        %v1506 = vpack.c.b16 %v1250, %v1186
        %v1507 = vpack.c.b16 %v1251, %v1187
        %v1508 = vpack.c.b16 %v1252, %v1188
        %v1509 = vpack.c.b16 %v1253, %v1189
        %v1510 = vpack.c.b16 %v1254, %v1190
        %v1511 = vpack.c.b16 %v1255, %v1191
        %v1512 = vpack.c.b16 %v1256, %v1192
        %v1513 = vpack.c.b16 %v1257, %v1193
        %v1514 = vpack.c.b16 %v1258, %v1194
        %v1515 = vpack.c.b16 %v1259, %v1195
        %v1516 = vpack.c.b16 %v1260, %v1196
        %v1517 = vpack.c.b16 %v1261, %v1197
        %v1518 = vpack.c.b16 %v1262, %v1198
        %v1519 = vpack.c.b16 %v1263, %v1199
        %v1520 = vpack.c.b16 %v1264, %v1200
        %v1521 = vpack.c.b16 %v1329, %v1265
        %v1522 = vpack.c.b16 %v1330, %v1266
        %v1523 = vpack.c.b16 %v1331, %v1267
        %v1524 = vpack.c.b16 %v1332, %v1268
        %v1525 = vpack.c.b16 %v1333, %v1269
        %v1526 = vpack.c.b16 %v1334, %v1270
        %v1527 = vpack.c.b16 %v1335, %v1271
        %v1528 = vpack.c.b16 %v1336, %v1272
        %v1529 = vpack.c.b16 %v1337, %v1273
        %v1530 = vpack.c.b16 %v1338, %v1274
        %v1531 = vpack.c.b16 %v1339, %v1275
        %v1532 = vpack.c.b16 %v1340, %v1276
        %v1533 = vpack.c.b16 %v1341, %v1277
        %v1534 = vpack.c.b16 %v1342, %v1278
        %v1535 = vpack.c.b16 %v1343, %v1279
        %v1536 = vpack.c.b16 %v1344, %v1280
        %v1537 = vpack.c.b16 %v1345, %v1281
        %v1538 = vpack.c.b16 %v1346, %v1282
        %v1539 = vpack.c.b16 %v1347, %v1283
        %v1540 = vpack.c.b16 %v1348, %v1284
        %v1541 = vpack.c.b16 %v1349, %v1285
        %v1542 = vpack.c.b16 %v1350, %v1286
        %v1543 = vpack.c.b16 %v1351, %v1287
        %v1544 = vpack.c.b16 %v1352, %v1288
        %v1545 = vpack.c.b16 %v1353, %v1289
        %v1546 = vpack.c.b16 %v1354, %v1290
        %v1547 = vpack.c.b16 %v1355, %v1291
        %v1548 = vpack.c.b16 %v1356, %v1292
        %v1549 = vpack.c.b16 %v1357, %v1293
        %v1550 = vpack.c.b16 %v1358, %v1294
        %v1551 = vpack.c.b16 %v1359, %v1295
        %v1552 = vpack.c.b16 %v1360, %v1296
        %v1553 = vpack.c.b16 %v1361, %v1297
        %v1554 = vpack.c.b16 %v1362, %v1298
        %v1555 = vpack.c.b16 %v1363, %v1299
        %v1556 = vpack.c.b16 %v1364, %v1300
        %v1557 = vpack.c.b16 %v1365, %v1301
        %v1558 = vpack.c.b16 %v1366, %v1302
        %v1559 = vpack.c.b16 %v1367, %v1303
        %v1560 = vpack.c.b16 %v1368, %v1304
        %v1561 = vpack.c.b16 %v1369, %v1305
        %v1562 = vpack.c.b16 %v1370, %v1306
        %v1563 = vpack.c.b16 %v1371, %v1307
        %v1564 = vpack.c.b16 %v1372, %v1308
        %v1565 = vpack.c.b16 %v1373, %v1309
        %v1566 = vpack.c.b16 %v1374, %v1310
        %v1567 = vpack.c.b16 %v1375, %v1311
        %v1568 = vpack.c.b16 %v1376, %v1312
        %v1569 = vpack.c.b16 %v1377, %v1313
        %v1570 = vpack.c.b16 %v1378, %v1314
        %v1571 = vpack.c.b16 %v1379, %v1315
        %v1572 = vpack.c.b16 %v1380, %v1316
        %v1573 = vpack.c.b16 %v1381, %v1317
        %v1574 = vpack.c.b16 %v1382, %v1318
        %v1575 = vpack.c.b16 %v1383, %v1319
        %v1576 = vpack.c.b16 %v1384, %v1320
        %v1577 = vpack.c.b16 %v1385, %v1321
        %v1578 = vpack.c.b16 %v1386, %v1322
        %v1579 = vpack.c.b16 %v1387, %v1323
        %v1580 = vpack.c.b16 %v1388, %v1324
        %v1581 = vpack.c.b16 %v1389, %v1325
        %v1582 = vpack.c.b16 %v1390, %v1326
        %v1583 = vpack.c.b16 %v1391, %v1327
        %v1584 = vpack.c.b16 %v1392, %v1328
        %vm1777 = vcmask 392192
        %v1779 = vsel %vm1777, %v624, 0
        %1781 = vmatprep.subr.bf16.mxu0 %v1394
        %1782 = vmatpush1.bf16.msra.mxu0 %v1393
        %1783 = vmatprep.subr.bf16.mxu0 %v1458
        %1784 = vmatpush1.bf16.msra.mxu0 %v1457
        %1785 = vmatprep.subr.bf16.mxu0 %v1522
        %1786 = vmatpush1.bf16.msra.mxu0 %v1521
        %1787 = vmatprep.subr.bf16.mxu0 0
        %1788 = vmatpush1.bf16.msra.mxu0 0
        %1789 = vmatprep.subr.bf16.mxu0 0
        %1790 = vmatpush1.bf16.msra.mxu0 0
        %1791 = vmatprep.subr.bf16.mxu0 0
        %1792 = vmatpush1.bf16.msra.mxu0 0
        %1793 = vmatprep.subr.bf16.mxu0 0
        %1794 = vmatpush1.bf16.msra.mxu0 0
        %1795 = vmatprep.subr.bf16.mxu0 0
        %1796 = vmatpush1.bf16.msra.mxu0 0
        %1797 = vmatprep.subr.bf16.mxu0 0
        %1798 = vmatpush1.bf16.msra.mxu0 0
        %1799 = vmatprep.subr.bf16.mxu0 0
        %1800 = vmatpush1.bf16.msra.mxu0 0
        %1801 = vmatprep.subr.bf16.mxu0 0
        %1802 = vmatpush1.bf16.msra.mxu0 0
        %1803 = vmatprep.subr.bf16.mxu0 0
        %1804 = vmatpush1.bf16.msra.mxu0 0
        %1805 = vmatprep.subr.bf16.mxu0 0
        %1806 = vmatpush1.bf16.msra.mxu0 0
        %1807 = vmatprep.subr.bf16.mxu0 0
        %1808 = vmatpush1.bf16.msra.mxu0 0
        %1809 = vmatprep.subr.bf16.mxu0 0
        %1810 = vmatpush1.bf16.msra.mxu0 0
        %1811 = vmatprep.subr.bf16.mxu0 0
        %1812 = vmatpush1.bf16.msra.mxu0 0
        %1813 = vmatprep.mubr.bf16.mxu0 0
        %1814 = vmatmul.mubr.bf16.gmra.mrb[0].mxu0 %v1779
        %v1815 = vpop.f32.mrb[0].mxu0
        %v1816 = vadd.f32 0.0, %v1815
        %v1817 = vpop.f32.mrb[0].mxu0
        %v1818 = vadd.f32 0.0, %v1817
        %v1819 = vpop.f32.mrb[0].mxu0
        %v1820 = vpop.f32.mrb[0].mxu0
        %1821 = vdwg.mxu0
        %1822 = vmatprep.subr.bf16.mxu0 %v1396
        %1823 = vmatpush1.bf16.msra.mxu0 %v1395
        %1824 = vmatprep.subr.bf16.mxu0 %v1460
        %1825 = vmatpush1.bf16.msra.mxu0 %v1459
        %1826 = vmatprep.subr.bf16.mxu0 %v1524
        %1827 = vmatpush1.bf16.msra.mxu0 %v1523
        %1828 = vmatprep.subr.bf16.mxu0 0
        %1829 = vmatpush1.bf16.msra.mxu0 0
        %1830 = vmatprep.subr.bf16.mxu0 0
        %1831 = vmatpush1.bf16.msra.mxu0 0
        %1832 = vmatprep.subr.bf16.mxu0 0
        %1833 = vmatpush1.bf16.msra.mxu0 0
        %1834 = vmatprep.subr.bf16.mxu0 0
        %1835 = vmatpush1.bf16.msra.mxu0 0
        %1836 = vmatprep.subr.bf16.mxu0 0
        %1837 = vmatpush1.bf16.msra.mxu0 0
        %1838 = vmatprep.subr.bf16.mxu0 0
        %1839 = vmatpush1.bf16.msra.mxu0 0
        %1840 = vmatprep.subr.bf16.mxu0 0
        %1841 = vmatpush1.bf16.msra.mxu0 0
        %1842 = vmatprep.subr.bf16.mxu0 0
        %1843 = vmatpush1.bf16.msra.mxu0 0
        %1844 = vmatprep.subr.bf16.mxu0 0
        %1845 = vmatpush1.bf16.msra.mxu0 0
        %1846 = vmatprep.subr.bf16.mxu0 0
        %1847 = vmatpush1.bf16.msra.mxu0 0
        %1848 = vmatprep.subr.bf16.mxu0 0
        %1849 = vmatpush1.bf16.msra.mxu0 0
        %1850 = vmatprep.subr.bf16.mxu0 0
        %1851 = vmatpush1.bf16.msra.mxu0 0
        %1852 = vmatprep.subr.bf16.mxu0 0
        %1853 = vmatpush1.bf16.msra.mxu0 0
        %1854 = vmatprep.mubr.bf16.mxu0 0
        %1855 = vmatmul.mubr.bf16.gmra.mrb[0].mxu0 %v1779
        %v1856 = vpop.f32.mrb[0].mxu0
        %v1857 = vadd.f32 0.0, %v1856
        %v1858 = vpop.f32.mrb[0].mxu0
        %v1859 = vadd.f32 0.0, %v1858
        %v1860 = vpop.f32.mrb[0].mxu0
        %v1861 = vpop.f32.mrb[0].mxu0
        %1862 = vdwg.mxu0
        %1863 = vmatprep.subr.bf16.mxu0 %v1398
        %1864 = vmatpush1.bf16.msra.mxu0 %v1397
        %1865 = vmatprep.subr.bf16.mxu0 %v1462
        %1866 = vmatpush1.bf16.msra.mxu0 %v1461
        %1867 = vmatprep.subr.bf16.mxu0 %v1526
        %1868 = vmatpush1.bf16.msra.mxu0 %v1525
        %1869 = vmatprep.subr.bf16.mxu0 0
        %1870 = vmatpush1.bf16.msra.mxu0 0
        %1871 = vmatprep.subr.bf16.mxu0 0
        %1872 = vmatpush1.bf16.msra.mxu0 0
        %1873 = vmatprep.subr.bf16.mxu0 0
        %1874 = vmatpush1.bf16.msra.mxu0 0
        %1875 = vmatprep.subr.bf16.mxu0 0
        %1876 = vmatpush1.bf16.msra.mxu0 0
        %1877 = vmatprep.subr.bf16.mxu0 0
        %1878 = vmatpush1.bf16.msra.mxu0 0
        %1879 = vmatprep.subr.bf16.mxu0 0
        %1880 = vmatpush1.bf16.msra.mxu0 0
        %1881 = vmatprep.subr.bf16.mxu0 0
        %1882 = vmatpush1.bf16.msra.mxu0 0
        %1883 = vmatprep.subr.bf16.mxu0 0
        %1884 = vmatpush1.bf16.msra.mxu0 0
        %1885 = vmatprep.subr.bf16.mxu0 0
        %1886 = vmatpush1.bf16.msra.mxu0 0
        %1887 = vmatprep.subr.bf16.mxu0 0
        %1888 = vmatpush1.bf16.msra.mxu0 0
        %1889 = vmatprep.subr.bf16.mxu0 0
        %1890 = vmatpush1.bf16.msra.mxu0 0
        %1891 = vmatprep.subr.bf16.mxu0 0
        %1892 = vmatpush1.bf16.msra.mxu0 0
        %1893 = vmatprep.subr.bf16.mxu0 0
        %1894 = vmatpush1.bf16.msra.mxu0 0
        %1895 = vmatprep.mubr.bf16.mxu0 0
        %1896 = vmatmul.mubr.bf16.gmra.mrb[0].mxu0 %v1779
        %v1897 = vpop.f32.mrb[0].mxu0
        %v1898 = vadd.f32 0.0, %v1897
        %v1899 = vpop.f32.mrb[0].mxu0
        %v1900 = vadd.f32 0.0, %v1899
        %v1901 = vpop.f32.mrb[0].mxu0
        %v1902 = vpop.f32.mrb[0].mxu0
        %1903 = vdwg.mxu0
        %1904 = vmatprep.subr.bf16.mxu0 %v1400
        %1905 = vmatpush1.bf16.msra.mxu0 %v1399
        %1906 = vmatprep.subr.bf16.mxu0 %v1464
        %1907 = vmatpush1.bf16.msra.mxu0 %v1463
        %1908 = vmatprep.subr.bf16.mxu0 %v1528
        %1909 = vmatpush1.bf16.msra.mxu0 %v1527
        %1910 = vmatprep.subr.bf16.mxu0 0
        %1911 = vmatpush1.bf16.msra.mxu0 0
        %1912 = vmatprep.subr.bf16.mxu0 0
        %1913 = vmatpush1.bf16.msra.mxu0 0
        %1914 = vmatprep.subr.bf16.mxu0 0
        %1915 = vmatpush1.bf16.msra.mxu0 0
        %1916 = vmatprep.subr.bf16.mxu0 0
        %1917 = vmatpush1.bf16.msra.mxu0 0
        %1918 = vmatprep.subr.bf16.mxu0 0
        %1919 = vmatpush1.bf16.msra.mxu0 0
        %1920 = vmatprep.subr.bf16.mxu0 0
        %1921 = vmatpush1.bf16.msra.mxu0 0
        %1922 = vmatprep.subr.bf16.mxu0 0
        %1923 = vmatpush1.bf16.msra.mxu0 0
        %1924 = vmatprep.subr.bf16.mxu0 0
        %1925 = vmatpush1.bf16.msra.mxu0 0
        %1926 = vmatprep.subr.bf16.mxu0 0
        %1927 = vmatpush1.bf16.msra.mxu0 0
        %1928 = vmatprep.subr.bf16.mxu0 0
        %1929 = vmatpush1.bf16.msra.mxu0 0
        %1930 = vmatprep.subr.bf16.mxu0 0
        %1931 = vmatpush1.bf16.msra.mxu0 0
        %1932 = vmatprep.subr.bf16.mxu0 0
        %1933 = vmatpush1.bf16.msra.mxu0 0
        %1934 = vmatprep.subr.bf16.mxu0 0
        %1935 = vmatpush1.bf16.msra.mxu0 0
        %1936 = vmatprep.mubr.bf16.mxu0 0
        %1937 = vmatmul.mubr.bf16.gmra.mrb[0].mxu0 %v1779
        %v1938 = vpop.f32.mrb[0].mxu0
        %v1939 = vadd.f32 0.0, %v1938
        %v1940 = vpop.f32.mrb[0].mxu0
        %v1941 = vadd.f32 0.0, %v1940
        %v1942 = vpop.f32.mrb[0].mxu0
        %v1943 = vpop.f32.mrb[0].mxu0
        %1944 = vdwg.mxu0
        %1945 = vmatprep.subr.bf16.mxu0 %v1402
        %1946 = vmatpush1.bf16.msra.mxu0 %v1401
        %1947 = vmatprep.subr.bf16.mxu0 %v1466
        %1948 = vmatpush1.bf16.msra.mxu0 %v1465
        %1949 = vmatprep.subr.bf16.mxu0 %v1530
        %1950 = vmatpush1.bf16.msra.mxu0 %v1529
        %1951 = vmatprep.subr.bf16.mxu0 0
        %1952 = vmatpush1.bf16.msra.mxu0 0
        %1953 = vmatprep.subr.bf16.mxu0 0
        %1954 = vmatpush1.bf16.msra.mxu0 0
        %1955 = vmatprep.subr.bf16.mxu0 0
        %1956 = vmatpush1.bf16.msra.mxu0 0
        %1957 = vmatprep.subr.bf16.mxu0 0
        %1958 = vmatpush1.bf16.msra.mxu0 0
        %1959 = vmatprep.subr.bf16.mxu0 0
        %1960 = vmatpush1.bf16.msra.mxu0 0
        %1961 = vmatprep.subr.bf16.mxu0 0
        %1962 = vmatpush1.bf16.msra.mxu0 0
        %1963 = vmatprep.subr.bf16.mxu0 0
        %1964 = vmatpush1.bf16.msra.mxu0 0
        %1965 = vmatprep.subr.bf16.mxu0 0
        %1966 = vmatpush1.bf16.msra.mxu0 0
        %1967 = vmatprep.subr.bf16.mxu0 0
        %1968 = vmatpush1.bf16.msra.mxu0 0
        %1969 = vmatprep.subr.bf16.mxu0 0
        %1970 = vmatpush1.bf16.msra.mxu0 0
        %1971 = vmatprep.subr.bf16.mxu0 0
        %1972 = vmatpush1.bf16.msra.mxu0 0
        %1973 = vmatprep.subr.bf16.mxu0 0
        %1974 = vmatpush1.bf16.msra.mxu0 0
        %1975 = vmatprep.subr.bf16.mxu0 0
        %1976 = vmatpush1.bf16.msra.mxu0 0
        %1977 = vmatprep.mubr.bf16.mxu0 0
        %1978 = vmatmul.mubr.bf16.gmra.mrb[0].mxu0 %v1779
        %v1979 = vpop.f32.mrb[0].mxu0
        %v1980 = vadd.f32 0.0, %v1979
        %v1981 = vpop.f32.mrb[0].mxu0
        %v1982 = vadd.f32 0.0, %v1981
        %v1983 = vpop.f32.mrb[0].mxu0
        %v1984 = vpop.f32.mrb[0].mxu0
        %1985 = vdwg.mxu0
        %1986 = vmatprep.subr.bf16.mxu0 %v1404
        %1987 = vmatpush1.bf16.msra.mxu0 %v1403
        %1988 = vmatprep.subr.bf16.mxu0 %v1468
        %1989 = vmatpush1.bf16.msra.mxu0 %v1467
        %1990 = vmatprep.subr.bf16.mxu0 %v1532
        %1991 = vmatpush1.bf16.msra.mxu0 %v1531
        %1992 = vmatprep.subr.bf16.mxu0 0
        %1993 = vmatpush1.bf16.msra.mxu0 0
        %1994 = vmatprep.subr.bf16.mxu0 0
        %1995 = vmatpush1.bf16.msra.mxu0 0
        %1996 = vmatprep.subr.bf16.mxu0 0
        %1997 = vmatpush1.bf16.msra.mxu0 0
        %1998 = vmatprep.subr.bf16.mxu0 0
        %1999 = vmatpush1.bf16.msra.mxu0 0
        %2000 = vmatprep.subr.bf16.mxu0 0
        %2001 = vmatpush1.bf16.msra.mxu0 0
        %2002 = vmatprep.subr.bf16.mxu0 0
        %2003 = vmatpush1.bf16.msra.mxu0 0
        %2004 = vmatprep.subr.bf16.mxu0 0
        %2005 = vmatpush1.bf16.msra.mxu0 0
        %2006 = vmatprep.subr.bf16.mxu0 0
        %2007 = vmatpush1.bf16.msra.mxu0 0
        %2008 = vmatprep.subr.bf16.mxu0 0
        %2009 = vmatpush1.bf16.msra.mxu0 0
        %2010 = vmatprep.subr.bf16.mxu0 0
        %2011 = vmatpush1.bf16.msra.mxu0 0
        %2012 = vmatprep.subr.bf16.mxu0 0
        %2013 = vmatpush1.bf16.msra.mxu0 0
        %2014 = vmatprep.subr.bf16.mxu0 0
        %2015 = vmatpush1.bf16.msra.mxu0 0
        %2016 = vmatprep.subr.bf16.mxu0 0
        %2017 = vmatpush1.bf16.msra.mxu0 0
        %2018 = vmatprep.mubr.bf16.mxu0 0
        %2019 = vmatmul.mubr.bf16.gmra.mrb[0].mxu0 %v1779
        %v2020 = vpop.f32.mrb[0].mxu0
        %v2021 = vadd.f32 0.0, %v2020
        %v2022 = vpop.f32.mrb[0].mxu0
        %v2023 = vadd.f32 0.0, %v2022
        %v2024 = vpop.f32.mrb[0].mxu0
        %v2025 = vpop.f32.mrb[0].mxu0
        %2026 = vdwg.mxu0
        %2027 = vmatprep.subr.bf16.mxu0 %v1406
        %2028 = vmatpush1.bf16.msra.mxu0 %v1405
        %2029 = vmatprep.subr.bf16.mxu0 %v1470
        %2030 = vmatpush1.bf16.msra.mxu0 %v1469
        %2031 = vmatprep.subr.bf16.mxu0 %v1534
        %2032 = vmatpush1.bf16.msra.mxu0 %v1533
        %2033 = vmatprep.subr.bf16.mxu0 0
        %2034 = vmatpush1.bf16.msra.mxu0 0
        %2035 = vmatprep.subr.bf16.mxu0 0
        %2036 = vmatpush1.bf16.msra.mxu0 0
        %2037 = vmatprep.subr.bf16.mxu0 0
        %2038 = vmatpush1.bf16.msra.mxu0 0
        %2039 = vmatprep.subr.bf16.mxu0 0
        %2040 = vmatpush1.bf16.msra.mxu0 0
        %2041 = vmatprep.subr.bf16.mxu0 0
        %2042 = vmatpush1.bf16.msra.mxu0 0
        %2043 = vmatprep.subr.bf16.mxu0 0
        %2044 = vmatpush1.bf16.msra.mxu0 0
        %2045 = vmatprep.subr.bf16.mxu0 0
        %2046 = vmatpush1.bf16.msra.mxu0 0
        %2047 = vmatprep.subr.bf16.mxu0 0
        %2048 = vmatpush1.bf16.msra.mxu0 0
        %2049 = vmatprep.subr.bf16.mxu0 0
        %2050 = vmatpush1.bf16.msra.mxu0 0
        %2051 = vmatprep.subr.bf16.mxu0 0
        %2052 = vmatpush1.bf16.msra.mxu0 0
        %2053 = vmatprep.subr.bf16.mxu0 0
        %2054 = vmatpush1.bf16.msra.mxu0 0
        %2055 = vmatprep.subr.bf16.mxu0 0
        %2056 = vmatpush1.bf16.msra.mxu0 0
        %2057 = vmatprep.subr.bf16.mxu0 0
        %2058 = vmatpush1.bf16.msra.mxu0 0
        %2059 = vmatprep.mubr.bf16.mxu0 0
        %2060 = vmatmul.mubr.bf16.gmra.mrb[0].mxu0 %v1779
        %v2061 = vpop.f32.mrb[0].mxu0
        %v2062 = vadd.f32 0.0, %v2061
        %v2063 = vpop.f32.mrb[0].mxu0
        %v2064 = vadd.f32 0.0, %v2063
        %v2065 = vpop.f32.mrb[0].mxu0
        %v2066 = vpop.f32.mrb[0].mxu0
        %2067 = vdwg.mxu0
        %2068 = vmatprep.subr.bf16.mxu0 %v1408
        %2069 = vmatpush1.bf16.msra.mxu0 %v1407
        %2070 = vmatprep.subr.bf16.mxu0 %v1472
        %2071 = vmatpush1.bf16.msra.mxu0 %v1471
        %2072 = vmatprep.subr.bf16.mxu0 %v1536
        %2073 = vmatpush1.bf16.msra.mxu0 %v1535
        %2074 = vmatprep.subr.bf16.mxu0 0
        %2075 = vmatpush1.bf16.msra.mxu0 0
        %2076 = vmatprep.subr.bf16.mxu0 0
        %2077 = vmatpush1.bf16.msra.mxu0 0
        %2078 = vmatprep.subr.bf16.mxu0 0
        %2079 = vmatpush1.bf16.msra.mxu0 0
        %2080 = vmatprep.subr.bf16.mxu0 0
        %2081 = vmatpush1.bf16.msra.mxu0 0
        %2082 = vmatprep.subr.bf16.mxu0 0
        %2083 = vmatpush1.bf16.msra.mxu0 0
        %2084 = vmatprep.subr.bf16.mxu0 0
        %2085 = vmatpush1.bf16.msra.mxu0 0
        %2086 = vmatprep.subr.bf16.mxu0 0
        %2087 = vmatpush1.bf16.msra.mxu0 0
        %2088 = vmatprep.subr.bf16.mxu0 0
        %2089 = vmatpush1.bf16.msra.mxu0 0
        %2090 = vmatprep.subr.bf16.mxu0 0
        %2091 = vmatpush1.bf16.msra.mxu0 0
        %2092 = vmatprep.subr.bf16.mxu0 0
        %2093 = vmatpush1.bf16.msra.mxu0 0
        %2094 = vmatprep.subr.bf16.mxu0 0
        %2095 = vmatpush1.bf16.msra.mxu0 0
        %2096 = vmatprep.subr.bf16.mxu0 0
        %2097 = vmatpush1.bf16.msra.mxu0 0
        %2098 = vmatprep.subr.bf16.mxu0 0
        %2099 = vmatpush1.bf16.msra.mxu0 0
        %2100 = vmatprep.mubr.bf16.mxu0 0
        %2101 = vmatmul.mubr.bf16.gmra.mrb[0].mxu0 %v1779
        %v2102 = vpop.f32.mrb[0].mxu0
        %v2103 = vadd.f32 0.0, %v2102
        %v2104 = vpop.f32.mrb[0].mxu0
        %v2105 = vadd.f32 0.0, %v2104
        %v2106 = vpop.f32.mrb[0].mxu0
        %v2107 = vpop.f32.mrb[0].mxu0
        %2108 = vdwg.mxu0
        %2109 = vmatprep.subr.bf16.mxu0 %v1410
        %2110 = vmatpush1.bf16.msra.mxu0 %v1409
        %2111 = vmatprep.subr.bf16.mxu0 %v1474
        %2112 = vmatpush1.bf16.msra.mxu0 %v1473
        %2113 = vmatprep.subr.bf16.mxu0 %v1538
        %2114 = vmatpush1.bf16.msra.mxu0 %v1537
        %2115 = vmatprep.subr.bf16.mxu0 0
        %2116 = vmatpush1.bf16.msra.mxu0 0
        %2117 = vmatprep.subr.bf16.mxu0 0
        %2118 = vmatpush1.bf16.msra.mxu0 0
        %2119 = vmatprep.subr.bf16.mxu0 0
        %2120 = vmatpush1.bf16.msra.mxu0 0
        %2121 = vmatprep.subr.bf16.mxu0 0
        %2122 = vmatpush1.bf16.msra.mxu0 0
        %2123 = vmatprep.subr.bf16.mxu0 0
        %2124 = vmatpush1.bf16.msra.mxu0 0
        %2125 = vmatprep.subr.bf16.mxu0 0
        %2126 = vmatpush1.bf16.msra.mxu0 0
        %2127 = vmatprep.subr.bf16.mxu0 0
        %2128 = vmatpush1.bf16.msra.mxu0 0
        %2129 = vmatprep.subr.bf16.mxu0 0
        %2130 = vmatpush1.bf16.msra.mxu0 0
        %2131 = vmatprep.subr.bf16.mxu0 0
        %2132 = vmatpush1.bf16.msra.mxu0 0
        %2133 = vmatprep.subr.bf16.mxu0 0
        %2134 = vmatpush1.bf16.msra.mxu0 0
        %2135 = vmatprep.subr.bf16.mxu0 0
        %2136 = vmatpush1.bf16.msra.mxu0 0
        %2137 = vmatprep.subr.bf16.mxu0 0
        %2138 = vmatpush1.bf16.msra.mxu0 0
        %2139 = vmatprep.subr.bf16.mxu0 0
        %2140 = vmatpush1.bf16.msra.mxu0 0
        %2141 = vmatprep.mubr.bf16.mxu0 0
        %2142 = vmatmul.mubr.bf16.gmra.mrb[0].mxu0 %v1779
        %v2143 = vpop.f32.mrb[0].mxu0
        %v2144 = vadd.f32 0.0, %v2143
        %v2145 = vpop.f32.mrb[0].mxu0
        %v2146 = vadd.f32 0.0, %v2145
        %v2147 = vpop.f32.mrb[0].mxu0
        %v2148 = vpop.f32.mrb[0].mxu0
        %2149 = vdwg.mxu0
        %2150 = vmatprep.subr.bf16.mxu0 %v1412
        %2151 = vmatpush1.bf16.msra.mxu0 %v1411
        %2152 = vmatprep.subr.bf16.mxu0 %v1476
        %2153 = vmatpush1.bf16.msra.mxu0 %v1475
        %2154 = vmatprep.subr.bf16.mxu0 %v1540
        %2155 = vmatpush1.bf16.msra.mxu0 %v1539
        %2156 = vmatprep.subr.bf16.mxu0 0
        %2157 = vmatpush1.bf16.msra.mxu0 0
        %2158 = vmatprep.subr.bf16.mxu0 0
        %2159 = vmatpush1.bf16.msra.mxu0 0
        %2160 = vmatprep.subr.bf16.mxu0 0
        %2161 = vmatpush1.bf16.msra.mxu0 0
        %2162 = vmatprep.subr.bf16.mxu0 0
        %2163 = vmatpush1.bf16.msra.mxu0 0
        %2164 = vmatprep.subr.bf16.mxu0 0
        %2165 = vmatpush1.bf16.msra.mxu0 0
        %2166 = vmatprep.subr.bf16.mxu0 0
        %2167 = vmatpush1.bf16.msra.mxu0 0
        %2168 = vmatprep.subr.bf16.mxu0 0
        %2169 = vmatpush1.bf16.msra.mxu0 0
        %2170 = vmatprep.subr.bf16.mxu0 0
        %2171 = vmatpush1.bf16.msra.mxu0 0
        %2172 = vmatprep.subr.bf16.mxu0 0
        %2173 = vmatpush1.bf16.msra.mxu0 0
        %2174 = vmatprep.subr.bf16.mxu0 0
        %2175 = vmatpush1.bf16.msra.mxu0 0
        %2176 = vmatprep.subr.bf16.mxu0 0
        %2177 = vmatpush1.bf16.msra.mxu0 0
        %2178 = vmatprep.subr.bf16.mxu0 0
        %2179 = vmatpush1.bf16.msra.mxu0 0
        %2180 = vmatprep.subr.bf16.mxu0 0
        %2181 = vmatpush1.bf16.msra.mxu0 0
        %2182 = vmatprep.mubr.bf16.mxu0 0
        %2183 = vmatmul.mubr.bf16.gmra.mrb[0].mxu0 %v1779
        %v2184 = vpop.f32.mrb[0].mxu0
        %v2185 = vadd.f32 0.0, %v2184
        %v2186 = vpop.f32.mrb[0].mxu0
        %v2187 = vadd.f32 0.0, %v2186
        %v2188 = vpop.f32.mrb[0].mxu0
        %v2189 = vpop.f32.mrb[0].mxu0
        %2190 = vdwg.mxu0
        %2191 = vmatprep.subr.bf16.mxu0 %v1414
        %2192 = vmatpush1.bf16.msra.mxu0 %v1413
        %2193 = vmatprep.subr.bf16.mxu0 %v1478
        %2194 = vmatpush1.bf16.msra.mxu0 %v1477
        %2195 = vmatprep.subr.bf16.mxu0 %v1542
        %2196 = vmatpush1.bf16.msra.mxu0 %v1541
        %2197 = vmatprep.subr.bf16.mxu0 0
        %2198 = vmatpush1.bf16.msra.mxu0 0
        %2199 = vmatprep.subr.bf16.mxu0 0
        %2200 = vmatpush1.bf16.msra.mxu0 0
        %2201 = vmatprep.subr.bf16.mxu0 0
        %2202 = vmatpush1.bf16.msra.mxu0 0
        %2203 = vmatprep.subr.bf16.mxu0 0
        %2204 = vmatpush1.bf16.msra.mxu0 0
        %2205 = vmatprep.subr.bf16.mxu0 0
        %2206 = vmatpush1.bf16.msra.mxu0 0
        %2207 = vmatprep.subr.bf16.mxu0 0
        %2208 = vmatpush1.bf16.msra.mxu0 0
        %2209 = vmatprep.subr.bf16.mxu0 0
        %2210 = vmatpush1.bf16.msra.mxu0 0
        %2211 = vmatprep.subr.bf16.mxu0 0
        %2212 = vmatpush1.bf16.msra.mxu0 0
        %2213 = vmatprep.subr.bf16.mxu0 0
        %2214 = vmatpush1.bf16.msra.mxu0 0
        %2215 = vmatprep.subr.bf16.mxu0 0
        %2216 = vmatpush1.bf16.msra.mxu0 0
        %2217 = vmatprep.subr.bf16.mxu0 0
        %2218 = vmatpush1.bf16.msra.mxu0 0
        %2219 = vmatprep.subr.bf16.mxu0 0
        %2220 = vmatpush1.bf16.msra.mxu0 0
        %2221 = vmatprep.subr.bf16.mxu0 0
        %2222 = vmatpush1.bf16.msra.mxu0 0
        %2223 = vmatprep.mubr.bf16.mxu0 0
        %2224 = vmatmul.mubr.bf16.gmra.mrb[0].mxu0 %v1779
        %v2225 = vpop.f32.mrb[0].mxu0
        %v2226 = vadd.f32 0.0, %v2225
        %v2227 = vpop.f32.mrb[0].mxu0
        %v2228 = vadd.f32 0.0, %v2227
        %v2229 = vpop.f32.mrb[0].mxu0
        %v2230 = vpop.f32.mrb[0].mxu0
        %2231 = vdwg.mxu0
        %2232 = vmatprep.subr.bf16.mxu0 %v1416
        %2233 = vmatpush1.bf16.msra.mxu0 %v1415
        %2234 = vmatprep.subr.bf16.mxu0 %v1480
        %2235 = vmatpush1.bf16.msra.mxu0 %v1479
        %2236 = vmatprep.subr.bf16.mxu0 %v1544
        %2237 = vmatpush1.bf16.msra.mxu0 %v1543
        %2238 = vmatprep.subr.bf16.mxu0 0
        %2239 = vmatpush1.bf16.msra.mxu0 0
        %2240 = vmatprep.subr.bf16.mxu0 0
        %2241 = vmatpush1.bf16.msra.mxu0 0
        %2242 = vmatprep.subr.bf16.mxu0 0
        %2243 = vmatpush1.bf16.msra.mxu0 0
        %2244 = vmatprep.subr.bf16.mxu0 0
        %2245 = vmatpush1.bf16.msra.mxu0 0
        %2246 = vmatprep.subr.bf16.mxu0 0
        %2247 = vmatpush1.bf16.msra.mxu0 0
        %2248 = vmatprep.subr.bf16.mxu0 0
        %2249 = vmatpush1.bf16.msra.mxu0 0
        %2250 = vmatprep.subr.bf16.mxu0 0
        %2251 = vmatpush1.bf16.msra.mxu0 0
        %2252 = vmatprep.subr.bf16.mxu0 0
        %2253 = vmatpush1.bf16.msra.mxu0 0
        %2254 = vmatprep.subr.bf16.mxu0 0
        %2255 = vmatpush1.bf16.msra.mxu0 0
        %2256 = vmatprep.subr.bf16.mxu0 0
        %2257 = vmatpush1.bf16.msra.mxu0 0
        %2258 = vmatprep.subr.bf16.mxu0 0
        %2259 = vmatpush1.bf16.msra.mxu0 0
        %2260 = vmatprep.subr.bf16.mxu0 0
        %2261 = vmatpush1.bf16.msra.mxu0 0
        %2262 = vmatprep.subr.bf16.mxu0 0
        %2263 = vmatpush1.bf16.msra.mxu0 0
        %2264 = vmatprep.mubr.bf16.mxu0 0
        %2265 = vmatmul.mubr.bf16.gmra.mrb[0].mxu0 %v1779
        %v2266 = vpop.f32.mrb[0].mxu0
        %v2267 = vadd.f32 0.0, %v2266
        %v2268 = vpop.f32.mrb[0].mxu0
        %v2269 = vadd.f32 0.0, %v2268
        %v2270 = vpop.f32.mrb[0].mxu0
        %v2271 = vpop.f32.mrb[0].mxu0
        %2272 = vdwg.mxu0
        %2273 = vmatprep.subr.bf16.mxu0 %v1418
        %2274 = vmatpush1.bf16.msra.mxu0 %v1417
        %2275 = vmatprep.subr.bf16.mxu0 %v1482
        %2276 = vmatpush1.bf16.msra.mxu0 %v1481
        %2277 = vmatprep.subr.bf16.mxu0 %v1546
        %2278 = vmatpush1.bf16.msra.mxu0 %v1545
        %2279 = vmatprep.subr.bf16.mxu0 0
        %2280 = vmatpush1.bf16.msra.mxu0 0
        %2281 = vmatprep.subr.bf16.mxu0 0
        %2282 = vmatpush1.bf16.msra.mxu0 0
        %2283 = vmatprep.subr.bf16.mxu0 0
        %2284 = vmatpush1.bf16.msra.mxu0 0
        %2285 = vmatprep.subr.bf16.mxu0 0
        %2286 = vmatpush1.bf16.msra.mxu0 0
        %2287 = vmatprep.subr.bf16.mxu0 0
        %2288 = vmatpush1.bf16.msra.mxu0 0
        %2289 = vmatprep.subr.bf16.mxu0 0
        %2290 = vmatpush1.bf16.msra.mxu0 0
        %2291 = vmatprep.subr.bf16.mxu0 0
        %2292 = vmatpush1.bf16.msra.mxu0 0
        %2293 = vmatprep.subr.bf16.mxu0 0
        %2294 = vmatpush1.bf16.msra.mxu0 0
        %2295 = vmatprep.subr.bf16.mxu0 0
        %2296 = vmatpush1.bf16.msra.mxu0 0
        %2297 = vmatprep.subr.bf16.mxu0 0
        %2298 = vmatpush1.bf16.msra.mxu0 0
        %2299 = vmatprep.subr.bf16.mxu0 0
        %2300 = vmatpush1.bf16.msra.mxu0 0
        %2301 = vmatprep.subr.bf16.mxu0 0
        %2302 = vmatpush1.bf16.msra.mxu0 0
        %2303 = vmatprep.subr.bf16.mxu0 0
        %2304 = vmatpush1.bf16.msra.mxu0 0
        %2305 = vmatprep.mubr.bf16.mxu0 0
        %2306 = vmatmul.mubr.bf16.gmra.mrb[0].mxu0 %v1779
        %v2307 = vpop.f32.mrb[0].mxu0
        %v2308 = vadd.f32 0.0, %v2307
        %v2309 = vpop.f32.mrb[0].mxu0
        %v2310 = vadd.f32 0.0, %v2309
        %v2311 = vpop.f32.mrb[0].mxu0
        %v2312 = vpop.f32.mrb[0].mxu0
        %2313 = vdwg.mxu0
        %2314 = vmatprep.subr.bf16.mxu0 %v1420
        %2315 = vmatpush1.bf16.msra.mxu0 %v1419
        %2316 = vmatprep.subr.bf16.mxu0 %v1484
        %2317 = vmatpush1.bf16.msra.mxu0 %v1483
        %2318 = vmatprep.subr.bf16.mxu0 %v1548
        %2319 = vmatpush1.bf16.msra.mxu0 %v1547
        %2320 = vmatprep.subr.bf16.mxu0 0
        %2321 = vmatpush1.bf16.msra.mxu0 0
        %2322 = vmatprep.subr.bf16.mxu0 0
        %2323 = vmatpush1.bf16.msra.mxu0 0
        %2324 = vmatprep.subr.bf16.mxu0 0
        %2325 = vmatpush1.bf16.msra.mxu0 0
        %2326 = vmatprep.subr.bf16.mxu0 0
        %2327 = vmatpush1.bf16.msra.mxu0 0
        %2328 = vmatprep.subr.bf16.mxu0 0
        %2329 = vmatpush1.bf16.msra.mxu0 0
        %2330 = vmatprep.subr.bf16.mxu0 0
        %2331 = vmatpush1.bf16.msra.mxu0 0
        %2332 = vmatprep.subr.bf16.mxu0 0
        %2333 = vmatpush1.bf16.msra.mxu0 0
        %2334 = vmatprep.subr.bf16.mxu0 0
        %2335 = vmatpush1.bf16.msra.mxu0 0
        %2336 = vmatprep.subr.bf16.mxu0 0
        %2337 = vmatpush1.bf16.msra.mxu0 0
        %2338 = vmatprep.subr.bf16.mxu0 0
        %2339 = vmatpush1.bf16.msra.mxu0 0
        %2340 = vmatprep.subr.bf16.mxu0 0
        %2341 = vmatpush1.bf16.msra.mxu0 0
        %2342 = vmatprep.subr.bf16.mxu0 0
        %2343 = vmatpush1.bf16.msra.mxu0 0
        %2344 = vmatprep.subr.bf16.mxu0 0
        %2345 = vmatpush1.bf16.msra.mxu0 0
        %2346 = vmatprep.mubr.bf16.mxu0 0
        %2347 = vmatmul.mubr.bf16.gmra.mrb[0].mxu0 %v1779
        %v2348 = vpop.f32.mrb[0].mxu0
        %v2349 = vadd.f32 0.0, %v2348
        %v2350 = vpop.f32.mrb[0].mxu0
        %v2351 = vadd.f32 0.0, %v2350
        %v2352 = vpop.f32.mrb[0].mxu0
        %v2353 = vpop.f32.mrb[0].mxu0
        %2354 = vdwg.mxu0
        %2355 = vmatprep.subr.bf16.mxu0 %v1422
        %2356 = vmatpush1.bf16.msra.mxu0 %v1421
        %2357 = vmatprep.subr.bf16.mxu0 %v1486
        %2358 = vmatpush1.bf16.msra.mxu0 %v1485
        %2359 = vmatprep.subr.bf16.mxu0 %v1550
        %2360 = vmatpush1.bf16.msra.mxu0 %v1549
        %2361 = vmatprep.subr.bf16.mxu0 0
        %2362 = vmatpush1.bf16.msra.mxu0 0
        %2363 = vmatprep.subr.bf16.mxu0 0
        %2364 = vmatpush1.bf16.msra.mxu0 0
        %2365 = vmatprep.subr.bf16.mxu0 0
        %2366 = vmatpush1.bf16.msra.mxu0 0
        %2367 = vmatprep.subr.bf16.mxu0 0
        %2368 = vmatpush1.bf16.msra.mxu0 0
        %2369 = vmatprep.subr.bf16.mxu0 0
        %2370 = vmatpush1.bf16.msra.mxu0 0
        %2371 = vmatprep.subr.bf16.mxu0 0
        %2372 = vmatpush1.bf16.msra.mxu0 0
        %2373 = vmatprep.subr.bf16.mxu0 0
        %2374 = vmatpush1.bf16.msra.mxu0 0
        %2375 = vmatprep.subr.bf16.mxu0 0
        %2376 = vmatpush1.bf16.msra.mxu0 0
        %2377 = vmatprep.subr.bf16.mxu0 0
        %2378 = vmatpush1.bf16.msra.mxu0 0
        %2379 = vmatprep.subr.bf16.mxu0 0
        %2380 = vmatpush1.bf16.msra.mxu0 0
        %2381 = vmatprep.subr.bf16.mxu0 0
        %2382 = vmatpush1.bf16.msra.mxu0 0
        %2383 = vmatprep.subr.bf16.mxu0 0
        %2384 = vmatpush1.bf16.msra.mxu0 0
        %2385 = vmatprep.subr.bf16.mxu0 0
        %2386 = vmatpush1.bf16.msra.mxu0 0
        %2387 = vmatprep.mubr.bf16.mxu0 0
        %2388 = vmatmul.mubr.bf16.gmra.mrb[0].mxu0 %v1779
        %v2389 = vpop.f32.mrb[0].mxu0
        %v2390 = vadd.f32 0.0, %v2389
        %v2391 = vpop.f32.mrb[0].mxu0
        %v2392 = vadd.f32 0.0, %v2391
        %v2393 = vpop.f32.mrb[0].mxu0
        %v2394 = vpop.f32.mrb[0].mxu0
        %2395 = vdwg.mxu0
        %2396 = vmatprep.subr.bf16.mxu0 %v1424
        %2397 = vmatpush1.bf16.msra.mxu0 %v1423
        %2398 = vmatprep.subr.bf16.mxu0 %v1488
        %2399 = vmatpush1.bf16.msra.mxu0 %v1487
        %2400 = vmatprep.subr.bf16.mxu0 %v1552
        %2401 = vmatpush1.bf16.msra.mxu0 %v1551
        %2402 = vmatprep.subr.bf16.mxu0 0
        %2403 = vmatpush1.bf16.msra.mxu0 0
        %2404 = vmatprep.subr.bf16.mxu0 0
        %2405 = vmatpush1.bf16.msra.mxu0 0
        %2406 = vmatprep.subr.bf16.mxu0 0
        %2407 = vmatpush1.bf16.msra.mxu0 0
        %2408 = vmatprep.subr.bf16.mxu0 0
        %2409 = vmatpush1.bf16.msra.mxu0 0
        %2410 = vmatprep.subr.bf16.mxu0 0
        %2411 = vmatpush1.bf16.msra.mxu0 0
        %2412 = vmatprep.subr.bf16.mxu0 0
        %2413 = vmatpush1.bf16.msra.mxu0 0
        %2414 = vmatprep.subr.bf16.mxu0 0
        %2415 = vmatpush1.bf16.msra.mxu0 0
        %2416 = vmatprep.subr.bf16.mxu0 0
        %2417 = vmatpush1.bf16.msra.mxu0 0
        %2418 = vmatprep.subr.bf16.mxu0 0
        %2419 = vmatpush1.bf16.msra.mxu0 0
        %2420 = vmatprep.subr.bf16.mxu0 0
        %2421 = vmatpush1.bf16.msra.mxu0 0
        %2422 = vmatprep.subr.bf16.mxu0 0
        %2423 = vmatpush1.bf16.msra.mxu0 0
        %2424 = vmatprep.subr.bf16.mxu0 0
        %2425 = vmatpush1.bf16.msra.mxu0 0
        %2426 = vmatprep.subr.bf16.mxu0 0
        %2427 = vmatpush1.bf16.msra.mxu0 0
        %2428 = vmatprep.mubr.bf16.mxu0 0
        %2429 = vmatmul.mubr.bf16.gmra.mrb[0].mxu0 %v1779
        %v2430 = vpop.f32.mrb[0].mxu0
        %v2431 = vadd.f32 0.0, %v2430
        %v2432 = vpop.f32.mrb[0].mxu0
        %v2433 = vadd.f32 0.0, %v2432
        %v2434 = vpop.f32.mrb[0].mxu0
        %v2435 = vpop.f32.mrb[0].mxu0
        %2436 = vdwg.mxu0
        %2437 = vmatprep.subr.bf16.mxu0 %v1426
        %2438 = vmatpush1.bf16.msra.mxu0 %v1425
        %2439 = vmatprep.subr.bf16.mxu0 %v1490
        %2440 = vmatpush1.bf16.msra.mxu0 %v1489
        %2441 = vmatprep.subr.bf16.mxu0 %v1554
        %2442 = vmatpush1.bf16.msra.mxu0 %v1553
        %2443 = vmatprep.subr.bf16.mxu0 0
        %2444 = vmatpush1.bf16.msra.mxu0 0
        %2445 = vmatprep.subr.bf16.mxu0 0
        %2446 = vmatpush1.bf16.msra.mxu0 0
        %2447 = vmatprep.subr.bf16.mxu0 0
        %2448 = vmatpush1.bf16.msra.mxu0 0
        %2449 = vmatprep.subr.bf16.mxu0 0
        %2450 = vmatpush1.bf16.msra.mxu0 0
        %2451 = vmatprep.subr.bf16.mxu0 0
        %2452 = vmatpush1.bf16.msra.mxu0 0
        %2453 = vmatprep.subr.bf16.mxu0 0
        %2454 = vmatpush1.bf16.msra.mxu0 0
        %2455 = vmatprep.subr.bf16.mxu0 0
        %2456 = vmatpush1.bf16.msra.mxu0 0
        %2457 = vmatprep.subr.bf16.mxu0 0
        %2458 = vmatpush1.bf16.msra.mxu0 0
        %2459 = vmatprep.subr.bf16.mxu0 0
        %2460 = vmatpush1.bf16.msra.mxu0 0
        %2461 = vmatprep.subr.bf16.mxu0 0
        %2462 = vmatpush1.bf16.msra.mxu0 0
        %2463 = vmatprep.subr.bf16.mxu0 0
        %2464 = vmatpush1.bf16.msra.mxu0 0
        %2465 = vmatprep.subr.bf16.mxu0 0
        %2466 = vmatpush1.bf16.msra.mxu0 0
        %2467 = vmatprep.subr.bf16.mxu0 0
        %2468 = vmatpush1.bf16.msra.mxu0 0
        %2469 = vmatprep.mubr.bf16.mxu0 0
        %2470 = vmatmul.mubr.bf16.gmra.mrb[0].mxu0 %v1779
        %v2471 = vpop.f32.mrb[0].mxu0
        %v2472 = vadd.f32 0.0, %v2471
        %v2473 = vpop.f32.mrb[0].mxu0
        %v2474 = vadd.f32 0.0, %v2473
        %v2475 = vpop.f32.mrb[0].mxu0
        %v2476 = vpop.f32.mrb[0].mxu0
        %2477 = vdwg.mxu0
        %2478 = vmatprep.subr.bf16.mxu0 %v1428
        %2479 = vmatpush1.bf16.msra.mxu0 %v1427
        %2480 = vmatprep.subr.bf16.mxu0 %v1492
        %2481 = vmatpush1.bf16.msra.mxu0 %v1491
        %2482 = vmatprep.subr.bf16.mxu0 %v1556
        %2483 = vmatpush1.bf16.msra.mxu0 %v1555
        %2484 = vmatprep.subr.bf16.mxu0 0
        %2485 = vmatpush1.bf16.msra.mxu0 0
        %2486 = vmatprep.subr.bf16.mxu0 0
        %2487 = vmatpush1.bf16.msra.mxu0 0
        %2488 = vmatprep.subr.bf16.mxu0 0
        %2489 = vmatpush1.bf16.msra.mxu0 0
        %2490 = vmatprep.subr.bf16.mxu0 0
        %2491 = vmatpush1.bf16.msra.mxu0 0
        %2492 = vmatprep.subr.bf16.mxu0 0
        %2493 = vmatpush1.bf16.msra.mxu0 0
        %2494 = vmatprep.subr.bf16.mxu0 0
        %2495 = vmatpush1.bf16.msra.mxu0 0
        %2496 = vmatprep.subr.bf16.mxu0 0
        %2497 = vmatpush1.bf16.msra.mxu0 0
        %2498 = vmatprep.subr.bf16.mxu0 0
        %2499 = vmatpush1.bf16.msra.mxu0 0
        %2500 = vmatprep.subr.bf16.mxu0 0
        %2501 = vmatpush1.bf16.msra.mxu0 0
        %2502 = vmatprep.subr.bf16.mxu0 0
        %2503 = vmatpush1.bf16.msra.mxu0 0
        %2504 = vmatprep.subr.bf16.mxu0 0
        %2505 = vmatpush1.bf16.msra.mxu0 0
        %2506 = vmatprep.subr.bf16.mxu0 0
        %2507 = vmatpush1.bf16.msra.mxu0 0
        %2508 = vmatprep.subr.bf16.mxu0 0
        %2509 = vmatpush1.bf16.msra.mxu0 0
        %2510 = vmatprep.mubr.bf16.mxu0 0
        %2511 = vmatmul.mubr.bf16.gmra.mrb[0].mxu0 %v1779
        %v2512 = vpop.f32.mrb[0].mxu0
        %v2513 = vadd.f32 0.0, %v2512
        %v2514 = vpop.f32.mrb[0].mxu0
        %v2515 = vadd.f32 0.0, %v2514
        %v2516 = vpop.f32.mrb[0].mxu0
        %v2517 = vpop.f32.mrb[0].mxu0
        %2518 = vdwg.mxu0
        %2519 = vmatprep.subr.bf16.mxu0 %v1430
        %2520 = vmatpush1.bf16.msra.mxu0 %v1429
        %2521 = vmatprep.subr.bf16.mxu0 %v1494
        %2522 = vmatpush1.bf16.msra.mxu0 %v1493
        %2523 = vmatprep.subr.bf16.mxu0 %v1558
        %2524 = vmatpush1.bf16.msra.mxu0 %v1557
        %2525 = vmatprep.subr.bf16.mxu0 0
        %2526 = vmatpush1.bf16.msra.mxu0 0
        %2527 = vmatprep.subr.bf16.mxu0 0
        %2528 = vmatpush1.bf16.msra.mxu0 0
        %2529 = vmatprep.subr.bf16.mxu0 0
        %2530 = vmatpush1.bf16.msra.mxu0 0
        %2531 = vmatprep.subr.bf16.mxu0 0
        %2532 = vmatpush1.bf16.msra.mxu0 0
        %2533 = vmatprep.subr.bf16.mxu0 0
        %2534 = vmatpush1.bf16.msra.mxu0 0
        %2535 = vmatprep.subr.bf16.mxu0 0
        %2536 = vmatpush1.bf16.msra.mxu0 0
        %2537 = vmatprep.subr.bf16.mxu0 0
        %2538 = vmatpush1.bf16.msra.mxu0 0
        %2539 = vmatprep.subr.bf16.mxu0 0
        %2540 = vmatpush1.bf16.msra.mxu0 0
        %2541 = vmatprep.subr.bf16.mxu0 0
        %2542 = vmatpush1.bf16.msra.mxu0 0
        %2543 = vmatprep.subr.bf16.mxu0 0
        %2544 = vmatpush1.bf16.msra.mxu0 0
        %2545 = vmatprep.subr.bf16.mxu0 0
        %2546 = vmatpush1.bf16.msra.mxu0 0
        %2547 = vmatprep.subr.bf16.mxu0 0
        %2548 = vmatpush1.bf16.msra.mxu0 0
        %2549 = vmatprep.subr.bf16.mxu0 0
        %2550 = vmatpush1.bf16.msra.mxu0 0
        %2551 = vmatprep.mubr.bf16.mxu0 0
        %2552 = vmatmul.mubr.bf16.gmra.mrb[0].mxu0 %v1779
        %v2553 = vpop.f32.mrb[0].mxu0
        %v2554 = vadd.f32 0.0, %v2553
        %v2555 = vpop.f32.mrb[0].mxu0
        %v2556 = vadd.f32 0.0, %v2555
        %v2557 = vpop.f32.mrb[0].mxu0
        %v2558 = vpop.f32.mrb[0].mxu0
        %2559 = vdwg.mxu0
        %2560 = vmatprep.subr.bf16.mxu0 %v1432
        %2561 = vmatpush1.bf16.msra.mxu0 %v1431
        %2562 = vmatprep.subr.bf16.mxu0 %v1496
        %2563 = vmatpush1.bf16.msra.mxu0 %v1495
        %2564 = vmatprep.subr.bf16.mxu0 %v1560
        %2565 = vmatpush1.bf16.msra.mxu0 %v1559
        %2566 = vmatprep.subr.bf16.mxu0 0
        %2567 = vmatpush1.bf16.msra.mxu0 0
        %2568 = vmatprep.subr.bf16.mxu0 0
        %2569 = vmatpush1.bf16.msra.mxu0 0
        %2570 = vmatprep.subr.bf16.mxu0 0
        %2571 = vmatpush1.bf16.msra.mxu0 0
        %2572 = vmatprep.subr.bf16.mxu0 0
        %2573 = vmatpush1.bf16.msra.mxu0 0
        %2574 = vmatprep.subr.bf16.mxu0 0
        %2575 = vmatpush1.bf16.msra.mxu0 0
        %2576 = vmatprep.subr.bf16.mxu0 0
        %2577 = vmatpush1.bf16.msra.mxu0 0
        %2578 = vmatprep.subr.bf16.mxu0 0
        %2579 = vmatpush1.bf16.msra.mxu0 0
        %2580 = vmatprep.subr.bf16.mxu0 0
        %2581 = vmatpush1.bf16.msra.mxu0 0
        %2582 = vmatprep.subr.bf16.mxu0 0
        %2583 = vmatpush1.bf16.msra.mxu0 0
        %2584 = vmatprep.subr.bf16.mxu0 0
        %2585 = vmatpush1.bf16.msra.mxu0 0
        %2586 = vmatprep.subr.bf16.mxu0 0
        %2587 = vmatpush1.bf16.msra.mxu0 0
        %2588 = vmatprep.subr.bf16.mxu0 0
        %2589 = vmatpush1.bf16.msra.mxu0 0
        %2590 = vmatprep.subr.bf16.mxu0 0
        %2591 = vmatpush1.bf16.msra.mxu0 0
        %2592 = vmatprep.mubr.bf16.mxu0 0
        %2593 = vmatmul.mubr.bf16.gmra.mrb[0].mxu0 %v1779
        %v2594 = vpop.f32.mrb[0].mxu0
        %v2595 = vadd.f32 0.0, %v2594
        %v2596 = vpop.f32.mrb[0].mxu0
        %v2597 = vadd.f32 0.0, %v2596
        %v2598 = vpop.f32.mrb[0].mxu0
        %v2599 = vpop.f32.mrb[0].mxu0
        %2600 = vdwg.mxu0
        %2601 = vmatprep.subr.bf16.mxu0 %v1434
        %2602 = vmatpush1.bf16.msra.mxu0 %v1433
        %2603 = vmatprep.subr.bf16.mxu0 %v1498
        %2604 = vmatpush1.bf16.msra.mxu0 %v1497
        %2605 = vmatprep.subr.bf16.mxu0 %v1562
        %2606 = vmatpush1.bf16.msra.mxu0 %v1561
        %2607 = vmatprep.subr.bf16.mxu0 0
        %2608 = vmatpush1.bf16.msra.mxu0 0
        %2609 = vmatprep.subr.bf16.mxu0 0
        %2610 = vmatpush1.bf16.msra.mxu0 0
        %2611 = vmatprep.subr.bf16.mxu0 0
        %2612 = vmatpush1.bf16.msra.mxu0 0
        %2613 = vmatprep.subr.bf16.mxu0 0
        %2614 = vmatpush1.bf16.msra.mxu0 0
        %2615 = vmatprep.subr.bf16.mxu0 0
        %2616 = vmatpush1.bf16.msra.mxu0 0
        %2617 = vmatprep.subr.bf16.mxu0 0
        %2618 = vmatpush1.bf16.msra.mxu0 0
        %2619 = vmatprep.subr.bf16.mxu0 0
        %2620 = vmatpush1.bf16.msra.mxu0 0
        %2621 = vmatprep.subr.bf16.mxu0 0
        %2622 = vmatpush1.bf16.msra.mxu0 0
        %2623 = vmatprep.subr.bf16.mxu0 0
        %2624 = vmatpush1.bf16.msra.mxu0 0
        %2625 = vmatprep.subr.bf16.mxu0 0
        %2626 = vmatpush1.bf16.msra.mxu0 0
        %2627 = vmatprep.subr.bf16.mxu0 0
        %2628 = vmatpush1.bf16.msra.mxu0 0
        %2629 = vmatprep.subr.bf16.mxu0 0
        %2630 = vmatpush1.bf16.msra.mxu0 0
        %2631 = vmatprep.subr.bf16.mxu0 0
        %2632 = vmatpush1.bf16.msra.mxu0 0
        %2633 = vmatprep.mubr.bf16.mxu0 0
        %2634 = vmatmul.mubr.bf16.gmra.mrb[0].mxu0 %v1779
        %v2635 = vpop.f32.mrb[0].mxu0
        %v2636 = vadd.f32 0.0, %v2635
        %v2637 = vpop.f32.mrb[0].mxu0
        %v2638 = vadd.f32 0.0, %v2637
        %v2639 = vpop.f32.mrb[0].mxu0
        %v2640 = vpop.f32.mrb[0].mxu0
        %2641 = vdwg.mxu0
        %2642 = vmatprep.subr.bf16.mxu0 %v1436
        %2643 = vmatpush1.bf16.msra.mxu0 %v1435
        %2644 = vmatprep.subr.bf16.mxu0 %v1500
        %2645 = vmatpush1.bf16.msra.mxu0 %v1499
        %2646 = vmatprep.subr.bf16.mxu0 %v1564
        %2647 = vmatpush1.bf16.msra.mxu0 %v1563
        %2648 = vmatprep.subr.bf16.mxu0 0
        %2649 = vmatpush1.bf16.msra.mxu0 0
        %2650 = vmatprep.subr.bf16.mxu0 0
        %2651 = vmatpush1.bf16.msra.mxu0 0
        %2652 = vmatprep.subr.bf16.mxu0 0
        %2653 = vmatpush1.bf16.msra.mxu0 0
        %2654 = vmatprep.subr.bf16.mxu0 0
        %2655 = vmatpush1.bf16.msra.mxu0 0
        %2656 = vmatprep.subr.bf16.mxu0 0
        %2657 = vmatpush1.bf16.msra.mxu0 0
        %2658 = vmatprep.subr.bf16.mxu0 0
        %2659 = vmatpush1.bf16.msra.mxu0 0
        %2660 = vmatprep.subr.bf16.mxu0 0
        %2661 = vmatpush1.bf16.msra.mxu0 0
        %2662 = vmatprep.subr.bf16.mxu0 0
        %2663 = vmatpush1.bf16.msra.mxu0 0
        %2664 = vmatprep.subr.bf16.mxu0 0
        %2665 = vmatpush1.bf16.msra.mxu0 0
        %2666 = vmatprep.subr.bf16.mxu0 0
        %2667 = vmatpush1.bf16.msra.mxu0 0
        %2668 = vmatprep.subr.bf16.mxu0 0
        %2669 = vmatpush1.bf16.msra.mxu0 0
        %2670 = vmatprep.subr.bf16.mxu0 0
        %2671 = vmatpush1.bf16.msra.mxu0 0
        %2672 = vmatprep.subr.bf16.mxu0 0
        %2673 = vmatpush1.bf16.msra.mxu0 0
        %2674 = vmatprep.mubr.bf16.mxu0 0
        %2675 = vmatmul.mubr.bf16.gmra.mrb[0].mxu0 %v1779
        %v2676 = vpop.f32.mrb[0].mxu0
        %v2677 = vadd.f32 0.0, %v2676
        %v2678 = vpop.f32.mrb[0].mxu0
        %v2679 = vadd.f32 0.0, %v2678
        %v2680 = vpop.f32.mrb[0].mxu0
        %v2681 = vpop.f32.mrb[0].mxu0
        %2682 = vdwg.mxu0
        %2683 = vmatprep.subr.bf16.mxu0 %v1438
        %2684 = vmatpush1.bf16.msra.mxu0 %v1437
        %2685 = vmatprep.subr.bf16.mxu0 %v1502
        %2686 = vmatpush1.bf16.msra.mxu0 %v1501
        %2687 = vmatprep.subr.bf16.mxu0 %v1566
        %2688 = vmatpush1.bf16.msra.mxu0 %v1565
        %2689 = vmatprep.subr.bf16.mxu0 0
        %2690 = vmatpush1.bf16.msra.mxu0 0
        %2691 = vmatprep.subr.bf16.mxu0 0
        %2692 = vmatpush1.bf16.msra.mxu0 0
        %2693 = vmatprep.subr.bf16.mxu0 0
        %2694 = vmatpush1.bf16.msra.mxu0 0
        %2695 = vmatprep.subr.bf16.mxu0 0
        %2696 = vmatpush1.bf16.msra.mxu0 0
        %2697 = vmatprep.subr.bf16.mxu0 0
        %2698 = vmatpush1.bf16.msra.mxu0 0
        %2699 = vmatprep.subr.bf16.mxu0 0
        %2700 = vmatpush1.bf16.msra.mxu0 0
        %2701 = vmatprep.subr.bf16.mxu0 0
        %2702 = vmatpush1.bf16.msra.mxu0 0
        %2703 = vmatprep.subr.bf16.mxu0 0
        %2704 = vmatpush1.bf16.msra.mxu0 0
        %2705 = vmatprep.subr.bf16.mxu0 0
        %2706 = vmatpush1.bf16.msra.mxu0 0
        %2707 = vmatprep.subr.bf16.mxu0 0
        %2708 = vmatpush1.bf16.msra.mxu0 0
        %2709 = vmatprep.subr.bf16.mxu0 0
        %2710 = vmatpush1.bf16.msra.mxu0 0
        %2711 = vmatprep.subr.bf16.mxu0 0
        %2712 = vmatpush1.bf16.msra.mxu0 0
        %2713 = vmatprep.subr.bf16.mxu0 0
        %2714 = vmatpush1.bf16.msra.mxu0 0
        %2715 = vmatprep.mubr.bf16.mxu0 0
        %2716 = vmatmul.mubr.bf16.gmra.mrb[0].mxu0 %v1779
        %v2717 = vpop.f32.mrb[0].mxu0
        %v2718 = vadd.f32 0.0, %v2717
        %v2719 = vpop.f32.mrb[0].mxu0
        %v2720 = vadd.f32 0.0, %v2719
        %v2721 = vpop.f32.mrb[0].mxu0
        %v2722 = vpop.f32.mrb[0].mxu0
        %2723 = vdwg.mxu0
        %2724 = vmatprep.subr.bf16.mxu0 %v1440
        %2725 = vmatpush1.bf16.msra.mxu0 %v1439
        %2726 = vmatprep.subr.bf16.mxu0 %v1504
        %2727 = vmatpush1.bf16.msra.mxu0 %v1503
        %2728 = vmatprep.subr.bf16.mxu0 %v1568
        %2729 = vmatpush1.bf16.msra.mxu0 %v1567
        %2730 = vmatprep.subr.bf16.mxu0 0
        %2731 = vmatpush1.bf16.msra.mxu0 0
        %2732 = vmatprep.subr.bf16.mxu0 0
        %2733 = vmatpush1.bf16.msra.mxu0 0
        %2734 = vmatprep.subr.bf16.mxu0 0
        %2735 = vmatpush1.bf16.msra.mxu0 0
        %2736 = vmatprep.subr.bf16.mxu0 0
        %2737 = vmatpush1.bf16.msra.mxu0 0
        %2738 = vmatprep.subr.bf16.mxu0 0
        %2739 = vmatpush1.bf16.msra.mxu0 0
        %2740 = vmatprep.subr.bf16.mxu0 0
        %2741 = vmatpush1.bf16.msra.mxu0 0
        %2742 = vmatprep.subr.bf16.mxu0 0
        %2743 = vmatpush1.bf16.msra.mxu0 0
        %2744 = vmatprep.subr.bf16.mxu0 0
        %2745 = vmatpush1.bf16.msra.mxu0 0
        %2746 = vmatprep.subr.bf16.mxu0 0
        %2747 = vmatpush1.bf16.msra.mxu0 0
        %2748 = vmatprep.subr.bf16.mxu0 0
        %2749 = vmatpush1.bf16.msra.mxu0 0
        %2750 = vmatprep.subr.bf16.mxu0 0
        %2751 = vmatpush1.bf16.msra.mxu0 0
        %2752 = vmatprep.subr.bf16.mxu0 0
        %2753 = vmatpush1.bf16.msra.mxu0 0
        %2754 = vmatprep.subr.bf16.mxu0 0
        %2755 = vmatpush1.bf16.msra.mxu0 0
        %2756 = vmatprep.mubr.bf16.mxu0 0
        %2757 = vmatmul.mubr.bf16.gmra.mrb[0].mxu0 %v1779
        %v2758 = vpop.f32.mrb[0].mxu0
        %v2759 = vadd.f32 0.0, %v2758
        %v2760 = vpop.f32.mrb[0].mxu0
        %v2761 = vadd.f32 0.0, %v2760
        %v2762 = vpop.f32.mrb[0].mxu0
        %v2763 = vpop.f32.mrb[0].mxu0
        %2764 = vdwg.mxu0
        %2765 = vmatprep.subr.bf16.mxu0 %v1442
        %2766 = vmatpush1.bf16.msra.mxu0 %v1441
        %2767 = vmatprep.subr.bf16.mxu0 %v1506
        %2768 = vmatpush1.bf16.msra.mxu0 %v1505
        %2769 = vmatprep.subr.bf16.mxu0 %v1570
        %2770 = vmatpush1.bf16.msra.mxu0 %v1569
        %2771 = vmatprep.subr.bf16.mxu0 0
        %2772 = vmatpush1.bf16.msra.mxu0 0
        %2773 = vmatprep.subr.bf16.mxu0 0
        %2774 = vmatpush1.bf16.msra.mxu0 0
        %2775 = vmatprep.subr.bf16.mxu0 0
        %2776 = vmatpush1.bf16.msra.mxu0 0
        %2777 = vmatprep.subr.bf16.mxu0 0
        %2778 = vmatpush1.bf16.msra.mxu0 0
        %2779 = vmatprep.subr.bf16.mxu0 0
        %2780 = vmatpush1.bf16.msra.mxu0 0
        %2781 = vmatprep.subr.bf16.mxu0 0
        %2782 = vmatpush1.bf16.msra.mxu0 0
        %2783 = vmatprep.subr.bf16.mxu0 0
        %2784 = vmatpush1.bf16.msra.mxu0 0
        %2785 = vmatprep.subr.bf16.mxu0 0
        %2786 = vmatpush1.bf16.msra.mxu0 0
        %2787 = vmatprep.subr.bf16.mxu0 0
        %2788 = vmatpush1.bf16.msra.mxu0 0
        %2789 = vmatprep.subr.bf16.mxu0 0
        %2790 = vmatpush1.bf16.msra.mxu0 0
        %2791 = vmatprep.subr.bf16.mxu0 0
        %2792 = vmatpush1.bf16.msra.mxu0 0
        %2793 = vmatprep.subr.bf16.mxu0 0
        %2794 = vmatpush1.bf16.msra.mxu0 0
        %2795 = vmatprep.subr.bf16.mxu0 0
        %2796 = vmatpush1.bf16.msra.mxu0 0
        %2797 = vmatprep.mubr.bf16.mxu0 0
        %2798 = vmatmul.mubr.bf16.gmra.mrb[0].mxu0 %v1779
        %v2799 = vpop.f32.mrb[0].mxu0
        %v2800 = vadd.f32 0.0, %v2799
        %v2801 = vpop.f32.mrb[0].mxu0
        %v2802 = vadd.f32 0.0, %v2801
        %v2803 = vpop.f32.mrb[0].mxu0
        %v2804 = vpop.f32.mrb[0].mxu0
        %2805 = vdwg.mxu0
        %2806 = vmatprep.subr.bf16.mxu0 %v1444
        %2807 = vmatpush1.bf16.msra.mxu0 %v1443
        %2808 = vmatprep.subr.bf16.mxu0 %v1508
        %2809 = vmatpush1.bf16.msra.mxu0 %v1507
        %2810 = vmatprep.subr.bf16.mxu0 %v1572
        %2811 = vmatpush1.bf16.msra.mxu0 %v1571
        %2812 = vmatprep.subr.bf16.mxu0 0
        %2813 = vmatpush1.bf16.msra.mxu0 0
        %2814 = vmatprep.subr.bf16.mxu0 0
        %2815 = vmatpush1.bf16.msra.mxu0 0
        %2816 = vmatprep.subr.bf16.mxu0 0
        %2817 = vmatpush1.bf16.msra.mxu0 0
        %2818 = vmatprep.subr.bf16.mxu0 0
        %2819 = vmatpush1.bf16.msra.mxu0 0
        %2820 = vmatprep.subr.bf16.mxu0 0
        %2821 = vmatpush1.bf16.msra.mxu0 0
        %2822 = vmatprep.subr.bf16.mxu0 0
        %2823 = vmatpush1.bf16.msra.mxu0 0
        %2824 = vmatprep.subr.bf16.mxu0 0
        %2825 = vmatpush1.bf16.msra.mxu0 0
        %2826 = vmatprep.subr.bf16.mxu0 0
        %2827 = vmatpush1.bf16.msra.mxu0 0
        %2828 = vmatprep.subr.bf16.mxu0 0
        %2829 = vmatpush1.bf16.msra.mxu0 0
        %2830 = vmatprep.subr.bf16.mxu0 0
        %2831 = vmatpush1.bf16.msra.mxu0 0
        %2832 = vmatprep.subr.bf16.mxu0 0
        %2833 = vmatpush1.bf16.msra.mxu0 0
        %2834 = vmatprep.subr.bf16.mxu0 0
        %2835 = vmatpush1.bf16.msra.mxu0 0
        %2836 = vmatprep.subr.bf16.mxu0 0
        %2837 = vmatpush1.bf16.msra.mxu0 0
        %2838 = vmatprep.mubr.bf16.mxu0 0
        %2839 = vmatmul.mubr.bf16.gmra.mrb[0].mxu0 %v1779
        %v2840 = vpop.f32.mrb[0].mxu0
        %v2841 = vadd.f32 0.0, %v2840
        %v2842 = vpop.f32.mrb[0].mxu0
        %v2843 = vadd.f32 0.0, %v2842
        %v2844 = vpop.f32.mrb[0].mxu0
        %v2845 = vpop.f32.mrb[0].mxu0
        %2846 = vdwg.mxu0
        %2847 = vmatprep.subr.bf16.mxu0 %v1446
        %2848 = vmatpush1.bf16.msra.mxu0 %v1445
        %2849 = vmatprep.subr.bf16.mxu0 %v1510
        %2850 = vmatpush1.bf16.msra.mxu0 %v1509
        %2851 = vmatprep.subr.bf16.mxu0 %v1574
        %2852 = vmatpush1.bf16.msra.mxu0 %v1573
        %2853 = vmatprep.subr.bf16.mxu0 0
        %2854 = vmatpush1.bf16.msra.mxu0 0
        %2855 = vmatprep.subr.bf16.mxu0 0
        %2856 = vmatpush1.bf16.msra.mxu0 0
        %2857 = vmatprep.subr.bf16.mxu0 0
        %2858 = vmatpush1.bf16.msra.mxu0 0
        %2859 = vmatprep.subr.bf16.mxu0 0
        %2860 = vmatpush1.bf16.msra.mxu0 0
        %2861 = vmatprep.subr.bf16.mxu0 0
        %2862 = vmatpush1.bf16.msra.mxu0 0
        %2863 = vmatprep.subr.bf16.mxu0 0
        %2864 = vmatpush1.bf16.msra.mxu0 0
        %2865 = vmatprep.subr.bf16.mxu0 0
        %2866 = vmatpush1.bf16.msra.mxu0 0
        %2867 = vmatprep.subr.bf16.mxu0 0
        %2868 = vmatpush1.bf16.msra.mxu0 0
        %2869 = vmatprep.subr.bf16.mxu0 0
        %2870 = vmatpush1.bf16.msra.mxu0 0
        %2871 = vmatprep.subr.bf16.mxu0 0
        %2872 = vmatpush1.bf16.msra.mxu0 0
        %2873 = vmatprep.subr.bf16.mxu0 0
        %2874 = vmatpush1.bf16.msra.mxu0 0
        %2875 = vmatprep.subr.bf16.mxu0 0
        %2876 = vmatpush1.bf16.msra.mxu0 0
        %2877 = vmatprep.subr.bf16.mxu0 0
        %2878 = vmatpush1.bf16.msra.mxu0 0
        %2879 = vmatprep.mubr.bf16.mxu0 0
        %2880 = vmatmul.mubr.bf16.gmra.mrb[0].mxu0 %v1779
        %v2881 = vpop.f32.mrb[0].mxu0
        %v2882 = vadd.f32 0.0, %v2881
        %v2883 = vpop.f32.mrb[0].mxu0
        %v2884 = vadd.f32 0.0, %v2883
        %v2885 = vpop.f32.mrb[0].mxu0
        %v2886 = vpop.f32.mrb[0].mxu0
        %2887 = vdwg.mxu0
        %2888 = vmatprep.subr.bf16.mxu0 %v1448
        %2889 = vmatpush1.bf16.msra.mxu0 %v1447
        %2890 = vmatprep.subr.bf16.mxu0 %v1512
        %2891 = vmatpush1.bf16.msra.mxu0 %v1511
        %2892 = vmatprep.subr.bf16.mxu0 %v1576
        %2893 = vmatpush1.bf16.msra.mxu0 %v1575
        %2894 = vmatprep.subr.bf16.mxu0 0
        %2895 = vmatpush1.bf16.msra.mxu0 0
        %2896 = vmatprep.subr.bf16.mxu0 0
        %2897 = vmatpush1.bf16.msra.mxu0 0
        %2898 = vmatprep.subr.bf16.mxu0 0
        %2899 = vmatpush1.bf16.msra.mxu0 0
        %2900 = vmatprep.subr.bf16.mxu0 0
        %2901 = vmatpush1.bf16.msra.mxu0 0
        %2902 = vmatprep.subr.bf16.mxu0 0
        %2903 = vmatpush1.bf16.msra.mxu0 0
        %2904 = vmatprep.subr.bf16.mxu0 0
        %2905 = vmatpush1.bf16.msra.mxu0 0
        %2906 = vmatprep.subr.bf16.mxu0 0
        %2907 = vmatpush1.bf16.msra.mxu0 0
        %2908 = vmatprep.subr.bf16.mxu0 0
        %2909 = vmatpush1.bf16.msra.mxu0 0
        %2910 = vmatprep.subr.bf16.mxu0 0
        %2911 = vmatpush1.bf16.msra.mxu0 0
        %2912 = vmatprep.subr.bf16.mxu0 0
        %2913 = vmatpush1.bf16.msra.mxu0 0
        %2914 = vmatprep.subr.bf16.mxu0 0
        %2915 = vmatpush1.bf16.msra.mxu0 0
        %2916 = vmatprep.subr.bf16.mxu0 0
        %2917 = vmatpush1.bf16.msra.mxu0 0
        %2918 = vmatprep.subr.bf16.mxu0 0
        %2919 = vmatpush1.bf16.msra.mxu0 0
        %2920 = vmatprep.mubr.bf16.mxu0 0
        %2921 = vmatmul.mubr.bf16.gmra.mrb[0].mxu0 %v1779
        %v2922 = vpop.f32.mrb[0].mxu0
        %v2923 = vadd.f32 0.0, %v2922
        %v2924 = vpop.f32.mrb[0].mxu0
        %v2925 = vadd.f32 0.0, %v2924
        %v2926 = vpop.f32.mrb[0].mxu0
        %v2927 = vpop.f32.mrb[0].mxu0
        %2928 = vdwg.mxu0
        %2929 = vmatprep.subr.bf16.mxu0 %v1450
        %2930 = vmatpush1.bf16.msra.mxu0 %v1449
        %2931 = vmatprep.subr.bf16.mxu0 %v1514
        %2932 = vmatpush1.bf16.msra.mxu0 %v1513
        %2933 = vmatprep.subr.bf16.mxu0 %v1578
        %2934 = vmatpush1.bf16.msra.mxu0 %v1577
        %2935 = vmatprep.subr.bf16.mxu0 0
        %2936 = vmatpush1.bf16.msra.mxu0 0
        %2937 = vmatprep.subr.bf16.mxu0 0
        %2938 = vmatpush1.bf16.msra.mxu0 0
        %2939 = vmatprep.subr.bf16.mxu0 0
        %2940 = vmatpush1.bf16.msra.mxu0 0
        %2941 = vmatprep.subr.bf16.mxu0 0
        %2942 = vmatpush1.bf16.msra.mxu0 0
        %2943 = vmatprep.subr.bf16.mxu0 0
        %2944 = vmatpush1.bf16.msra.mxu0 0
        %2945 = vmatprep.subr.bf16.mxu0 0
        %2946 = vmatpush1.bf16.msra.mxu0 0
        %2947 = vmatprep.subr.bf16.mxu0 0
        %2948 = vmatpush1.bf16.msra.mxu0 0
        %2949 = vmatprep.subr.bf16.mxu0 0
        %2950 = vmatpush1.bf16.msra.mxu0 0
        %2951 = vmatprep.subr.bf16.mxu0 0
        %2952 = vmatpush1.bf16.msra.mxu0 0
        %2953 = vmatprep.subr.bf16.mxu0 0
        %2954 = vmatpush1.bf16.msra.mxu0 0
        %2955 = vmatprep.subr.bf16.mxu0 0
        %2956 = vmatpush1.bf16.msra.mxu0 0
        %2957 = vmatprep.subr.bf16.mxu0 0
        %2958 = vmatpush1.bf16.msra.mxu0 0
        %2959 = vmatprep.subr.bf16.mxu0 0
        %2960 = vmatpush1.bf16.msra.mxu0 0
        %2961 = vmatprep.mubr.bf16.mxu0 0
        %2962 = vmatmul.mubr.bf16.gmra.mrb[0].mxu0 %v1779
        %v2963 = vpop.f32.mrb[0].mxu0
        %v2964 = vadd.f32 0.0, %v2963
        %v2965 = vpop.f32.mrb[0].mxu0
        %v2966 = vadd.f32 0.0, %v2965
        %v2967 = vpop.f32.mrb[0].mxu0
        %v2968 = vpop.f32.mrb[0].mxu0
        %2969 = vdwg.mxu0
        %2970 = vmatprep.subr.bf16.mxu0 %v1452
        %2971 = vmatpush1.bf16.msra.mxu0 %v1451
        %2972 = vmatprep.subr.bf16.mxu0 %v1516
        %2973 = vmatpush1.bf16.msra.mxu0 %v1515
        %2974 = vmatprep.subr.bf16.mxu0 %v1580
        %2975 = vmatpush1.bf16.msra.mxu0 %v1579
        %2976 = vmatprep.subr.bf16.mxu0 0
        %2977 = vmatpush1.bf16.msra.mxu0 0
        %2978 = vmatprep.subr.bf16.mxu0 0
        %2979 = vmatpush1.bf16.msra.mxu0 0
        %2980 = vmatprep.subr.bf16.mxu0 0
        %2981 = vmatpush1.bf16.msra.mxu0 0
        %2982 = vmatprep.subr.bf16.mxu0 0
        %2983 = vmatpush1.bf16.msra.mxu0 0
        %2984 = vmatprep.subr.bf16.mxu0 0
        %2985 = vmatpush1.bf16.msra.mxu0 0
        %2986 = vmatprep.subr.bf16.mxu0 0
        %2987 = vmatpush1.bf16.msra.mxu0 0
        %2988 = vmatprep.subr.bf16.mxu0 0
        %2989 = vmatpush1.bf16.msra.mxu0 0
        %2990 = vmatprep.subr.bf16.mxu0 0
        %2991 = vmatpush1.bf16.msra.mxu0 0
        %2992 = vmatprep.subr.bf16.mxu0 0
        %2993 = vmatpush1.bf16.msra.mxu0 0
        %2994 = vmatprep.subr.bf16.mxu0 0
        %2995 = vmatpush1.bf16.msra.mxu0 0
        %2996 = vmatprep.subr.bf16.mxu0 0
        %2997 = vmatpush1.bf16.msra.mxu0 0
        %2998 = vmatprep.subr.bf16.mxu0 0
        %2999 = vmatpush1.bf16.msra.mxu0 0
        %3000 = vmatprep.subr.bf16.mxu0 0
        %3001 = vmatpush1.bf16.msra.mxu0 0
        %3002 = vmatprep.mubr.bf16.mxu0 0
        %3003 = vmatmul.mubr.bf16.gmra.mrb[0].mxu0 %v1779
        %v3004 = vpop.f32.mrb[0].mxu0
        %v3005 = vadd.f32 0.0, %v3004
        %v3006 = vpop.f32.mrb[0].mxu0
        %v3007 = vadd.f32 0.0, %v3006
        %v3008 = vpop.f32.mrb[0].mxu0
        %v3009 = vpop.f32.mrb[0].mxu0
        %3010 = vdwg.mxu0
        %3011 = vmatprep.subr.bf16.mxu0 %v1454
        %3012 = vmatpush1.bf16.msra.mxu0 %v1453
        %3013 = vmatprep.subr.bf16.mxu0 %v1518
        %3014 = vmatpush1.bf16.msra.mxu0 %v1517
        %3015 = vmatprep.subr.bf16.mxu0 %v1582
        %3016 = vmatpush1.bf16.msra.mxu0 %v1581
        %3017 = vmatprep.subr.bf16.mxu0 0
        %3018 = vmatpush1.bf16.msra.mxu0 0
        %3019 = vmatprep.subr.bf16.mxu0 0
        %3020 = vmatpush1.bf16.msra.mxu0 0
        %3021 = vmatprep.subr.bf16.mxu0 0
        %3022 = vmatpush1.bf16.msra.mxu0 0
        %3023 = vmatprep.subr.bf16.mxu0 0
        %3024 = vmatpush1.bf16.msra.mxu0 0
        %3025 = vmatprep.subr.bf16.mxu0 0
        %3026 = vmatpush1.bf16.msra.mxu0 0
        %3027 = vmatprep.subr.bf16.mxu0 0
        %3028 = vmatpush1.bf16.msra.mxu0 0
        %3029 = vmatprep.subr.bf16.mxu0 0
        %3030 = vmatpush1.bf16.msra.mxu0 0
        %3031 = vmatprep.subr.bf16.mxu0 0
        %3032 = vmatpush1.bf16.msra.mxu0 0
        %3033 = vmatprep.subr.bf16.mxu0 0
        %3034 = vmatpush1.bf16.msra.mxu0 0
        %3035 = vmatprep.subr.bf16.mxu0 0
        %3036 = vmatpush1.bf16.msra.mxu0 0
        %3037 = vmatprep.subr.bf16.mxu0 0
        %3038 = vmatpush1.bf16.msra.mxu0 0
        %3039 = vmatprep.subr.bf16.mxu0 0
        %3040 = vmatpush1.bf16.msra.mxu0 0
        %3041 = vmatprep.subr.bf16.mxu0 0
        %3042 = vmatpush1.bf16.msra.mxu0 0
        %3043 = vmatprep.mubr.bf16.mxu0 0
        %3044 = vmatmul.mubr.bf16.gmra.mrb[0].mxu0 %v1779
        %v3045 = vpop.f32.mrb[0].mxu0
        %v3046 = vadd.f32 0.0, %v3045
        %v3047 = vpop.f32.mrb[0].mxu0
        %v3048 = vadd.f32 0.0, %v3047
        %v3049 = vpop.f32.mrb[0].mxu0
        %v3050 = vpop.f32.mrb[0].mxu0
        %3051 = vdwg.mxu0
        %3052 = vmatprep.subr.bf16.mxu0 %v1456
        %3053 = vmatpush1.bf16.msra.mxu0 %v1455
        %3054 = vmatprep.subr.bf16.mxu0 %v1520
        %3055 = vmatpush1.bf16.msra.mxu0 %v1519
        %3056 = vmatprep.subr.bf16.mxu0 %v1584
        %3057 = vmatpush1.bf16.msra.mxu0 %v1583
        %3058 = vmatprep.subr.bf16.mxu0 0
        %3059 = vmatpush1.bf16.msra.mxu0 0
        %3060 = vmatprep.subr.bf16.mxu0 0
        %3061 = vmatpush1.bf16.msra.mxu0 0
        %3062 = vmatprep.subr.bf16.mxu0 0
        %3063 = vmatpush1.bf16.msra.mxu0 0
        %3064 = vmatprep.subr.bf16.mxu0 0
        %3065 = vmatpush1.bf16.msra.mxu0 0
        %3066 = vmatprep.subr.bf16.mxu0 0
        %3067 = vmatpush1.bf16.msra.mxu0 0
        %3068 = vmatprep.subr.bf16.mxu0 0
        %3069 = vmatpush1.bf16.msra.mxu0 0
        %3070 = vmatprep.subr.bf16.mxu0 0
        %3071 = vmatpush1.bf16.msra.mxu0 0
        %3072 = vmatprep.subr.bf16.mxu0 0
        %3073 = vmatpush1.bf16.msra.mxu0 0
        %3074 = vmatprep.subr.bf16.mxu0 0
        %3075 = vmatpush1.bf16.msra.mxu0 0
        %3076 = vmatprep.subr.bf16.mxu0 0
        %3077 = vmatpush1.bf16.msra.mxu0 0
        %3078 = vmatprep.subr.bf16.mxu0 0
        %3079 = vmatpush1.bf16.msra.mxu0 0
        %3080 = vmatprep.subr.bf16.mxu0 0
        %3081 = vmatpush1.bf16.msra.mxu0 0
        %3082 = vmatprep.subr.bf16.mxu0 0
        %3083 = vmatpush1.bf16.msra.mxu0 0
        %3084 = vmatprep.mubr.bf16.mxu0 0
        %3085 = vmatmul.mubr.bf16.gmra.mrb[0].mxu0 %v1779
        %v3086 = vpop.f32.mrb[0].mxu0
        %v3087 = vadd.f32 0.0, %v3086
        %v3088 = vpop.f32.mrb[0].mxu0
        %v3089 = vadd.f32 0.0, %v3088
        %v3090 = vpop.f32.mrb[0].mxu0
        %v3091 = vpop.f32.mrb[0].mxu0
        %3092 = vdwg.mxu0
        %v3093 = vpack.c.bf16 %v1816, %v1816
        %v3094 = vpack.c.bf16 %v1818, %v1818
        %v3095 = vpack.c.bf16 %v1857, %v1857
        %v3096 = vpack.c.bf16 %v1859, %v1859
        %v3097 = vpack.c.bf16 %v1898, %v1898
        %v3098 = vpack.c.bf16 %v1900, %v1900
        %v3099 = vpack.c.bf16 %v1939, %v1939
        %v3100 = vpack.c.bf16 %v1941, %v1941
        %v3101 = vpack.c.bf16 %v1980, %v1980
        %v3102 = vpack.c.bf16 %v1982, %v1982
        %v3103 = vpack.c.bf16 %v2021, %v2021
        %v3104 = vpack.c.bf16 %v2023, %v2023
        %v3105 = vpack.c.bf16 %v2062, %v2062
        %v3106 = vpack.c.bf16 %v2064, %v2064
        %v3107 = vpack.c.bf16 %v2103, %v2103
        %v3108 = vpack.c.bf16 %v2105, %v2105
        %v3109 = vpack.c.bf16 %v2144, %v2144
        %v3110 = vpack.c.bf16 %v2146, %v2146
        %v3111 = vpack.c.bf16 %v2185, %v2185
        %v3112 = vpack.c.bf16 %v2187, %v2187
        %v3113 = vpack.c.bf16 %v2226, %v2226
        %v3114 = vpack.c.bf16 %v2228, %v2228
        %v3115 = vpack.c.bf16 %v2267, %v2267
        %v3116 = vpack.c.bf16 %v2269, %v2269
        %v3117 = vpack.c.bf16 %v2308, %v2308
        %v3118 = vpack.c.bf16 %v2310, %v2310
        %v3119 = vpack.c.bf16 %v2349, %v2349
        %v3120 = vpack.c.bf16 %v2351, %v2351
        %v3121 = vpack.c.bf16 %v2390, %v2390
        %v3122 = vpack.c.bf16 %v2392, %v2392
        %v3123 = vpack.c.bf16 %v2431, %v2431
        %v3124 = vpack.c.bf16 %v2433, %v2433
        %v3125 = vpack.c.bf16 %v2472, %v2472
        %v3126 = vpack.c.bf16 %v2474, %v2474
        %v3127 = vpack.c.bf16 %v2513, %v2513
        %v3128 = vpack.c.bf16 %v2515, %v2515
        %v3129 = vpack.c.bf16 %v2554, %v2554
        %v3130 = vpack.c.bf16 %v2556, %v2556
        %v3131 = vpack.c.bf16 %v2595, %v2595
        %v3132 = vpack.c.bf16 %v2597, %v2597
        %v3133 = vpack.c.bf16 %v2636, %v2636
        %v3134 = vpack.c.bf16 %v2638, %v2638
        %v3135 = vpack.c.bf16 %v2677, %v2677
        %v3136 = vpack.c.bf16 %v2679, %v2679
        %v3137 = vpack.c.bf16 %v2718, %v2718
        %v3138 = vpack.c.bf16 %v2720, %v2720
        %v3139 = vpack.c.bf16 %v2759, %v2759
        %v3140 = vpack.c.bf16 %v2761, %v2761
        %v3141 = vpack.c.bf16 %v2800, %v2800
        %v3142 = vpack.c.bf16 %v2802, %v2802
        %v3143 = vpack.c.bf16 %v2841, %v2841
        %v3144 = vpack.c.bf16 %v2843, %v2843
        %v3145 = vpack.c.bf16 %v2882, %v2882
        %v3146 = vpack.c.bf16 %v2884, %v2884
        %v3147 = vpack.c.bf16 %v2923, %v2923
        %v3148 = vpack.c.bf16 %v2925, %v2925
        %v3149 = vpack.c.bf16 %v2964, %v2964
        %v3150 = vpack.c.bf16 %v2966, %v2966
        %v3151 = vpack.c.bf16 %v3005, %v3005
        %v3152 = vpack.c.bf16 %v3007, %v3007
        %v3153 = vpack.c.bf16 %v3046, %v3046
        %v3154 = vpack.c.bf16 %v3048, %v3048
        %v3155 = vpack.c.bf16 %v3087, %v3087
        %v3156 = vpack.c.bf16 %v3089, %v3089
        %v3221 = vunpack.c.l.b16 %v3093
        %v3222 = vunpack.c.l.b16 %v3094
        %v3223 = vunpack.c.l.b16 %v3095
        %v3224 = vunpack.c.l.b16 %v3096
        %v3225 = vunpack.c.l.b16 %v3097
        %v3226 = vunpack.c.l.b16 %v3098
        %v3227 = vunpack.c.l.b16 %v3099
        %v3228 = vunpack.c.l.b16 %v3100
        %v3229 = vunpack.c.l.b16 %v3101
        %v3230 = vunpack.c.l.b16 %v3102
        %v3231 = vunpack.c.l.b16 %v3103
        %v3232 = vunpack.c.l.b16 %v3104
        %v3233 = vunpack.c.l.b16 %v3105
        %v3234 = vunpack.c.l.b16 %v3106
        %v3235 = vunpack.c.l.b16 %v3107
        %v3236 = vunpack.c.l.b16 %v3108
        %v3237 = vunpack.c.l.b16 %v3109
        %v3238 = vunpack.c.l.b16 %v3110
        %v3239 = vunpack.c.l.b16 %v3111
        %v3240 = vunpack.c.l.b16 %v3112
        %v3241 = vunpack.c.l.b16 %v3113
        %v3242 = vunpack.c.l.b16 %v3114
        %v3243 = vunpack.c.l.b16 %v3115
        %v3244 = vunpack.c.l.b16 %v3116
        %v3245 = vunpack.c.l.b16 %v3117
        %v3246 = vunpack.c.l.b16 %v3118
        %v3247 = vunpack.c.l.b16 %v3119
        %v3248 = vunpack.c.l.b16 %v3120
        %v3249 = vunpack.c.l.b16 %v3121
        %v3250 = vunpack.c.l.b16 %v3122
        %v3251 = vunpack.c.l.b16 %v3123
        %v3252 = vunpack.c.l.b16 %v3124
        %v3253 = vunpack.c.l.b16 %v3125
        %v3254 = vunpack.c.l.b16 %v3126
        %v3255 = vunpack.c.l.b16 %v3127
        %v3256 = vunpack.c.l.b16 %v3128
        %v3257 = vunpack.c.l.b16 %v3129
        %v3258 = vunpack.c.l.b16 %v3130
        %v3259 = vunpack.c.l.b16 %v3131
        %v3260 = vunpack.c.l.b16 %v3132
        %v3261 = vunpack.c.l.b16 %v3133
        %v3262 = vunpack.c.l.b16 %v3134
        %v3263 = vunpack.c.l.b16 %v3135
        %v3264 = vunpack.c.l.b16 %v3136
        %v3265 = vunpack.c.l.b16 %v3137
        %v3266 = vunpack.c.l.b16 %v3138
        %v3267 = vunpack.c.l.b16 %v3139
        %v3268 = vunpack.c.l.b16 %v3140
        %v3269 = vunpack.c.l.b16 %v3141
        %v3270 = vunpack.c.l.b16 %v3142
        %v3271 = vunpack.c.l.b16 %v3143
        %v3272 = vunpack.c.l.b16 %v3144
        %v3273 = vunpack.c.l.b16 %v3145
        %v3274 = vunpack.c.l.b16 %v3146
        %v3275 = vunpack.c.l.b16 %v3147
        %v3276 = vunpack.c.l.b16 %v3148
        %v3277 = vunpack.c.l.b16 %v3149
        %v3278 = vunpack.c.l.b16 %v3150
        %v3279 = vunpack.c.l.b16 %v3151
        %v3280 = vunpack.c.l.b16 %v3152
        %v3281 = vunpack.c.l.b16 %v3153
        %v3282 = vunpack.c.l.b16 %v3154
        %v3283 = vunpack.c.l.b16 %v3155
        %v3284 = vunpack.c.l.b16 %v3156
        %v3285 = vpack.c.b16 %v3222, %v3221
        %v3286 = vpack.c.b16 %v3224, %v3223
        %v3287 = vpack.c.b16 %v3226, %v3225
        %v3288 = vpack.c.b16 %v3228, %v3227
        %v3289 = vpack.c.b16 %v3230, %v3229
        %v3290 = vpack.c.b16 %v3232, %v3231
        %v3291 = vpack.c.b16 %v3234, %v3233
        %v3292 = vpack.c.b16 %v3236, %v3235
        %v3293 = vpack.c.b16 %v3238, %v3237
        %v3294 = vpack.c.b16 %v3240, %v3239
        %v3295 = vpack.c.b16 %v3242, %v3241
        %v3296 = vpack.c.b16 %v3244, %v3243
        %v3297 = vpack.c.b16 %v3246, %v3245
        %v3298 = vpack.c.b16 %v3248, %v3247
        %v3299 = vpack.c.b16 %v3250, %v3249
        %v3300 = vpack.c.b16 %v3252, %v3251
        %v3301 = vpack.c.b16 %v3254, %v3253
        %v3302 = vpack.c.b16 %v3256, %v3255
        %v3303 = vpack.c.b16 %v3258, %v3257
        %v3304 = vpack.c.b16 %v3260, %v3259
        %v3305 = vpack.c.b16 %v3262, %v3261
        %v3306 = vpack.c.b16 %v3264, %v3263
        %v3307 = vpack.c.b16 %v3266, %v3265
        %v3308 = vpack.c.b16 %v3268, %v3267
        %v3309 = vpack.c.b16 %v3270, %v3269
        %v3310 = vpack.c.b16 %v3272, %v3271
        %v3311 = vpack.c.b16 %v3274, %v3273
        %v3312 = vpack.c.b16 %v3276, %v3275
        %v3313 = vpack.c.b16 %v3278, %v3277
        %v3314 = vpack.c.b16 %v3280, %v3279
        %v3315 = vpack.c.b16 %v3282, %v3281
        %v3316 = vpack.c.b16 %v3284, %v3283
        %3349 = vst [vmem:[%s613] sm:$0xff] %v3285
        %3350 = vst [vmem:[%s613 + $0x8] sm:$0xff] %v3286
        %3351 = vst [vmem:[%s613 + $0x10] sm:$0xff] %v3287
        %3352 = vst [vmem:[%s613 + $0x18] sm:$0xff] %v3288
        %3353 = vst [vmem:[%s613 + $0x20] sm:$0xff] %v3289
        %3354 = vst [vmem:[%s613 + $0x28] sm:$0xff] %v3290
        %3355 = vst [vmem:[%s613 + $0x30] sm:$0xff] %v3291
        %3356 = vst [vmem:[%s613 + $0x38] sm:$0xff] %v3292
        %3357 = vst [vmem:[%s613 + $0x40] sm:$0xff] %v3293
        %3358 = vst [vmem:[%s613 + $0x48] sm:$0xff] %v3294
        %3359 = vst [vmem:[%s613 + $0x50] sm:$0xff] %v3295
        %3360 = vst [vmem:[%s613 + $0x58] sm:$0xff] %v3296
        %3361 = vst [vmem:[%s613 + $0x60] sm:$0xff] %v3297
        %3362 = vst [vmem:[%s613 + $0x68] sm:$0xff] %v3298
        %3363 = vst [vmem:[%s613 + $0x70] sm:$0xff] %v3299
        %3364 = vst [vmem:[%s613 + $0x78] sm:$0xff] %v3300
        %3365 = vst [vmem:[%s613 + $0x80] sm:$0xff] %v3301
        %3366 = vst [vmem:[%s613 + $0x88] sm:$0xff] %v3302
        %3367 = vst [vmem:[%s613 + $0x90] sm:$0xff] %v3303
        %3368 = vst [vmem:[%s613 + $0x98] sm:$0xff] %v3304
        %3369 = vst [vmem:[%s613 + $0xa0] sm:$0xff] %v3305
        %3370 = vst [vmem:[%s613 + $0xa8] sm:$0xff] %v3306
        %3371 = vst [vmem:[%s613 + $0xb0] sm:$0xff] %v3307
        %3372 = vst [vmem:[%s613 + $0xb8] sm:$0xff] %v3308
        %3373 = vst [vmem:[%s613 + $0xc0] sm:$0xff] %v3309
        %3374 = vst [vmem:[%s613 + $0xc8] sm:$0xff] %v3310
        %3375 = vst [vmem:[%s613 + $0xd0] sm:$0xff] %v3311
        %3376 = vst [vmem:[%s613 + $0xd8] sm:$0xff] %v3312
        %3377 = vst [vmem:[%s613 + $0xe0] sm:$0xff] %v3313
        %3378 = vst [vmem:[%s613 + $0xe8] sm:$0xff] %v3314
        %3379 = vst [vmem:[%s613 + $0xf0] sm:$0xff] %v3315
        %3380 = vst [vmem:[%s613 + $0xf8] sm:$0xff] %v3316
        %v3381 = vadd.f32 %v1816, %v1818
        %v3382 = vadd.f32 %v3381, %v1857
        %v3383 = vadd.f32 %v3382, %v1859
        %v3384 = vadd.f32 %v3383, %v1898
        %v3385 = vadd.f32 %v3384, %v1900
        %v3386 = vadd.f32 %v3385, %v1939
        %v3387 = vadd.f32 %v3386, %v1941
        %v3388 = vadd.f32 %v3387, %v1980
        %v3389 = vadd.f32 %v3388, %v1982
        %v3390 = vadd.f32 %v3389, %v2021
        %v3391 = vadd.f32 %v3390, %v2023
        %v3392 = vadd.f32 %v3391, %v2062
        %v3393 = vadd.f32 %v3392, %v2064
        %v3394 = vadd.f32 %v3393, %v2103
        %v3395 = vadd.f32 %v3394, %v2105
        %v3396 = vadd.f32 %v3395, %v2144
        %v3397 = vadd.f32 %v3396, %v2146
        %v3398 = vadd.f32 %v3397, %v2185
        %v3399 = vadd.f32 %v3398, %v2187
        %v3400 = vadd.f32 %v3399, %v2226
        %v3401 = vadd.f32 %v3400, %v2228
        %v3402 = vadd.f32 %v3401, %v2267
        %v3403 = vadd.f32 %v3402, %v2269
        %v3404 = vadd.f32 %v3403, %v2308
        %v3405 = vadd.f32 %v3404, %v2310
        %v3406 = vadd.f32 %v3405, %v2349
        %v3407 = vadd.f32 %v3406, %v2351
        %v3408 = vadd.f32 %v3407, %v2390
        %v3409 = vadd.f32 %v3408, %v2392
        %v3410 = vadd.f32 %v3409, %v2431
        %v3411 = vadd.f32 %v3410, %v2433
        %v3412 = vadd.f32 %v3411, %v2472
        %v3413 = vadd.f32 %v3412, %v2474
        %v3414 = vadd.f32 %v3413, %v2513
        %v3415 = vadd.f32 %v3414, %v2515
        %v3416 = vadd.f32 %v3415, %v2554
        %v3417 = vadd.f32 %v3416, %v2556
        %v3418 = vadd.f32 %v3417, %v2595
        %v3419 = vadd.f32 %v3418, %v2597
        %v3420 = vadd.f32 %v3419, %v2636
        %v3421 = vadd.f32 %v3420, %v2638
        %v3422 = vadd.f32 %v3421, %v2677
        %v3423 = vadd.f32 %v3422, %v2679
        %v3424 = vadd.f32 %v3423, %v2718
        %v3425 = vadd.f32 %v3424, %v2720
        %v3426 = vadd.f32 %v3425, %v2759
        %v3427 = vadd.f32 %v3426, %v2761
        %v3428 = vadd.f32 %v3427, %v2800
        %v3429 = vadd.f32 %v3428, %v2802
        %v3430 = vadd.f32 %v3429, %v2841
        %v3431 = vadd.f32 %v3430, %v2843
        %v3432 = vadd.f32 %v3431, %v2882
        %v3433 = vadd.f32 %v3432, %v2884
        %v3434 = vadd.f32 %v3433, %v2923
        %v3435 = vadd.f32 %v3434, %v2925
        %v3436 = vadd.f32 %v3435, %v2964
        %v3437 = vadd.f32 %v3436, %v2966
        %v3438 = vadd.f32 %v3437, %v3005
        %v3439 = vadd.f32 %v3438, %v3007
        %v3440 = vadd.f32 %v3439, %v3046
        %v3441 = vadd.f32 %v3440, %v3048
        %v3442 = vadd.f32 %v3441, %v3087
        %v3443 = vadd.f32 %v3442, %v3089
        %3444 = vadd.xlane.f32.xlu0 %v3443
        %v3445 = vpop.xlane.xlu0 %3444
        %vm3446 = vcmask 7168
        %3447 = vst.msk [vmem:[%s618] sm:$0xff] %vm3446, %v3445
        %v3448 = vmul.f32 %v1816, %v1816
        %v3449 = vmul.f32 %v1818, %v1818
        %v3450 = vmul.f32 %v1857, %v1857
        %v3451 = vmul.f32 %v1859, %v1859
        %v3452 = vmul.f32 %v1898, %v1898
        %v3453 = vmul.f32 %v1900, %v1900
        %v3454 = vmul.f32 %v1939, %v1939
        %v3455 = vmul.f32 %v1941, %v1941
        %v3456 = vmul.f32 %v1980, %v1980
        %v3457 = vmul.f32 %v1982, %v1982
        %v3458 = vmul.f32 %v2021, %v2021
        %v3459 = vmul.f32 %v2023, %v2023
        %v3460 = vmul.f32 %v2062, %v2062
        %v3461 = vmul.f32 %v2064, %v2064
        %v3462 = vmul.f32 %v2103, %v2103
        %v3463 = vmul.f32 %v2105, %v2105
        %v3464 = vmul.f32 %v2144, %v2144
        %v3465 = vmul.f32 %v2146, %v2146
        %v3466 = vmul.f32 %v2185, %v2185
        %v3467 = vmul.f32 %v2187, %v2187
        %v3468 = vmul.f32 %v2226, %v2226
        %v3469 = vmul.f32 %v2228, %v2228
        %v3470 = vmul.f32 %v2267, %v2267
        %v3471 = vmul.f32 %v2269, %v2269
        %v3472 = vmul.f32 %v2308, %v2308
        %v3473 = vmul.f32 %v2310, %v2310
        %v3474 = vmul.f32 %v2349, %v2349
        %v3475 = vmul.f32 %v2351, %v2351
        %v3476 = vmul.f32 %v2390, %v2390
        %v3477 = vmul.f32 %v2392, %v2392
        %v3478 = vmul.f32 %v2431, %v2431
        %v3479 = vmul.f32 %v2433, %v2433
        %v3480 = vmul.f32 %v2472, %v2472
        %v3481 = vmul.f32 %v2474, %v2474
        %v3482 = vmul.f32 %v2513, %v2513
        %v3483 = vmul.f32 %v2515, %v2515
        %v3484 = vmul.f32 %v2554, %v2554
        %v3485 = vmul.f32 %v2556, %v2556
        %v3486 = vmul.f32 %v2595, %v2595
        %v3487 = vmul.f32 %v2597, %v2597
        %v3488 = vmul.f32 %v2636, %v2636
        %v3489 = vmul.f32 %v2638, %v2638
        %v3490 = vmul.f32 %v2677, %v2677
        %v3491 = vmul.f32 %v2679, %v2679
        %v3492 = vmul.f32 %v2718, %v2718
        %v3493 = vmul.f32 %v2720, %v2720
        %v3494 = vmul.f32 %v2759, %v2759
        %v3495 = vmul.f32 %v2761, %v2761
        %v3496 = vmul.f32 %v2800, %v2800
        %v3497 = vmul.f32 %v2802, %v2802
        %v3498 = vmul.f32 %v2841, %v2841
        %v3499 = vmul.f32 %v2843, %v2843
        %v3500 = vmul.f32 %v2882, %v2882
        %v3501 = vmul.f32 %v2884, %v2884
        %v3502 = vmul.f32 %v2923, %v2923
        %v3503 = vmul.f32 %v2925, %v2925
        %v3504 = vmul.f32 %v2964, %v2964
        %v3505 = vmul.f32 %v2966, %v2966
        %v3506 = vmul.f32 %v3005, %v3005
        %v3507 = vmul.f32 %v3007, %v3007
        %v3508 = vmul.f32 %v3046, %v3046
        %v3509 = vmul.f32 %v3048, %v3048
        %v3510 = vmul.f32 %v3087, %v3087
        %v3511 = vmul.f32 %v3089, %v3089
        %v3512 = vadd.f32 %v3448, %v3449
        %v3513 = vadd.f32 %v3512, %v3450
        %v3514 = vadd.f32 %v3513, %v3451
        %v3515 = vadd.f32 %v3514, %v3452
        %v3516 = vadd.f32 %v3515, %v3453
        %v3517 = vadd.f32 %v3516, %v3454
        %v3518 = vadd.f32 %v3517, %v3455
        %v3519 = vadd.f32 %v3518, %v3456
        %v3520 = vadd.f32 %v3519, %v3457
        %v3521 = vadd.f32 %v3520, %v3458
        %v3522 = vadd.f32 %v3521, %v3459
        %v3523 = vadd.f32 %v3522, %v3460
        %v3524 = vadd.f32 %v3523, %v3461
        %v3525 = vadd.f32 %v3524, %v3462
        %v3526 = vadd.f32 %v3525, %v3463
        %v3527 = vadd.f32 %v3526, %v3464
        %v3528 = vadd.f32 %v3527, %v3465
        %v3529 = vadd.f32 %v3528, %v3466
        %v3530 = vadd.f32 %v3529, %v3467
        %v3531 = vadd.f32 %v3530, %v3468
        %v3532 = vadd.f32 %v3531, %v3469
        %v3533 = vadd.f32 %v3532, %v3470
        %v3534 = vadd.f32 %v3533, %v3471
        %v3535 = vadd.f32 %v3534, %v3472
        %v3536 = vadd.f32 %v3535, %v3473
        %v3537 = vadd.f32 %v3536, %v3474
        %v3538 = vadd.f32 %v3537, %v3475
        %v3539 = vadd.f32 %v3538, %v3476
        %v3540 = vadd.f32 %v3539, %v3477
        %v3541 = vadd.f32 %v3540, %v3478
        %v3542 = vadd.f32 %v3541, %v3479
        %v3543 = vadd.f32 %v3542, %v3480
        %v3544 = vadd.f32 %v3543, %v3481
        %v3545 = vadd.f32 %v3544, %v3482
        %v3546 = vadd.f32 %v3545, %v3483
        %v3547 = vadd.f32 %v3546, %v3484
        %v3548 = vadd.f32 %v3547, %v3485
        %v3549 = vadd.f32 %v3548, %v3486
        %v3550 = vadd.f32 %v3549, %v3487
        %v3551 = vadd.f32 %v3550, %v3488
        %v3552 = vadd.f32 %v3551, %v3489
        %v3553 = vadd.f32 %v3552, %v3490
        %v3554 = vadd.f32 %v3553, %v3491
        %v3555 = vadd.f32 %v3554, %v3492
        %v3556 = vadd.f32 %v3555, %v3493
        %v3557 = vadd.f32 %v3556, %v3494
        %v3558 = vadd.f32 %v3557, %v3495
        %v3559 = vadd.f32 %v3558, %v3496
        %v3560 = vadd.f32 %v3559, %v3497
        %v3561 = vadd.f32 %v3560, %v3498
        %v3562 = vadd.f32 %v3561, %v3499
        %v3563 = vadd.f32 %v3562, %v3500
        %v3564 = vadd.f32 %v3563, %v3501
        %v3565 = vadd.f32 %v3564, %v3502
        %v3566 = vadd.f32 %v3565, %v3503
        %v3567 = vadd.f32 %v3566, %v3504
        %v3568 = vadd.f32 %v3567, %v3505
        %v3569 = vadd.f32 %v3568, %v3506
        %v3570 = vadd.f32 %v3569, %v3507
        %v3571 = vadd.f32 %v3570, %v3508
        %v3572 = vadd.f32 %v3571, %v3509
        %v3573 = vadd.f32 %v3572, %v3510
        %v3574 = vadd.f32 %v3573, %v3511
        %3575 = vadd.xlane.f32.xlu0 %v3574
        %v3576 = vpop.xlane.xlu0 %3575
        %3577 = vst.msk [vmem:[%s622] sm:$0xff] %vm3446, %v3576
        %s3578 = smul.u32 64, %s16
        %p3579 = scmp.lt.s32.totalorder %s3578, 255
        %s3580 = scalar_select %p3579, %s3578, 255
        %s3581 = smul.addr %s3580, 4
        %s3582 = scalar_lea.vmem %s2, %s3581
        %p3583 = scmp.lt.s32.totalorder %s16, 3
        %s3584 = scalar_select %p3583, %s16, 3
        %s3585 = smul.addr %s3584, 8
        %s3586 = scalar_lea.vmem %s3, %s3585
        %p3587 = scmp.lt.s32.totalorder %s16, 3
        %s3588 = scalar_select %p3587, %s16, 3
        %s3589 = smul.addr %s3588, 8
        %s3590 = scalar_lea.vmem %s4, %s3589
        // Predicated region
        $region52: #{encoder_forward.4} parent=46 // pred_check
          %p3591 = pneg %p81
        $region53: #{encoder_forward.4} parent=46 // pred_check_branch
          %3593 = sbr.rel (%p3591) target = $region55
        $region54: #{encoder_forward.4} parent=46 // pred_region
          %s3594 = smul.u32 64, %s16
        $region55: #{encoder_forward.4} parent=46 // pred_fallthru
          _
        // Predicated region
        $region56: #{encoder_forward.4} parent=46 // pred_check
          %p3595 = pneg %p107
        $region57: #{encoder_forward.4} parent=46 // pred_check_branch
          %3597 = sbr.rel (%p3595) target = $region59
        $region58: #{encoder_forward.4} parent=46 // pred_region
          _
        $region59: #{encoder_forward.4} parent=46 // pred_fallthru
          _
        // Predicated region
        $region60: #{encoder_forward.4} parent=46 // pred_check
          %p3598 = pneg %p133
        $region61: #{encoder_forward.4} parent=46 // pred_check_branch
          %3600 = sbr.rel (%p3598) target = $region63
        $region62: #{encoder_forward.4} parent=46 // pred_region
          _
        $region63: #{encoder_forward.4} parent=46 // pred_fallthru
          _
      $region47: #{encoder_forward.4} parent=5 // pred_fallthru
        _
      %p3601 = scmp.le.s32.totalorder 2, %s11
      // Predicated region
      $region64: #{encoder_forward.4} parent=5 // pred_check
        %p3602 = pneg %p3601
      $region65: #{encoder_forward.4} parent=5 // pred_check_branch
        %3604 = sbr.rel (%p3602) target = $region67
      $region66: #{encoder_forward.4} parent=5 // pred_region
        %s3605 = ssub.s32 %s11, 2
        // Predicated region
        $region68: #{encoder_forward.4} parent=66 // pred_check
          %p3606 = pneg %p87
        $region69: #{encoder_forward.4} parent=66 // pred_check_branch
          %3608 = sbr.rel (%p3606) target = $region71
        $region70: #{encoder_forward.4} parent=66 // pred_region
          %s3609 = smul.u32 64, %s17
          %p3610 = scmp.lt.s32.totalorder %s3609, 255
          %s3611 = scalar_select %p3610, %s3609, 255
          %s3612 = smul.addr %s3611, 4
          %s3613 = scalar_lea.vmem %s2, %s3612
        $region71: #{encoder_forward.4} parent=66 // pred_fallthru
          _
        // Predicated region
        $region72: #{encoder_forward.4} parent=66 // pred_check
          %p3614 = pneg %p113
        $region73: #{encoder_forward.4} parent=66 // pred_check_branch
          %3616 = sbr.rel (%p3614) target = $region75
        $region74: #{encoder_forward.4} parent=66 // pred_region
          %p3617 = scmp.lt.s32.totalorder %s17, 3
          %s3618 = scalar_select %p3617, %s17, 3
          %s3619 = smul.addr %s3618, 8
          %s3620 = scalar_lea.vmem %s3, %s3619
        $region75: #{encoder_forward.4} parent=66 // pred_fallthru
          _
        // Predicated region
        $region76: #{encoder_forward.4} parent=66 // pred_check
          %p3621 = pneg %p139
        $region77: #{encoder_forward.4} parent=66 // pred_check_branch
          %3623 = sbr.rel (%p3621) target = $region79
        $region78: #{encoder_forward.4} parent=66 // pred_region
          %p3624 = scmp.lt.s32.totalorder %s17, 3
          %s3625 = scalar_select %p3624, %s17, 3
          %s3626 = smul.addr %s3625, 8
          %s3627 = scalar_lea.vmem %s4, %s3626
        $region79: #{encoder_forward.4} parent=66 // pred_fallthru
          _
      $region67: #{encoder_forward.4} parent=5 // pred_fallthru
        _
    $region6: #{encoder_forward.4} parent=1 // loop_footer
      %s15 = sadd.s32 1, %s11
    $region7: #{encoder_forward.4} parent=1 // loop_footer_branch
      %10 = sbr.rel target = $region3
    $region8: #{encoder_forward.4} parent=1 // loop_exit
      _

// kernel: encoder_forward.5
$region0: #{encoder_forward.5}
  #allocation0 [shape = 'u32[]', space=smem, size = 0x4, offset = 0x4, fixed_abs, tag = 'smem constant byte address 0x4 - core index']
  #allocation1 [shape = 'u32[144,128]{1,0:T(1,128)}', space=vmem, size = 0x12000, scoped, tag = 'internal scratch']
  %s0 = inlined_call_operand.vmem [shape: bf16[16,128], index: 0, kind: input, shape index: {}]
  %s1 = inlined_call_operand.vmem [shape: bf16[128,8192], index: 1, kind: input, shape index: {}]
  %s2 = inlined_call_operand.vmem [shape: bf16[16,8192], index: 2, kind: output, shape index: {0}]
  %s3 = inlined_call_operand.vmem [shape: f32[2,16,1], index: 3, kind: output, shape index: {1}]
  %s4 = inlined_call_operand.vmem [shape: f32[2,16,1], index: 4, kind: output, shape index: {2}]
  %5 = xla_tuple %s2, %s3, %s4
  %s6 = sld [smem:[#allocation0]]
  $region99: #{encoder_forward.5} parent=0
    _
  %s8 = ssub.s32 1, %s6
  %s9 = scalar_select 0, %s8, %s6
  $region1: #{encoder_forward.5} parent=0
    #allocation2 [shape = 'u8[2097152]{0}', space=vmem, size = 0x200000, scoped, tag = 'input window, operand 1']
    #allocation3 [shape = 'u8[262144]{0}', space=vmem, size = 0x40000, scoped, tag = 'output window, operand 0']
    loop: start=0, step=1, limit=4
    $region2: #{encoder_forward.5} parent=1 // loop_pre_header
      _
    $region3: #{encoder_forward.5} parent=1 // loop_header
      %s11 = sphi 0, %s15
      %p12 = scmp.ge.s32.totalorder %s11, 4
      %s19 = sphi 0, %s19
      %s21 = sphi 0, %s19
      %s22 = sphi 0, %s21
      %s36 = sphi 0, %s22
      %s42 = sphi 0, %s44
      %s45 = sphi 0, %s42
      %s46 = sphi 0, %s45
      %s62 = sphi 0, %s46
      %s68 = sphi 0, %s70
      %s71 = sphi 0, %s68
      %s72 = sphi 0, %s71
      %s88 = sphi 0, %s72
      %s94 = sphi 0, %s96
      %s97 = sphi 0, %s94
      %s98 = sphi 0, %s97
      %s114 = sphi 0, %s98
      %s120 = sphi 0, %s122
      %s123 = sphi 0, %s120
      %s124 = sphi 0, %s123
      %s140 = sphi 0, %s124
    $region4: #{encoder_forward.5} parent=1 // loop_header_branch
      %14 = sbr.rel (%p12) target = $region8
    $region5: #{encoder_forward.5} parent=1 // loop_body
      %s16 = ssub.s32 %s11, 1
      %s17 = ssub.s32 %s11, 2
      %s18 = sadd.s32 %s11, 1
      %s20 = sadd.s32 %s19, 1
      %p23 = scmp.eq.s32.totalorder %s11, 1
      %p24 = scmp.ne.s32.totalorder %s19, %s21
      %p25 = scmp.eq.s32.totalorder %s11, 0
      %p26 = por %p24, %p25
      %p27 = scmp.ne.s32.totalorder %s19, %s21
      %p28 = scmp.eq.s32.totalorder %s16, 1
      %p29 = por %p27, %p28
      %p30 = scmp.ne.s32.totalorder %s21, %s22
      %p31 = scmp.eq.s32.totalorder %s16, 0
      %p32 = por %p30, %p31
      %p33 = scmp.ne.s32.totalorder %s21, %s22
      %p34 = scmp.eq.s32.totalorder %s17, 1
      %p35 = por %p33, %p34
      %p37 = scmp.ne.s32.totalorder %s22, %s36
      %p38 = scmp.eq.s32.totalorder %s17, 0
      %p39 = por %p37, %p38
      %s40 = ssub.s32 %s11, %s18
      %p41 = scmp.eq.s32.totalorder %s40, 0
      %s43 = sadd.s32 %s42, 1
      %s44 = scalar_select %p41, %s42, %s43
      %p47 = pneg %p41
      %p48 = scmp.eq.s32.totalorder %s11, 1
      %p49 = por %p47, %p48
      %p50 = scmp.ne.s32.totalorder %s42, %s45
      %p51 = scmp.eq.s32.totalorder %s11, 0
      %p52 = por %p50, %p51
      %p53 = scmp.ne.s32.totalorder %s42, %s45
      %p54 = scmp.eq.s32.totalorder %s16, 1
      %p55 = por %p53, %p54
      %p56 = scmp.ne.s32.totalorder %s45, %s46
      %p57 = scmp.eq.s32.totalorder %s16, 0
      %p58 = por %p56, %p57
      %p59 = scmp.ne.s32.totalorder %s45, %s46
      %p60 = scmp.eq.s32.totalorder %s17, 1
      %p61 = por %p59, %p60
      %p63 = scmp.ne.s32.totalorder %s46, %s62
      %p64 = scmp.eq.s32.totalorder %s17, 0
      %p65 = por %p63, %p64
      %s66 = ssub.s32 %s11, %s18
      %p67 = scmp.eq.s32.totalorder %s66, 0
      %s69 = sadd.s32 %s68, 1
      %s70 = scalar_select %p67, %s68, %s69
      %p73 = pneg %p67
      %p74 = scmp.eq.s32.totalorder %s11, 1
      %p75 = por %p73, %p74
      %p76 = scmp.ne.s32.totalorder %s68, %s71
      %p77 = scmp.eq.s32.totalorder %s11, 0
      %p78 = por %p76, %p77
      %p79 = scmp.ne.s32.totalorder %s68, %s71
      %p80 = scmp.eq.s32.totalorder %s16, 1
      %p81 = por %p79, %p80
      %p82 = scmp.ne.s32.totalorder %s71, %s72
      %p83 = scmp.eq.s32.totalorder %s16, 0
      %p84 = por %p82, %p83
      %p85 = scmp.ne.s32.totalorder %s71, %s72
      %p86 = scmp.eq.s32.totalorder %s17, 1
      %p87 = por %p85, %p86
      %p89 = scmp.ne.s32.totalorder %s72, %s88
      %p90 = scmp.eq.s32.totalorder %s17, 0
      %p91 = por %p89, %p90
      %s92 = ssub.s32 %s11, %s18
      %p93 = scmp.eq.s32.totalorder %s92, 0
      %s95 = sadd.s32 %s94, 1
      %s96 = scalar_select %p93, %s94, %s95
      %p99 = pneg %p93
      %p100 = scmp.eq.s32.totalorder %s11, 1
      %p101 = por %p99, %p100
      %p102 = scmp.ne.s32.totalorder %s94, %s97
      %p103 = scmp.eq.s32.totalorder %s11, 0
      %p104 = por %p102, %p103
      %p105 = scmp.ne.s32.totalorder %s94, %s97
      %p106 = scmp.eq.s32.totalorder %s16, 1
      %p107 = por %p105, %p106
      %p108 = scmp.ne.s32.totalorder %s97, %s98
      %p109 = scmp.eq.s32.totalorder %s16, 0
      %p110 = por %p108, %p109
      %p111 = scmp.ne.s32.totalorder %s97, %s98
      %p112 = scmp.eq.s32.totalorder %s17, 1
      %p113 = por %p111, %p112
      %p115 = scmp.ne.s32.totalorder %s98, %s114
      %p116 = scmp.eq.s32.totalorder %s17, 0
      %p117 = por %p115, %p116
      %s118 = ssub.s32 %s11, %s18
      %p119 = scmp.eq.s32.totalorder %s118, 0
      %s121 = sadd.s32 %s120, 1
      %s122 = scalar_select %p119, %s120, %s121
      %p125 = pneg %p119
      %p126 = scmp.eq.s32.totalorder %s11, 1
      %p127 = por %p125, %p126
      %p128 = scmp.ne.s32.totalorder %s120, %s123
      %p129 = scmp.eq.s32.totalorder %s11, 0
      %p130 = por %p128, %p129
      %p131 = scmp.ne.s32.totalorder %s120, %s123
      %p132 = scmp.eq.s32.totalorder %s16, 1
      %p133 = por %p131, %p132
      %p134 = scmp.ne.s32.totalorder %s123, %s124
      %p135 = scmp.eq.s32.totalorder %s16, 0
      %p136 = por %p134, %p135
      %p137 = scmp.ne.s32.totalorder %s123, %s124
      %p138 = scmp.eq.s32.totalorder %s17, 1
      %p139 = por %p137, %p138
      %p141 = scmp.ne.s32.totalorder %s124, %s140
      %p142 = scmp.eq.s32.totalorder %s17, 0
      %p143 = por %p141, %p142
      %p144 = scmp.le.s32.totalorder 1, %s11
      %p145 = scmp.lt.s32.totalorder %s11, 3
      %p146 = pnand %p144, %p145
      %p147 = pneg %p146
      // Predicated region
      $region9: #{encoder_forward.5} parent=5 // pred_check
        _
      $region10: #{encoder_forward.5} parent=5 // pred_check_branch
        %149 = sbr.rel (%p146) target = $region12
      $region11: #{encoder_forward.5} parent=5 // pred_region
        %s150 = ssub.s32 %s11, 1
        // Predicated region
        $region13: #{encoder_forward.5} parent=11 // pred_check
          %p151 = pneg %p32
        $region14: #{encoder_forward.5} parent=11 // pred_check_branch
          %153 = sbr.rel (%p151) target = $region16
        $region15: #{encoder_forward.5} parent=11 // pred_region
          _
        $region16: #{encoder_forward.5} parent=11 // pred_fallthru
          _
      $region12: #{encoder_forward.5} parent=5 // pred_fallthru
        _
      %p154 = scmp.lt.s32.totalorder %s11, 2
      // Predicated region
      $region17: #{encoder_forward.5} parent=5 // pred_check
        %p155 = pneg %p154
      $region18: #{encoder_forward.5} parent=5 // pred_check_branch
        %157 = sbr.rel (%p155) target = $region20
      $region19: #{encoder_forward.5} parent=5 // pred_region
        // Predicated region
        $region21: #{encoder_forward.5} parent=19 // pred_check
          %p158 = pneg %p52
        $region22: #{encoder_forward.5} parent=19 // pred_check_branch
          %160 = sbr.rel (%p158) target = $region24
        $region23: #{encoder_forward.5} parent=19 // pred_region
          %s161 = sand.u32 %s42, 1
          %s162 = sand.u32 %s42, 1
          %s163 = smul.addr %s162, 2048
          %s164 = scalar_lea.vmem [#allocation2], %s163
          %s165 = smul.u32 32, %s11
          %s166 = smul.addr %s165, 4
          %s167 = scalar_lea.vmem %s1, %s166
          // Predicated region
          $region25: #{encoder_forward.5} parent=23 // pred_check
            _
          $region26: #{encoder_forward.5} parent=23 // pred_check_branch
            %169 = sbr.rel (0) target = $region28
          $region27: #{encoder_forward.5} parent=23 // pred_region
            // Predicated region
            $region29: #{encoder_forward.5} parent=27 // pred_check
              _
            $region30: #{encoder_forward.5} parent=27 // pred_check_branch
              %171 = sbr.rel (0) target = $region32
            $region31: #{encoder_forward.5} parent=27 // pred_region
              loop: start=0, step=1, limit=1
              $region33: #{encoder_forward.5} parent=31 // loop_pre_header
                _
              $region34: #{encoder_forward.5} parent=31 // loop_header
                %s173 = sphi 0, %s177
                %p174 = scmp.ge.s32.totalorder %s173, 1
                %s178 = sphi %s167, %s167
                %s179 = sphi %s164, %s164
              $region35: #{encoder_forward.5} parent=31 // loop_header_branch
                %176 = sbr.rel (%p174) target = $region39
              $region36: #{encoder_forward.5} parent=31 // loop_body
                %v180 = vld [vmem:[%s178] sm:$0xff]
                %181 = vst [vmem:[%s179] sm:$0xff] %v180
                %v182 = vld [vmem:[%s178 + $0x8] sm:$0xff]
                %183 = vst [vmem:[%s179 + $0x8] sm:$0xff] %v182
                %v184 = vld [vmem:[%s178 + $0x10] sm:$0xff]
                %185 = vst [vmem:[%s179 + $0x10] sm:$0xff] %v184
                %v186 = vld [vmem:[%s178 + $0x18] sm:$0xff]
                %187 = vst [vmem:[%s179 + $0x18] sm:$0xff] %v186
                %v188 = vld [vmem:[%s178 + $0x20] sm:$0xff]
                %189 = vst [vmem:[%s179 + $0x20] sm:$0xff] %v188
                %v190 = vld [vmem:[%s178 + $0x28] sm:$0xff]
                %191 = vst [vmem:[%s179 + $0x28] sm:$0xff] %v190
                %v192 = vld [vmem:[%s178 + $0x30] sm:$0xff]
                %193 = vst [vmem:[%s179 + $0x30] sm:$0xff] %v192
                %v194 = vld [vmem:[%s178 + $0x38] sm:$0xff]
                %195 = vst [vmem:[%s179 + $0x38] sm:$0xff] %v194
                %v196 = vld [vmem:[%s178 + $0x40] sm:$0xff]
                %197 = vst [vmem:[%s179 + $0x40] sm:$0xff] %v196
                %v198 = vld [vmem:[%s178 + $0x48] sm:$0xff]
                %199 = vst [vmem:[%s179 + $0x48] sm:$0xff] %v198
                %v200 = vld [vmem:[%s178 + $0x50] sm:$0xff]
                %201 = vst [vmem:[%s179 + $0x50] sm:$0xff] %v200
                %v202 = vld [vmem:[%s178 + $0x58] sm:$0xff]
                %203 = vst [vmem:[%s179 + $0x58] sm:$0xff] %v202
                %v204 = vld [vmem:[%s178 + $0x60] sm:$0xff]
                %205 = vst [vmem:[%s179 + $0x60] sm:$0xff] %v204
                %v206 = vld [vmem:[%s178 + $0x68] sm:$0xff]
                %207 = vst [vmem:[%s179 + $0x68] sm:$0xff] %v206
                %v208 = vld [vmem:[%s178 + $0x70] sm:$0xff]
                %209 = vst [vmem:[%s179 + $0x70] sm:$0xff] %v208
                %v210 = vld [vmem:[%s178 + $0x78] sm:$0xff]
                %211 = vst [vmem:[%s179 + $0x78] sm:$0xff] %v210
                %v212 = vld [vmem:[%s178 + $0x100] sm:$0xff]
                %213 = vst [vmem:[%s179 + $0x80] sm:$0xff] %v212
                %v214 = vld [vmem:[%s178 + $0x108] sm:$0xff]
                %215 = vst [vmem:[%s179 + $0x88] sm:$0xff] %v214
                %v216 = vld [vmem:[%s178 + $0x110] sm:$0xff]
                %217 = vst [vmem:[%s179 + $0x90] sm:$0xff] %v216
                %v218 = vld [vmem:[%s178 + $0x118] sm:$0xff]
                %219 = vst [vmem:[%s179 + $0x98] sm:$0xff] %v218
                %v220 = vld [vmem:[%s178 + $0x120] sm:$0xff]
                %221 = vst [vmem:[%s179 + $0xa0] sm:$0xff] %v220
                %v222 = vld [vmem:[%s178 + $0x128] sm:$0xff]
                %223 = vst [vmem:[%s179 + $0xa8] sm:$0xff] %v222
                %v224 = vld [vmem:[%s178 + $0x130] sm:$0xff]
                %225 = vst [vmem:[%s179 + $0xb0] sm:$0xff] %v224
                %v226 = vld [vmem:[%s178 + $0x138] sm:$0xff]
                %227 = vst [vmem:[%s179 + $0xb8] sm:$0xff] %v226
                %v228 = vld [vmem:[%s178 + $0x140] sm:$0xff]
                %229 = vst [vmem:[%s179 + $0xc0] sm:$0xff] %v228
                %v230 = vld [vmem:[%s178 + $0x148] sm:$0xff]
                %231 = vst [vmem:[%s179 + $0xc8] sm:$0xff] %v230
                %v232 = vld [vmem:[%s178 + $0x150] sm:$0xff]
                %233 = vst [vmem:[%s179 + $0xd0] sm:$0xff] %v232
                %v234 = vld [vmem:[%s178 + $0x158] sm:$0xff]
                %235 = vst [vmem:[%s179 + $0xd8] sm:$0xff] %v234
                %v236 = vld [vmem:[%s178 + $0x160] sm:$0xff]
                %237 = vst [vmem:[%s179 + $0xe0] sm:$0xff] %v236
                %v238 = vld [vmem:[%s178 + $0x168] sm:$0xff]
                %239 = vst [vmem:[%s179 + $0xe8] sm:$0xff] %v238
                %v240 = vld [vmem:[%s178 + $0x170] sm:$0xff]
                %241 = vst [vmem:[%s179 + $0xf0] sm:$0xff] %v240
                %v242 = vld [vmem:[%s178 + $0x178] sm:$0xff]
                %243 = vst [vmem:[%s179 + $0xf8] sm:$0xff] %v242
                %v244 = vld [vmem:[%s178 + $0x200] sm:$0xff]
                %245 = vst [vmem:[%s179 + $0x100] sm:$0xff] %v244
                %v246 = vld [vmem:[%s178 + $0x208] sm:$0xff]
                %247 = vst [vmem:[%s179 + $0x108] sm:$0xff] %v246
                %v248 = vld [vmem:[%s178 + $0x210] sm:$0xff]
                %249 = vst [vmem:[%s179 + $0x110] sm:$0xff] %v248
                %v250 = vld [vmem:[%s178 + $0x218] sm:$0xff]
                %251 = vst [vmem:[%s179 + $0x118] sm:$0xff] %v250
                %v252 = vld [vmem:[%s178 + $0x220] sm:$0xff]
                %253 = vst [vmem:[%s179 + $0x120] sm:$0xff] %v252
                %v254 = vld [vmem:[%s178 + $0x228] sm:$0xff]
                %255 = vst [vmem:[%s179 + $0x128] sm:$0xff] %v254
                %v256 = vld [vmem:[%s178 + $0x230] sm:$0xff]
                %257 = vst [vmem:[%s179 + $0x130] sm:$0xff] %v256
                %v258 = vld [vmem:[%s178 + $0x238] sm:$0xff]
                %259 = vst [vmem:[%s179 + $0x138] sm:$0xff] %v258
                %v260 = vld [vmem:[%s178 + $0x240] sm:$0xff]
                %261 = vst [vmem:[%s179 + $0x140] sm:$0xff] %v260
                %v262 = vld [vmem:[%s178 + $0x248] sm:$0xff]
                %263 = vst [vmem:[%s179 + $0x148] sm:$0xff] %v262
                %v264 = vld [vmem:[%s178 + $0x250] sm:$0xff]
                %265 = vst [vmem:[%s179 + $0x150] sm:$0xff] %v264
                %v266 = vld [vmem:[%s178 + $0x258] sm:$0xff]
                %267 = vst [vmem:[%s179 + $0x158] sm:$0xff] %v266
                %v268 = vld [vmem:[%s178 + $0x260] sm:$0xff]
                %269 = vst [vmem:[%s179 + $0x160] sm:$0xff] %v268
                %v270 = vld [vmem:[%s178 + $0x268] sm:$0xff]
                %271 = vst [vmem:[%s179 + $0x168] sm:$0xff] %v270
                %v272 = vld [vmem:[%s178 + $0x270] sm:$0xff]
                %273 = vst [vmem:[%s179 + $0x170] sm:$0xff] %v272
                %v274 = vld [vmem:[%s178 + $0x278] sm:$0xff]
                %275 = vst [vmem:[%s179 + $0x178] sm:$0xff] %v274
                %v276 = vld [vmem:[%s178 + $0x300] sm:$0xff]
                %277 = vst [vmem:[%s179 + $0x180] sm:$0xff] %v276
                %v278 = vld [vmem:[%s178 + $0x308] sm:$0xff]
                %279 = vst [vmem:[%s179 + $0x188] sm:$0xff] %v278
                %v280 = vld [vmem:[%s178 + $0x310] sm:$0xff]
                %281 = vst [vmem:[%s179 + $0x190] sm:$0xff] %v280
                %v282 = vld [vmem:[%s178 + $0x318] sm:$0xff]
                %283 = vst [vmem:[%s179 + $0x198] sm:$0xff] %v282
                %v284 = vld [vmem:[%s178 + $0x320] sm:$0xff]
                %285 = vst [vmem:[%s179 + $0x1a0] sm:$0xff] %v284
                %v286 = vld [vmem:[%s178 + $0x328] sm:$0xff]
                %287 = vst [vmem:[%s179 + $0x1a8] sm:$0xff] %v286
                %v288 = vld [vmem:[%s178 + $0x330] sm:$0xff]
                %289 = vst [vmem:[%s179 + $0x1b0] sm:$0xff] %v288
                %v290 = vld [vmem:[%s178 + $0x338] sm:$0xff]
                %291 = vst [vmem:[%s179 + $0x1b8] sm:$0xff] %v290
                %v292 = vld [vmem:[%s178 + $0x340] sm:$0xff]
                %293 = vst [vmem:[%s179 + $0x1c0] sm:$0xff] %v292
                %v294 = vld [vmem:[%s178 + $0x348] sm:$0xff]
                %295 = vst [vmem:[%s179 + $0x1c8] sm:$0xff] %v294
                %v296 = vld [vmem:[%s178 + $0x350] sm:$0xff]
                %297 = vst [vmem:[%s179 + $0x1d0] sm:$0xff] %v296
                %v298 = vld [vmem:[%s178 + $0x358] sm:$0xff]
                %299 = vst [vmem:[%s179 + $0x1d8] sm:$0xff] %v298
                %v300 = vld [vmem:[%s178 + $0x360] sm:$0xff]
                %301 = vst [vmem:[%s179 + $0x1e0] sm:$0xff] %v300
                %v302 = vld [vmem:[%s178 + $0x368] sm:$0xff]
                %303 = vst [vmem:[%s179 + $0x1e8] sm:$0xff] %v302
                %v304 = vld [vmem:[%s178 + $0x370] sm:$0xff]
                %305 = vst [vmem:[%s179 + $0x1f0] sm:$0xff] %v304
                %v306 = vld [vmem:[%s178 + $0x378] sm:$0xff]
                %307 = vst [vmem:[%s179 + $0x1f8] sm:$0xff] %v306
                %v308 = vld [vmem:[%s178 + $0x400] sm:$0xff]
                %309 = vst [vmem:[%s179 + $0x200] sm:$0xff] %v308
                %v310 = vld [vmem:[%s178 + $0x408] sm:$0xff]
                %311 = vst [vmem:[%s179 + $0x208] sm:$0xff] %v310
                %v312 = vld [vmem:[%s178 + $0x410] sm:$0xff]
                %313 = vst [vmem:[%s179 + $0x210] sm:$0xff] %v312
                %v314 = vld [vmem:[%s178 + $0x418] sm:$0xff]
                %315 = vst [vmem:[%s179 + $0x218] sm:$0xff] %v314
                %v316 = vld [vmem:[%s178 + $0x420] sm:$0xff]
                %317 = vst [vmem:[%s179 + $0x220] sm:$0xff] %v316
                %v318 = vld [vmem:[%s178 + $0x428] sm:$0xff]
                %319 = vst [vmem:[%s179 + $0x228] sm:$0xff] %v318
                %v320 = vld [vmem:[%s178 + $0x430] sm:$0xff]
                %321 = vst [vmem:[%s179 + $0x230] sm:$0xff] %v320
                %v322 = vld [vmem:[%s178 + $0x438] sm:$0xff]
                %323 = vst [vmem:[%s179 + $0x238] sm:$0xff] %v322
                %v324 = vld [vmem:[%s178 + $0x440] sm:$0xff]
                %325 = vst [vmem:[%s179 + $0x240] sm:$0xff] %v324
                %v326 = vld [vmem:[%s178 + $0x448] sm:$0xff]
                %327 = vst [vmem:[%s179 + $0x248] sm:$0xff] %v326
                %v328 = vld [vmem:[%s178 + $0x450] sm:$0xff]
                %329 = vst [vmem:[%s179 + $0x250] sm:$0xff] %v328
                %v330 = vld [vmem:[%s178 + $0x458] sm:$0xff]
                %331 = vst [vmem:[%s179 + $0x258] sm:$0xff] %v330
                %v332 = vld [vmem:[%s178 + $0x460] sm:$0xff]
                %333 = vst [vmem:[%s179 + $0x260] sm:$0xff] %v332
                %v334 = vld [vmem:[%s178 + $0x468] sm:$0xff]
                %335 = vst [vmem:[%s179 + $0x268] sm:$0xff] %v334
                %v336 = vld [vmem:[%s178 + $0x470] sm:$0xff]
                %337 = vst [vmem:[%s179 + $0x270] sm:$0xff] %v336
                %v338 = vld [vmem:[%s178 + $0x478] sm:$0xff]
                %339 = vst [vmem:[%s179 + $0x278] sm:$0xff] %v338
                %v340 = vld [vmem:[%s178 + $0x500] sm:$0xff]
                %341 = vst [vmem:[%s179 + $0x280] sm:$0xff] %v340
                %v342 = vld [vmem:[%s178 + $0x508] sm:$0xff]
                %343 = vst [vmem:[%s179 + $0x288] sm:$0xff] %v342
                %v344 = vld [vmem:[%s178 + $0x510] sm:$0xff]
                %345 = vst [vmem:[%s179 + $0x290] sm:$0xff] %v344
                %v346 = vld [vmem:[%s178 + $0x518] sm:$0xff]
                %347 = vst [vmem:[%s179 + $0x298] sm:$0xff] %v346
                %v348 = vld [vmem:[%s178 + $0x520] sm:$0xff]
                %349 = vst [vmem:[%s179 + $0x2a0] sm:$0xff] %v348
                %v350 = vld [vmem:[%s178 + $0x528] sm:$0xff]
                %351 = vst [vmem:[%s179 + $0x2a8] sm:$0xff] %v350
                %v352 = vld [vmem:[%s178 + $0x530] sm:$0xff]
                %353 = vst [vmem:[%s179 + $0x2b0] sm:$0xff] %v352
                %v354 = vld [vmem:[%s178 + $0x538] sm:$0xff]
                %355 = vst [vmem:[%s179 + $0x2b8] sm:$0xff] %v354
                %v356 = vld [vmem:[%s178 + $0x540] sm:$0xff]
                %357 = vst [vmem:[%s179 + $0x2c0] sm:$0xff] %v356
                %v358 = vld [vmem:[%s178 + $0x548] sm:$0xff]
                %359 = vst [vmem:[%s179 + $0x2c8] sm:$0xff] %v358
                %v360 = vld [vmem:[%s178 + $0x550] sm:$0xff]
                %361 = vst [vmem:[%s179 + $0x2d0] sm:$0xff] %v360
                %v362 = vld [vmem:[%s178 + $0x558] sm:$0xff]
                %363 = vst [vmem:[%s179 + $0x2d8] sm:$0xff] %v362
                %v364 = vld [vmem:[%s178 + $0x560] sm:$0xff]
                %365 = vst [vmem:[%s179 + $0x2e0] sm:$0xff] %v364
                %v366 = vld [vmem:[%s178 + $0x568] sm:$0xff]
                %367 = vst [vmem:[%s179 + $0x2e8] sm:$0xff] %v366
                %v368 = vld [vmem:[%s178 + $0x570] sm:$0xff]
                %369 = vst [vmem:[%s179 + $0x2f0] sm:$0xff] %v368
                %v370 = vld [vmem:[%s178 + $0x578] sm:$0xff]
                %371 = vst [vmem:[%s179 + $0x2f8] sm:$0xff] %v370
                %v372 = vld [vmem:[%s178 + $0x600] sm:$0xff]
                %373 = vst [vmem:[%s179 + $0x300] sm:$0xff] %v372
                %v374 = vld [vmem:[%s178 + $0x608] sm:$0xff]
                %375 = vst [vmem:[%s179 + $0x308] sm:$0xff] %v374
                %v376 = vld [vmem:[%s178 + $0x610] sm:$0xff]
                %377 = vst [vmem:[%s179 + $0x310] sm:$0xff] %v376
                %v378 = vld [vmem:[%s178 + $0x618] sm:$0xff]
                %379 = vst [vmem:[%s179 + $0x318] sm:$0xff] %v378
                %v380 = vld [vmem:[%s178 + $0x620] sm:$0xff]
                %381 = vst [vmem:[%s179 + $0x320] sm:$0xff] %v380
                %v382 = vld [vmem:[%s178 + $0x628] sm:$0xff]
                %383 = vst [vmem:[%s179 + $0x328] sm:$0xff] %v382
                %v384 = vld [vmem:[%s178 + $0x630] sm:$0xff]
                %385 = vst [vmem:[%s179 + $0x330] sm:$0xff] %v384
                %v386 = vld [vmem:[%s178 + $0x638] sm:$0xff]
                %387 = vst [vmem:[%s179 + $0x338] sm:$0xff] %v386
                %v388 = vld [vmem:[%s178 + $0x640] sm:$0xff]
                %389 = vst [vmem:[%s179 + $0x340] sm:$0xff] %v388
                %v390 = vld [vmem:[%s178 + $0x648] sm:$0xff]
                %391 = vst [vmem:[%s179 + $0x348] sm:$0xff] %v390
                %v392 = vld [vmem:[%s178 + $0x650] sm:$0xff]
                %393 = vst [vmem:[%s179 + $0x350] sm:$0xff] %v392
                %v394 = vld [vmem:[%s178 + $0x658] sm:$0xff]
                %395 = vst [vmem:[%s179 + $0x358] sm:$0xff] %v394
                %v396 = vld [vmem:[%s178 + $0x660] sm:$0xff]
                %397 = vst [vmem:[%s179 + $0x360] sm:$0xff] %v396
                %v398 = vld [vmem:[%s178 + $0x668] sm:$0xff]
                %399 = vst [vmem:[%s179 + $0x368] sm:$0xff] %v398
                %v400 = vld [vmem:[%s178 + $0x670] sm:$0xff]
                %401 = vst [vmem:[%s179 + $0x370] sm:$0xff] %v400
                %v402 = vld [vmem:[%s178 + $0x678] sm:$0xff]
                %403 = vst [vmem:[%s179 + $0x378] sm:$0xff] %v402
                %v404 = vld [vmem:[%s178 + $0x700] sm:$0xff]
                %405 = vst [vmem:[%s179 + $0x380] sm:$0xff] %v404
                %v406 = vld [vmem:[%s178 + $0x708] sm:$0xff]
                %407 = vst [vmem:[%s179 + $0x388] sm:$0xff] %v406
                %v408 = vld [vmem:[%s178 + $0x710] sm:$0xff]
                %409 = vst [vmem:[%s179 + $0x390] sm:$0xff] %v408
                %v410 = vld [vmem:[%s178 + $0x718] sm:$0xff]
                %411 = vst [vmem:[%s179 + $0x398] sm:$0xff] %v410
                %v412 = vld [vmem:[%s178 + $0x720] sm:$0xff]
                %413 = vst [vmem:[%s179 + $0x3a0] sm:$0xff] %v412
                %v414 = vld [vmem:[%s178 + $0x728] sm:$0xff]
                %415 = vst [vmem:[%s179 + $0x3a8] sm:$0xff] %v414
                %v416 = vld [vmem:[%s178 + $0x730] sm:$0xff]
                %417 = vst [vmem:[%s179 + $0x3b0] sm:$0xff] %v416
                %v418 = vld [vmem:[%s178 + $0x738] sm:$0xff]
                %419 = vst [vmem:[%s179 + $0x3b8] sm:$0xff] %v418
                %v420 = vld [vmem:[%s178 + $0x740] sm:$0xff]
                %421 = vst [vmem:[%s179 + $0x3c0] sm:$0xff] %v420
                %v422 = vld [vmem:[%s178 + $0x748] sm:$0xff]
                %423 = vst [vmem:[%s179 + $0x3c8] sm:$0xff] %v422
                %v424 = vld [vmem:[%s178 + $0x750] sm:$0xff]
                %425 = vst [vmem:[%s179 + $0x3d0] sm:$0xff] %v424
                %v426 = vld [vmem:[%s178 + $0x758] sm:$0xff]
                %427 = vst [vmem:[%s179 + $0x3d8] sm:$0xff] %v426
                %v428 = vld [vmem:[%s178 + $0x760] sm:$0xff]
                %429 = vst [vmem:[%s179 + $0x3e0] sm:$0xff] %v428
                %v430 = vld [vmem:[%s178 + $0x768] sm:$0xff]
                %431 = vst [vmem:[%s179 + $0x3e8] sm:$0xff] %v430
                %v432 = vld [vmem:[%s178 + $0x770] sm:$0xff]
                %433 = vst [vmem:[%s179 + $0x3f0] sm:$0xff] %v432
                %v434 = vld [vmem:[%s178 + $0x778] sm:$0xff]
                %435 = vst [vmem:[%s179 + $0x3f8] sm:$0xff] %v434
                %v436 = vld [vmem:[%s178 + $0x800] sm:$0xff]
                %437 = vst [vmem:[%s179 + $0x400] sm:$0xff] %v436
                %v438 = vld [vmem:[%s178 + $0x808] sm:$0xff]
                %439 = vst [vmem:[%s179 + $0x408] sm:$0xff] %v438
                %v440 = vld [vmem:[%s178 + $0x810] sm:$0xff]
                %441 = vst [vmem:[%s179 + $0x410] sm:$0xff] %v440
                %v442 = vld [vmem:[%s178 + $0x818] sm:$0xff]
                %443 = vst [vmem:[%s179 + $0x418] sm:$0xff] %v442
                %v444 = vld [vmem:[%s178 + $0x820] sm:$0xff]
                %445 = vst [vmem:[%s179 + $0x420] sm:$0xff] %v444
                %v446 = vld [vmem:[%s178 + $0x828] sm:$0xff]
                %447 = vst [vmem:[%s179 + $0x428] sm:$0xff] %v446
                %v448 = vld [vmem:[%s178 + $0x830] sm:$0xff]
                %449 = vst [vmem:[%s179 + $0x430] sm:$0xff] %v448
                %v450 = vld [vmem:[%s178 + $0x838] sm:$0xff]
                %451 = vst [vmem:[%s179 + $0x438] sm:$0xff] %v450
                %v452 = vld [vmem:[%s178 + $0x840] sm:$0xff]
                %453 = vst [vmem:[%s179 + $0x440] sm:$0xff] %v452
                %v454 = vld [vmem:[%s178 + $0x848] sm:$0xff]
                %455 = vst [vmem:[%s179 + $0x448] sm:$0xff] %v454
                %v456 = vld [vmem:[%s178 + $0x850] sm:$0xff]
                %457 = vst [vmem:[%s179 + $0x450] sm:$0xff] %v456
                %v458 = vld [vmem:[%s178 + $0x858] sm:$0xff]
                %459 = vst [vmem:[%s179 + $0x458] sm:$0xff] %v458
                %v460 = vld [vmem:[%s178 + $0x860] sm:$0xff]
                %461 = vst [vmem:[%s179 + $0x460] sm:$0xff] %v460
                %v462 = vld [vmem:[%s178 + $0x868] sm:$0xff]
                %463 = vst [vmem:[%s179 + $0x468] sm:$0xff] %v462
                %v464 = vld [vmem:[%s178 + $0x870] sm:$0xff]
                %465 = vst [vmem:[%s179 + $0x470] sm:$0xff] %v464
                %v466 = vld [vmem:[%s178 + $0x878] sm:$0xff]
                %467 = vst [vmem:[%s179 + $0x478] sm:$0xff] %v466
                %v468 = vld [vmem:[%s178 + $0x900] sm:$0xff]
                %469 = vst [vmem:[%s179 + $0x480] sm:$0xff] %v468
                %v470 = vld [vmem:[%s178 + $0x908] sm:$0xff]
                %471 = vst [vmem:[%s179 + $0x488] sm:$0xff] %v470
                %v472 = vld [vmem:[%s178 + $0x910] sm:$0xff]
                %473 = vst [vmem:[%s179 + $0x490] sm:$0xff] %v472
                %v474 = vld [vmem:[%s178 + $0x918] sm:$0xff]
                %475 = vst [vmem:[%s179 + $0x498] sm:$0xff] %v474
                %v476 = vld [vmem:[%s178 + $0x920] sm:$0xff]
                %477 = vst [vmem:[%s179 + $0x4a0] sm:$0xff] %v476
                %v478 = vld [vmem:[%s178 + $0x928] sm:$0xff]
                %479 = vst [vmem:[%s179 + $0x4a8] sm:$0xff] %v478
                %v480 = vld [vmem:[%s178 + $0x930] sm:$0xff]
                %481 = vst [vmem:[%s179 + $0x4b0] sm:$0xff] %v480
                %v482 = vld [vmem:[%s178 + $0x938] sm:$0xff]
                %483 = vst [vmem:[%s179 + $0x4b8] sm:$0xff] %v482
                %v484 = vld [vmem:[%s178 + $0x940] sm:$0xff]
                %485 = vst [vmem:[%s179 + $0x4c0] sm:$0xff] %v484
                %v486 = vld [vmem:[%s178 + $0x948] sm:$0xff]
                %487 = vst [vmem:[%s179 + $0x4c8] sm:$0xff] %v486
                %v488 = vld [vmem:[%s178 + $0x950] sm:$0xff]
                %489 = vst [vmem:[%s179 + $0x4d0] sm:$0xff] %v488
                %v490 = vld [vmem:[%s178 + $0x958] sm:$0xff]
                %491 = vst [vmem:[%s179 + $0x4d8] sm:$0xff] %v490
                %v492 = vld [vmem:[%s178 + $0x960] sm:$0xff]
                %493 = vst [vmem:[%s179 + $0x4e0] sm:$0xff] %v492
                %v494 = vld [vmem:[%s178 + $0x968] sm:$0xff]
                %495 = vst [vmem:[%s179 + $0x4e8] sm:$0xff] %v494
                %v496 = vld [vmem:[%s178 + $0x970] sm:$0xff]
                %497 = vst [vmem:[%s179 + $0x4f0] sm:$0xff] %v496
                %v498 = vld [vmem:[%s178 + $0x978] sm:$0xff]
                %499 = vst [vmem:[%s179 + $0x4f8] sm:$0xff] %v498
                %v500 = vld [vmem:[%s178 + $0xa00] sm:$0xff]
                %501 = vst [vmem:[%s179 + $0x500] sm:$0xff] %v500
                %v502 = vld [vmem:[%s178 + $0xa08] sm:$0xff]
                %503 = vst [vmem:[%s179 + $0x508] sm:$0xff] %v502
                %v504 = vld [vmem:[%s178 + $0xa10] sm:$0xff]
                %505 = vst [vmem:[%s179 + $0x510] sm:$0xff] %v504
                %v506 = vld [vmem:[%s178 + $0xa18] sm:$0xff]
                %507 = vst [vmem:[%s179 + $0x518] sm:$0xff] %v506
                %v508 = vld [vmem:[%s178 + $0xa20] sm:$0xff]
                %509 = vst [vmem:[%s179 + $0x520] sm:$0xff] %v508
                %v510 = vld [vmem:[%s178 + $0xa28] sm:$0xff]
                %511 = vst [vmem:[%s179 + $0x528] sm:$0xff] %v510
                %v512 = vld [vmem:[%s178 + $0xa30] sm:$0xff]
                %513 = vst [vmem:[%s179 + $0x530] sm:$0xff] %v512
                %v514 = vld [vmem:[%s178 + $0xa38] sm:$0xff]
                %515 = vst [vmem:[%s179 + $0x538] sm:$0xff] %v514
                %v516 = vld [vmem:[%s178 + $0xa40] sm:$0xff]
                %517 = vst [vmem:[%s179 + $0x540] sm:$0xff] %v516
                %v518 = vld [vmem:[%s178 + $0xa48] sm:$0xff]
                %519 = vst [vmem:[%s179 + $0x548] sm:$0xff] %v518
                %v520 = vld [vmem:[%s178 + $0xa50] sm:$0xff]
                %521 = vst [vmem:[%s179 + $0x550] sm:$0xff] %v520
                %v522 = vld [vmem:[%s178 + $0xa58] sm:$0xff]
                %523 = vst [vmem:[%s179 + $0x558] sm:$0xff] %v522
                %v524 = vld [vmem:[%s178 + $0xa60] sm:$0xff]
                %525 = vst [vmem:[%s179 + $0x560] sm:$0xff] %v524
                %v526 = vld [vmem:[%s178 + $0xa68] sm:$0xff]
                %527 = vst [vmem:[%s179 + $0x568] sm:$0xff] %v526
                %v528 = vld [vmem:[%s178 + $0xa70] sm:$0xff]
                %529 = vst [vmem:[%s179 + $0x570] sm:$0xff] %v528
                %v530 = vld [vmem:[%s178 + $0xa78] sm:$0xff]
                %531 = vst [vmem:[%s179 + $0x578] sm:$0xff] %v530
                %v532 = vld [vmem:[%s178 + $0xb00] sm:$0xff]
                %533 = vst [vmem:[%s179 + $0x580] sm:$0xff] %v532
                %v534 = vld [vmem:[%s178 + $0xb08] sm:$0xff]
                %535 = vst [vmem:[%s179 + $0x588] sm:$0xff] %v534
                %v536 = vld [vmem:[%s178 + $0xb10] sm:$0xff]
                %537 = vst [vmem:[%s179 + $0x590] sm:$0xff] %v536
                %v538 = vld [vmem:[%s178 + $0xb18] sm:$0xff]
                %539 = vst [vmem:[%s179 + $0x598] sm:$0xff] %v538
                %v540 = vld [vmem:[%s178 + $0xb20] sm:$0xff]
                %541 = vst [vmem:[%s179 + $0x5a0] sm:$0xff] %v540
                %v542 = vld [vmem:[%s178 + $0xb28] sm:$0xff]
                %543 = vst [vmem:[%s179 + $0x5a8] sm:$0xff] %v542
                %v544 = vld [vmem:[%s178 + $0xb30] sm:$0xff]
                %545 = vst [vmem:[%s179 + $0x5b0] sm:$0xff] %v544
                %v546 = vld [vmem:[%s178 + $0xb38] sm:$0xff]
                %547 = vst [vmem:[%s179 + $0x5b8] sm:$0xff] %v546
                %v548 = vld [vmem:[%s178 + $0xb40] sm:$0xff]
                %549 = vst [vmem:[%s179 + $0x5c0] sm:$0xff] %v548
                %v550 = vld [vmem:[%s178 + $0xb48] sm:$0xff]
                %551 = vst [vmem:[%s179 + $0x5c8] sm:$0xff] %v550
                %v552 = vld [vmem:[%s178 + $0xb50] sm:$0xff]
                %553 = vst [vmem:[%s179 + $0x5d0] sm:$0xff] %v552
                %v554 = vld [vmem:[%s178 + $0xb58] sm:$0xff]
                %555 = vst [vmem:[%s179 + $0x5d8] sm:$0xff] %v554
                %v556 = vld [vmem:[%s178 + $0xb60] sm:$0xff]
                %557 = vst [vmem:[%s179 + $0x5e0] sm:$0xff] %v556
                %v558 = vld [vmem:[%s178 + $0xb68] sm:$0xff]
                %559 = vst [vmem:[%s179 + $0x5e8] sm:$0xff] %v558
                %v560 = vld [vmem:[%s178 + $0xb70] sm:$0xff]
                %561 = vst [vmem:[%s179 + $0x5f0] sm:$0xff] %v560
                %v562 = vld [vmem:[%s178 + $0xb78] sm:$0xff]
                %563 = vst [vmem:[%s179 + $0x5f8] sm:$0xff] %v562
                %v564 = vld [vmem:[%s178 + $0xc00] sm:$0xff]
                %565 = vst [vmem:[%s179 + $0x600] sm:$0xff] %v564
                %v566 = vld [vmem:[%s178 + $0xc08] sm:$0xff]
                %567 = vst [vmem:[%s179 + $0x608] sm:$0xff] %v566
                %v568 = vld [vmem:[%s178 + $0xc10] sm:$0xff]
                %569 = vst [vmem:[%s179 + $0x610] sm:$0xff] %v568
                %v570 = vld [vmem:[%s178 + $0xc18] sm:$0xff]
                %571 = vst [vmem:[%s179 + $0x618] sm:$0xff] %v570
                %v572 = vld [vmem:[%s178 + $0xc20] sm:$0xff]
                %573 = vst [vmem:[%s179 + $0x620] sm:$0xff] %v572
                %v574 = vld [vmem:[%s178 + $0xc28] sm:$0xff]
                %575 = vst [vmem:[%s179 + $0x628] sm:$0xff] %v574
                %v576 = vld [vmem:[%s178 + $0xc30] sm:$0xff]
                %577 = vst [vmem:[%s179 + $0x630] sm:$0xff] %v576
                %v578 = vld [vmem:[%s178 + $0xc38] sm:$0xff]
                %579 = vst [vmem:[%s179 + $0x638] sm:$0xff] %v578
                %v580 = vld [vmem:[%s178 + $0xc40] sm:$0xff]
                %581 = vst [vmem:[%s179 + $0x640] sm:$0xff] %v580
                %v582 = vld [vmem:[%s178 + $0xc48] sm:$0xff]
                %583 = vst [vmem:[%s179 + $0x648] sm:$0xff] %v582
                %v584 = vld [vmem:[%s178 + $0xc50] sm:$0xff]
                %585 = vst [vmem:[%s179 + $0x650] sm:$0xff] %v584
                %v586 = vld [vmem:[%s178 + $0xc58] sm:$0xff]
                %587 = vst [vmem:[%s179 + $0x658] sm:$0xff] %v586
                %v588 = vld [vmem:[%s178 + $0xc60] sm:$0xff]
                %589 = vst [vmem:[%s179 + $0x660] sm:$0xff] %v588
                %v590 = vld [vmem:[%s178 + $0xc68] sm:$0xff]
                %591 = vst [vmem:[%s179 + $0x668] sm:$0xff] %v590
                %v592 = vld [vmem:[%s178 + $0xc70] sm:$0xff]
                %593 = vst [vmem:[%s179 + $0x670] sm:$0xff] %v592
                %v594 = vld [vmem:[%s178 + $0xc78] sm:$0xff]
                %595 = vst [vmem:[%s179 + $0x678] sm:$0xff] %v594
                %v596 = vld [vmem:[%s178 + $0xd00] sm:$0xff]
                %597 = vst [vmem:[%s179 + $0x680] sm:$0xff] %v596
                %v598 = vld [vmem:[%s178 + $0xd08] sm:$0xff]
                %599 = vst [vmem:[%s179 + $0x688] sm:$0xff] %v598
                %v600 = vld [vmem:[%s178 + $0xd10] sm:$0xff]
                %601 = vst [vmem:[%s179 + $0x690] sm:$0xff] %v600
                %v602 = vld [vmem:[%s178 + $0xd18] sm:$0xff]
                %603 = vst [vmem:[%s179 + $0x698] sm:$0xff] %v602
                %v604 = vld [vmem:[%s178 + $0xd20] sm:$0xff]
                %605 = vst [vmem:[%s179 + $0x6a0] sm:$0xff] %v604
                %v606 = vld [vmem:[%s178 + $0xd28] sm:$0xff]
                %607 = vst [vmem:[%s179 + $0x6a8] sm:$0xff] %v606
                %v608 = vld [vmem:[%s178 + $0xd30] sm:$0xff]
                %609 = vst [vmem:[%s179 + $0x6b0] sm:$0xff] %v608
                %v610 = vld [vmem:[%s178 + $0xd38] sm:$0xff]
                %611 = vst [vmem:[%s179 + $0x6b8] sm:$0xff] %v610
                %v612 = vld [vmem:[%s178 + $0xd40] sm:$0xff]
                %613 = vst [vmem:[%s179 + $0x6c0] sm:$0xff] %v612
                %v614 = vld [vmem:[%s178 + $0xd48] sm:$0xff]
                %615 = vst [vmem:[%s179 + $0x6c8] sm:$0xff] %v614
                %v616 = vld [vmem:[%s178 + $0xd50] sm:$0xff]
                %617 = vst [vmem:[%s179 + $0x6d0] sm:$0xff] %v616
                %v618 = vld [vmem:[%s178 + $0xd58] sm:$0xff]
                %619 = vst [vmem:[%s179 + $0x6d8] sm:$0xff] %v618
                %v620 = vld [vmem:[%s178 + $0xd60] sm:$0xff]
                %621 = vst [vmem:[%s179 + $0x6e0] sm:$0xff] %v620
                %v622 = vld [vmem:[%s178 + $0xd68] sm:$0xff]
                %623 = vst [vmem:[%s179 + $0x6e8] sm:$0xff] %v622
                %v624 = vld [vmem:[%s178 + $0xd70] sm:$0xff]
                %625 = vst [vmem:[%s179 + $0x6f0] sm:$0xff] %v624
                %v626 = vld [vmem:[%s178 + $0xd78] sm:$0xff]
                %627 = vst [vmem:[%s179 + $0x6f8] sm:$0xff] %v626
                %v628 = vld [vmem:[%s178 + $0xe00] sm:$0xff]
                %629 = vst [vmem:[%s179 + $0x700] sm:$0xff] %v628
                %v630 = vld [vmem:[%s178 + $0xe08] sm:$0xff]
                %631 = vst [vmem:[%s179 + $0x708] sm:$0xff] %v630
                %v632 = vld [vmem:[%s178 + $0xe10] sm:$0xff]
                %633 = vst [vmem:[%s179 + $0x710] sm:$0xff] %v632
                %v634 = vld [vmem:[%s178 + $0xe18] sm:$0xff]
                %635 = vst [vmem:[%s179 + $0x718] sm:$0xff] %v634
                %v636 = vld [vmem:[%s178 + $0xe20] sm:$0xff]
                %637 = vst [vmem:[%s179 + $0x720] sm:$0xff] %v636
                %v638 = vld [vmem:[%s178 + $0xe28] sm:$0xff]
                %639 = vst [vmem:[%s179 + $0x728] sm:$0xff] %v638
                %v640 = vld [vmem:[%s178 + $0xe30] sm:$0xff]
                %641 = vst [vmem:[%s179 + $0x730] sm:$0xff] %v640
                %v642 = vld [vmem:[%s178 + $0xe38] sm:$0xff]
                %643 = vst [vmem:[%s179 + $0x738] sm:$0xff] %v642
                %v644 = vld [vmem:[%s178 + $0xe40] sm:$0xff]
                %645 = vst [vmem:[%s179 + $0x740] sm:$0xff] %v644
                %v646 = vld [vmem:[%s178 + $0xe48] sm:$0xff]
                %647 = vst [vmem:[%s179 + $0x748] sm:$0xff] %v646
                %v648 = vld [vmem:[%s178 + $0xe50] sm:$0xff]
                %649 = vst [vmem:[%s179 + $0x750] sm:$0xff] %v648
                %v650 = vld [vmem:[%s178 + $0xe58] sm:$0xff]
                %651 = vst [vmem:[%s179 + $0x758] sm:$0xff] %v650
                %v652 = vld [vmem:[%s178 + $0xe60] sm:$0xff]
                %653 = vst [vmem:[%s179 + $0x760] sm:$0xff] %v652
                %v654 = vld [vmem:[%s178 + $0xe68] sm:$0xff]
                %655 = vst [vmem:[%s179 + $0x768] sm:$0xff] %v654
                %v656 = vld [vmem:[%s178 + $0xe70] sm:$0xff]
                %657 = vst [vmem:[%s179 + $0x770] sm:$0xff] %v656
                %v658 = vld [vmem:[%s178 + $0xe78] sm:$0xff]
                %659 = vst [vmem:[%s179 + $0x778] sm:$0xff] %v658
                %v660 = vld [vmem:[%s178 + $0xf00] sm:$0xff]
                %661 = vst [vmem:[%s179 + $0x780] sm:$0xff] %v660
                %v662 = vld [vmem:[%s178 + $0xf08] sm:$0xff]
                %663 = vst [vmem:[%s179 + $0x788] sm:$0xff] %v662
                %v664 = vld [vmem:[%s178 + $0xf10] sm:$0xff]
                %665 = vst [vmem:[%s179 + $0x790] sm:$0xff] %v664
                %v666 = vld [vmem:[%s178 + $0xf18] sm:$0xff]
                %667 = vst [vmem:[%s179 + $0x798] sm:$0xff] %v666
                %v668 = vld [vmem:[%s178 + $0xf20] sm:$0xff]
                %669 = vst [vmem:[%s179 + $0x7a0] sm:$0xff] %v668
                %v670 = vld [vmem:[%s178 + $0xf28] sm:$0xff]
                %671 = vst [vmem:[%s179 + $0x7a8] sm:$0xff] %v670
                %v672 = vld [vmem:[%s178 + $0xf30] sm:$0xff]
                %673 = vst [vmem:[%s179 + $0x7b0] sm:$0xff] %v672
                %v674 = vld [vmem:[%s178 + $0xf38] sm:$0xff]
                %675 = vst [vmem:[%s179 + $0x7b8] sm:$0xff] %v674
                %v676 = vld [vmem:[%s178 + $0xf40] sm:$0xff]
                %677 = vst [vmem:[%s179 + $0x7c0] sm:$0xff] %v676
                %v678 = vld [vmem:[%s178 + $0xf48] sm:$0xff]
                %679 = vst [vmem:[%s179 + $0x7c8] sm:$0xff] %v678
                %v680 = vld [vmem:[%s178 + $0xf50] sm:$0xff]
                %681 = vst [vmem:[%s179 + $0x7d0] sm:$0xff] %v680
                %v682 = vld [vmem:[%s178 + $0xf58] sm:$0xff]
                %683 = vst [vmem:[%s179 + $0x7d8] sm:$0xff] %v682
                %v684 = vld [vmem:[%s178 + $0xf60] sm:$0xff]
                %685 = vst [vmem:[%s179 + $0x7e0] sm:$0xff] %v684
                %v686 = vld [vmem:[%s178 + $0xf68] sm:$0xff]
                %687 = vst [vmem:[%s179 + $0x7e8] sm:$0xff] %v686
                %v688 = vld [vmem:[%s178 + $0xf70] sm:$0xff]
                %689 = vst [vmem:[%s179 + $0x7f0] sm:$0xff] %v688
                %v690 = vld [vmem:[%s178 + $0xf78] sm:$0xff]
                %691 = vst [vmem:[%s179 + $0x7f8] sm:$0xff] %v690
              $region37: #{encoder_forward.5} parent=31 // loop_footer
                %s177 = sadd.s32 1, %s173
              $region38: #{encoder_forward.5} parent=31 // loop_footer_branch
                %172 = sbr.rel target = $region34
              $region39: #{encoder_forward.5} parent=31 // loop_exit
                _
            $region32: #{encoder_forward.5} parent=27 // pred_fallthru
              _
            // Predicated region
            $region40: #{encoder_forward.5} parent=27 // pred_check
              _
            $region41: #{encoder_forward.5} parent=27 // pred_check_branch
              %693 = sbr.rel target = $region43
            $region42: #{encoder_forward.5} parent=27 // pred_region
              _
            $region43: #{encoder_forward.5} parent=27 // pred_fallthru
              _
          $region28: #{encoder_forward.5} parent=23 // pred_fallthru
            _
          %694 = vnop
        $region24: #{encoder_forward.5} parent=19 // pred_fallthru
          _
      $region20: #{encoder_forward.5} parent=5 // pred_fallthru
        _
      %p695 = scmp.le.s32.totalorder 1, %s11
      %p696 = scmp.lt.s32.totalorder %s11, 3
      %p697 = pnand %p695, %p696
      %p698 = pneg %p697
      // Predicated region
      $region44: #{encoder_forward.5} parent=5 // pred_check
        _
      $region45: #{encoder_forward.5} parent=5 // pred_check_branch
        %700 = sbr.rel (%p697) target = $region47
      $region46: #{encoder_forward.5} parent=5 // pred_region
        %s701 = ssub.s32 %s11, 1
        %s702 = sand.u32 %s45, 1
        %s703 = sand.u32 %s45, 1
        %s704 = smul.addr %s703, 2048
        %s705 = scalar_lea.vmem [#allocation2], %s704
        // Predicated region
        $region48: #{encoder_forward.5} parent=46 // pred_check
          %p706 = pneg %p58
        $region49: #{encoder_forward.5} parent=46 // pred_check_branch
          %708 = sbr.rel (%p706) target = $region51
        $region50: #{encoder_forward.5} parent=46 // pred_region
          _
        $region51: #{encoder_forward.5} parent=46 // pred_fallthru
          _
        %p709 = pneg %p32
        %p710 = pneg %p29
        %s711 = sand.u32 %s45, 1
        %s712 = sand.u32 %s45, 1
        %s713 = smul.addr %s712, 2048
        %s714 = scalar_lea.vmem [#allocation2], %s713
        %p715 = pneg %p58
        %p716 = pneg %p55
        %p717 = pneg %p84
        %p718 = pneg %p81
        %s719 = sand.u32 %s71, 1
        %s720 = sand.u32 %s71, 1
        %s721 = smul.addr %s720, 256
        %s722 = scalar_lea.vmem [#allocation3], %s721
        %p723 = pneg %p110
        %p724 = pneg %p107
        %p725 = scmp.lt.s32.totalorder %s16, 1
        %s726 = scalar_select %p725, %s16, 1
        %s727 = smul.addr %s726, 2
        %s728 = smul.addr %s727, 8
        %s729 = scalar_lea.vmem %s3, %s728
        %p730 = pneg %p136
        %p731 = pneg %p133
        %p732 = scmp.lt.s32.totalorder %s16, 1
        %s733 = scalar_select %p732, %s16, 1
        %s734 = smul.addr %s733, 2
        %s735 = smul.addr %s734, 8
        %s736 = scalar_lea.vmem %s4, %s735
        %s737 = smul.u32 32, %s16
        %s738 = smul.u32 32, %s16
        %p739 = scmp.lt.s32.totalorder %s16, 1
        %s740 = scalar_select %p739, %s16, 1
        %s741 = smul.addr %s740, 2
        %s742 = smul.addr %s741, 8
        %s743 = scalar_lea.vmem %s3, %s742
        %p744 = scmp.lt.s32.totalorder %s16, 1
        %s745 = scalar_select %p744, %s16, 1
        %s746 = smul.addr %s745, 2
        %s747 = smul.addr %s746, 8
        %s748 = scalar_lea.vmem %s4, %s747
        %v750 = vld [vmem:[%s0] sm:$0xf]
        %v751 = vld [vmem:[%s0 + $0x4] sm:$0xf]
        %v752 = vld [vmem:[%s705] sm:$0xff]
        %v753 = vld [vmem:[%s705 + $0x8] sm:$0xff]
        %v754 = vld [vmem:[%s705 + $0x10] sm:$0xff]
        %v755 = vld [vmem:[%s705 + $0x18] sm:$0xff]
        %v756 = vld [vmem:[%s705 + $0x20] sm:$0xff]
        %v757 = vld [vmem:[%s705 + $0x28] sm:$0xff]
        %v758 = vld [vmem:[%s705 + $0x30] sm:$0xff]
        %v759 = vld [vmem:[%s705 + $0x38] sm:$0xff]
        %v760 = vld [vmem:[%s705 + $0x40] sm:$0xff]
        %v761 = vld [vmem:[%s705 + $0x48] sm:$0xff]
        %v762 = vld [vmem:[%s705 + $0x50] sm:$0xff]
        %v763 = vld [vmem:[%s705 + $0x58] sm:$0xff]
        %v764 = vld [vmem:[%s705 + $0x60] sm:$0xff]
        %v765 = vld [vmem:[%s705 + $0x68] sm:$0xff]
        %v766 = vld [vmem:[%s705 + $0x70] sm:$0xff]
        %v767 = vld [vmem:[%s705 + $0x78] sm:$0xff]
        %v768 = vld [vmem:[%s705 + $0x80] sm:$0xff]
        %v769 = vld [vmem:[%s705 + $0x88] sm:$0xff]
        %v770 = vld [vmem:[%s705 + $0x90] sm:$0xff]
        %v771 = vld [vmem:[%s705 + $0x98] sm:$0xff]
        %v772 = vld [vmem:[%s705 + $0xa0] sm:$0xff]
        %v773 = vld [vmem:[%s705 + $0xa8] sm:$0xff]
        %v774 = vld [vmem:[%s705 + $0xb0] sm:$0xff]
        %v775 = vld [vmem:[%s705 + $0xb8] sm:$0xff]
        %v776 = vld [vmem:[%s705 + $0xc0] sm:$0xff]
        %v777 = vld [vmem:[%s705 + $0xc8] sm:$0xff]
        %v778 = vld [vmem:[%s705 + $0xd0] sm:$0xff]
        %v779 = vld [vmem:[%s705 + $0xd8] sm:$0xff]
        %v780 = vld [vmem:[%s705 + $0xe0] sm:$0xff]
        %v781 = vld [vmem:[%s705 + $0xe8] sm:$0xff]
        %v782 = vld [vmem:[%s705 + $0xf0] sm:$0xff]
        %v783 = vld [vmem:[%s705 + $0xf8] sm:$0xff]
        %v784 = vld [vmem:[%s705 + $0x100] sm:$0xff]
        %v785 = vld [vmem:[%s705 + $0x108] sm:$0xff]
        %v786 = vld [vmem:[%s705 + $0x110] sm:$0xff]
        %v787 = vld [vmem:[%s705 + $0x118] sm:$0xff]
        %v788 = vld [vmem:[%s705 + $0x120] sm:$0xff]
        %v789 = vld [vmem:[%s705 + $0x128] sm:$0xff]
        %v790 = vld [vmem:[%s705 + $0x130] sm:$0xff]
        %v791 = vld [vmem:[%s705 + $0x138] sm:$0xff]
        %v792 = vld [vmem:[%s705 + $0x140] sm:$0xff]
        %v793 = vld [vmem:[%s705 + $0x148] sm:$0xff]
        %v794 = vld [vmem:[%s705 + $0x150] sm:$0xff]
        %v795 = vld [vmem:[%s705 + $0x158] sm:$0xff]
        %v796 = vld [vmem:[%s705 + $0x160] sm:$0xff]
        %v797 = vld [vmem:[%s705 + $0x168] sm:$0xff]
        %v798 = vld [vmem:[%s705 + $0x170] sm:$0xff]
        %v799 = vld [vmem:[%s705 + $0x178] sm:$0xff]
        %v800 = vld [vmem:[%s705 + $0x180] sm:$0xff]
        %v801 = vld [vmem:[%s705 + $0x188] sm:$0xff]
        %v802 = vld [vmem:[%s705 + $0x190] sm:$0xff]
        %v803 = vld [vmem:[%s705 + $0x198] sm:$0xff]
        %v804 = vld [vmem:[%s705 + $0x1a0] sm:$0xff]
        %v805 = vld [vmem:[%s705 + $0x1a8] sm:$0xff]
        %v806 = vld [vmem:[%s705 + $0x1b0] sm:$0xff]
        %v807 = vld [vmem:[%s705 + $0x1b8] sm:$0xff]
        %v808 = vld [vmem:[%s705 + $0x1c0] sm:$0xff]
        %v809 = vld [vmem:[%s705 + $0x1c8] sm:$0xff]
        %v810 = vld [vmem:[%s705 + $0x1d0] sm:$0xff]
        %v811 = vld [vmem:[%s705 + $0x1d8] sm:$0xff]
        %v812 = vld [vmem:[%s705 + $0x1e0] sm:$0xff]
        %v813 = vld [vmem:[%s705 + $0x1e8] sm:$0xff]
        %v814 = vld [vmem:[%s705 + $0x1f0] sm:$0xff]
        %v815 = vld [vmem:[%s705 + $0x1f8] sm:$0xff]
        %v816 = vld [vmem:[%s705 + $0x200] sm:$0xff]
        %v817 = vld [vmem:[%s705 + $0x208] sm:$0xff]
        %v818 = vld [vmem:[%s705 + $0x210] sm:$0xff]
        %v819 = vld [vmem:[%s705 + $0x218] sm:$0xff]
        %v820 = vld [vmem:[%s705 + $0x220] sm:$0xff]
        %v821 = vld [vmem:[%s705 + $0x228] sm:$0xff]
        %v822 = vld [vmem:[%s705 + $0x230] sm:$0xff]
        %v823 = vld [vmem:[%s705 + $0x238] sm:$0xff]
        %v824 = vld [vmem:[%s705 + $0x240] sm:$0xff]
        %v825 = vld [vmem:[%s705 + $0x248] sm:$0xff]
        %v826 = vld [vmem:[%s705 + $0x250] sm:$0xff]
        %v827 = vld [vmem:[%s705 + $0x258] sm:$0xff]
        %v828 = vld [vmem:[%s705 + $0x260] sm:$0xff]
        %v829 = vld [vmem:[%s705 + $0x268] sm:$0xff]
        %v830 = vld [vmem:[%s705 + $0x270] sm:$0xff]
        %v831 = vld [vmem:[%s705 + $0x278] sm:$0xff]
        %v832 = vld [vmem:[%s705 + $0x280] sm:$0xff]
        %v833 = vld [vmem:[%s705 + $0x288] sm:$0xff]
        %v834 = vld [vmem:[%s705 + $0x290] sm:$0xff]
        %v835 = vld [vmem:[%s705 + $0x298] sm:$0xff]
        %v836 = vld [vmem:[%s705 + $0x2a0] sm:$0xff]
        %v837 = vld [vmem:[%s705 + $0x2a8] sm:$0xff]
        %v838 = vld [vmem:[%s705 + $0x2b0] sm:$0xff]
        %v839 = vld [vmem:[%s705 + $0x2b8] sm:$0xff]
        %v840 = vld [vmem:[%s705 + $0x2c0] sm:$0xff]
        %v841 = vld [vmem:[%s705 + $0x2c8] sm:$0xff]
        %v842 = vld [vmem:[%s705 + $0x2d0] sm:$0xff]
        %v843 = vld [vmem:[%s705 + $0x2d8] sm:$0xff]
        %v844 = vld [vmem:[%s705 + $0x2e0] sm:$0xff]
        %v845 = vld [vmem:[%s705 + $0x2e8] sm:$0xff]
        %v846 = vld [vmem:[%s705 + $0x2f0] sm:$0xff]
        %v847 = vld [vmem:[%s705 + $0x2f8] sm:$0xff]
        %v848 = vld [vmem:[%s705 + $0x300] sm:$0xff]
        %v849 = vld [vmem:[%s705 + $0x308] sm:$0xff]
        %v850 = vld [vmem:[%s705 + $0x310] sm:$0xff]
        %v851 = vld [vmem:[%s705 + $0x318] sm:$0xff]
        %v852 = vld [vmem:[%s705 + $0x320] sm:$0xff]
        %v853 = vld [vmem:[%s705 + $0x328] sm:$0xff]
        %v854 = vld [vmem:[%s705 + $0x330] sm:$0xff]
        %v855 = vld [vmem:[%s705 + $0x338] sm:$0xff]
        %v856 = vld [vmem:[%s705 + $0x340] sm:$0xff]
        %v857 = vld [vmem:[%s705 + $0x348] sm:$0xff]
        %v858 = vld [vmem:[%s705 + $0x350] sm:$0xff]
        %v859 = vld [vmem:[%s705 + $0x358] sm:$0xff]
        %v860 = vld [vmem:[%s705 + $0x360] sm:$0xff]
        %v861 = vld [vmem:[%s705 + $0x368] sm:$0xff]
        %v862 = vld [vmem:[%s705 + $0x370] sm:$0xff]
        %v863 = vld [vmem:[%s705 + $0x378] sm:$0xff]
        %v864 = vld [vmem:[%s705 + $0x380] sm:$0xff]
        %v865 = vld [vmem:[%s705 + $0x388] sm:$0xff]
        %v866 = vld [vmem:[%s705 + $0x390] sm:$0xff]
        %v867 = vld [vmem:[%s705 + $0x398] sm:$0xff]
        %v868 = vld [vmem:[%s705 + $0x3a0] sm:$0xff]
        %v869 = vld [vmem:[%s705 + $0x3a8] sm:$0xff]
        %v870 = vld [vmem:[%s705 + $0x3b0] sm:$0xff]
        %v871 = vld [vmem:[%s705 + $0x3b8] sm:$0xff]
        %v872 = vld [vmem:[%s705 + $0x3c0] sm:$0xff]
        %v873 = vld [vmem:[%s705 + $0x3c8] sm:$0xff]
        %v874 = vld [vmem:[%s705 + $0x3d0] sm:$0xff]
        %v875 = vld [vmem:[%s705 + $0x3d8] sm:$0xff]
        %v876 = vld [vmem:[%s705 + $0x3e0] sm:$0xff]
        %v877 = vld [vmem:[%s705 + $0x3e8] sm:$0xff]
        %v878 = vld [vmem:[%s705 + $0x3f0] sm:$0xff]
        %v879 = vld [vmem:[%s705 + $0x3f8] sm:$0xff]
        %v880 = vld [vmem:[%s705 + $0x400] sm:$0xff]
        %v881 = vld [vmem:[%s705 + $0x408] sm:$0xff]
        %v882 = vld [vmem:[%s705 + $0x410] sm:$0xff]
        %v883 = vld [vmem:[%s705 + $0x418] sm:$0xff]
        %v884 = vld [vmem:[%s705 + $0x420] sm:$0xff]
        %v885 = vld [vmem:[%s705 + $0x428] sm:$0xff]
        %v886 = vld [vmem:[%s705 + $0x430] sm:$0xff]
        %v887 = vld [vmem:[%s705 + $0x438] sm:$0xff]
        %v888 = vld [vmem:[%s705 + $0x440] sm:$0xff]
        %v889 = vld [vmem:[%s705 + $0x448] sm:$0xff]
        %v890 = vld [vmem:[%s705 + $0x450] sm:$0xff]
        %v891 = vld [vmem:[%s705 + $0x458] sm:$0xff]
        %v892 = vld [vmem:[%s705 + $0x460] sm:$0xff]
        %v893 = vld [vmem:[%s705 + $0x468] sm:$0xff]
        %v894 = vld [vmem:[%s705 + $0x470] sm:$0xff]
        %v895 = vld [vmem:[%s705 + $0x478] sm:$0xff]
        %v896 = vld [vmem:[%s705 + $0x480] sm:$0xff]
        %v897 = vld [vmem:[%s705 + $0x488] sm:$0xff]
        %v898 = vld [vmem:[%s705 + $0x490] sm:$0xff]
        %v899 = vld [vmem:[%s705 + $0x498] sm:$0xff]
        %v900 = vld [vmem:[%s705 + $0x4a0] sm:$0xff]
        %v901 = vld [vmem:[%s705 + $0x4a8] sm:$0xff]
        %v902 = vld [vmem:[%s705 + $0x4b0] sm:$0xff]
        %v903 = vld [vmem:[%s705 + $0x4b8] sm:$0xff]
        %v904 = vld [vmem:[%s705 + $0x4c0] sm:$0xff]
        %v905 = vld [vmem:[%s705 + $0x4c8] sm:$0xff]
        %v906 = vld [vmem:[%s705 + $0x4d0] sm:$0xff]
        %v907 = vld [vmem:[%s705 + $0x4d8] sm:$0xff]
        %v908 = vld [vmem:[%s705 + $0x4e0] sm:$0xff]
        %v909 = vld [vmem:[%s705 + $0x4e8] sm:$0xff]
        %v910 = vld [vmem:[%s705 + $0x4f0] sm:$0xff]
        %v911 = vld [vmem:[%s705 + $0x4f8] sm:$0xff]
        %v912 = vld [vmem:[%s705 + $0x500] sm:$0xff]
        %v913 = vld [vmem:[%s705 + $0x508] sm:$0xff]
        %v914 = vld [vmem:[%s705 + $0x510] sm:$0xff]
        %v915 = vld [vmem:[%s705 + $0x518] sm:$0xff]
        %v916 = vld [vmem:[%s705 + $0x520] sm:$0xff]
        %v917 = vld [vmem:[%s705 + $0x528] sm:$0xff]
        %v918 = vld [vmem:[%s705 + $0x530] sm:$0xff]
        %v919 = vld [vmem:[%s705 + $0x538] sm:$0xff]
        %v920 = vld [vmem:[%s705 + $0x540] sm:$0xff]
        %v921 = vld [vmem:[%s705 + $0x548] sm:$0xff]
        %v922 = vld [vmem:[%s705 + $0x550] sm:$0xff]
        %v923 = vld [vmem:[%s705 + $0x558] sm:$0xff]
        %v924 = vld [vmem:[%s705 + $0x560] sm:$0xff]
        %v925 = vld [vmem:[%s705 + $0x568] sm:$0xff]
        %v926 = vld [vmem:[%s705 + $0x570] sm:$0xff]
        %v927 = vld [vmem:[%s705 + $0x578] sm:$0xff]
        %v928 = vld [vmem:[%s705 + $0x580] sm:$0xff]
        %v929 = vld [vmem:[%s705 + $0x588] sm:$0xff]
        %v930 = vld [vmem:[%s705 + $0x590] sm:$0xff]
        %v931 = vld [vmem:[%s705 + $0x598] sm:$0xff]
        %v932 = vld [vmem:[%s705 + $0x5a0] sm:$0xff]
        %v933 = vld [vmem:[%s705 + $0x5a8] sm:$0xff]
        %v934 = vld [vmem:[%s705 + $0x5b0] sm:$0xff]
        %v935 = vld [vmem:[%s705 + $0x5b8] sm:$0xff]
        %v936 = vld [vmem:[%s705 + $0x5c0] sm:$0xff]
        %v937 = vld [vmem:[%s705 + $0x5c8] sm:$0xff]
        %v938 = vld [vmem:[%s705 + $0x5d0] sm:$0xff]
        %v939 = vld [vmem:[%s705 + $0x5d8] sm:$0xff]
        %v940 = vld [vmem:[%s705 + $0x5e0] sm:$0xff]
        %v941 = vld [vmem:[%s705 + $0x5e8] sm:$0xff]
        %v942 = vld [vmem:[%s705 + $0x5f0] sm:$0xff]
        %v943 = vld [vmem:[%s705 + $0x5f8] sm:$0xff]
        %v944 = vld [vmem:[%s705 + $0x600] sm:$0xff]
        %v945 = vld [vmem:[%s705 + $0x608] sm:$0xff]
        %v946 = vld [vmem:[%s705 + $0x610] sm:$0xff]
        %v947 = vld [vmem:[%s705 + $0x618] sm:$0xff]
        %v948 = vld [vmem:[%s705 + $0x620] sm:$0xff]
        %v949 = vld [vmem:[%s705 + $0x628] sm:$0xff]
        %v950 = vld [vmem:[%s705 + $0x630] sm:$0xff]
        %v951 = vld [vmem:[%s705 + $0x638] sm:$0xff]
        %v952 = vld [vmem:[%s705 + $0x640] sm:$0xff]
        %v953 = vld [vmem:[%s705 + $0x648] sm:$0xff]
        %v954 = vld [vmem:[%s705 + $0x650] sm:$0xff]
        %v955 = vld [vmem:[%s705 + $0x658] sm:$0xff]
        %v956 = vld [vmem:[%s705 + $0x660] sm:$0xff]
        %v957 = vld [vmem:[%s705 + $0x668] sm:$0xff]
        %v958 = vld [vmem:[%s705 + $0x670] sm:$0xff]
        %v959 = vld [vmem:[%s705 + $0x678] sm:$0xff]
        %v960 = vld [vmem:[%s705 + $0x680] sm:$0xff]
        %v961 = vld [vmem:[%s705 + $0x688] sm:$0xff]
        %v962 = vld [vmem:[%s705 + $0x690] sm:$0xff]
        %v963 = vld [vmem:[%s705 + $0x698] sm:$0xff]
        %v964 = vld [vmem:[%s705 + $0x6a0] sm:$0xff]
        %v965 = vld [vmem:[%s705 + $0x6a8] sm:$0xff]
        %v966 = vld [vmem:[%s705 + $0x6b0] sm:$0xff]
        %v967 = vld [vmem:[%s705 + $0x6b8] sm:$0xff]
        %v968 = vld [vmem:[%s705 + $0x6c0] sm:$0xff]
        %v969 = vld [vmem:[%s705 + $0x6c8] sm:$0xff]
        %v970 = vld [vmem:[%s705 + $0x6d0] sm:$0xff]
        %v971 = vld [vmem:[%s705 + $0x6d8] sm:$0xff]
        %v972 = vld [vmem:[%s705 + $0x6e0] sm:$0xff]
        %v973 = vld [vmem:[%s705 + $0x6e8] sm:$0xff]
        %v974 = vld [vmem:[%s705 + $0x6f0] sm:$0xff]
        %v975 = vld [vmem:[%s705 + $0x6f8] sm:$0xff]
        %v976 = vld [vmem:[%s705 + $0x700] sm:$0xff]
        %v977 = vld [vmem:[%s705 + $0x708] sm:$0xff]
        %v978 = vld [vmem:[%s705 + $0x710] sm:$0xff]
        %v979 = vld [vmem:[%s705 + $0x718] sm:$0xff]
        %v980 = vld [vmem:[%s705 + $0x720] sm:$0xff]
        %v981 = vld [vmem:[%s705 + $0x728] sm:$0xff]
        %v982 = vld [vmem:[%s705 + $0x730] sm:$0xff]
        %v983 = vld [vmem:[%s705 + $0x738] sm:$0xff]
        %v984 = vld [vmem:[%s705 + $0x740] sm:$0xff]
        %v985 = vld [vmem:[%s705 + $0x748] sm:$0xff]
        %v986 = vld [vmem:[%s705 + $0x750] sm:$0xff]
        %v987 = vld [vmem:[%s705 + $0x758] sm:$0xff]
        %v988 = vld [vmem:[%s705 + $0x760] sm:$0xff]
        %v989 = vld [vmem:[%s705 + $0x768] sm:$0xff]
        %v990 = vld [vmem:[%s705 + $0x770] sm:$0xff]
        %v991 = vld [vmem:[%s705 + $0x778] sm:$0xff]
        %v992 = vld [vmem:[%s705 + $0x780] sm:$0xff]
        %v993 = vld [vmem:[%s705 + $0x788] sm:$0xff]
        %v994 = vld [vmem:[%s705 + $0x790] sm:$0xff]
        %v995 = vld [vmem:[%s705 + $0x798] sm:$0xff]
        %v996 = vld [vmem:[%s705 + $0x7a0] sm:$0xff]
        %v997 = vld [vmem:[%s705 + $0x7a8] sm:$0xff]
        %v998 = vld [vmem:[%s705 + $0x7b0] sm:$0xff]
        %v999 = vld [vmem:[%s705 + $0x7b8] sm:$0xff]
        %v1000 = vld [vmem:[%s705 + $0x7c0] sm:$0xff]
        %v1001 = vld [vmem:[%s705 + $0x7c8] sm:$0xff]
        %v1002 = vld [vmem:[%s705 + $0x7d0] sm:$0xff]
        %v1003 = vld [vmem:[%s705 + $0x7d8] sm:$0xff]
        %v1004 = vld [vmem:[%s705 + $0x7e0] sm:$0xff]
        %v1005 = vld [vmem:[%s705 + $0x7e8] sm:$0xff]
        %v1006 = vld [vmem:[%s705 + $0x7f0] sm:$0xff]
        %v1007 = vld [vmem:[%s705 + $0x7f8] sm:$0xff]
        %v1010 = vunpack.c.l.b16 %v750
        %v1011 = vunpack.c.l.b16 %v751
        %v1012 = vpack.c.b16 %v1011, %v1010
        %v1270 = vunpack.c.l.b16 %v752
        %v1271 = vunpack.c.h.b16 %v752
        %v1272 = vunpack.c.l.b16 %v753
        %v1273 = vunpack.c.h.b16 %v753
        %v1274 = vunpack.c.l.b16 %v754
        %v1275 = vunpack.c.h.b16 %v754
        %v1276 = vunpack.c.l.b16 %v755
        %v1277 = vunpack.c.h.b16 %v755
        %v1278 = vunpack.c.l.b16 %v756
        %v1279 = vunpack.c.h.b16 %v756
        %v1280 = vunpack.c.l.b16 %v757
        %v1281 = vunpack.c.h.b16 %v757
        %v1282 = vunpack.c.l.b16 %v758
        %v1283 = vunpack.c.h.b16 %v758
        %v1284 = vunpack.c.l.b16 %v759
        %v1285 = vunpack.c.h.b16 %v759
        %v1286 = vunpack.c.l.b16 %v760
        %v1287 = vunpack.c.h.b16 %v760
        %v1288 = vunpack.c.l.b16 %v761
        %v1289 = vunpack.c.h.b16 %v761
        %v1290 = vunpack.c.l.b16 %v762
        %v1291 = vunpack.c.h.b16 %v762
        %v1292 = vunpack.c.l.b16 %v763
        %v1293 = vunpack.c.h.b16 %v763
        %v1294 = vunpack.c.l.b16 %v764
        %v1295 = vunpack.c.h.b16 %v764
        %v1296 = vunpack.c.l.b16 %v765
        %v1297 = vunpack.c.h.b16 %v765
        %v1298 = vunpack.c.l.b16 %v766
        %v1299 = vunpack.c.h.b16 %v766
        %v1300 = vunpack.c.l.b16 %v767
        %v1301 = vunpack.c.h.b16 %v767
        %v1302 = vunpack.c.l.b16 %v768
        %v1303 = vunpack.c.h.b16 %v768
        %v1304 = vunpack.c.l.b16 %v769
        %v1305 = vunpack.c.h.b16 %v769
        %v1306 = vunpack.c.l.b16 %v770
        %v1307 = vunpack.c.h.b16 %v770
        %v1308 = vunpack.c.l.b16 %v771
        %v1309 = vunpack.c.h.b16 %v771
        %v1310 = vunpack.c.l.b16 %v772
        %v1311 = vunpack.c.h.b16 %v772
        %v1312 = vunpack.c.l.b16 %v773
        %v1313 = vunpack.c.h.b16 %v773
        %v1314 = vunpack.c.l.b16 %v774
        %v1315 = vunpack.c.h.b16 %v774
        %v1316 = vunpack.c.l.b16 %v775
        %v1317 = vunpack.c.h.b16 %v775
        %v1318 = vunpack.c.l.b16 %v776
        %v1319 = vunpack.c.h.b16 %v776
        %v1320 = vunpack.c.l.b16 %v777
        %v1321 = vunpack.c.h.b16 %v777
        %v1322 = vunpack.c.l.b16 %v778
        %v1323 = vunpack.c.h.b16 %v778
        %v1324 = vunpack.c.l.b16 %v779
        %v1325 = vunpack.c.h.b16 %v779
        %v1326 = vunpack.c.l.b16 %v780
        %v1327 = vunpack.c.h.b16 %v780
        %v1328 = vunpack.c.l.b16 %v781
        %v1329 = vunpack.c.h.b16 %v781
        %v1330 = vunpack.c.l.b16 %v782
        %v1331 = vunpack.c.h.b16 %v782
        %v1332 = vunpack.c.l.b16 %v783
        %v1333 = vunpack.c.h.b16 %v783
        %v1334 = vunpack.c.l.b16 %v784
        %v1335 = vunpack.c.h.b16 %v784
        %v1336 = vunpack.c.l.b16 %v785
        %v1337 = vunpack.c.h.b16 %v785
        %v1338 = vunpack.c.l.b16 %v786
        %v1339 = vunpack.c.h.b16 %v786
        %v1340 = vunpack.c.l.b16 %v787
        %v1341 = vunpack.c.h.b16 %v787
        %v1342 = vunpack.c.l.b16 %v788
        %v1343 = vunpack.c.h.b16 %v788
        %v1344 = vunpack.c.l.b16 %v789
        %v1345 = vunpack.c.h.b16 %v789
        %v1346 = vunpack.c.l.b16 %v790
        %v1347 = vunpack.c.h.b16 %v790
        %v1348 = vunpack.c.l.b16 %v791
        %v1349 = vunpack.c.h.b16 %v791
        %v1350 = vunpack.c.l.b16 %v792
        %v1351 = vunpack.c.h.b16 %v792
        %v1352 = vunpack.c.l.b16 %v793
        %v1353 = vunpack.c.h.b16 %v793
        %v1354 = vunpack.c.l.b16 %v794
        %v1355 = vunpack.c.h.b16 %v794
        %v1356 = vunpack.c.l.b16 %v795
        %v1357 = vunpack.c.h.b16 %v795
        %v1358 = vunpack.c.l.b16 %v796
        %v1359 = vunpack.c.h.b16 %v796
        %v1360 = vunpack.c.l.b16 %v797
        %v1361 = vunpack.c.h.b16 %v797
        %v1362 = vunpack.c.l.b16 %v798
        %v1363 = vunpack.c.h.b16 %v798
        %v1364 = vunpack.c.l.b16 %v799
        %v1365 = vunpack.c.h.b16 %v799
        %v1366 = vunpack.c.l.b16 %v800
        %v1367 = vunpack.c.h.b16 %v800
        %v1368 = vunpack.c.l.b16 %v801
        %v1369 = vunpack.c.h.b16 %v801
        %v1370 = vunpack.c.l.b16 %v802
        %v1371 = vunpack.c.h.b16 %v802
        %v1372 = vunpack.c.l.b16 %v803
        %v1373 = vunpack.c.h.b16 %v803
        %v1374 = vunpack.c.l.b16 %v804
        %v1375 = vunpack.c.h.b16 %v804
        %v1376 = vunpack.c.l.b16 %v805
        %v1377 = vunpack.c.h.b16 %v805
        %v1378 = vunpack.c.l.b16 %v806
        %v1379 = vunpack.c.h.b16 %v806
        %v1380 = vunpack.c.l.b16 %v807
        %v1381 = vunpack.c.h.b16 %v807
        %v1382 = vunpack.c.l.b16 %v808
        %v1383 = vunpack.c.h.b16 %v808
        %v1384 = vunpack.c.l.b16 %v809
        %v1385 = vunpack.c.h.b16 %v809
        %v1386 = vunpack.c.l.b16 %v810
        %v1387 = vunpack.c.h.b16 %v810
        %v1388 = vunpack.c.l.b16 %v811
        %v1389 = vunpack.c.h.b16 %v811
        %v1390 = vunpack.c.l.b16 %v812
        %v1391 = vunpack.c.h.b16 %v812
        %v1392 = vunpack.c.l.b16 %v813
        %v1393 = vunpack.c.h.b16 %v813
        %v1394 = vunpack.c.l.b16 %v814
        %v1395 = vunpack.c.h.b16 %v814
        %v1396 = vunpack.c.l.b16 %v815
        %v1397 = vunpack.c.h.b16 %v815
        %v1398 = vunpack.c.l.b16 %v816
        %v1399 = vunpack.c.h.b16 %v816
        %v1400 = vunpack.c.l.b16 %v817
        %v1401 = vunpack.c.h.b16 %v817
        %v1402 = vunpack.c.l.b16 %v818
        %v1403 = vunpack.c.h.b16 %v818
        %v1404 = vunpack.c.l.b16 %v819
        %v1405 = vunpack.c.h.b16 %v819
        %v1406 = vunpack.c.l.b16 %v820
        %v1407 = vunpack.c.h.b16 %v820
        %v1408 = vunpack.c.l.b16 %v821
        %v1409 = vunpack.c.h.b16 %v821
        %v1410 = vunpack.c.l.b16 %v822
        %v1411 = vunpack.c.h.b16 %v822
        %v1412 = vunpack.c.l.b16 %v823
        %v1413 = vunpack.c.h.b16 %v823
        %v1414 = vunpack.c.l.b16 %v824
        %v1415 = vunpack.c.h.b16 %v824
        %v1416 = vunpack.c.l.b16 %v825
        %v1417 = vunpack.c.h.b16 %v825
        %v1418 = vunpack.c.l.b16 %v826
        %v1419 = vunpack.c.h.b16 %v826
        %v1420 = vunpack.c.l.b16 %v827
        %v1421 = vunpack.c.h.b16 %v827
        %v1422 = vunpack.c.l.b16 %v828
        %v1423 = vunpack.c.h.b16 %v828
        %v1424 = vunpack.c.l.b16 %v829
        %v1425 = vunpack.c.h.b16 %v829
        %v1426 = vunpack.c.l.b16 %v830
        %v1427 = vunpack.c.h.b16 %v830
        %v1428 = vunpack.c.l.b16 %v831
        %v1429 = vunpack.c.h.b16 %v831
        %v1430 = vunpack.c.l.b16 %v832
        %v1431 = vunpack.c.h.b16 %v832
        %v1432 = vunpack.c.l.b16 %v833
        %v1433 = vunpack.c.h.b16 %v833
        %v1434 = vunpack.c.l.b16 %v834
        %v1435 = vunpack.c.h.b16 %v834
        %v1436 = vunpack.c.l.b16 %v835
        %v1437 = vunpack.c.h.b16 %v835
        %v1438 = vunpack.c.l.b16 %v836
        %v1439 = vunpack.c.h.b16 %v836
        %v1440 = vunpack.c.l.b16 %v837
        %v1441 = vunpack.c.h.b16 %v837
        %v1442 = vunpack.c.l.b16 %v838
        %v1443 = vunpack.c.h.b16 %v838
        %v1444 = vunpack.c.l.b16 %v839
        %v1445 = vunpack.c.h.b16 %v839
        %v1446 = vunpack.c.l.b16 %v840
        %v1447 = vunpack.c.h.b16 %v840
        %v1448 = vunpack.c.l.b16 %v841
        %v1449 = vunpack.c.h.b16 %v841
        %v1450 = vunpack.c.l.b16 %v842
        %v1451 = vunpack.c.h.b16 %v842
        %v1452 = vunpack.c.l.b16 %v843
        %v1453 = vunpack.c.h.b16 %v843
        %v1454 = vunpack.c.l.b16 %v844
        %v1455 = vunpack.c.h.b16 %v844
        %v1456 = vunpack.c.l.b16 %v845
        %v1457 = vunpack.c.h.b16 %v845
        %v1458 = vunpack.c.l.b16 %v846
        %v1459 = vunpack.c.h.b16 %v846
        %v1460 = vunpack.c.l.b16 %v847
        %v1461 = vunpack.c.h.b16 %v847
        %v1462 = vunpack.c.l.b16 %v848
        %v1463 = vunpack.c.h.b16 %v848
        %v1464 = vunpack.c.l.b16 %v849
        %v1465 = vunpack.c.h.b16 %v849
        %v1466 = vunpack.c.l.b16 %v850
        %v1467 = vunpack.c.h.b16 %v850
        %v1468 = vunpack.c.l.b16 %v851
        %v1469 = vunpack.c.h.b16 %v851
        %v1470 = vunpack.c.l.b16 %v852
        %v1471 = vunpack.c.h.b16 %v852
        %v1472 = vunpack.c.l.b16 %v853
        %v1473 = vunpack.c.h.b16 %v853
        %v1474 = vunpack.c.l.b16 %v854
        %v1475 = vunpack.c.h.b16 %v854
        %v1476 = vunpack.c.l.b16 %v855
        %v1477 = vunpack.c.h.b16 %v855
        %v1478 = vunpack.c.l.b16 %v856
        %v1479 = vunpack.c.h.b16 %v856
        %v1480 = vunpack.c.l.b16 %v857
        %v1481 = vunpack.c.h.b16 %v857
        %v1482 = vunpack.c.l.b16 %v858
        %v1483 = vunpack.c.h.b16 %v858
        %v1484 = vunpack.c.l.b16 %v859
        %v1485 = vunpack.c.h.b16 %v859
        %v1486 = vunpack.c.l.b16 %v860
        %v1487 = vunpack.c.h.b16 %v860
        %v1488 = vunpack.c.l.b16 %v861
        %v1489 = vunpack.c.h.b16 %v861
        %v1490 = vunpack.c.l.b16 %v862
        %v1491 = vunpack.c.h.b16 %v862
        %v1492 = vunpack.c.l.b16 %v863
        %v1493 = vunpack.c.h.b16 %v863
        %v1494 = vunpack.c.l.b16 %v864
        %v1495 = vunpack.c.h.b16 %v864
        %v1496 = vunpack.c.l.b16 %v865
        %v1497 = vunpack.c.h.b16 %v865
        %v1498 = vunpack.c.l.b16 %v866
        %v1499 = vunpack.c.h.b16 %v866
        %v1500 = vunpack.c.l.b16 %v867
        %v1501 = vunpack.c.h.b16 %v867
        %v1502 = vunpack.c.l.b16 %v868
        %v1503 = vunpack.c.h.b16 %v868
        %v1504 = vunpack.c.l.b16 %v869
        %v1505 = vunpack.c.h.b16 %v869
        %v1506 = vunpack.c.l.b16 %v870
        %v1507 = vunpack.c.h.b16 %v870
        %v1508 = vunpack.c.l.b16 %v871
        %v1509 = vunpack.c.h.b16 %v871
        %v1510 = vunpack.c.l.b16 %v872
        %v1511 = vunpack.c.h.b16 %v872
        %v1512 = vunpack.c.l.b16 %v873
        %v1513 = vunpack.c.h.b16 %v873
        %v1514 = vunpack.c.l.b16 %v874
        %v1515 = vunpack.c.h.b16 %v874
        %v1516 = vunpack.c.l.b16 %v875
        %v1517 = vunpack.c.h.b16 %v875
        %v1518 = vunpack.c.l.b16 %v876
        %v1519 = vunpack.c.h.b16 %v876
        %v1520 = vunpack.c.l.b16 %v877
        %v1521 = vunpack.c.h.b16 %v877
        %v1522 = vunpack.c.l.b16 %v878
        %v1523 = vunpack.c.h.b16 %v878
        %v1524 = vunpack.c.l.b16 %v879
        %v1525 = vunpack.c.h.b16 %v879
        %v1526 = vunpack.c.l.b16 %v880
        %v1527 = vunpack.c.h.b16 %v880
        %v1528 = vunpack.c.l.b16 %v881
        %v1529 = vunpack.c.h.b16 %v881
        %v1530 = vunpack.c.l.b16 %v882
        %v1531 = vunpack.c.h.b16 %v882
        %v1532 = vunpack.c.l.b16 %v883
        %v1533 = vunpack.c.h.b16 %v883
        %v1534 = vunpack.c.l.b16 %v884
        %v1535 = vunpack.c.h.b16 %v884
        %v1536 = vunpack.c.l.b16 %v885
        %v1537 = vunpack.c.h.b16 %v885
        %v1538 = vunpack.c.l.b16 %v886
        %v1539 = vunpack.c.h.b16 %v886
        %v1540 = vunpack.c.l.b16 %v887
        %v1541 = vunpack.c.h.b16 %v887
        %v1542 = vunpack.c.l.b16 %v888
        %v1543 = vunpack.c.h.b16 %v888
        %v1544 = vunpack.c.l.b16 %v889
        %v1545 = vunpack.c.h.b16 %v889
        %v1546 = vunpack.c.l.b16 %v890
        %v1547 = vunpack.c.h.b16 %v890
        %v1548 = vunpack.c.l.b16 %v891
        %v1549 = vunpack.c.h.b16 %v891
        %v1550 = vunpack.c.l.b16 %v892
        %v1551 = vunpack.c.h.b16 %v892
        %v1552 = vunpack.c.l.b16 %v893
        %v1553 = vunpack.c.h.b16 %v893
        %v1554 = vunpack.c.l.b16 %v894
        %v1555 = vunpack.c.h.b16 %v894
        %v1556 = vunpack.c.l.b16 %v895
        %v1557 = vunpack.c.h.b16 %v895
        %v1558 = vunpack.c.l.b16 %v896
        %v1559 = vunpack.c.h.b16 %v896
        %v1560 = vunpack.c.l.b16 %v897
        %v1561 = vunpack.c.h.b16 %v897
        %v1562 = vunpack.c.l.b16 %v898
        %v1563 = vunpack.c.h.b16 %v898
        %v1564 = vunpack.c.l.b16 %v899
        %v1565 = vunpack.c.h.b16 %v899
        %v1566 = vunpack.c.l.b16 %v900
        %v1567 = vunpack.c.h.b16 %v900
        %v1568 = vunpack.c.l.b16 %v901
        %v1569 = vunpack.c.h.b16 %v901
        %v1570 = vunpack.c.l.b16 %v902
        %v1571 = vunpack.c.h.b16 %v902
        %v1572 = vunpack.c.l.b16 %v903
        %v1573 = vunpack.c.h.b16 %v903
        %v1574 = vunpack.c.l.b16 %v904
        %v1575 = vunpack.c.h.b16 %v904
        %v1576 = vunpack.c.l.b16 %v905
        %v1577 = vunpack.c.h.b16 %v905
        %v1578 = vunpack.c.l.b16 %v906
        %v1579 = vunpack.c.h.b16 %v906
        %v1580 = vunpack.c.l.b16 %v907
        %v1581 = vunpack.c.h.b16 %v907
        %v1582 = vunpack.c.l.b16 %v908
        %v1583 = vunpack.c.h.b16 %v908
        %v1584 = vunpack.c.l.b16 %v909
        %v1585 = vunpack.c.h.b16 %v909
        %v1586 = vunpack.c.l.b16 %v910
        %v1587 = vunpack.c.h.b16 %v910
        %v1588 = vunpack.c.l.b16 %v911
        %v1589 = vunpack.c.h.b16 %v911
        %v1590 = vunpack.c.l.b16 %v912
        %v1591 = vunpack.c.h.b16 %v912
        %v1592 = vunpack.c.l.b16 %v913
        %v1593 = vunpack.c.h.b16 %v913
        %v1594 = vunpack.c.l.b16 %v914
        %v1595 = vunpack.c.h.b16 %v914
        %v1596 = vunpack.c.l.b16 %v915
        %v1597 = vunpack.c.h.b16 %v915
        %v1598 = vunpack.c.l.b16 %v916
        %v1599 = vunpack.c.h.b16 %v916
        %v1600 = vunpack.c.l.b16 %v917
        %v1601 = vunpack.c.h.b16 %v917
        %v1602 = vunpack.c.l.b16 %v918
        %v1603 = vunpack.c.h.b16 %v918
        %v1604 = vunpack.c.l.b16 %v919
        %v1605 = vunpack.c.h.b16 %v919
        %v1606 = vunpack.c.l.b16 %v920
        %v1607 = vunpack.c.h.b16 %v920
        %v1608 = vunpack.c.l.b16 %v921
        %v1609 = vunpack.c.h.b16 %v921
        %v1610 = vunpack.c.l.b16 %v922
        %v1611 = vunpack.c.h.b16 %v922
        %v1612 = vunpack.c.l.b16 %v923
        %v1613 = vunpack.c.h.b16 %v923
        %v1614 = vunpack.c.l.b16 %v924
        %v1615 = vunpack.c.h.b16 %v924
        %v1616 = vunpack.c.l.b16 %v925
        %v1617 = vunpack.c.h.b16 %v925
        %v1618 = vunpack.c.l.b16 %v926
        %v1619 = vunpack.c.h.b16 %v926
        %v1620 = vunpack.c.l.b16 %v927
        %v1621 = vunpack.c.h.b16 %v927
        %v1622 = vunpack.c.l.b16 %v928
        %v1623 = vunpack.c.h.b16 %v928
        %v1624 = vunpack.c.l.b16 %v929
        %v1625 = vunpack.c.h.b16 %v929
        %v1626 = vunpack.c.l.b16 %v930
        %v1627 = vunpack.c.h.b16 %v930
        %v1628 = vunpack.c.l.b16 %v931
        %v1629 = vunpack.c.h.b16 %v931
        %v1630 = vunpack.c.l.b16 %v932
        %v1631 = vunpack.c.h.b16 %v932
        %v1632 = vunpack.c.l.b16 %v933
        %v1633 = vunpack.c.h.b16 %v933
        %v1634 = vunpack.c.l.b16 %v934
        %v1635 = vunpack.c.h.b16 %v934
        %v1636 = vunpack.c.l.b16 %v935
        %v1637 = vunpack.c.h.b16 %v935
        %v1638 = vunpack.c.l.b16 %v936
        %v1639 = vunpack.c.h.b16 %v936
        %v1640 = vunpack.c.l.b16 %v937
        %v1641 = vunpack.c.h.b16 %v937
        %v1642 = vunpack.c.l.b16 %v938
        %v1643 = vunpack.c.h.b16 %v938
        %v1644 = vunpack.c.l.b16 %v939
        %v1645 = vunpack.c.h.b16 %v939
        %v1646 = vunpack.c.l.b16 %v940
        %v1647 = vunpack.c.h.b16 %v940
        %v1648 = vunpack.c.l.b16 %v941
        %v1649 = vunpack.c.h.b16 %v941
        %v1650 = vunpack.c.l.b16 %v942
        %v1651 = vunpack.c.h.b16 %v942
        %v1652 = vunpack.c.l.b16 %v943
        %v1653 = vunpack.c.h.b16 %v943
        %v1654 = vunpack.c.l.b16 %v944
        %v1655 = vunpack.c.h.b16 %v944
        %v1656 = vunpack.c.l.b16 %v945
        %v1657 = vunpack.c.h.b16 %v945
        %v1658 = vunpack.c.l.b16 %v946
        %v1659 = vunpack.c.h.b16 %v946
        %v1660 = vunpack.c.l.b16 %v947
        %v1661 = vunpack.c.h.b16 %v947
        %v1662 = vunpack.c.l.b16 %v948
        %v1663 = vunpack.c.h.b16 %v948
        %v1664 = vunpack.c.l.b16 %v949
        %v1665 = vunpack.c.h.b16 %v949
        %v1666 = vunpack.c.l.b16 %v950
        %v1667 = vunpack.c.h.b16 %v950
        %v1668 = vunpack.c.l.b16 %v951
        %v1669 = vunpack.c.h.b16 %v951
        %v1670 = vunpack.c.l.b16 %v952
        %v1671 = vunpack.c.h.b16 %v952
        %v1672 = vunpack.c.l.b16 %v953
        %v1673 = vunpack.c.h.b16 %v953
        %v1674 = vunpack.c.l.b16 %v954
        %v1675 = vunpack.c.h.b16 %v954
        %v1676 = vunpack.c.l.b16 %v955
        %v1677 = vunpack.c.h.b16 %v955
        %v1678 = vunpack.c.l.b16 %v956
        %v1679 = vunpack.c.h.b16 %v956
        %v1680 = vunpack.c.l.b16 %v957
        %v1681 = vunpack.c.h.b16 %v957
        %v1682 = vunpack.c.l.b16 %v958
        %v1683 = vunpack.c.h.b16 %v958
        %v1684 = vunpack.c.l.b16 %v959
        %v1685 = vunpack.c.h.b16 %v959
        %v1686 = vunpack.c.l.b16 %v960
        %v1687 = vunpack.c.h.b16 %v960
        %v1688 = vunpack.c.l.b16 %v961
        %v1689 = vunpack.c.h.b16 %v961
        %v1690 = vunpack.c.l.b16 %v962
        %v1691 = vunpack.c.h.b16 %v962
        %v1692 = vunpack.c.l.b16 %v963
        %v1693 = vunpack.c.h.b16 %v963
        %v1694 = vunpack.c.l.b16 %v964
        %v1695 = vunpack.c.h.b16 %v964
        %v1696 = vunpack.c.l.b16 %v965
        %v1697 = vunpack.c.h.b16 %v965
        %v1698 = vunpack.c.l.b16 %v966
        %v1699 = vunpack.c.h.b16 %v966
        %v1700 = vunpack.c.l.b16 %v967
        %v1701 = vunpack.c.h.b16 %v967
        %v1702 = vunpack.c.l.b16 %v968
        %v1703 = vunpack.c.h.b16 %v968
        %v1704 = vunpack.c.l.b16 %v969
        %v1705 = vunpack.c.h.b16 %v969
        %v1706 = vunpack.c.l.b16 %v970
        %v1707 = vunpack.c.h.b16 %v970
        %v1708 = vunpack.c.l.b16 %v971
        %v1709 = vunpack.c.h.b16 %v971
        %v1710 = vunpack.c.l.b16 %v972
        %v1711 = vunpack.c.h.b16 %v972
        %v1712 = vunpack.c.l.b16 %v973
        %v1713 = vunpack.c.h.b16 %v973
        %v1714 = vunpack.c.l.b16 %v974
        %v1715 = vunpack.c.h.b16 %v974
        %v1716 = vunpack.c.l.b16 %v975
        %v1717 = vunpack.c.h.b16 %v975
        %v1718 = vunpack.c.l.b16 %v976
        %v1719 = vunpack.c.h.b16 %v976
        %v1720 = vunpack.c.l.b16 %v977
        %v1721 = vunpack.c.h.b16 %v977
        %v1722 = vunpack.c.l.b16 %v978
        %v1723 = vunpack.c.h.b16 %v978
        %v1724 = vunpack.c.l.b16 %v979
        %v1725 = vunpack.c.h.b16 %v979
        %v1726 = vunpack.c.l.b16 %v980
        %v1727 = vunpack.c.h.b16 %v980
        %v1728 = vunpack.c.l.b16 %v981
        %v1729 = vunpack.c.h.b16 %v981
        %v1730 = vunpack.c.l.b16 %v982
        %v1731 = vunpack.c.h.b16 %v982
        %v1732 = vunpack.c.l.b16 %v983
        %v1733 = vunpack.c.h.b16 %v983
        %v1734 = vunpack.c.l.b16 %v984
        %v1735 = vunpack.c.h.b16 %v984
        %v1736 = vunpack.c.l.b16 %v985
        %v1737 = vunpack.c.h.b16 %v985
        %v1738 = vunpack.c.l.b16 %v986
        %v1739 = vunpack.c.h.b16 %v986
        %v1740 = vunpack.c.l.b16 %v987
        %v1741 = vunpack.c.h.b16 %v987
        %v1742 = vunpack.c.l.b16 %v988
        %v1743 = vunpack.c.h.b16 %v988
        %v1744 = vunpack.c.l.b16 %v989
        %v1745 = vunpack.c.h.b16 %v989
        %v1746 = vunpack.c.l.b16 %v990
        %v1747 = vunpack.c.h.b16 %v990
        %v1748 = vunpack.c.l.b16 %v991
        %v1749 = vunpack.c.h.b16 %v991
        %v1750 = vunpack.c.l.b16 %v992
        %v1751 = vunpack.c.h.b16 %v992
        %v1752 = vunpack.c.l.b16 %v993
        %v1753 = vunpack.c.h.b16 %v993
        %v1754 = vunpack.c.l.b16 %v994
        %v1755 = vunpack.c.h.b16 %v994
        %v1756 = vunpack.c.l.b16 %v995
        %v1757 = vunpack.c.h.b16 %v995
        %v1758 = vunpack.c.l.b16 %v996
        %v1759 = vunpack.c.h.b16 %v996
        %v1760 = vunpack.c.l.b16 %v997
        %v1761 = vunpack.c.h.b16 %v997
        %v1762 = vunpack.c.l.b16 %v998
        %v1763 = vunpack.c.h.b16 %v998
        %v1764 = vunpack.c.l.b16 %v999
        %v1765 = vunpack.c.h.b16 %v999
        %v1766 = vunpack.c.l.b16 %v1000
        %v1767 = vunpack.c.h.b16 %v1000
        %v1768 = vunpack.c.l.b16 %v1001
        %v1769 = vunpack.c.h.b16 %v1001
        %v1770 = vunpack.c.l.b16 %v1002
        %v1771 = vunpack.c.h.b16 %v1002
        %v1772 = vunpack.c.l.b16 %v1003
        %v1773 = vunpack.c.h.b16 %v1003
        %v1774 = vunpack.c.l.b16 %v1004
        %v1775 = vunpack.c.h.b16 %v1004
        %v1776 = vunpack.c.l.b16 %v1005
        %v1777 = vunpack.c.h.b16 %v1005
        %v1778 = vunpack.c.l.b16 %v1006
        %v1779 = vunpack.c.h.b16 %v1006
        %v1780 = vunpack.c.l.b16 %v1007
        %v1781 = vunpack.c.h.b16 %v1007
        %v1782 = vpack.c.b16 %v1302, %v1270
        %v1783 = vpack.c.b16 %v1303, %v1271
        %v1784 = vpack.c.b16 %v1304, %v1272
        %v1785 = vpack.c.b16 %v1305, %v1273
        %v1786 = vpack.c.b16 %v1306, %v1274
        %v1787 = vpack.c.b16 %v1307, %v1275
        %v1788 = vpack.c.b16 %v1308, %v1276
        %v1789 = vpack.c.b16 %v1309, %v1277
        %v1790 = vpack.c.b16 %v1310, %v1278
        %v1791 = vpack.c.b16 %v1311, %v1279
        %v1792 = vpack.c.b16 %v1312, %v1280
        %v1793 = vpack.c.b16 %v1313, %v1281
        %v1794 = vpack.c.b16 %v1314, %v1282
        %v1795 = vpack.c.b16 %v1315, %v1283
        %v1796 = vpack.c.b16 %v1316, %v1284
        %v1797 = vpack.c.b16 %v1317, %v1285
        %v1798 = vpack.c.b16 %v1318, %v1286
        %v1799 = vpack.c.b16 %v1319, %v1287
        %v1800 = vpack.c.b16 %v1320, %v1288
        %v1801 = vpack.c.b16 %v1321, %v1289
        %v1802 = vpack.c.b16 %v1322, %v1290
        %v1803 = vpack.c.b16 %v1323, %v1291
        %v1804 = vpack.c.b16 %v1324, %v1292
        %v1805 = vpack.c.b16 %v1325, %v1293
        %v1806 = vpack.c.b16 %v1326, %v1294
        %v1807 = vpack.c.b16 %v1327, %v1295
        %v1808 = vpack.c.b16 %v1328, %v1296
        %v1809 = vpack.c.b16 %v1329, %v1297
        %v1810 = vpack.c.b16 %v1330, %v1298
        %v1811 = vpack.c.b16 %v1331, %v1299
        %v1812 = vpack.c.b16 %v1332, %v1300
        %v1813 = vpack.c.b16 %v1333, %v1301
        %v1814 = vpack.c.b16 %v1366, %v1334
        %v1815 = vpack.c.b16 %v1367, %v1335
        %v1816 = vpack.c.b16 %v1368, %v1336
        %v1817 = vpack.c.b16 %v1369, %v1337
        %v1818 = vpack.c.b16 %v1370, %v1338
        %v1819 = vpack.c.b16 %v1371, %v1339
        %v1820 = vpack.c.b16 %v1372, %v1340
        %v1821 = vpack.c.b16 %v1373, %v1341
        %v1822 = vpack.c.b16 %v1374, %v1342
        %v1823 = vpack.c.b16 %v1375, %v1343
        %v1824 = vpack.c.b16 %v1376, %v1344
        %v1825 = vpack.c.b16 %v1377, %v1345
        %v1826 = vpack.c.b16 %v1378, %v1346
        %v1827 = vpack.c.b16 %v1379, %v1347
        %v1828 = vpack.c.b16 %v1380, %v1348
        %v1829 = vpack.c.b16 %v1381, %v1349
        %v1830 = vpack.c.b16 %v1382, %v1350
        %v1831 = vpack.c.b16 %v1383, %v1351
        %v1832 = vpack.c.b16 %v1384, %v1352
        %v1833 = vpack.c.b16 %v1385, %v1353
        %v1834 = vpack.c.b16 %v1386, %v1354
        %v1835 = vpack.c.b16 %v1387, %v1355
        %v1836 = vpack.c.b16 %v1388, %v1356
        %v1837 = vpack.c.b16 %v1389, %v1357
        %v1838 = vpack.c.b16 %v1390, %v1358
        %v1839 = vpack.c.b16 %v1391, %v1359
        %v1840 = vpack.c.b16 %v1392, %v1360
        %v1841 = vpack.c.b16 %v1393, %v1361
        %v1842 = vpack.c.b16 %v1394, %v1362
        %v1843 = vpack.c.b16 %v1395, %v1363
        %v1844 = vpack.c.b16 %v1396, %v1364
        %v1845 = vpack.c.b16 %v1397, %v1365
        %v1846 = vpack.c.b16 %v1430, %v1398
        %v1847 = vpack.c.b16 %v1431, %v1399
        %v1848 = vpack.c.b16 %v1432, %v1400
        %v1849 = vpack.c.b16 %v1433, %v1401
        %v1850 = vpack.c.b16 %v1434, %v1402
        %v1851 = vpack.c.b16 %v1435, %v1403
        %v1852 = vpack.c.b16 %v1436, %v1404
        %v1853 = vpack.c.b16 %v1437, %v1405
        %v1854 = vpack.c.b16 %v1438, %v1406
        %v1855 = vpack.c.b16 %v1439, %v1407
        %v1856 = vpack.c.b16 %v1440, %v1408
        %v1857 = vpack.c.b16 %v1441, %v1409
        %v1858 = vpack.c.b16 %v1442, %v1410
        %v1859 = vpack.c.b16 %v1443, %v1411
        %v1860 = vpack.c.b16 %v1444, %v1412
        %v1861 = vpack.c.b16 %v1445, %v1413
        %v1862 = vpack.c.b16 %v1446, %v1414
        %v1863 = vpack.c.b16 %v1447, %v1415
        %v1864 = vpack.c.b16 %v1448, %v1416
        %v1865 = vpack.c.b16 %v1449, %v1417
        %v1866 = vpack.c.b16 %v1450, %v1418
        %v1867 = vpack.c.b16 %v1451, %v1419
        %v1868 = vpack.c.b16 %v1452, %v1420
        %v1869 = vpack.c.b16 %v1453, %v1421
        %v1870 = vpack.c.b16 %v1454, %v1422
        %v1871 = vpack.c.b16 %v1455, %v1423
        %v1872 = vpack.c.b16 %v1456, %v1424
        %v1873 = vpack.c.b16 %v1457, %v1425
        %v1874 = vpack.c.b16 %v1458, %v1426
        %v1875 = vpack.c.b16 %v1459, %v1427
        %v1876 = vpack.c.b16 %v1460, %v1428
        %v1877 = vpack.c.b16 %v1461, %v1429
        %v1878 = vpack.c.b16 %v1494, %v1462
        %v1879 = vpack.c.b16 %v1495, %v1463
        %v1880 = vpack.c.b16 %v1496, %v1464
        %v1881 = vpack.c.b16 %v1497, %v1465
        %v1882 = vpack.c.b16 %v1498, %v1466
        %v1883 = vpack.c.b16 %v1499, %v1467
        %v1884 = vpack.c.b16 %v1500, %v1468
        %v1885 = vpack.c.b16 %v1501, %v1469
        %v1886 = vpack.c.b16 %v1502, %v1470
        %v1887 = vpack.c.b16 %v1503, %v1471
        %v1888 = vpack.c.b16 %v1504, %v1472
        %v1889 = vpack.c.b16 %v1505, %v1473
        %v1890 = vpack.c.b16 %v1506, %v1474
        %v1891 = vpack.c.b16 %v1507, %v1475
        %v1892 = vpack.c.b16 %v1508, %v1476
        %v1893 = vpack.c.b16 %v1509, %v1477
        %v1894 = vpack.c.b16 %v1510, %v1478
        %v1895 = vpack.c.b16 %v1511, %v1479
        %v1896 = vpack.c.b16 %v1512, %v1480
        %v1897 = vpack.c.b16 %v1513, %v1481
        %v1898 = vpack.c.b16 %v1514, %v1482
        %v1899 = vpack.c.b16 %v1515, %v1483
        %v1900 = vpack.c.b16 %v1516, %v1484
        %v1901 = vpack.c.b16 %v1517, %v1485
        %v1902 = vpack.c.b16 %v1518, %v1486
        %v1903 = vpack.c.b16 %v1519, %v1487
        %v1904 = vpack.c.b16 %v1520, %v1488
        %v1905 = vpack.c.b16 %v1521, %v1489
        %v1906 = vpack.c.b16 %v1522, %v1490
        %v1907 = vpack.c.b16 %v1523, %v1491
        %v1908 = vpack.c.b16 %v1524, %v1492
        %v1909 = vpack.c.b16 %v1525, %v1493
        %v1910 = vpack.c.b16 %v1558, %v1526
        %v1911 = vpack.c.b16 %v1559, %v1527
        %v1912 = vpack.c.b16 %v1560, %v1528
        %v1913 = vpack.c.b16 %v1561, %v1529
        %v1914 = vpack.c.b16 %v1562, %v1530
        %v1915 = vpack.c.b16 %v1563, %v1531
        %v1916 = vpack.c.b16 %v1564, %v1532
        %v1917 = vpack.c.b16 %v1565, %v1533
        %v1918 = vpack.c.b16 %v1566, %v1534
        %v1919 = vpack.c.b16 %v1567, %v1535
        %v1920 = vpack.c.b16 %v1568, %v1536
        %v1921 = vpack.c.b16 %v1569, %v1537
        %v1922 = vpack.c.b16 %v1570, %v1538
        %v1923 = vpack.c.b16 %v1571, %v1539
        %v1924 = vpack.c.b16 %v1572, %v1540
        %v1925 = vpack.c.b16 %v1573, %v1541
        %v1926 = vpack.c.b16 %v1574, %v1542
        %v1927 = vpack.c.b16 %v1575, %v1543
        %v1928 = vpack.c.b16 %v1576, %v1544
        %v1929 = vpack.c.b16 %v1577, %v1545
        %v1930 = vpack.c.b16 %v1578, %v1546
        %v1931 = vpack.c.b16 %v1579, %v1547
        %v1932 = vpack.c.b16 %v1580, %v1548
        %v1933 = vpack.c.b16 %v1581, %v1549
        %v1934 = vpack.c.b16 %v1582, %v1550
        %v1935 = vpack.c.b16 %v1583, %v1551
        %v1936 = vpack.c.b16 %v1584, %v1552
        %v1937 = vpack.c.b16 %v1585, %v1553
        %v1938 = vpack.c.b16 %v1586, %v1554
        %v1939 = vpack.c.b16 %v1587, %v1555
        %v1940 = vpack.c.b16 %v1588, %v1556
        %v1941 = vpack.c.b16 %v1589, %v1557
        %v1942 = vpack.c.b16 %v1622, %v1590
        %v1943 = vpack.c.b16 %v1623, %v1591
        %v1944 = vpack.c.b16 %v1624, %v1592
        %v1945 = vpack.c.b16 %v1625, %v1593
        %v1946 = vpack.c.b16 %v1626, %v1594
        %v1947 = vpack.c.b16 %v1627, %v1595
        %v1948 = vpack.c.b16 %v1628, %v1596
        %v1949 = vpack.c.b16 %v1629, %v1597
        %v1950 = vpack.c.b16 %v1630, %v1598
        %v1951 = vpack.c.b16 %v1631, %v1599
        %v1952 = vpack.c.b16 %v1632, %v1600
        %v1953 = vpack.c.b16 %v1633, %v1601
        %v1954 = vpack.c.b16 %v1634, %v1602
        %v1955 = vpack.c.b16 %v1635, %v1603
        %v1956 = vpack.c.b16 %v1636, %v1604
        %v1957 = vpack.c.b16 %v1637, %v1605
        %v1958 = vpack.c.b16 %v1638, %v1606
        %v1959 = vpack.c.b16 %v1639, %v1607
        %v1960 = vpack.c.b16 %v1640, %v1608
        %v1961 = vpack.c.b16 %v1641, %v1609
        %v1962 = vpack.c.b16 %v1642, %v1610
        %v1963 = vpack.c.b16 %v1643, %v1611
        %v1964 = vpack.c.b16 %v1644, %v1612
        %v1965 = vpack.c.b16 %v1645, %v1613
        %v1966 = vpack.c.b16 %v1646, %v1614
        %v1967 = vpack.c.b16 %v1647, %v1615
        %v1968 = vpack.c.b16 %v1648, %v1616
        %v1969 = vpack.c.b16 %v1649, %v1617
        %v1970 = vpack.c.b16 %v1650, %v1618
        %v1971 = vpack.c.b16 %v1651, %v1619
        %v1972 = vpack.c.b16 %v1652, %v1620
        %v1973 = vpack.c.b16 %v1653, %v1621
        %v1974 = vpack.c.b16 %v1686, %v1654
        %v1975 = vpack.c.b16 %v1687, %v1655
        %v1976 = vpack.c.b16 %v1688, %v1656
        %v1977 = vpack.c.b16 %v1689, %v1657
        %v1978 = vpack.c.b16 %v1690, %v1658
        %v1979 = vpack.c.b16 %v1691, %v1659
        %v1980 = vpack.c.b16 %v1692, %v1660
        %v1981 = vpack.c.b16 %v1693, %v1661
        %v1982 = vpack.c.b16 %v1694, %v1662
        %v1983 = vpack.c.b16 %v1695, %v1663
        %v1984 = vpack.c.b16 %v1696, %v1664
        %v1985 = vpack.c.b16 %v1697, %v1665
        %v1986 = vpack.c.b16 %v1698, %v1666
        %v1987 = vpack.c.b16 %v1699, %v1667
        %v1988 = vpack.c.b16 %v1700, %v1668
        %v1989 = vpack.c.b16 %v1701, %v1669
        %v1990 = vpack.c.b16 %v1702, %v1670
        %v1991 = vpack.c.b16 %v1703, %v1671
        %v1992 = vpack.c.b16 %v1704, %v1672
        %v1993 = vpack.c.b16 %v1705, %v1673
        %v1994 = vpack.c.b16 %v1706, %v1674
        %v1995 = vpack.c.b16 %v1707, %v1675
        %v1996 = vpack.c.b16 %v1708, %v1676
        %v1997 = vpack.c.b16 %v1709, %v1677
        %v1998 = vpack.c.b16 %v1710, %v1678
        %v1999 = vpack.c.b16 %v1711, %v1679
        %v2000 = vpack.c.b16 %v1712, %v1680
        %v2001 = vpack.c.b16 %v1713, %v1681
        %v2002 = vpack.c.b16 %v1714, %v1682
        %v2003 = vpack.c.b16 %v1715, %v1683
        %v2004 = vpack.c.b16 %v1716, %v1684
        %v2005 = vpack.c.b16 %v1717, %v1685
        %v2006 = vpack.c.b16 %v1750, %v1718
        %v2007 = vpack.c.b16 %v1751, %v1719
        %v2008 = vpack.c.b16 %v1752, %v1720
        %v2009 = vpack.c.b16 %v1753, %v1721
        %v2010 = vpack.c.b16 %v1754, %v1722
        %v2011 = vpack.c.b16 %v1755, %v1723
        %v2012 = vpack.c.b16 %v1756, %v1724
        %v2013 = vpack.c.b16 %v1757, %v1725
        %v2014 = vpack.c.b16 %v1758, %v1726
        %v2015 = vpack.c.b16 %v1759, %v1727
        %v2016 = vpack.c.b16 %v1760, %v1728
        %v2017 = vpack.c.b16 %v1761, %v1729
        %v2018 = vpack.c.b16 %v1762, %v1730
        %v2019 = vpack.c.b16 %v1763, %v1731
        %v2020 = vpack.c.b16 %v1764, %v1732
        %v2021 = vpack.c.b16 %v1765, %v1733
        %v2022 = vpack.c.b16 %v1766, %v1734
        %v2023 = vpack.c.b16 %v1767, %v1735
        %v2024 = vpack.c.b16 %v1768, %v1736
        %v2025 = vpack.c.b16 %v1769, %v1737
        %v2026 = vpack.c.b16 %v1770, %v1738
        %v2027 = vpack.c.b16 %v1771, %v1739
        %v2028 = vpack.c.b16 %v1772, %v1740
        %v2029 = vpack.c.b16 %v1773, %v1741
        %v2030 = vpack.c.b16 %v1774, %v1742
        %v2031 = vpack.c.b16 %v1775, %v1743
        %v2032 = vpack.c.b16 %v1776, %v1744
        %v2033 = vpack.c.b16 %v1777, %v1745
        %v2034 = vpack.c.b16 %v1778, %v1746
        %v2035 = vpack.c.b16 %v1779, %v1747
        %v2036 = vpack.c.b16 %v1780, %v1748
        %v2037 = vpack.c.b16 %v1781, %v1749
        %2294 = vmatprep.subr.bf16.mxu0 %v1783
        %2295 = vmatpush1.bf16.msra.mxu0 %v1782
        %2296 = vmatprep.subr.bf16.mxu0 %v1815
        %2297 = vmatpush1.bf16.msra.mxu0 %v1814
        %2298 = vmatprep.subr.bf16.mxu0 %v1847
        %2299 = vmatpush1.bf16.msra.mxu0 %v1846
        %2300 = vmatprep.subr.bf16.mxu0 %v1879
        %2301 = vmatpush1.bf16.msra.mxu0 %v1878
        %2302 = vmatprep.subr.bf16.mxu0 %v1911
        %2303 = vmatpush1.bf16.msra.mxu0 %v1910
        %2304 = vmatprep.subr.bf16.mxu0 %v1943
        %2305 = vmatpush1.bf16.msra.mxu0 %v1942
        %2306 = vmatprep.subr.bf16.mxu0 %v1975
        %2307 = vmatpush1.bf16.msra.mxu0 %v1974
        %2308 = vmatprep.subr.bf16.mxu0 %v2007
        %2309 = vmatpush1.bf16.msra.mxu0 %v2006
        %2310 = vmatprep.subr.bf16.mxu0 0
        %2311 = vmatpush1.bf16.msra.mxu0 0
        %2312 = vmatprep.subr.bf16.mxu0 0
        %2313 = vmatpush1.bf16.msra.mxu0 0
        %2314 = vmatprep.subr.bf16.mxu0 0
        %2315 = vmatpush1.bf16.msra.mxu0 0
        %2316 = vmatprep.subr.bf16.mxu0 0
        %2317 = vmatpush1.bf16.msra.mxu0 0
        %2318 = vmatprep.subr.bf16.mxu0 0
        %2319 = vmatpush1.bf16.msra.mxu0 0
        %2320 = vmatprep.subr.bf16.mxu0 0
        %2321 = vmatpush1.bf16.msra.mxu0 0
        %2322 = vmatprep.subr.bf16.mxu0 0
        %2323 = vmatpush1.bf16.msra.mxu0 0
        %2324 = vmatprep.subr.bf16.mxu0 0
        %2325 = vmatpush1.bf16.msra.mxu0 0
        %2326 = vmatprep.mubr.bf16.mxu0 0
        %2327 = vmatmul.mubr.bf16.gmra.mrb[0].mxu0 %v1012
        %v2328 = vpop.f32.mrb[0].mxu0
        %v2329 = vadd.f32 0.0, %v2328
        %v2330 = vpop.f32.mrb[0].mxu0
        %v2331 = vadd.f32 0.0, %v2330
        %v2332 = vpop.f32.mrb[0].mxu0
        %v2333 = vadd.f32 0.0, %v2332
        %v2334 = vpop.f32.mrb[0].mxu0
        %v2335 = vadd.f32 0.0, %v2334
        %2336 = vdwg.mxu0
        %2337 = vmatprep.subr.bf16.mxu0 %v1785
        %2338 = vmatpush1.bf16.msra.mxu0 %v1784
        %2339 = vmatprep.subr.bf16.mxu0 %v1817
        %2340 = vmatpush1.bf16.msra.mxu0 %v1816
        %2341 = vmatprep.subr.bf16.mxu0 %v1849
        %2342 = vmatpush1.bf16.msra.mxu0 %v1848
        %2343 = vmatprep.subr.bf16.mxu0 %v1881
        %2344 = vmatpush1.bf16.msra.mxu0 %v1880
        %2345 = vmatprep.subr.bf16.mxu0 %v1913
        %2346 = vmatpush1.bf16.msra.mxu0 %v1912
        %2347 = vmatprep.subr.bf16.mxu0 %v1945
        %2348 = vmatpush1.bf16.msra.mxu0 %v1944
        %2349 = vmatprep.subr.bf16.mxu0 %v1977
        %2350 = vmatpush1.bf16.msra.mxu0 %v1976
        %2351 = vmatprep.subr.bf16.mxu0 %v2009
        %2352 = vmatpush1.bf16.msra.mxu0 %v2008
        %2353 = vmatprep.subr.bf16.mxu0 0
        %2354 = vmatpush1.bf16.msra.mxu0 0
        %2355 = vmatprep.subr.bf16.mxu0 0
        %2356 = vmatpush1.bf16.msra.mxu0 0
        %2357 = vmatprep.subr.bf16.mxu0 0
        %2358 = vmatpush1.bf16.msra.mxu0 0
        %2359 = vmatprep.subr.bf16.mxu0 0
        %2360 = vmatpush1.bf16.msra.mxu0 0
        %2361 = vmatprep.subr.bf16.mxu0 0
        %2362 = vmatpush1.bf16.msra.mxu0 0
        %2363 = vmatprep.subr.bf16.mxu0 0
        %2364 = vmatpush1.bf16.msra.mxu0 0
        %2365 = vmatprep.subr.bf16.mxu0 0
        %2366 = vmatpush1.bf16.msra.mxu0 0
        %2367 = vmatprep.subr.bf16.mxu0 0
        %2368 = vmatpush1.bf16.msra.mxu0 0
        %2369 = vmatprep.mubr.bf16.mxu0 0
        %2370 = vmatmul.mubr.bf16.gmra.mrb[0].mxu0 %v1012
        %v2371 = vpop.f32.mrb[0].mxu0
        %v2372 = vadd.f32 0.0, %v2371
        %v2373 = vpop.f32.mrb[0].mxu0
        %v2374 = vadd.f32 0.0, %v2373
        %v2375 = vpop.f32.mrb[0].mxu0
        %v2376 = vadd.f32 0.0, %v2375
        %v2377 = vpop.f32.mrb[0].mxu0
        %v2378 = vadd.f32 0.0, %v2377
        %2379 = vdwg.mxu0
        %2380 = vmatprep.subr.bf16.mxu0 %v1787
        %2381 = vmatpush1.bf16.msra.mxu0 %v1786
        %2382 = vmatprep.subr.bf16.mxu0 %v1819
        %2383 = vmatpush1.bf16.msra.mxu0 %v1818
        %2384 = vmatprep.subr.bf16.mxu0 %v1851
        %2385 = vmatpush1.bf16.msra.mxu0 %v1850
        %2386 = vmatprep.subr.bf16.mxu0 %v1883
        %2387 = vmatpush1.bf16.msra.mxu0 %v1882
        %2388 = vmatprep.subr.bf16.mxu0 %v1915
        %2389 = vmatpush1.bf16.msra.mxu0 %v1914
        %2390 = vmatprep.subr.bf16.mxu0 %v1947
        %2391 = vmatpush1.bf16.msra.mxu0 %v1946
        %2392 = vmatprep.subr.bf16.mxu0 %v1979
        %2393 = vmatpush1.bf16.msra.mxu0 %v1978
        %2394 = vmatprep.subr.bf16.mxu0 %v2011
        %2395 = vmatpush1.bf16.msra.mxu0 %v2010
        %2396 = vmatprep.subr.bf16.mxu0 0
        %2397 = vmatpush1.bf16.msra.mxu0 0
        %2398 = vmatprep.subr.bf16.mxu0 0
        %2399 = vmatpush1.bf16.msra.mxu0 0
        %2400 = vmatprep.subr.bf16.mxu0 0
        %2401 = vmatpush1.bf16.msra.mxu0 0
        %2402 = vmatprep.subr.bf16.mxu0 0
        %2403 = vmatpush1.bf16.msra.mxu0 0
        %2404 = vmatprep.subr.bf16.mxu0 0
        %2405 = vmatpush1.bf16.msra.mxu0 0
        %2406 = vmatprep.subr.bf16.mxu0 0
        %2407 = vmatpush1.bf16.msra.mxu0 0
        %2408 = vmatprep.subr.bf16.mxu0 0
        %2409 = vmatpush1.bf16.msra.mxu0 0
        %2410 = vmatprep.subr.bf16.mxu0 0
        %2411 = vmatpush1.bf16.msra.mxu0 0
        %2412 = vmatprep.mubr.bf16.mxu0 0
        %2413 = vmatmul.mubr.bf16.gmra.mrb[0].mxu0 %v1012
        %v2414 = vpop.f32.mrb[0].mxu0
        %v2415 = vadd.f32 0.0, %v2414
        %v2416 = vpop.f32.mrb[0].mxu0
        %v2417 = vadd.f32 0.0, %v2416
        %v2418 = vpop.f32.mrb[0].mxu0
        %v2419 = vadd.f32 0.0, %v2418
        %v2420 = vpop.f32.mrb[0].mxu0
        %v2421 = vadd.f32 0.0, %v2420
        %2422 = vdwg.mxu0
        %2423 = vmatprep.subr.bf16.mxu0 %v1789
        %2424 = vmatpush1.bf16.msra.mxu0 %v1788
        %2425 = vmatprep.subr.bf16.mxu0 %v1821
        %2426 = vmatpush1.bf16.msra.mxu0 %v1820
        %2427 = vmatprep.subr.bf16.mxu0 %v1853
        %2428 = vmatpush1.bf16.msra.mxu0 %v1852
        %2429 = vmatprep.subr.bf16.mxu0 %v1885
        %2430 = vmatpush1.bf16.msra.mxu0 %v1884
        %2431 = vmatprep.subr.bf16.mxu0 %v1917
        %2432 = vmatpush1.bf16.msra.mxu0 %v1916
        %2433 = vmatprep.subr.bf16.mxu0 %v1949
        %2434 = vmatpush1.bf16.msra.mxu0 %v1948
        %2435 = vmatprep.subr.bf16.mxu0 %v1981
        %2436 = vmatpush1.bf16.msra.mxu0 %v1980
        %2437 = vmatprep.subr.bf16.mxu0 %v2013
        %2438 = vmatpush1.bf16.msra.mxu0 %v2012
        %2439 = vmatprep.subr.bf16.mxu0 0
        %2440 = vmatpush1.bf16.msra.mxu0 0
        %2441 = vmatprep.subr.bf16.mxu0 0
        %2442 = vmatpush1.bf16.msra.mxu0 0
        %2443 = vmatprep.subr.bf16.mxu0 0
        %2444 = vmatpush1.bf16.msra.mxu0 0
        %2445 = vmatprep.subr.bf16.mxu0 0
        %2446 = vmatpush1.bf16.msra.mxu0 0
        %2447 = vmatprep.subr.bf16.mxu0 0
        %2448 = vmatpush1.bf16.msra.mxu0 0
        %2449 = vmatprep.subr.bf16.mxu0 0
        %2450 = vmatpush1.bf16.msra.mxu0 0
        %2451 = vmatprep.subr.bf16.mxu0 0
        %2452 = vmatpush1.bf16.msra.mxu0 0
        %2453 = vmatprep.subr.bf16.mxu0 0
        %2454 = vmatpush1.bf16.msra.mxu0 0
        %2455 = vmatprep.mubr.bf16.mxu0 0
        %2456 = vmatmul.mubr.bf16.gmra.mrb[0].mxu0 %v1012
        %v2457 = vpop.f32.mrb[0].mxu0
        %v2458 = vadd.f32 0.0, %v2457
        %v2459 = vpop.f32.mrb[0].mxu0
        %v2460 = vadd.f32 0.0, %v2459
        %v2461 = vpop.f32.mrb[0].mxu0
        %v2462 = vadd.f32 0.0, %v2461
        %v2463 = vpop.f32.mrb[0].mxu0
        %v2464 = vadd.f32 0.0, %v2463
        %2465 = vdwg.mxu0
        %2466 = vmatprep.subr.bf16.mxu0 %v1791
        %2467 = vmatpush1.bf16.msra.mxu0 %v1790
        %2468 = vmatprep.subr.bf16.mxu0 %v1823
        %2469 = vmatpush1.bf16.msra.mxu0 %v1822
        %2470 = vmatprep.subr.bf16.mxu0 %v1855
        %2471 = vmatpush1.bf16.msra.mxu0 %v1854
        %2472 = vmatprep.subr.bf16.mxu0 %v1887
        %2473 = vmatpush1.bf16.msra.mxu0 %v1886
        %2474 = vmatprep.subr.bf16.mxu0 %v1919
        %2475 = vmatpush1.bf16.msra.mxu0 %v1918
        %2476 = vmatprep.subr.bf16.mxu0 %v1951
        %2477 = vmatpush1.bf16.msra.mxu0 %v1950
        %2478 = vmatprep.subr.bf16.mxu0 %v1983
        %2479 = vmatpush1.bf16.msra.mxu0 %v1982
        %2480 = vmatprep.subr.bf16.mxu0 %v2015
        %2481 = vmatpush1.bf16.msra.mxu0 %v2014
        %2482 = vmatprep.subr.bf16.mxu0 0
        %2483 = vmatpush1.bf16.msra.mxu0 0
        %2484 = vmatprep.subr.bf16.mxu0 0
        %2485 = vmatpush1.bf16.msra.mxu0 0
        %2486 = vmatprep.subr.bf16.mxu0 0
        %2487 = vmatpush1.bf16.msra.mxu0 0
        %2488 = vmatprep.subr.bf16.mxu0 0
        %2489 = vmatpush1.bf16.msra.mxu0 0
        %2490 = vmatprep.subr.bf16.mxu0 0
        %2491 = vmatpush1.bf16.msra.mxu0 0
        %2492 = vmatprep.subr.bf16.mxu0 0
        %2493 = vmatpush1.bf16.msra.mxu0 0
        %2494 = vmatprep.subr.bf16.mxu0 0
        %2495 = vmatpush1.bf16.msra.mxu0 0
        %2496 = vmatprep.subr.bf16.mxu0 0
        %2497 = vmatpush1.bf16.msra.mxu0 0
        %2498 = vmatprep.mubr.bf16.mxu0 0
        %2499 = vmatmul.mubr.bf16.gmra.mrb[0].mxu0 %v1012
        %v2500 = vpop.f32.mrb[0].mxu0
        %v2501 = vadd.f32 0.0, %v2500
        %v2502 = vpop.f32.mrb[0].mxu0
        %v2503 = vadd.f32 0.0, %v2502
        %v2504 = vpop.f32.mrb[0].mxu0
        %v2505 = vadd.f32 0.0, %v2504
        %v2506 = vpop.f32.mrb[0].mxu0
        %v2507 = vadd.f32 0.0, %v2506
        %2508 = vdwg.mxu0
        %2509 = vmatprep.subr.bf16.mxu0 %v1793
        %2510 = vmatpush1.bf16.msra.mxu0 %v1792
        %2511 = vmatprep.subr.bf16.mxu0 %v1825
        %2512 = vmatpush1.bf16.msra.mxu0 %v1824
        %2513 = vmatprep.subr.bf16.mxu0 %v1857
        %2514 = vmatpush1.bf16.msra.mxu0 %v1856
        %2515 = vmatprep.subr.bf16.mxu0 %v1889
        %2516 = vmatpush1.bf16.msra.mxu0 %v1888
        %2517 = vmatprep.subr.bf16.mxu0 %v1921
        %2518 = vmatpush1.bf16.msra.mxu0 %v1920
        %2519 = vmatprep.subr.bf16.mxu0 %v1953
        %2520 = vmatpush1.bf16.msra.mxu0 %v1952
        %2521 = vmatprep.subr.bf16.mxu0 %v1985
        %2522 = vmatpush1.bf16.msra.mxu0 %v1984
        %2523 = vmatprep.subr.bf16.mxu0 %v2017
        %2524 = vmatpush1.bf16.msra.mxu0 %v2016
        %2525 = vmatprep.subr.bf16.mxu0 0
        %2526 = vmatpush1.bf16.msra.mxu0 0
        %2527 = vmatprep.subr.bf16.mxu0 0
        %2528 = vmatpush1.bf16.msra.mxu0 0
        %2529 = vmatprep.subr.bf16.mxu0 0
        %2530 = vmatpush1.bf16.msra.mxu0 0
        %2531 = vmatprep.subr.bf16.mxu0 0
        %2532 = vmatpush1.bf16.msra.mxu0 0
        %2533 = vmatprep.subr.bf16.mxu0 0
        %2534 = vmatpush1.bf16.msra.mxu0 0
        %2535 = vmatprep.subr.bf16.mxu0 0
        %2536 = vmatpush1.bf16.msra.mxu0 0
        %2537 = vmatprep.subr.bf16.mxu0 0
        %2538 = vmatpush1.bf16.msra.mxu0 0
        %2539 = vmatprep.subr.bf16.mxu0 0
        %2540 = vmatpush1.bf16.msra.mxu0 0
        %2541 = vmatprep.mubr.bf16.mxu0 0
        %2542 = vmatmul.mubr.bf16.gmra.mrb[0].mxu0 %v1012
        %v2543 = vpop.f32.mrb[0].mxu0
        %v2544 = vadd.f32 0.0, %v2543
        %v2545 = vpop.f32.mrb[0].mxu0
        %v2546 = vadd.f32 0.0, %v2545
        %v2547 = vpop.f32.mrb[0].mxu0
        %v2548 = vadd.f32 0.0, %v2547
        %v2549 = vpop.f32.mrb[0].mxu0
        %v2550 = vadd.f32 0.0, %v2549
        %2551 = vdwg.mxu0
        %2552 = vmatprep.subr.bf16.mxu0 %v1795
        %2553 = vmatpush1.bf16.msra.mxu0 %v1794
        %2554 = vmatprep.subr.bf16.mxu0 %v1827
        %2555 = vmatpush1.bf16.msra.mxu0 %v1826
        %2556 = vmatprep.subr.bf16.mxu0 %v1859
        %2557 = vmatpush1.bf16.msra.mxu0 %v1858
        %2558 = vmatprep.subr.bf16.mxu0 %v1891
        %2559 = vmatpush1.bf16.msra.mxu0 %v1890
        %2560 = vmatprep.subr.bf16.mxu0 %v1923
        %2561 = vmatpush1.bf16.msra.mxu0 %v1922
        %2562 = vmatprep.subr.bf16.mxu0 %v1955
        %2563 = vmatpush1.bf16.msra.mxu0 %v1954
        %2564 = vmatprep.subr.bf16.mxu0 %v1987
        %2565 = vmatpush1.bf16.msra.mxu0 %v1986
        %2566 = vmatprep.subr.bf16.mxu0 %v2019
        %2567 = vmatpush1.bf16.msra.mxu0 %v2018
        %2568 = vmatprep.subr.bf16.mxu0 0
        %2569 = vmatpush1.bf16.msra.mxu0 0
        %2570 = vmatprep.subr.bf16.mxu0 0
        %2571 = vmatpush1.bf16.msra.mxu0 0
        %2572 = vmatprep.subr.bf16.mxu0 0
        %2573 = vmatpush1.bf16.msra.mxu0 0
        %2574 = vmatprep.subr.bf16.mxu0 0
        %2575 = vmatpush1.bf16.msra.mxu0 0
        %2576 = vmatprep.subr.bf16.mxu0 0
        %2577 = vmatpush1.bf16.msra.mxu0 0
        %2578 = vmatprep.subr.bf16.mxu0 0
        %2579 = vmatpush1.bf16.msra.mxu0 0
        %2580 = vmatprep.subr.bf16.mxu0 0
        %2581 = vmatpush1.bf16.msra.mxu0 0
        %2582 = vmatprep.subr.bf16.mxu0 0
        %2583 = vmatpush1.bf16.msra.mxu0 0
        %2584 = vmatprep.mubr.bf16.mxu0 0
        %2585 = vmatmul.mubr.bf16.gmra.mrb[0].mxu0 %v1012
        %v2586 = vpop.f32.mrb[0].mxu0
        %v2587 = vadd.f32 0.0, %v2586
        %v2588 = vpop.f32.mrb[0].mxu0
        %v2589 = vadd.f32 0.0, %v2588
        %v2590 = vpop.f32.mrb[0].mxu0
        %v2591 = vadd.f32 0.0, %v2590
        %v2592 = vpop.f32.mrb[0].mxu0
        %v2593 = vadd.f32 0.0, %v2592
        %2594 = vdwg.mxu0
        %2595 = vmatprep.subr.bf16.mxu0 %v1797
        %2596 = vmatpush1.bf16.msra.mxu0 %v1796
        %2597 = vmatprep.subr.bf16.mxu0 %v1829
        %2598 = vmatpush1.bf16.msra.mxu0 %v1828
        %2599 = vmatprep.subr.bf16.mxu0 %v1861
        %2600 = vmatpush1.bf16.msra.mxu0 %v1860
        %2601 = vmatprep.subr.bf16.mxu0 %v1893
        %2602 = vmatpush1.bf16.msra.mxu0 %v1892
        %2603 = vmatprep.subr.bf16.mxu0 %v1925
        %2604 = vmatpush1.bf16.msra.mxu0 %v1924
        %2605 = vmatprep.subr.bf16.mxu0 %v1957
        %2606 = vmatpush1.bf16.msra.mxu0 %v1956
        %2607 = vmatprep.subr.bf16.mxu0 %v1989
        %2608 = vmatpush1.bf16.msra.mxu0 %v1988
        %2609 = vmatprep.subr.bf16.mxu0 %v2021
        %2610 = vmatpush1.bf16.msra.mxu0 %v2020
        %2611 = vmatprep.subr.bf16.mxu0 0
        %2612 = vmatpush1.bf16.msra.mxu0 0
        %2613 = vmatprep.subr.bf16.mxu0 0
        %2614 = vmatpush1.bf16.msra.mxu0 0
        %2615 = vmatprep.subr.bf16.mxu0 0
        %2616 = vmatpush1.bf16.msra.mxu0 0
        %2617 = vmatprep.subr.bf16.mxu0 0
        %2618 = vmatpush1.bf16.msra.mxu0 0
        %2619 = vmatprep.subr.bf16.mxu0 0
        %2620 = vmatpush1.bf16.msra.mxu0 0
        %2621 = vmatprep.subr.bf16.mxu0 0
        %2622 = vmatpush1.bf16.msra.mxu0 0
        %2623 = vmatprep.subr.bf16.mxu0 0
        %2624 = vmatpush1.bf16.msra.mxu0 0
        %2625 = vmatprep.subr.bf16.mxu0 0
        %2626 = vmatpush1.bf16.msra.mxu0 0
        %2627 = vmatprep.mubr.bf16.mxu0 0
        %2628 = vmatmul.mubr.bf16.gmra.mrb[0].mxu0 %v1012
        %v2629 = vpop.f32.mrb[0].mxu0
        %v2630 = vadd.f32 0.0, %v2629
        %v2631 = vpop.f32.mrb[0].mxu0
        %v2632 = vadd.f32 0.0, %v2631
        %v2633 = vpop.f32.mrb[0].mxu0
        %v2634 = vadd.f32 0.0, %v2633
        %v2635 = vpop.f32.mrb[0].mxu0
        %v2636 = vadd.f32 0.0, %v2635
        %2637 = vdwg.mxu0
        %2638 = vmatprep.subr.bf16.mxu0 %v1799
        %2639 = vmatpush1.bf16.msra.mxu0 %v1798
        %2640 = vmatprep.subr.bf16.mxu0 %v1831
        %2641 = vmatpush1.bf16.msra.mxu0 %v1830
        %2642 = vmatprep.subr.bf16.mxu0 %v1863
        %2643 = vmatpush1.bf16.msra.mxu0 %v1862
        %2644 = vmatprep.subr.bf16.mxu0 %v1895
        %2645 = vmatpush1.bf16.msra.mxu0 %v1894
        %2646 = vmatprep.subr.bf16.mxu0 %v1927
        %2647 = vmatpush1.bf16.msra.mxu0 %v1926
        %2648 = vmatprep.subr.bf16.mxu0 %v1959
        %2649 = vmatpush1.bf16.msra.mxu0 %v1958
        %2650 = vmatprep.subr.bf16.mxu0 %v1991
        %2651 = vmatpush1.bf16.msra.mxu0 %v1990
        %2652 = vmatprep.subr.bf16.mxu0 %v2023
        %2653 = vmatpush1.bf16.msra.mxu0 %v2022
        %2654 = vmatprep.subr.bf16.mxu0 0
        %2655 = vmatpush1.bf16.msra.mxu0 0
        %2656 = vmatprep.subr.bf16.mxu0 0
        %2657 = vmatpush1.bf16.msra.mxu0 0
        %2658 = vmatprep.subr.bf16.mxu0 0
        %2659 = vmatpush1.bf16.msra.mxu0 0
        %2660 = vmatprep.subr.bf16.mxu0 0
        %2661 = vmatpush1.bf16.msra.mxu0 0
        %2662 = vmatprep.subr.bf16.mxu0 0
        %2663 = vmatpush1.bf16.msra.mxu0 0
        %2664 = vmatprep.subr.bf16.mxu0 0
        %2665 = vmatpush1.bf16.msra.mxu0 0
        %2666 = vmatprep.subr.bf16.mxu0 0
        %2667 = vmatpush1.bf16.msra.mxu0 0
        %2668 = vmatprep.subr.bf16.mxu0 0
        %2669 = vmatpush1.bf16.msra.mxu0 0
        %2670 = vmatprep.mubr.bf16.mxu0 0
        %2671 = vmatmul.mubr.bf16.gmra.mrb[0].mxu0 %v1012
        %v2672 = vpop.f32.mrb[0].mxu0
        %v2673 = vadd.f32 0.0, %v2672
        %v2674 = vpop.f32.mrb[0].mxu0
        %v2675 = vadd.f32 0.0, %v2674
        %v2676 = vpop.f32.mrb[0].mxu0
        %v2677 = vadd.f32 0.0, %v2676
        %v2678 = vpop.f32.mrb[0].mxu0
        %v2679 = vadd.f32 0.0, %v2678
        %2680 = vdwg.mxu0
        %2681 = vmatprep.subr.bf16.mxu0 %v1801
        %2682 = vmatpush1.bf16.msra.mxu0 %v1800
        %2683 = vmatprep.subr.bf16.mxu0 %v1833
        %2684 = vmatpush1.bf16.msra.mxu0 %v1832
        %2685 = vmatprep.subr.bf16.mxu0 %v1865
        %2686 = vmatpush1.bf16.msra.mxu0 %v1864
        %2687 = vmatprep.subr.bf16.mxu0 %v1897
        %2688 = vmatpush1.bf16.msra.mxu0 %v1896
        %2689 = vmatprep.subr.bf16.mxu0 %v1929
        %2690 = vmatpush1.bf16.msra.mxu0 %v1928
        %2691 = vmatprep.subr.bf16.mxu0 %v1961
        %2692 = vmatpush1.bf16.msra.mxu0 %v1960
        %2693 = vmatprep.subr.bf16.mxu0 %v1993
        %2694 = vmatpush1.bf16.msra.mxu0 %v1992
        %2695 = vmatprep.subr.bf16.mxu0 %v2025
        %2696 = vmatpush1.bf16.msra.mxu0 %v2024
        %2697 = vmatprep.subr.bf16.mxu0 0
        %2698 = vmatpush1.bf16.msra.mxu0 0
        %2699 = vmatprep.subr.bf16.mxu0 0
        %2700 = vmatpush1.bf16.msra.mxu0 0
        %2701 = vmatprep.subr.bf16.mxu0 0
        %2702 = vmatpush1.bf16.msra.mxu0 0
        %2703 = vmatprep.subr.bf16.mxu0 0
        %2704 = vmatpush1.bf16.msra.mxu0 0
        %2705 = vmatprep.subr.bf16.mxu0 0
        %2706 = vmatpush1.bf16.msra.mxu0 0
        %2707 = vmatprep.subr.bf16.mxu0 0
        %2708 = vmatpush1.bf16.msra.mxu0 0
        %2709 = vmatprep.subr.bf16.mxu0 0
        %2710 = vmatpush1.bf16.msra.mxu0 0
        %2711 = vmatprep.subr.bf16.mxu0 0
        %2712 = vmatpush1.bf16.msra.mxu0 0
        %2713 = vmatprep.mubr.bf16.mxu0 0
        %2714 = vmatmul.mubr.bf16.gmra.mrb[0].mxu0 %v1012
        %v2715 = vpop.f32.mrb[0].mxu0
        %v2716 = vadd.f32 0.0, %v2715
        %v2717 = vpop.f32.mrb[0].mxu0
        %v2718 = vadd.f32 0.0, %v2717
        %v2719 = vpop.f32.mrb[0].mxu0
        %v2720 = vadd.f32 0.0, %v2719
        %v2721 = vpop.f32.mrb[0].mxu0
        %v2722 = vadd.f32 0.0, %v2721
        %2723 = vdwg.mxu0
        %2724 = vmatprep.subr.bf16.mxu0 %v1803
        %2725 = vmatpush1.bf16.msra.mxu0 %v1802
        %2726 = vmatprep.subr.bf16.mxu0 %v1835
        %2727 = vmatpush1.bf16.msra.mxu0 %v1834
        %2728 = vmatprep.subr.bf16.mxu0 %v1867
        %2729 = vmatpush1.bf16.msra.mxu0 %v1866
        %2730 = vmatprep.subr.bf16.mxu0 %v1899
        %2731 = vmatpush1.bf16.msra.mxu0 %v1898
        %2732 = vmatprep.subr.bf16.mxu0 %v1931
        %2733 = vmatpush1.bf16.msra.mxu0 %v1930
        %2734 = vmatprep.subr.bf16.mxu0 %v1963
        %2735 = vmatpush1.bf16.msra.mxu0 %v1962
        %2736 = vmatprep.subr.bf16.mxu0 %v1995
        %2737 = vmatpush1.bf16.msra.mxu0 %v1994
        %2738 = vmatprep.subr.bf16.mxu0 %v2027
        %2739 = vmatpush1.bf16.msra.mxu0 %v2026
        %2740 = vmatprep.subr.bf16.mxu0 0
        %2741 = vmatpush1.bf16.msra.mxu0 0
        %2742 = vmatprep.subr.bf16.mxu0 0
        %2743 = vmatpush1.bf16.msra.mxu0 0
        %2744 = vmatprep.subr.bf16.mxu0 0
        %2745 = vmatpush1.bf16.msra.mxu0 0
        %2746 = vmatprep.subr.bf16.mxu0 0
        %2747 = vmatpush1.bf16.msra.mxu0 0
        %2748 = vmatprep.subr.bf16.mxu0 0
        %2749 = vmatpush1.bf16.msra.mxu0 0
        %2750 = vmatprep.subr.bf16.mxu0 0
        %2751 = vmatpush1.bf16.msra.mxu0 0
        %2752 = vmatprep.subr.bf16.mxu0 0
        %2753 = vmatpush1.bf16.msra.mxu0 0
        %2754 = vmatprep.subr.bf16.mxu0 0
        %2755 = vmatpush1.bf16.msra.mxu0 0
        %2756 = vmatprep.mubr.bf16.mxu0 0
        %2757 = vmatmul.mubr.bf16.gmra.mrb[0].mxu0 %v1012
        %v2758 = vpop.f32.mrb[0].mxu0
        %v2759 = vadd.f32 0.0, %v2758
        %v2760 = vpop.f32.mrb[0].mxu0
        %v2761 = vadd.f32 0.0, %v2760
        %v2762 = vpop.f32.mrb[0].mxu0
        %v2763 = vadd.f32 0.0, %v2762
        %v2764 = vpop.f32.mrb[0].mxu0
        %v2765 = vadd.f32 0.0, %v2764
        %2766 = vdwg.mxu0
        %2767 = vmatprep.subr.bf16.mxu0 %v1805
        %2768 = vmatpush1.bf16.msra.mxu0 %v1804
        %2769 = vmatprep.subr.bf16.mxu0 %v1837
        %2770 = vmatpush1.bf16.msra.mxu0 %v1836
        %2771 = vmatprep.subr.bf16.mxu0 %v1869
        %2772 = vmatpush1.bf16.msra.mxu0 %v1868
        %2773 = vmatprep.subr.bf16.mxu0 %v1901
        %2774 = vmatpush1.bf16.msra.mxu0 %v1900
        %2775 = vmatprep.subr.bf16.mxu0 %v1933
        %2776 = vmatpush1.bf16.msra.mxu0 %v1932
        %2777 = vmatprep.subr.bf16.mxu0 %v1965
        %2778 = vmatpush1.bf16.msra.mxu0 %v1964
        %2779 = vmatprep.subr.bf16.mxu0 %v1997
        %2780 = vmatpush1.bf16.msra.mxu0 %v1996
        %2781 = vmatprep.subr.bf16.mxu0 %v2029
        %2782 = vmatpush1.bf16.msra.mxu0 %v2028
        %2783 = vmatprep.subr.bf16.mxu0 0
        %2784 = vmatpush1.bf16.msra.mxu0 0
        %2785 = vmatprep.subr.bf16.mxu0 0
        %2786 = vmatpush1.bf16.msra.mxu0 0
        %2787 = vmatprep.subr.bf16.mxu0 0
        %2788 = vmatpush1.bf16.msra.mxu0 0
        %2789 = vmatprep.subr.bf16.mxu0 0
        %2790 = vmatpush1.bf16.msra.mxu0 0
        %2791 = vmatprep.subr.bf16.mxu0 0
        %2792 = vmatpush1.bf16.msra.mxu0 0
        %2793 = vmatprep.subr.bf16.mxu0 0
        %2794 = vmatpush1.bf16.msra.mxu0 0
        %2795 = vmatprep.subr.bf16.mxu0 0
        %2796 = vmatpush1.bf16.msra.mxu0 0
        %2797 = vmatprep.subr.bf16.mxu0 0
        %2798 = vmatpush1.bf16.msra.mxu0 0
        %2799 = vmatprep.mubr.bf16.mxu0 0
        %2800 = vmatmul.mubr.bf16.gmra.mrb[0].mxu0 %v1012
        %v2801 = vpop.f32.mrb[0].mxu0
        %v2802 = vadd.f32 0.0, %v2801
        %v2803 = vpop.f32.mrb[0].mxu0
        %v2804 = vadd.f32 0.0, %v2803
        %v2805 = vpop.f32.mrb[0].mxu0
        %v2806 = vadd.f32 0.0, %v2805
        %v2807 = vpop.f32.mrb[0].mxu0
        %v2808 = vadd.f32 0.0, %v2807
        %2809 = vdwg.mxu0
        %2810 = vmatprep.subr.bf16.mxu0 %v1807
        %2811 = vmatpush1.bf16.msra.mxu0 %v1806
        %2812 = vmatprep.subr.bf16.mxu0 %v1839
        %2813 = vmatpush1.bf16.msra.mxu0 %v1838
        %2814 = vmatprep.subr.bf16.mxu0 %v1871
        %2815 = vmatpush1.bf16.msra.mxu0 %v1870
        %2816 = vmatprep.subr.bf16.mxu0 %v1903
        %2817 = vmatpush1.bf16.msra.mxu0 %v1902
        %2818 = vmatprep.subr.bf16.mxu0 %v1935
        %2819 = vmatpush1.bf16.msra.mxu0 %v1934
        %2820 = vmatprep.subr.bf16.mxu0 %v1967
        %2821 = vmatpush1.bf16.msra.mxu0 %v1966
        %2822 = vmatprep.subr.bf16.mxu0 %v1999
        %2823 = vmatpush1.bf16.msra.mxu0 %v1998
        %2824 = vmatprep.subr.bf16.mxu0 %v2031
        %2825 = vmatpush1.bf16.msra.mxu0 %v2030
        %2826 = vmatprep.subr.bf16.mxu0 0
        %2827 = vmatpush1.bf16.msra.mxu0 0
        %2828 = vmatprep.subr.bf16.mxu0 0
        %2829 = vmatpush1.bf16.msra.mxu0 0
        %2830 = vmatprep.subr.bf16.mxu0 0
        %2831 = vmatpush1.bf16.msra.mxu0 0
        %2832 = vmatprep.subr.bf16.mxu0 0
        %2833 = vmatpush1.bf16.msra.mxu0 0
        %2834 = vmatprep.subr.bf16.mxu0 0
        %2835 = vmatpush1.bf16.msra.mxu0 0
        %2836 = vmatprep.subr.bf16.mxu0 0
        %2837 = vmatpush1.bf16.msra.mxu0 0
        %2838 = vmatprep.subr.bf16.mxu0 0
        %2839 = vmatpush1.bf16.msra.mxu0 0
        %2840 = vmatprep.subr.bf16.mxu0 0
        %2841 = vmatpush1.bf16.msra.mxu0 0
        %2842 = vmatprep.mubr.bf16.mxu0 0
        %2843 = vmatmul.mubr.bf16.gmra.mrb[0].mxu0 %v1012
        %v2844 = vpop.f32.mrb[0].mxu0
        %v2845 = vadd.f32 0.0, %v2844
        %v2846 = vpop.f32.mrb[0].mxu0
        %v2847 = vadd.f32 0.0, %v2846
        %v2848 = vpop.f32.mrb[0].mxu0
        %v2849 = vadd.f32 0.0, %v2848
        %v2850 = vpop.f32.mrb[0].mxu0
        %v2851 = vadd.f32 0.0, %v2850
        %2852 = vdwg.mxu0
        %2853 = vmatprep.subr.bf16.mxu0 %v1809
        %2854 = vmatpush1.bf16.msra.mxu0 %v1808
        %2855 = vmatprep.subr.bf16.mxu0 %v1841
        %2856 = vmatpush1.bf16.msra.mxu0 %v1840
        %2857 = vmatprep.subr.bf16.mxu0 %v1873
        %2858 = vmatpush1.bf16.msra.mxu0 %v1872
        %2859 = vmatprep.subr.bf16.mxu0 %v1905
        %2860 = vmatpush1.bf16.msra.mxu0 %v1904
        %2861 = vmatprep.subr.bf16.mxu0 %v1937
        %2862 = vmatpush1.bf16.msra.mxu0 %v1936
        %2863 = vmatprep.subr.bf16.mxu0 %v1969
        %2864 = vmatpush1.bf16.msra.mxu0 %v1968
        %2865 = vmatprep.subr.bf16.mxu0 %v2001
        %2866 = vmatpush1.bf16.msra.mxu0 %v2000
        %2867 = vmatprep.subr.bf16.mxu0 %v2033
        %2868 = vmatpush1.bf16.msra.mxu0 %v2032
        %2869 = vmatprep.subr.bf16.mxu0 0
        %2870 = vmatpush1.bf16.msra.mxu0 0
        %2871 = vmatprep.subr.bf16.mxu0 0
        %2872 = vmatpush1.bf16.msra.mxu0 0
        %2873 = vmatprep.subr.bf16.mxu0 0
        %2874 = vmatpush1.bf16.msra.mxu0 0
        %2875 = vmatprep.subr.bf16.mxu0 0
        %2876 = vmatpush1.bf16.msra.mxu0 0
        %2877 = vmatprep.subr.bf16.mxu0 0
        %2878 = vmatpush1.bf16.msra.mxu0 0
        %2879 = vmatprep.subr.bf16.mxu0 0
        %2880 = vmatpush1.bf16.msra.mxu0 0
        %2881 = vmatprep.subr.bf16.mxu0 0
        %2882 = vmatpush1.bf16.msra.mxu0 0
        %2883 = vmatprep.subr.bf16.mxu0 0
        %2884 = vmatpush1.bf16.msra.mxu0 0
        %2885 = vmatprep.mubr.bf16.mxu0 0
        %2886 = vmatmul.mubr.bf16.gmra.mrb[0].mxu0 %v1012
        %v2887 = vpop.f32.mrb[0].mxu0
        %v2888 = vadd.f32 0.0, %v2887
        %v2889 = vpop.f32.mrb[0].mxu0
        %v2890 = vadd.f32 0.0, %v2889
        %v2891 = vpop.f32.mrb[0].mxu0
        %v2892 = vadd.f32 0.0, %v2891
        %v2893 = vpop.f32.mrb[0].mxu0
        %v2894 = vadd.f32 0.0, %v2893
        %2895 = vdwg.mxu0
        %2896 = vmatprep.subr.bf16.mxu0 %v1811
        %2897 = vmatpush1.bf16.msra.mxu0 %v1810
        %2898 = vmatprep.subr.bf16.mxu0 %v1843
        %2899 = vmatpush1.bf16.msra.mxu0 %v1842
        %2900 = vmatprep.subr.bf16.mxu0 %v1875
        %2901 = vmatpush1.bf16.msra.mxu0 %v1874
        %2902 = vmatprep.subr.bf16.mxu0 %v1907
        %2903 = vmatpush1.bf16.msra.mxu0 %v1906
        %2904 = vmatprep.subr.bf16.mxu0 %v1939
        %2905 = vmatpush1.bf16.msra.mxu0 %v1938
        %2906 = vmatprep.subr.bf16.mxu0 %v1971
        %2907 = vmatpush1.bf16.msra.mxu0 %v1970
        %2908 = vmatprep.subr.bf16.mxu0 %v2003
        %2909 = vmatpush1.bf16.msra.mxu0 %v2002
        %2910 = vmatprep.subr.bf16.mxu0 %v2035
        %2911 = vmatpush1.bf16.msra.mxu0 %v2034
        %2912 = vmatprep.subr.bf16.mxu0 0
        %2913 = vmatpush1.bf16.msra.mxu0 0
        %2914 = vmatprep.subr.bf16.mxu0 0
        %2915 = vmatpush1.bf16.msra.mxu0 0
        %2916 = vmatprep.subr.bf16.mxu0 0
        %2917 = vmatpush1.bf16.msra.mxu0 0
        %2918 = vmatprep.subr.bf16.mxu0 0
        %2919 = vmatpush1.bf16.msra.mxu0 0
        %2920 = vmatprep.subr.bf16.mxu0 0
        %2921 = vmatpush1.bf16.msra.mxu0 0
        %2922 = vmatprep.subr.bf16.mxu0 0
        %2923 = vmatpush1.bf16.msra.mxu0 0
        %2924 = vmatprep.subr.bf16.mxu0 0
        %2925 = vmatpush1.bf16.msra.mxu0 0
        %2926 = vmatprep.subr.bf16.mxu0 0
        %2927 = vmatpush1.bf16.msra.mxu0 0
        %2928 = vmatprep.mubr.bf16.mxu0 0
        %2929 = vmatmul.mubr.bf16.gmra.mrb[0].mxu0 %v1012
        %v2930 = vpop.f32.mrb[0].mxu0
        %v2931 = vadd.f32 0.0, %v2930
        %v2932 = vpop.f32.mrb[0].mxu0
        %v2933 = vadd.f32 0.0, %v2932
        %v2934 = vpop.f32.mrb[0].mxu0
        %v2935 = vadd.f32 0.0, %v2934
        %v2936 = vpop.f32.mrb[0].mxu0
        %v2937 = vadd.f32 0.0, %v2936
        %2938 = vdwg.mxu0
        %2939 = vmatprep.subr.bf16.mxu0 %v1813
        %2940 = vmatpush1.bf16.msra.mxu0 %v1812
        %2941 = vmatprep.subr.bf16.mxu0 %v1845
        %2942 = vmatpush1.bf16.msra.mxu0 %v1844
        %2943 = vmatprep.subr.bf16.mxu0 %v1877
        %2944 = vmatpush1.bf16.msra.mxu0 %v1876
        %2945 = vmatprep.subr.bf16.mxu0 %v1909
        %2946 = vmatpush1.bf16.msra.mxu0 %v1908
        %2947 = vmatprep.subr.bf16.mxu0 %v1941
        %2948 = vmatpush1.bf16.msra.mxu0 %v1940
        %2949 = vmatprep.subr.bf16.mxu0 %v1973
        %2950 = vmatpush1.bf16.msra.mxu0 %v1972
        %2951 = vmatprep.subr.bf16.mxu0 %v2005
        %2952 = vmatpush1.bf16.msra.mxu0 %v2004
        %2953 = vmatprep.subr.bf16.mxu0 %v2037
        %2954 = vmatpush1.bf16.msra.mxu0 %v2036
        %2955 = vmatprep.subr.bf16.mxu0 0
        %2956 = vmatpush1.bf16.msra.mxu0 0
        %2957 = vmatprep.subr.bf16.mxu0 0
        %2958 = vmatpush1.bf16.msra.mxu0 0
        %2959 = vmatprep.subr.bf16.mxu0 0
        %2960 = vmatpush1.bf16.msra.mxu0 0
        %2961 = vmatprep.subr.bf16.mxu0 0
        %2962 = vmatpush1.bf16.msra.mxu0 0
        %2963 = vmatprep.subr.bf16.mxu0 0
        %2964 = vmatpush1.bf16.msra.mxu0 0
        %2965 = vmatprep.subr.bf16.mxu0 0
        %2966 = vmatpush1.bf16.msra.mxu0 0
        %2967 = vmatprep.subr.bf16.mxu0 0
        %2968 = vmatpush1.bf16.msra.mxu0 0
        %2969 = vmatprep.subr.bf16.mxu0 0
        %2970 = vmatpush1.bf16.msra.mxu0 0
        %2971 = vmatprep.mubr.bf16.mxu0 0
        %2972 = vmatmul.mubr.bf16.gmra.mrb[0].mxu0 %v1012
        %v2973 = vpop.f32.mrb[0].mxu0
        %v2974 = vadd.f32 0.0, %v2973
        %v2975 = vpop.f32.mrb[0].mxu0
        %v2976 = vadd.f32 0.0, %v2975
        %v2977 = vpop.f32.mrb[0].mxu0
        %v2978 = vadd.f32 0.0, %v2977
        %v2979 = vpop.f32.mrb[0].mxu0
        %v2980 = vadd.f32 0.0, %v2979
        %2981 = vdwg.mxu0
        %v2982 = vpack.c.bf16 %v2333, %v2329
        %v2983 = vpack.c.bf16 %v2335, %v2331
        %v2984 = vpack.c.bf16 %v2376, %v2372
        %v2985 = vpack.c.bf16 %v2378, %v2374
        %v2986 = vpack.c.bf16 %v2419, %v2415
        %v2987 = vpack.c.bf16 %v2421, %v2417
        %v2988 = vpack.c.bf16 %v2462, %v2458
        %v2989 = vpack.c.bf16 %v2464, %v2460
        %v2990 = vpack.c.bf16 %v2505, %v2501
        %v2991 = vpack.c.bf16 %v2507, %v2503
        %v2992 = vpack.c.bf16 %v2548, %v2544
        %v2993 = vpack.c.bf16 %v2550, %v2546
        %v2994 = vpack.c.bf16 %v2591, %v2587
        %v2995 = vpack.c.bf16 %v2593, %v2589
        %v2996 = vpack.c.bf16 %v2634, %v2630
        %v2997 = vpack.c.bf16 %v2636, %v2632
        %v2998 = vpack.c.bf16 %v2677, %v2673
        %v2999 = vpack.c.bf16 %v2679, %v2675
        %v3000 = vpack.c.bf16 %v2720, %v2716
        %v3001 = vpack.c.bf16 %v2722, %v2718
        %v3002 = vpack.c.bf16 %v2763, %v2759
        %v3003 = vpack.c.bf16 %v2765, %v2761
        %v3004 = vpack.c.bf16 %v2806, %v2802
        %v3005 = vpack.c.bf16 %v2808, %v2804
        %v3006 = vpack.c.bf16 %v2849, %v2845
        %v3007 = vpack.c.bf16 %v2851, %v2847
        %v3008 = vpack.c.bf16 %v2892, %v2888
        %v3009 = vpack.c.bf16 %v2894, %v2890
        %v3010 = vpack.c.bf16 %v2935, %v2931
        %v3011 = vpack.c.bf16 %v2937, %v2933
        %v3012 = vpack.c.bf16 %v2978, %v2974
        %v3013 = vpack.c.bf16 %v2980, %v2976
        %v3046 = vunpack.c.l.b16 %v2982
        %v3047 = vunpack.c.l.b16 %v2983
        %v3048 = vunpack.c.l.b16 %v2984
        %v3049 = vunpack.c.l.b16 %v2985
        %v3050 = vunpack.c.l.b16 %v2986
        %v3051 = vunpack.c.l.b16 %v2987
        %v3052 = vunpack.c.l.b16 %v2988
        %v3053 = vunpack.c.l.b16 %v2989
        %v3054 = vunpack.c.l.b16 %v2990
        %v3055 = vunpack.c.l.b16 %v2991
        %v3056 = vunpack.c.l.b16 %v2992
        %v3057 = vunpack.c.l.b16 %v2993
        %v3058 = vunpack.c.l.b16 %v2994
        %v3059 = vunpack.c.l.b16 %v2995
        %v3060 = vunpack.c.l.b16 %v2996
        %v3061 = vunpack.c.l.b16 %v2997
        %v3062 = vunpack.c.l.b16 %v2998
        %v3063 = vunpack.c.l.b16 %v2999
        %v3064 = vunpack.c.l.b16 %v3000
        %v3065 = vunpack.c.l.b16 %v3001
        %v3066 = vunpack.c.l.b16 %v3002
        %v3067 = vunpack.c.l.b16 %v3003
        %v3068 = vunpack.c.l.b16 %v3004
        %v3069 = vunpack.c.l.b16 %v3005
        %v3070 = vunpack.c.l.b16 %v3006
        %v3071 = vunpack.c.l.b16 %v3007
        %v3072 = vunpack.c.l.b16 %v3008
        %v3073 = vunpack.c.l.b16 %v3009
        %v3074 = vunpack.c.l.b16 %v3010
        %v3075 = vunpack.c.l.b16 %v3011
        %v3076 = vunpack.c.l.b16 %v3012
        %v3077 = vunpack.c.l.b16 %v3013
        %v3078 = vunpack.c.h.b16 %v2982
        %v3079 = vunpack.c.h.b16 %v2983
        %v3080 = vunpack.c.h.b16 %v2984
        %v3081 = vunpack.c.h.b16 %v2985
        %v3082 = vunpack.c.h.b16 %v2986
        %v3083 = vunpack.c.h.b16 %v2987
        %v3084 = vunpack.c.h.b16 %v2988
        %v3085 = vunpack.c.h.b16 %v2989
        %v3086 = vunpack.c.h.b16 %v2990
        %v3087 = vunpack.c.h.b16 %v2991
        %v3088 = vunpack.c.h.b16 %v2992
        %v3089 = vunpack.c.h.b16 %v2993
        %v3090 = vunpack.c.h.b16 %v2994
        %v3091 = vunpack.c.h.b16 %v2995
        %v3092 = vunpack.c.h.b16 %v2996
        %v3093 = vunpack.c.h.b16 %v2997
        %v3094 = vunpack.c.h.b16 %v2998
        %v3095 = vunpack.c.h.b16 %v2999
        %v3096 = vunpack.c.h.b16 %v3000
        %v3097 = vunpack.c.h.b16 %v3001
        %v3098 = vunpack.c.h.b16 %v3002
        %v3099 = vunpack.c.h.b16 %v3003
        %v3100 = vunpack.c.h.b16 %v3004
        %v3101 = vunpack.c.h.b16 %v3005
        %v3102 = vunpack.c.h.b16 %v3006
        %v3103 = vunpack.c.h.b16 %v3007
        %v3104 = vunpack.c.h.b16 %v3008
        %v3105 = vunpack.c.h.b16 %v3009
        %v3106 = vunpack.c.h.b16 %v3010
        %v3107 = vunpack.c.h.b16 %v3011
        %v3108 = vunpack.c.h.b16 %v3012
        %v3109 = vunpack.c.h.b16 %v3013
        %v3110 = vpack.c.b16 %v3047, %v3046
        %v3111 = vpack.c.b16 %v3049, %v3048
        %v3112 = vpack.c.b16 %v3051, %v3050
        %v3113 = vpack.c.b16 %v3053, %v3052
        %v3114 = vpack.c.b16 %v3055, %v3054
        %v3115 = vpack.c.b16 %v3057, %v3056
        %v3116 = vpack.c.b16 %v3059, %v3058
        %v3117 = vpack.c.b16 %v3061, %v3060
        %v3118 = vpack.c.b16 %v3063, %v3062
        %v3119 = vpack.c.b16 %v3065, %v3064
        %v3120 = vpack.c.b16 %v3067, %v3066
        %v3121 = vpack.c.b16 %v3069, %v3068
        %v3122 = vpack.c.b16 %v3071, %v3070
        %v3123 = vpack.c.b16 %v3073, %v3072
        %v3124 = vpack.c.b16 %v3075, %v3074
        %v3125 = vpack.c.b16 %v3077, %v3076
        %v3126 = vpack.c.b16 %v3079, %v3078
        %v3127 = vpack.c.b16 %v3081, %v3080
        %v3128 = vpack.c.b16 %v3083, %v3082
        %v3129 = vpack.c.b16 %v3085, %v3084
        %v3130 = vpack.c.b16 %v3087, %v3086
        %v3131 = vpack.c.b16 %v3089, %v3088
        %v3132 = vpack.c.b16 %v3091, %v3090
        %v3133 = vpack.c.b16 %v3093, %v3092
        %v3134 = vpack.c.b16 %v3095, %v3094
        %v3135 = vpack.c.b16 %v3097, %v3096
        %v3136 = vpack.c.b16 %v3099, %v3098
        %v3137 = vpack.c.b16 %v3101, %v3100
        %v3138 = vpack.c.b16 %v3103, %v3102
        %v3139 = vpack.c.b16 %v3105, %v3104
        %v3140 = vpack.c.b16 %v3107, %v3106
        %v3141 = vpack.c.b16 %v3109, %v3108
        %3174 = vst [vmem:[%s722] sm:$0xff] %v3110
        %3175 = vst [vmem:[%s722 + $0x8] sm:$0xff] %v3111
        %3176 = vst [vmem:[%s722 + $0x10] sm:$0xff] %v3112
        %3177 = vst [vmem:[%s722 + $0x18] sm:$0xff] %v3113
        %3178 = vst [vmem:[%s722 + $0x20] sm:$0xff] %v3114
        %3179 = vst [vmem:[%s722 + $0x28] sm:$0xff] %v3115
        %3180 = vst [vmem:[%s722 + $0x30] sm:$0xff] %v3116
        %3181 = vst [vmem:[%s722 + $0x38] sm:$0xff] %v3117
        %3182 = vst [vmem:[%s722 + $0x40] sm:$0xff] %v3118
        %3183 = vst [vmem:[%s722 + $0x48] sm:$0xff] %v3119
        %3184 = vst [vmem:[%s722 + $0x50] sm:$0xff] %v3120
        %3185 = vst [vmem:[%s722 + $0x58] sm:$0xff] %v3121
        %3186 = vst [vmem:[%s722 + $0x60] sm:$0xff] %v3122
        %3187 = vst [vmem:[%s722 + $0x68] sm:$0xff] %v3123
        %3188 = vst [vmem:[%s722 + $0x70] sm:$0xff] %v3124
        %3189 = vst [vmem:[%s722 + $0x78] sm:$0xff] %v3125
        %3190 = vst [vmem:[%s722 + $0x80] sm:$0xff] %v3126
        %3191 = vst [vmem:[%s722 + $0x88] sm:$0xff] %v3127
        %3192 = vst [vmem:[%s722 + $0x90] sm:$0xff] %v3128
        %3193 = vst [vmem:[%s722 + $0x98] sm:$0xff] %v3129
        %3194 = vst [vmem:[%s722 + $0xa0] sm:$0xff] %v3130
        %3195 = vst [vmem:[%s722 + $0xa8] sm:$0xff] %v3131
        %3196 = vst [vmem:[%s722 + $0xb0] sm:$0xff] %v3132
        %3197 = vst [vmem:[%s722 + $0xb8] sm:$0xff] %v3133
        %3198 = vst [vmem:[%s722 + $0xc0] sm:$0xff] %v3134
        %3199 = vst [vmem:[%s722 + $0xc8] sm:$0xff] %v3135
        %3200 = vst [vmem:[%s722 + $0xd0] sm:$0xff] %v3136
        %3201 = vst [vmem:[%s722 + $0xd8] sm:$0xff] %v3137
        %3202 = vst [vmem:[%s722 + $0xe0] sm:$0xff] %v3138
        %3203 = vst [vmem:[%s722 + $0xe8] sm:$0xff] %v3139
        %3204 = vst [vmem:[%s722 + $0xf0] sm:$0xff] %v3140
        %3205 = vst [vmem:[%s722 + $0xf8] sm:$0xff] %v3141
        %v3206 = vadd.f32 %v2329, %v2331
        %v3207 = vadd.f32 %v3206, %v2372
        %v3208 = vadd.f32 %v3207, %v2374
        %v3209 = vadd.f32 %v3208, %v2415
        %v3210 = vadd.f32 %v3209, %v2417
        %v3211 = vadd.f32 %v3210, %v2458
        %v3212 = vadd.f32 %v3211, %v2460
        %v3213 = vadd.f32 %v3212, %v2501
        %v3214 = vadd.f32 %v3213, %v2503
        %v3215 = vadd.f32 %v3214, %v2544
        %v3216 = vadd.f32 %v3215, %v2546
        %v3217 = vadd.f32 %v3216, %v2587
        %v3218 = vadd.f32 %v3217, %v2589
        %v3219 = vadd.f32 %v3218, %v2630
        %v3220 = vadd.f32 %v3219, %v2632
        %v3221 = vadd.f32 %v3220, %v2673
        %v3222 = vadd.f32 %v3221, %v2675
        %v3223 = vadd.f32 %v3222, %v2716
        %v3224 = vadd.f32 %v3223, %v2718
        %v3225 = vadd.f32 %v3224, %v2759
        %v3226 = vadd.f32 %v3225, %v2761
        %v3227 = vadd.f32 %v3226, %v2802
        %v3228 = vadd.f32 %v3227, %v2804
        %v3229 = vadd.f32 %v3228, %v2845
        %v3230 = vadd.f32 %v3229, %v2847
        %v3231 = vadd.f32 %v3230, %v2888
        %v3232 = vadd.f32 %v3231, %v2890
        %v3233 = vadd.f32 %v3232, %v2931
        %v3234 = vadd.f32 %v3233, %v2933
        %v3235 = vadd.f32 %v3234, %v2974
        %v3236 = vadd.f32 %v3235, %v2976
        %3237 = vadd.xlane.f32.xlu0 %v3236
        %v3238 = vpop.xlane.xlu0 %3237
        %v3239 = vadd.f32 %v2333, %v2335
        %v3240 = vadd.f32 %v3239, %v2376
        %v3241 = vadd.f32 %v3240, %v2378
        %v3242 = vadd.f32 %v3241, %v2419
        %v3243 = vadd.f32 %v3242, %v2421
        %v3244 = vadd.f32 %v3243, %v2462
        %v3245 = vadd.f32 %v3244, %v2464
        %v3246 = vadd.f32 %v3245, %v2505
        %v3247 = vadd.f32 %v3246, %v2507
        %v3248 = vadd.f32 %v3247, %v2548
        %v3249 = vadd.f32 %v3248, %v2550
        %v3250 = vadd.f32 %v3249, %v2591
        %v3251 = vadd.f32 %v3250, %v2593
        %v3252 = vadd.f32 %v3251, %v2634
        %v3253 = vadd.f32 %v3252, %v2636
        %v3254 = vadd.f32 %v3253, %v2677
        %v3255 = vadd.f32 %v3254, %v2679
        %v3256 = vadd.f32 %v3255, %v2720
        %v3257 = vadd.f32 %v3256, %v2722
        %v3258 = vadd.f32 %v3257, %v2763
        %v3259 = vadd.f32 %v3258, %v2765
        %v3260 = vadd.f32 %v3259, %v2806
        %v3261 = vadd.f32 %v3260, %v2808
        %v3262 = vadd.f32 %v3261, %v2849
        %v3263 = vadd.f32 %v3262, %v2851
        %v3264 = vadd.f32 %v3263, %v2892
        %v3265 = vadd.f32 %v3264, %v2894
        %v3266 = vadd.f32 %v3265, %v2935
        %v3267 = vadd.f32 %v3266, %v2937
        %v3268 = vadd.f32 %v3267, %v2978
        %v3269 = vadd.f32 %v3268, %v2980
        %3270 = vadd.xlane.f32.xlu0 %v3269
        %v3271 = vpop.xlane.xlu0 %3270
        %vm3272 = vcmask 7168
        %3273 = vst.msk [vmem:[%s743] sm:$0xff] %vm3272, %v3238
        %3274 = vst.msk [vmem:[%s743 + $0x8] sm:$0xff] %vm3272, %v3271
        %v3275 = vmul.f32 %v2329, %v2329
        %v3276 = vmul.f32 %v2331, %v2331
        %v3277 = vmul.f32 %v2372, %v2372
        %v3278 = vmul.f32 %v2374, %v2374
        %v3279 = vmul.f32 %v2415, %v2415
        %v3280 = vmul.f32 %v2417, %v2417
        %v3281 = vmul.f32 %v2458, %v2458
        %v3282 = vmul.f32 %v2460, %v2460
        %v3283 = vmul.f32 %v2501, %v2501
        %v3284 = vmul.f32 %v2503, %v2503
        %v3285 = vmul.f32 %v2544, %v2544
        %v3286 = vmul.f32 %v2546, %v2546
        %v3287 = vmul.f32 %v2587, %v2587
        %v3288 = vmul.f32 %v2589, %v2589
        %v3289 = vmul.f32 %v2630, %v2630
        %v3290 = vmul.f32 %v2632, %v2632
        %v3291 = vmul.f32 %v2673, %v2673
        %v3292 = vmul.f32 %v2675, %v2675
        %v3293 = vmul.f32 %v2716, %v2716
        %v3294 = vmul.f32 %v2718, %v2718
        %v3295 = vmul.f32 %v2759, %v2759
        %v3296 = vmul.f32 %v2761, %v2761
        %v3297 = vmul.f32 %v2802, %v2802
        %v3298 = vmul.f32 %v2804, %v2804
        %v3299 = vmul.f32 %v2845, %v2845
        %v3300 = vmul.f32 %v2847, %v2847
        %v3301 = vmul.f32 %v2888, %v2888
        %v3302 = vmul.f32 %v2890, %v2890
        %v3303 = vmul.f32 %v2931, %v2931
        %v3304 = vmul.f32 %v2933, %v2933
        %v3305 = vmul.f32 %v2974, %v2974
        %v3306 = vmul.f32 %v2976, %v2976
        %v3307 = vmul.f32 %v2333, %v2333
        %v3308 = vmul.f32 %v2335, %v2335
        %v3309 = vmul.f32 %v2376, %v2376
        %v3310 = vmul.f32 %v2378, %v2378
        %v3311 = vmul.f32 %v2419, %v2419
        %v3312 = vmul.f32 %v2421, %v2421
        %v3313 = vmul.f32 %v2462, %v2462
        %v3314 = vmul.f32 %v2464, %v2464
        %v3315 = vmul.f32 %v2505, %v2505
        %v3316 = vmul.f32 %v2507, %v2507
        %v3317 = vmul.f32 %v2548, %v2548
        %v3318 = vmul.f32 %v2550, %v2550
        %v3319 = vmul.f32 %v2591, %v2591
        %v3320 = vmul.f32 %v2593, %v2593
        %v3321 = vmul.f32 %v2634, %v2634
        %v3322 = vmul.f32 %v2636, %v2636
        %v3323 = vmul.f32 %v2677, %v2677
        %v3324 = vmul.f32 %v2679, %v2679
        %v3325 = vmul.f32 %v2720, %v2720
        %v3326 = vmul.f32 %v2722, %v2722
        %v3327 = vmul.f32 %v2763, %v2763
        %v3328 = vmul.f32 %v2765, %v2765
        %v3329 = vmul.f32 %v2806, %v2806
        %v3330 = vmul.f32 %v2808, %v2808
        %v3331 = vmul.f32 %v2849, %v2849
        %v3332 = vmul.f32 %v2851, %v2851
        %v3333 = vmul.f32 %v2892, %v2892
        %v3334 = vmul.f32 %v2894, %v2894
        %v3335 = vmul.f32 %v2935, %v2935
        %v3336 = vmul.f32 %v2937, %v2937
        %v3337 = vmul.f32 %v2978, %v2978
        %v3338 = vmul.f32 %v2980, %v2980
        %v3339 = vadd.f32 %v3275, %v3276
        %v3340 = vadd.f32 %v3339, %v3277
        %v3341 = vadd.f32 %v3340, %v3278
        %v3342 = vadd.f32 %v3341, %v3279
        %v3343 = vadd.f32 %v3342, %v3280
        %v3344 = vadd.f32 %v3343, %v3281
        %v3345 = vadd.f32 %v3344, %v3282
        %v3346 = vadd.f32 %v3345, %v3283
        %v3347 = vadd.f32 %v3346, %v3284
        %v3348 = vadd.f32 %v3347, %v3285
        %v3349 = vadd.f32 %v3348, %v3286
        %v3350 = vadd.f32 %v3349, %v3287
        %v3351 = vadd.f32 %v3350, %v3288
        %v3352 = vadd.f32 %v3351, %v3289
        %v3353 = vadd.f32 %v3352, %v3290
        %v3354 = vadd.f32 %v3353, %v3291
        %v3355 = vadd.f32 %v3354, %v3292
        %v3356 = vadd.f32 %v3355, %v3293
        %v3357 = vadd.f32 %v3356, %v3294
        %v3358 = vadd.f32 %v3357, %v3295
        %v3359 = vadd.f32 %v3358, %v3296
        %v3360 = vadd.f32 %v3359, %v3297
        %v3361 = vadd.f32 %v3360, %v3298
        %v3362 = vadd.f32 %v3361, %v3299
        %v3363 = vadd.f32 %v3362, %v3300
        %v3364 = vadd.f32 %v3363, %v3301
        %v3365 = vadd.f32 %v3364, %v3302
        %v3366 = vadd.f32 %v3365, %v3303
        %v3367 = vadd.f32 %v3366, %v3304
        %v3368 = vadd.f32 %v3367, %v3305
        %v3369 = vadd.f32 %v3368, %v3306
        %3370 = vadd.xlane.f32.xlu0 %v3369
        %v3371 = vpop.xlane.xlu0 %3370
        %v3372 = vadd.f32 %v3307, %v3308
        %v3373 = vadd.f32 %v3372, %v3309
        %v3374 = vadd.f32 %v3373, %v3310
        %v3375 = vadd.f32 %v3374, %v3311
        %v3376 = vadd.f32 %v3375, %v3312
        %v3377 = vadd.f32 %v3376, %v3313
        %v3378 = vadd.f32 %v3377, %v3314
        %v3379 = vadd.f32 %v3378, %v3315
        %v3380 = vadd.f32 %v3379, %v3316
        %v3381 = vadd.f32 %v3380, %v3317
        %v3382 = vadd.f32 %v3381, %v3318
        %v3383 = vadd.f32 %v3382, %v3319
        %v3384 = vadd.f32 %v3383, %v3320
        %v3385 = vadd.f32 %v3384, %v3321
        %v3386 = vadd.f32 %v3385, %v3322
        %v3387 = vadd.f32 %v3386, %v3323
        %v3388 = vadd.f32 %v3387, %v3324
        %v3389 = vadd.f32 %v3388, %v3325
        %v3390 = vadd.f32 %v3389, %v3326
        %v3391 = vadd.f32 %v3390, %v3327
        %v3392 = vadd.f32 %v3391, %v3328
        %v3393 = vadd.f32 %v3392, %v3329
        %v3394 = vadd.f32 %v3393, %v3330
        %v3395 = vadd.f32 %v3394, %v3331
        %v3396 = vadd.f32 %v3395, %v3332
        %v3397 = vadd.f32 %v3396, %v3333
        %v3398 = vadd.f32 %v3397, %v3334
        %v3399 = vadd.f32 %v3398, %v3335
        %v3400 = vadd.f32 %v3399, %v3336
        %v3401 = vadd.f32 %v3400, %v3337
        %v3402 = vadd.f32 %v3401, %v3338
        %3403 = vadd.xlane.f32.xlu0 %v3402
        %v3404 = vpop.xlane.xlu0 %3403
        %3405 = vst.msk [vmem:[%s748] sm:$0xff] %vm3272, %v3371
        %3406 = vst.msk [vmem:[%s748 + $0x8] sm:$0xff] %vm3272, %v3404
        %s3407 = sand.u32 %s71, 1
        %s3408 = sand.u32 %s71, 1
        %s3409 = smul.addr %s3408, 256
        %s3410 = scalar_lea.vmem [#allocation3], %s3409
        %p3411 = scmp.lt.s32.totalorder %s16, 1
        %s3412 = scalar_select %p3411, %s16, 1
        %s3413 = smul.addr %s3412, 2
        %s3414 = smul.addr %s3413, 8
        %s3415 = scalar_lea.vmem %s3, %s3414
        %p3416 = scmp.lt.s32.totalorder %s16, 1
        %s3417 = scalar_select %p3416, %s16, 1
        %s3418 = smul.addr %s3417, 2
        %s3419 = smul.addr %s3418, 8
        %s3420 = scalar_lea.vmem %s4, %s3419
        // Predicated region
        $region52: #{encoder_forward.5} parent=46 // pred_check
          %p3421 = pneg %p81
        $region53: #{encoder_forward.5} parent=46 // pred_check_branch
          %3423 = sbr.rel (%p3421) target = $region55
        $region54: #{encoder_forward.5} parent=46 // pred_region
          %s3424 = smul.u32 32, %s16
          %s3425 = smul.addr %s3424, 4
          %s3426 = scalar_lea.vmem %s2, %s3425
          // Predicated region
          $region56: #{encoder_forward.5} parent=54 // pred_check
            _
          $region57: #{encoder_forward.5} parent=54 // pred_check_branch
            %3428 = sbr.rel (0) target = $region59
          $region58: #{encoder_forward.5} parent=54 // pred_region
            // Predicated region
            $region60: #{encoder_forward.5} parent=58 // pred_check
              _
            $region61: #{encoder_forward.5} parent=58 // pred_check_branch
              %3430 = sbr.rel (0) target = $region63
            $region62: #{encoder_forward.5} parent=58 // pred_region
              loop: start=0, step=1, limit=1
              $region64: #{encoder_forward.5} parent=62 // loop_pre_header
                _
              $region65: #{encoder_forward.5} parent=62 // loop_header
                %s3432 = sphi 0, %s3436
                %p3433 = scmp.ge.s32.totalorder %s3432, 1
                %s3437 = sphi %s3410, %s3410
                %s3438 = sphi %s3426, %s3426
              $region66: #{encoder_forward.5} parent=62 // loop_header_branch
                %3435 = sbr.rel (%p3433) target = $region70
              $region67: #{encoder_forward.5} parent=62 // loop_body
                %v3439 = vld [vmem:[%s3437] sm:$0xff]
                %3440 = vst [vmem:[%s3438] sm:$0xff] %v3439
                %v3441 = vld [vmem:[%s3437 + $0x8] sm:$0xff]
                %3442 = vst [vmem:[%s3438 + $0x8] sm:$0xff] %v3441
                %v3443 = vld [vmem:[%s3437 + $0x10] sm:$0xff]
                %3444 = vst [vmem:[%s3438 + $0x10] sm:$0xff] %v3443
                %v3445 = vld [vmem:[%s3437 + $0x18] sm:$0xff]
                %3446 = vst [vmem:[%s3438 + $0x18] sm:$0xff] %v3445
                %v3447 = vld [vmem:[%s3437 + $0x20] sm:$0xff]
                %3448 = vst [vmem:[%s3438 + $0x20] sm:$0xff] %v3447
                %v3449 = vld [vmem:[%s3437 + $0x28] sm:$0xff]
                %3450 = vst [vmem:[%s3438 + $0x28] sm:$0xff] %v3449
                %v3451 = vld [vmem:[%s3437 + $0x30] sm:$0xff]
                %3452 = vst [vmem:[%s3438 + $0x30] sm:$0xff] %v3451
                %v3453 = vld [vmem:[%s3437 + $0x38] sm:$0xff]
                %3454 = vst [vmem:[%s3438 + $0x38] sm:$0xff] %v3453
                %v3455 = vld [vmem:[%s3437 + $0x40] sm:$0xff]
                %3456 = vst [vmem:[%s3438 + $0x40] sm:$0xff] %v3455
                %v3457 = vld [vmem:[%s3437 + $0x48] sm:$0xff]
                %3458 = vst [vmem:[%s3438 + $0x48] sm:$0xff] %v3457
                %v3459 = vld [vmem:[%s3437 + $0x50] sm:$0xff]
                %3460 = vst [vmem:[%s3438 + $0x50] sm:$0xff] %v3459
                %v3461 = vld [vmem:[%s3437 + $0x58] sm:$0xff]
                %3462 = vst [vmem:[%s3438 + $0x58] sm:$0xff] %v3461
                %v3463 = vld [vmem:[%s3437 + $0x60] sm:$0xff]
                %3464 = vst [vmem:[%s3438 + $0x60] sm:$0xff] %v3463
                %v3465 = vld [vmem:[%s3437 + $0x68] sm:$0xff]
                %3466 = vst [vmem:[%s3438 + $0x68] sm:$0xff] %v3465
                %v3467 = vld [vmem:[%s3437 + $0x70] sm:$0xff]
                %3468 = vst [vmem:[%s3438 + $0x70] sm:$0xff] %v3467
                %v3469 = vld [vmem:[%s3437 + $0x78] sm:$0xff]
                %3470 = vst [vmem:[%s3438 + $0x78] sm:$0xff] %v3469
                %v3471 = vld [vmem:[%s3437 + $0x80] sm:$0xff]
                %3472 = vst [vmem:[%s3438 + $0x100] sm:$0xff] %v3471
                %v3473 = vld [vmem:[%s3437 + $0x88] sm:$0xff]
                %3474 = vst [vmem:[%s3438 + $0x108] sm:$0xff] %v3473
                %v3475 = vld [vmem:[%s3437 + $0x90] sm:$0xff]
                %3476 = vst [vmem:[%s3438 + $0x110] sm:$0xff] %v3475
                %v3477 = vld [vmem:[%s3437 + $0x98] sm:$0xff]
                %3478 = vst [vmem:[%s3438 + $0x118] sm:$0xff] %v3477
                %v3479 = vld [vmem:[%s3437 + $0xa0] sm:$0xff]
                %3480 = vst [vmem:[%s3438 + $0x120] sm:$0xff] %v3479
                %v3481 = vld [vmem:[%s3437 + $0xa8] sm:$0xff]
                %3482 = vst [vmem:[%s3438 + $0x128] sm:$0xff] %v3481
                %v3483 = vld [vmem:[%s3437 + $0xb0] sm:$0xff]
                %3484 = vst [vmem:[%s3438 + $0x130] sm:$0xff] %v3483
                %v3485 = vld [vmem:[%s3437 + $0xb8] sm:$0xff]
                %3486 = vst [vmem:[%s3438 + $0x138] sm:$0xff] %v3485
                %v3487 = vld [vmem:[%s3437 + $0xc0] sm:$0xff]
                %3488 = vst [vmem:[%s3438 + $0x140] sm:$0xff] %v3487
                %v3489 = vld [vmem:[%s3437 + $0xc8] sm:$0xff]
                %3490 = vst [vmem:[%s3438 + $0x148] sm:$0xff] %v3489
                %v3491 = vld [vmem:[%s3437 + $0xd0] sm:$0xff]
                %3492 = vst [vmem:[%s3438 + $0x150] sm:$0xff] %v3491
                %v3493 = vld [vmem:[%s3437 + $0xd8] sm:$0xff]
                %3494 = vst [vmem:[%s3438 + $0x158] sm:$0xff] %v3493
                %v3495 = vld [vmem:[%s3437 + $0xe0] sm:$0xff]
                %3496 = vst [vmem:[%s3438 + $0x160] sm:$0xff] %v3495
                %v3497 = vld [vmem:[%s3437 + $0xe8] sm:$0xff]
                %3498 = vst [vmem:[%s3438 + $0x168] sm:$0xff] %v3497
                %v3499 = vld [vmem:[%s3437 + $0xf0] sm:$0xff]
                %3500 = vst [vmem:[%s3438 + $0x170] sm:$0xff] %v3499
                %v3501 = vld [vmem:[%s3437 + $0xf8] sm:$0xff]
                %3502 = vst [vmem:[%s3438 + $0x178] sm:$0xff] %v3501
              $region68: #{encoder_forward.5} parent=62 // loop_footer
                %s3436 = sadd.s32 1, %s3432
              $region69: #{encoder_forward.5} parent=62 // loop_footer_branch
                %3431 = sbr.rel target = $region65
              $region70: #{encoder_forward.5} parent=62 // loop_exit
                _
            $region63: #{encoder_forward.5} parent=58 // pred_fallthru
              _
            // Predicated region
            $region71: #{encoder_forward.5} parent=58 // pred_check
              _
            $region72: #{encoder_forward.5} parent=58 // pred_check_branch
              %3504 = sbr.rel target = $region74
            $region73: #{encoder_forward.5} parent=58 // pred_region
              _
            $region74: #{encoder_forward.5} parent=58 // pred_fallthru
              _
          $region59: #{encoder_forward.5} parent=54 // pred_fallthru
            _
          %3505 = vnop
        $region55: #{encoder_forward.5} parent=46 // pred_fallthru
          _
        // Predicated region
        $region75: #{encoder_forward.5} parent=46 // pred_check
          %p3506 = pneg %p107
        $region76: #{encoder_forward.5} parent=46 // pred_check_branch
          %3508 = sbr.rel (%p3506) target = $region78
        $region77: #{encoder_forward.5} parent=46 // pred_region
          _
        $region78: #{encoder_forward.5} parent=46 // pred_fallthru
          _
        // Predicated region
        $region79: #{encoder_forward.5} parent=46 // pred_check
          %p3509 = pneg %p133
        $region80: #{encoder_forward.5} parent=46 // pred_check_branch
          %3511 = sbr.rel (%p3509) target = $region82
        $region81: #{encoder_forward.5} parent=46 // pred_region
          _
        $region82: #{encoder_forward.5} parent=46 // pred_fallthru
          _
      $region47: #{encoder_forward.5} parent=5 // pred_fallthru
        _
      %p3512 = scmp.le.s32.totalorder 2, %s11
      // Predicated region
      $region83: #{encoder_forward.5} parent=5 // pred_check
        %p3513 = pneg %p3512
      $region84: #{encoder_forward.5} parent=5 // pred_check_branch
        %3515 = sbr.rel (%p3513) target = $region86
      $region85: #{encoder_forward.5} parent=5 // pred_region
        %s3516 = ssub.s32 %s11, 2
        // Predicated region
        $region87: #{encoder_forward.5} parent=85 // pred_check
          %p3517 = pneg %p87
        $region88: #{encoder_forward.5} parent=85 // pred_check_branch
          %3519 = sbr.rel (%p3517) target = $region90
        $region89: #{encoder_forward.5} parent=85 // pred_region
          %s3520 = sand.u32 %s72, 1
          %s3521 = sand.u32 %s72, 1
          %s3522 = smul.addr %s3521, 256
          %s3523 = scalar_lea.vmem [#allocation3], %s3522
        $region90: #{encoder_forward.5} parent=85 // pred_fallthru
          _
        // Predicated region
        $region91: #{encoder_forward.5} parent=85 // pred_check
          %p3524 = pneg %p113
        $region92: #{encoder_forward.5} parent=85 // pred_check_branch
          %3526 = sbr.rel (%p3524) target = $region94
        $region93: #{encoder_forward.5} parent=85 // pred_region
          %p3527 = scmp.lt.s32.totalorder %s17, 1
          %s3528 = scalar_select %p3527, %s17, 1
          %s3529 = smul.addr %s3528, 2
          %s3530 = smul.addr %s3529, 8
          %s3531 = scalar_lea.vmem %s3, %s3530
        $region94: #{encoder_forward.5} parent=85 // pred_fallthru
          _
        // Predicated region
        $region95: #{encoder_forward.5} parent=85 // pred_check
          %p3532 = pneg %p139
        $region96: #{encoder_forward.5} parent=85 // pred_check_branch
          %3534 = sbr.rel (%p3532) target = $region98
        $region97: #{encoder_forward.5} parent=85 // pred_region
          %p3535 = scmp.lt.s32.totalorder %s17, 1
          %s3536 = scalar_select %p3535, %s17, 1
          %s3537 = smul.addr %s3536, 2
          %s3538 = smul.addr %s3537, 8
          %s3539 = scalar_lea.vmem %s4, %s3538
        $region98: #{encoder_forward.5} parent=85 // pred_fallthru
          _
      $region86: #{encoder_forward.5} parent=5 // pred_fallthru
        _
    $region6: #{encoder_forward.5} parent=1 // loop_footer
      %s15 = sadd.s32 1, %s11
    $region7: #{encoder_forward.5} parent=1 // loop_footer_branch
      %10 = sbr.rel target = $region3
    $region8: #{encoder_forward.5} parent=1 // loop_exit
      _

// kernel: encoder_forward.6
$region0: #{encoder_forward.6}
  #allocation0 [shape = 'u32[]', space=smem, size = 0x4, offset = 0x4, fixed_abs, tag = 'smem constant byte address 0x4 - core index']
  #allocation1 [shape = 'u32[144,128]{1,0:T(1,128)}', space=vmem, size = 0x12000, scoped, tag = 'internal scratch']
  %s0 = inlined_call_operand.vmem [shape: bf16[32,256], index: 0, kind: input, shape index: {}]
  %s1 = inlined_call_operand.vmem [shape: bf16[256,2048], index: 1, kind: input, shape index: {}]
  %s2 = inlined_call_operand.vmem [shape: bf16[32,2048], index: 2, kind: output, shape index: {0}]
  %s3 = inlined_call_operand.vmem [shape: f32[2,32,1], index: 3, kind: output, shape index: {1}]
  %s4 = inlined_call_operand.vmem [shape: f32[2,32,1], index: 4, kind: output, shape index: {2}]
  %5 = xla_tuple %s2, %s3, %s4
  %s6 = sld [smem:[#allocation0]]
  $region99: #{encoder_forward.6} parent=0
    _
  %s8 = ssub.s32 1, %s6
  %s9 = scalar_select 0, %s8, %s6
  $region1: #{encoder_forward.6} parent=0
    #allocation2 [shape = 'u8[1048576]{0}', space=vmem, size = 0x100000, scoped, tag = 'input window, operand 1']
    #allocation3 [shape = 'u8[131072]{0}', space=vmem, size = 0x20000, scoped, tag = 'output window, operand 0']
    loop: start=0, step=1, limit=4
    $region2: #{encoder_forward.6} parent=1 // loop_pre_header
      _
    $region3: #{encoder_forward.6} parent=1 // loop_header
      %s11 = sphi 0, %s15
      %p12 = scmp.ge.s32.totalorder %s11, 4
      %s19 = sphi 0, %s19
      %s21 = sphi 0, %s19
      %s22 = sphi 0, %s21
      %s36 = sphi 0, %s22
      %s42 = sphi 0, %s44
      %s45 = sphi 0, %s42
      %s46 = sphi 0, %s45
      %s62 = sphi 0, %s46
      %s68 = sphi 0, %s70
      %s71 = sphi 0, %s68
      %s72 = sphi 0, %s71
      %s88 = sphi 0, %s72
      %s94 = sphi 0, %s96
      %s97 = sphi 0, %s94
      %s98 = sphi 0, %s97
      %s114 = sphi 0, %s98
      %s120 = sphi 0, %s122
      %s123 = sphi 0, %s120
      %s124 = sphi 0, %s123
      %s140 = sphi 0, %s124
    $region4: #{encoder_forward.6} parent=1 // loop_header_branch
      %14 = sbr.rel (%p12) target = $region8
    $region5: #{encoder_forward.6} parent=1 // loop_body
      %s16 = ssub.s32 %s11, 1
      %s17 = ssub.s32 %s11, 2
      %s18 = sadd.s32 %s11, 1
      %s20 = sadd.s32 %s19, 1
      %p23 = scmp.eq.s32.totalorder %s11, 1
      %p24 = scmp.ne.s32.totalorder %s19, %s21
      %p25 = scmp.eq.s32.totalorder %s11, 0
      %p26 = por %p24, %p25
      %p27 = scmp.ne.s32.totalorder %s19, %s21
      %p28 = scmp.eq.s32.totalorder %s16, 1
      %p29 = por %p27, %p28
      %p30 = scmp.ne.s32.totalorder %s21, %s22
      %p31 = scmp.eq.s32.totalorder %s16, 0
      %p32 = por %p30, %p31
      %p33 = scmp.ne.s32.totalorder %s21, %s22
      %p34 = scmp.eq.s32.totalorder %s17, 1
      %p35 = por %p33, %p34
      %p37 = scmp.ne.s32.totalorder %s22, %s36
      %p38 = scmp.eq.s32.totalorder %s17, 0
      %p39 = por %p37, %p38
      %s40 = ssub.s32 %s11, %s18
      %p41 = scmp.eq.s32.totalorder %s40, 0
      %s43 = sadd.s32 %s42, 1
      %s44 = scalar_select %p41, %s42, %s43
      %p47 = pneg %p41
      %p48 = scmp.eq.s32.totalorder %s11, 1
      %p49 = por %p47, %p48
      %p50 = scmp.ne.s32.totalorder %s42, %s45
      %p51 = scmp.eq.s32.totalorder %s11, 0
      %p52 = por %p50, %p51
      %p53 = scmp.ne.s32.totalorder %s42, %s45
      %p54 = scmp.eq.s32.totalorder %s16, 1
      %p55 = por %p53, %p54
      %p56 = scmp.ne.s32.totalorder %s45, %s46
      %p57 = scmp.eq.s32.totalorder %s16, 0
      %p58 = por %p56, %p57
      %p59 = scmp.ne.s32.totalorder %s45, %s46
      %p60 = scmp.eq.s32.totalorder %s17, 1
      %p61 = por %p59, %p60
      %p63 = scmp.ne.s32.totalorder %s46, %s62
      %p64 = scmp.eq.s32.totalorder %s17, 0
      %p65 = por %p63, %p64
      %s66 = ssub.s32 %s11, %s18
      %p67 = scmp.eq.s32.totalorder %s66, 0
      %s69 = sadd.s32 %s68, 1
      %s70 = scalar_select %p67, %s68, %s69
      %p73 = pneg %p67
      %p74 = scmp.eq.s32.totalorder %s11, 1
      %p75 = por %p73, %p74
      %p76 = scmp.ne.s32.totalorder %s68, %s71
      %p77 = scmp.eq.s32.totalorder %s11, 0
      %p78 = por %p76, %p77
      %p79 = scmp.ne.s32.totalorder %s68, %s71
      %p80 = scmp.eq.s32.totalorder %s16, 1
      %p81 = por %p79, %p80
      %p82 = scmp.ne.s32.totalorder %s71, %s72
      %p83 = scmp.eq.s32.totalorder %s16, 0
      %p84 = por %p82, %p83
      %p85 = scmp.ne.s32.totalorder %s71, %s72
      %p86 = scmp.eq.s32.totalorder %s17, 1
      %p87 = por %p85, %p86
      %p89 = scmp.ne.s32.totalorder %s72, %s88
      %p90 = scmp.eq.s32.totalorder %s17, 0
      %p91 = por %p89, %p90
      %s92 = ssub.s32 %s11, %s18
      %p93 = scmp.eq.s32.totalorder %s92, 0
      %s95 = sadd.s32 %s94, 1
      %s96 = scalar_select %p93, %s94, %s95
      %p99 = pneg %p93
      %p100 = scmp.eq.s32.totalorder %s11, 1
      %p101 = por %p99, %p100
      %p102 = scmp.ne.s32.totalorder %s94, %s97
      %p103 = scmp.eq.s32.totalorder %s11, 0
      %p104 = por %p102, %p103
      %p105 = scmp.ne.s32.totalorder %s94, %s97
      %p106 = scmp.eq.s32.totalorder %s16, 1
      %p107 = por %p105, %p106
      %p108 = scmp.ne.s32.totalorder %s97, %s98
      %p109 = scmp.eq.s32.totalorder %s16, 0
      %p110 = por %p108, %p109
      %p111 = scmp.ne.s32.totalorder %s97, %s98
      %p112 = scmp.eq.s32.totalorder %s17, 1
      %p113 = por %p111, %p112
      %p115 = scmp.ne.s32.totalorder %s98, %s114
      %p116 = scmp.eq.s32.totalorder %s17, 0
      %p117 = por %p115, %p116
      %s118 = ssub.s32 %s11, %s18
      %p119 = scmp.eq.s32.totalorder %s118, 0
      %s121 = sadd.s32 %s120, 1
      %s122 = scalar_select %p119, %s120, %s121
      %p125 = pneg %p119
      %p126 = scmp.eq.s32.totalorder %s11, 1
      %p127 = por %p125, %p126
      %p128 = scmp.ne.s32.totalorder %s120, %s123
      %p129 = scmp.eq.s32.totalorder %s11, 0
      %p130 = por %p128, %p129
      %p131 = scmp.ne.s32.totalorder %s120, %s123
      %p132 = scmp.eq.s32.totalorder %s16, 1
      %p133 = por %p131, %p132
      %p134 = scmp.ne.s32.totalorder %s123, %s124
      %p135 = scmp.eq.s32.totalorder %s16, 0
      %p136 = por %p134, %p135
      %p137 = scmp.ne.s32.totalorder %s123, %s124
      %p138 = scmp.eq.s32.totalorder %s17, 1
      %p139 = por %p137, %p138
      %p141 = scmp.ne.s32.totalorder %s124, %s140
      %p142 = scmp.eq.s32.totalorder %s17, 0
      %p143 = por %p141, %p142
      %p144 = scmp.le.s32.totalorder 1, %s11
      %p145 = scmp.lt.s32.totalorder %s11, 3
      %p146 = pnand %p144, %p145
      %p147 = pneg %p146
      // Predicated region
      $region9: #{encoder_forward.6} parent=5 // pred_check
        _
      $region10: #{encoder_forward.6} parent=5 // pred_check_branch
        %149 = sbr.rel (%p146) target = $region12
      $region11: #{encoder_forward.6} parent=5 // pred_region
        %s150 = ssub.s32 %s11, 1
        // Predicated region
        $region13: #{encoder_forward.6} parent=11 // pred_check
          %p151 = pneg %p32
        $region14: #{encoder_forward.6} parent=11 // pred_check_branch
          %153 = sbr.rel (%p151) target = $region16
        $region15: #{encoder_forward.6} parent=11 // pred_region
          _
        $region16: #{encoder_forward.6} parent=11 // pred_fallthru
          _
      $region12: #{encoder_forward.6} parent=5 // pred_fallthru
        _
      %p154 = scmp.lt.s32.totalorder %s11, 2
      // Predicated region
      $region17: #{encoder_forward.6} parent=5 // pred_check
        %p155 = pneg %p154
      $region18: #{encoder_forward.6} parent=5 // pred_check_branch
        %157 = sbr.rel (%p155) target = $region20
      $region19: #{encoder_forward.6} parent=5 // pred_region
        // Predicated region
        $region21: #{encoder_forward.6} parent=19 // pred_check
          %p158 = pneg %p52
        $region22: #{encoder_forward.6} parent=19 // pred_check_branch
          %160 = sbr.rel (%p158) target = $region24
        $region23: #{encoder_forward.6} parent=19 // pred_region
          %s161 = sand.u32 %s42, 1
          %s162 = sand.u32 %s42, 1
          %s163 = smul.addr %s162, 1024
          %s164 = scalar_lea.vmem [#allocation2], %s163
          %s165 = smul.u32 8, %s11
          %s166 = smul.addr %s165, 4
          %s167 = scalar_lea.vmem %s1, %s166
          // Predicated region
          $region25: #{encoder_forward.6} parent=23 // pred_check
            _
          $region26: #{encoder_forward.6} parent=23 // pred_check_branch
            %169 = sbr.rel (0) target = $region28
          $region27: #{encoder_forward.6} parent=23 // pred_region
            // Predicated region
            $region29: #{encoder_forward.6} parent=27 // pred_check
              _
            $region30: #{encoder_forward.6} parent=27 // pred_check_branch
              %171 = sbr.rel (0) target = $region32
            $region31: #{encoder_forward.6} parent=27 // pred_region
              loop: start=0, step=1, limit=1
              $region33: #{encoder_forward.6} parent=31 // loop_pre_header
                _
              $region34: #{encoder_forward.6} parent=31 // loop_header
                %s173 = sphi 0, %s177
                %p174 = scmp.ge.s32.totalorder %s173, 1
                %s178 = sphi %s167, %s167
                %s179 = sphi %s164, %s164
              $region35: #{encoder_forward.6} parent=31 // loop_header_branch
                %176 = sbr.rel (%p174) target = $region39
              $region36: #{encoder_forward.6} parent=31 // loop_body
                %v180 = vld [vmem:[%s178] sm:$0xff]
                %181 = vst [vmem:[%s179] sm:$0xff] %v180
                %v182 = vld [vmem:[%s178 + $0x8] sm:$0xff]
                %183 = vst [vmem:[%s179 + $0x8] sm:$0xff] %v182
                %v184 = vld [vmem:[%s178 + $0x10] sm:$0xff]
                %185 = vst [vmem:[%s179 + $0x10] sm:$0xff] %v184
                %v186 = vld [vmem:[%s178 + $0x18] sm:$0xff]
                %187 = vst [vmem:[%s179 + $0x18] sm:$0xff] %v186
                %v188 = vld [vmem:[%s178 + $0x40] sm:$0xff]
                %189 = vst [vmem:[%s179 + $0x20] sm:$0xff] %v188
                %v190 = vld [vmem:[%s178 + $0x48] sm:$0xff]
                %191 = vst [vmem:[%s179 + $0x28] sm:$0xff] %v190
                %v192 = vld [vmem:[%s178 + $0x50] sm:$0xff]
                %193 = vst [vmem:[%s179 + $0x30] sm:$0xff] %v192
                %v194 = vld [vmem:[%s178 + $0x58] sm:$0xff]
                %195 = vst [vmem:[%s179 + $0x38] sm:$0xff] %v194
                %v196 = vld [vmem:[%s178 + $0x80] sm:$0xff]
                %197 = vst [vmem:[%s179 + $0x40] sm:$0xff] %v196
                %v198 = vld [vmem:[%s178 + $0x88] sm:$0xff]
                %199 = vst [vmem:[%s179 + $0x48] sm:$0xff] %v198
                %v200 = vld [vmem:[%s178 + $0x90] sm:$0xff]
                %201 = vst [vmem:[%s179 + $0x50] sm:$0xff] %v200
                %v202 = vld [vmem:[%s178 + $0x98] sm:$0xff]
                %203 = vst [vmem:[%s179 + $0x58] sm:$0xff] %v202
                %v204 = vld [vmem:[%s178 + $0xc0] sm:$0xff]
                %205 = vst [vmem:[%s179 + $0x60] sm:$0xff] %v204
                %v206 = vld [vmem:[%s178 + $0xc8] sm:$0xff]
                %207 = vst [vmem:[%s179 + $0x68] sm:$0xff] %v206
                %v208 = vld [vmem:[%s178 + $0xd0] sm:$0xff]
                %209 = vst [vmem:[%s179 + $0x70] sm:$0xff] %v208
                %v210 = vld [vmem:[%s178 + $0xd8] sm:$0xff]
                %211 = vst [vmem:[%s179 + $0x78] sm:$0xff] %v210
                %v212 = vld [vmem:[%s178 + $0x100] sm:$0xff]
                %213 = vst [vmem:[%s179 + $0x80] sm:$0xff] %v212
                %v214 = vld [vmem:[%s178 + $0x108] sm:$0xff]
                %215 = vst [vmem:[%s179 + $0x88] sm:$0xff] %v214
                %v216 = vld [vmem:[%s178 + $0x110] sm:$0xff]
                %217 = vst [vmem:[%s179 + $0x90] sm:$0xff] %v216
                %v218 = vld [vmem:[%s178 + $0x118] sm:$0xff]
                %219 = vst [vmem:[%s179 + $0x98] sm:$0xff] %v218
                %v220 = vld [vmem:[%s178 + $0x140] sm:$0xff]
                %221 = vst [vmem:[%s179 + $0xa0] sm:$0xff] %v220
                %v222 = vld [vmem:[%s178 + $0x148] sm:$0xff]
                %223 = vst [vmem:[%s179 + $0xa8] sm:$0xff] %v222
                %v224 = vld [vmem:[%s178 + $0x150] sm:$0xff]
                %225 = vst [vmem:[%s179 + $0xb0] sm:$0xff] %v224
                %v226 = vld [vmem:[%s178 + $0x158] sm:$0xff]
                %227 = vst [vmem:[%s179 + $0xb8] sm:$0xff] %v226
                %v228 = vld [vmem:[%s178 + $0x180] sm:$0xff]
                %229 = vst [vmem:[%s179 + $0xc0] sm:$0xff] %v228
                %v230 = vld [vmem:[%s178 + $0x188] sm:$0xff]
                %231 = vst [vmem:[%s179 + $0xc8] sm:$0xff] %v230
                %v232 = vld [vmem:[%s178 + $0x190] sm:$0xff]
                %233 = vst [vmem:[%s179 + $0xd0] sm:$0xff] %v232
                %v234 = vld [vmem:[%s178 + $0x198] sm:$0xff]
                %235 = vst [vmem:[%s179 + $0xd8] sm:$0xff] %v234
                %v236 = vld [vmem:[%s178 + $0x1c0] sm:$0xff]
                %237 = vst [vmem:[%s179 + $0xe0] sm:$0xff] %v236
                %v238 = vld [vmem:[%s178 + $0x1c8] sm:$0xff]
                %239 = vst [vmem:[%s179 + $0xe8] sm:$0xff] %v238
                %v240 = vld [vmem:[%s178 + $0x1d0] sm:$0xff]
                %241 = vst [vmem:[%s179 + $0xf0] sm:$0xff] %v240
                %v242 = vld [vmem:[%s178 + $0x1d8] sm:$0xff]
                %243 = vst [vmem:[%s179 + $0xf8] sm:$0xff] %v242
                %v244 = vld [vmem:[%s178 + $0x200] sm:$0xff]
                %245 = vst [vmem:[%s179 + $0x100] sm:$0xff] %v244
                %v246 = vld [vmem:[%s178 + $0x208] sm:$0xff]
                %247 = vst [vmem:[%s179 + $0x108] sm:$0xff] %v246
                %v248 = vld [vmem:[%s178 + $0x210] sm:$0xff]
                %249 = vst [vmem:[%s179 + $0x110] sm:$0xff] %v248
                %v250 = vld [vmem:[%s178 + $0x218] sm:$0xff]
                %251 = vst [vmem:[%s179 + $0x118] sm:$0xff] %v250
                %v252 = vld [vmem:[%s178 + $0x240] sm:$0xff]
                %253 = vst [vmem:[%s179 + $0x120] sm:$0xff] %v252
                %v254 = vld [vmem:[%s178 + $0x248] sm:$0xff]
                %255 = vst [vmem:[%s179 + $0x128] sm:$0xff] %v254
                %v256 = vld [vmem:[%s178 + $0x250] sm:$0xff]
                %257 = vst [vmem:[%s179 + $0x130] sm:$0xff] %v256
                %v258 = vld [vmem:[%s178 + $0x258] sm:$0xff]
                %259 = vst [vmem:[%s179 + $0x138] sm:$0xff] %v258
                %v260 = vld [vmem:[%s178 + $0x280] sm:$0xff]
                %261 = vst [vmem:[%s179 + $0x140] sm:$0xff] %v260
                %v262 = vld [vmem:[%s178 + $0x288] sm:$0xff]
                %263 = vst [vmem:[%s179 + $0x148] sm:$0xff] %v262
                %v264 = vld [vmem:[%s178 + $0x290] sm:$0xff]
                %265 = vst [vmem:[%s179 + $0x150] sm:$0xff] %v264
                %v266 = vld [vmem:[%s178 + $0x298] sm:$0xff]
                %267 = vst [vmem:[%s179 + $0x158] sm:$0xff] %v266
                %v268 = vld [vmem:[%s178 + $0x2c0] sm:$0xff]
                %269 = vst [vmem:[%s179 + $0x160] sm:$0xff] %v268
                %v270 = vld [vmem:[%s178 + $0x2c8] sm:$0xff]
                %271 = vst [vmem:[%s179 + $0x168] sm:$0xff] %v270
                %v272 = vld [vmem:[%s178 + $0x2d0] sm:$0xff]
                %273 = vst [vmem:[%s179 + $0x170] sm:$0xff] %v272
                %v274 = vld [vmem:[%s178 + $0x2d8] sm:$0xff]
                %275 = vst [vmem:[%s179 + $0x178] sm:$0xff] %v274
                %v276 = vld [vmem:[%s178 + $0x300] sm:$0xff]
                %277 = vst [vmem:[%s179 + $0x180] sm:$0xff] %v276
                %v278 = vld [vmem:[%s178 + $0x308] sm:$0xff]
                %279 = vst [vmem:[%s179 + $0x188] sm:$0xff] %v278
                %v280 = vld [vmem:[%s178 + $0x310] sm:$0xff]
                %281 = vst [vmem:[%s179 + $0x190] sm:$0xff] %v280
                %v282 = vld [vmem:[%s178 + $0x318] sm:$0xff]
                %283 = vst [vmem:[%s179 + $0x198] sm:$0xff] %v282
                %v284 = vld [vmem:[%s178 + $0x340] sm:$0xff]
                %285 = vst [vmem:[%s179 + $0x1a0] sm:$0xff] %v284
                %v286 = vld [vmem:[%s178 + $0x348] sm:$0xff]
                %287 = vst [vmem:[%s179 + $0x1a8] sm:$0xff] %v286
                %v288 = vld [vmem:[%s178 + $0x350] sm:$0xff]
                %289 = vst [vmem:[%s179 + $0x1b0] sm:$0xff] %v288
                %v290 = vld [vmem:[%s178 + $0x358] sm:$0xff]
                %291 = vst [vmem:[%s179 + $0x1b8] sm:$0xff] %v290
                %v292 = vld [vmem:[%s178 + $0x380] sm:$0xff]
                %293 = vst [vmem:[%s179 + $0x1c0] sm:$0xff] %v292
                %v294 = vld [vmem:[%s178 + $0x388] sm:$0xff]
                %295 = vst [vmem:[%s179 + $0x1c8] sm:$0xff] %v294
                %v296 = vld [vmem:[%s178 + $0x390] sm:$0xff]
                %297 = vst [vmem:[%s179 + $0x1d0] sm:$0xff] %v296
                %v298 = vld [vmem:[%s178 + $0x398] sm:$0xff]
                %299 = vst [vmem:[%s179 + $0x1d8] sm:$0xff] %v298
                %v300 = vld [vmem:[%s178 + $0x3c0] sm:$0xff]
                %301 = vst [vmem:[%s179 + $0x1e0] sm:$0xff] %v300
                %v302 = vld [vmem:[%s178 + $0x3c8] sm:$0xff]
                %303 = vst [vmem:[%s179 + $0x1e8] sm:$0xff] %v302
                %v304 = vld [vmem:[%s178 + $0x3d0] sm:$0xff]
                %305 = vst [vmem:[%s179 + $0x1f0] sm:$0xff] %v304
                %v306 = vld [vmem:[%s178 + $0x3d8] sm:$0xff]
                %307 = vst [vmem:[%s179 + $0x1f8] sm:$0xff] %v306
                %v308 = vld [vmem:[%s178 + $0x400] sm:$0xff]
                %309 = vst [vmem:[%s179 + $0x200] sm:$0xff] %v308
                %v310 = vld [vmem:[%s178 + $0x408] sm:$0xff]
                %311 = vst [vmem:[%s179 + $0x208] sm:$0xff] %v310
                %v312 = vld [vmem:[%s178 + $0x410] sm:$0xff]
                %313 = vst [vmem:[%s179 + $0x210] sm:$0xff] %v312
                %v314 = vld [vmem:[%s178 + $0x418] sm:$0xff]
                %315 = vst [vmem:[%s179 + $0x218] sm:$0xff] %v314
                %v316 = vld [vmem:[%s178 + $0x440] sm:$0xff]
                %317 = vst [vmem:[%s179 + $0x220] sm:$0xff] %v316
                %v318 = vld [vmem:[%s178 + $0x448] sm:$0xff]
                %319 = vst [vmem:[%s179 + $0x228] sm:$0xff] %v318
                %v320 = vld [vmem:[%s178 + $0x450] sm:$0xff]
                %321 = vst [vmem:[%s179 + $0x230] sm:$0xff] %v320
                %v322 = vld [vmem:[%s178 + $0x458] sm:$0xff]
                %323 = vst [vmem:[%s179 + $0x238] sm:$0xff] %v322
                %v324 = vld [vmem:[%s178 + $0x480] sm:$0xff]
                %325 = vst [vmem:[%s179 + $0x240] sm:$0xff] %v324
                %v326 = vld [vmem:[%s178 + $0x488] sm:$0xff]
                %327 = vst [vmem:[%s179 + $0x248] sm:$0xff] %v326
                %v328 = vld [vmem:[%s178 + $0x490] sm:$0xff]
                %329 = vst [vmem:[%s179 + $0x250] sm:$0xff] %v328
                %v330 = vld [vmem:[%s178 + $0x498] sm:$0xff]
                %331 = vst [vmem:[%s179 + $0x258] sm:$0xff] %v330
                %v332 = vld [vmem:[%s178 + $0x4c0] sm:$0xff]
                %333 = vst [vmem:[%s179 + $0x260] sm:$0xff] %v332
                %v334 = vld [vmem:[%s178 + $0x4c8] sm:$0xff]
                %335 = vst [vmem:[%s179 + $0x268] sm:$0xff] %v334
                %v336 = vld [vmem:[%s178 + $0x4d0] sm:$0xff]
                %337 = vst [vmem:[%s179 + $0x270] sm:$0xff] %v336
                %v338 = vld [vmem:[%s178 + $0x4d8] sm:$0xff]
                %339 = vst [vmem:[%s179 + $0x278] sm:$0xff] %v338
                %v340 = vld [vmem:[%s178 + $0x500] sm:$0xff]
                %341 = vst [vmem:[%s179 + $0x280] sm:$0xff] %v340
                %v342 = vld [vmem:[%s178 + $0x508] sm:$0xff]
                %343 = vst [vmem:[%s179 + $0x288] sm:$0xff] %v342
                %v344 = vld [vmem:[%s178 + $0x510] sm:$0xff]
                %345 = vst [vmem:[%s179 + $0x290] sm:$0xff] %v344
                %v346 = vld [vmem:[%s178 + $0x518] sm:$0xff]
                %347 = vst [vmem:[%s179 + $0x298] sm:$0xff] %v346
                %v348 = vld [vmem:[%s178 + $0x540] sm:$0xff]
                %349 = vst [vmem:[%s179 + $0x2a0] sm:$0xff] %v348
                %v350 = vld [vmem:[%s178 + $0x548] sm:$0xff]
                %351 = vst [vmem:[%s179 + $0x2a8] sm:$0xff] %v350
                %v352 = vld [vmem:[%s178 + $0x550] sm:$0xff]
                %353 = vst [vmem:[%s179 + $0x2b0] sm:$0xff] %v352
                %v354 = vld [vmem:[%s178 + $0x558] sm:$0xff]
                %355 = vst [vmem:[%s179 + $0x2b8] sm:$0xff] %v354
                %v356 = vld [vmem:[%s178 + $0x580] sm:$0xff]
                %357 = vst [vmem:[%s179 + $0x2c0] sm:$0xff] %v356
                %v358 = vld [vmem:[%s178 + $0x588] sm:$0xff]
                %359 = vst [vmem:[%s179 + $0x2c8] sm:$0xff] %v358
                %v360 = vld [vmem:[%s178 + $0x590] sm:$0xff]
                %361 = vst [vmem:[%s179 + $0x2d0] sm:$0xff] %v360
                %v362 = vld [vmem:[%s178 + $0x598] sm:$0xff]
                %363 = vst [vmem:[%s179 + $0x2d8] sm:$0xff] %v362
                %v364 = vld [vmem:[%s178 + $0x5c0] sm:$0xff]
                %365 = vst [vmem:[%s179 + $0x2e0] sm:$0xff] %v364
                %v366 = vld [vmem:[%s178 + $0x5c8] sm:$0xff]
                %367 = vst [vmem:[%s179 + $0x2e8] sm:$0xff] %v366
                %v368 = vld [vmem:[%s178 + $0x5d0] sm:$0xff]
                %369 = vst [vmem:[%s179 + $0x2f0] sm:$0xff] %v368
                %v370 = vld [vmem:[%s178 + $0x5d8] sm:$0xff]
                %371 = vst [vmem:[%s179 + $0x2f8] sm:$0xff] %v370
                %v372 = vld [vmem:[%s178 + $0x600] sm:$0xff]
                %373 = vst [vmem:[%s179 + $0x300] sm:$0xff] %v372
                %v374 = vld [vmem:[%s178 + $0x608] sm:$0xff]
                %375 = vst [vmem:[%s179 + $0x308] sm:$0xff] %v374
                %v376 = vld [vmem:[%s178 + $0x610] sm:$0xff]
                %377 = vst [vmem:[%s179 + $0x310] sm:$0xff] %v376
                %v378 = vld [vmem:[%s178 + $0x618] sm:$0xff]
                %379 = vst [vmem:[%s179 + $0x318] sm:$0xff] %v378
                %v380 = vld [vmem:[%s178 + $0x640] sm:$0xff]
                %381 = vst [vmem:[%s179 + $0x320] sm:$0xff] %v380
                %v382 = vld [vmem:[%s178 + $0x648] sm:$0xff]
                %383 = vst [vmem:[%s179 + $0x328] sm:$0xff] %v382
                %v384 = vld [vmem:[%s178 + $0x650] sm:$0xff]
                %385 = vst [vmem:[%s179 + $0x330] sm:$0xff] %v384
                %v386 = vld [vmem:[%s178 + $0x658] sm:$0xff]
                %387 = vst [vmem:[%s179 + $0x338] sm:$0xff] %v386
                %v388 = vld [vmem:[%s178 + $0x680] sm:$0xff]
                %389 = vst [vmem:[%s179 + $0x340] sm:$0xff] %v388
                %v390 = vld [vmem:[%s178 + $0x688] sm:$0xff]
                %391 = vst [vmem:[%s179 + $0x348] sm:$0xff] %v390
                %v392 = vld [vmem:[%s178 + $0x690] sm:$0xff]
                %393 = vst [vmem:[%s179 + $0x350] sm:$0xff] %v392
                %v394 = vld [vmem:[%s178 + $0x698] sm:$0xff]
                %395 = vst [vmem:[%s179 + $0x358] sm:$0xff] %v394
                %v396 = vld [vmem:[%s178 + $0x6c0] sm:$0xff]
                %397 = vst [vmem:[%s179 + $0x360] sm:$0xff] %v396
                %v398 = vld [vmem:[%s178 + $0x6c8] sm:$0xff]
                %399 = vst [vmem:[%s179 + $0x368] sm:$0xff] %v398
                %v400 = vld [vmem:[%s178 + $0x6d0] sm:$0xff]
                %401 = vst [vmem:[%s179 + $0x370] sm:$0xff] %v400
                %v402 = vld [vmem:[%s178 + $0x6d8] sm:$0xff]
                %403 = vst [vmem:[%s179 + $0x378] sm:$0xff] %v402
                %v404 = vld [vmem:[%s178 + $0x700] sm:$0xff]
                %405 = vst [vmem:[%s179 + $0x380] sm:$0xff] %v404
                %v406 = vld [vmem:[%s178 + $0x708] sm:$0xff]
                %407 = vst [vmem:[%s179 + $0x388] sm:$0xff] %v406
                %v408 = vld [vmem:[%s178 + $0x710] sm:$0xff]
                %409 = vst [vmem:[%s179 + $0x390] sm:$0xff] %v408
                %v410 = vld [vmem:[%s178 + $0x718] sm:$0xff]
                %411 = vst [vmem:[%s179 + $0x398] sm:$0xff] %v410
                %v412 = vld [vmem:[%s178 + $0x740] sm:$0xff]
                %413 = vst [vmem:[%s179 + $0x3a0] sm:$0xff] %v412
                %v414 = vld [vmem:[%s178 + $0x748] sm:$0xff]
                %415 = vst [vmem:[%s179 + $0x3a8] sm:$0xff] %v414
                %v416 = vld [vmem:[%s178 + $0x750] sm:$0xff]
                %417 = vst [vmem:[%s179 + $0x3b0] sm:$0xff] %v416
                %v418 = vld [vmem:[%s178 + $0x758] sm:$0xff]
                %419 = vst [vmem:[%s179 + $0x3b8] sm:$0xff] %v418
                %v420 = vld [vmem:[%s178 + $0x780] sm:$0xff]
                %421 = vst [vmem:[%s179 + $0x3c0] sm:$0xff] %v420
                %v422 = vld [vmem:[%s178 + $0x788] sm:$0xff]
                %423 = vst [vmem:[%s179 + $0x3c8] sm:$0xff] %v422
                %v424 = vld [vmem:[%s178 + $0x790] sm:$0xff]
                %425 = vst [vmem:[%s179 + $0x3d0] sm:$0xff] %v424
                %v426 = vld [vmem:[%s178 + $0x798] sm:$0xff]
                %427 = vst [vmem:[%s179 + $0x3d8] sm:$0xff] %v426
                %v428 = vld [vmem:[%s178 + $0x7c0] sm:$0xff]
                %429 = vst [vmem:[%s179 + $0x3e0] sm:$0xff] %v428
                %v430 = vld [vmem:[%s178 + $0x7c8] sm:$0xff]
                %431 = vst [vmem:[%s179 + $0x3e8] sm:$0xff] %v430
                %v432 = vld [vmem:[%s178 + $0x7d0] sm:$0xff]
                %433 = vst [vmem:[%s179 + $0x3f0] sm:$0xff] %v432
                %v434 = vld [vmem:[%s178 + $0x7d8] sm:$0xff]
                %435 = vst [vmem:[%s179 + $0x3f8] sm:$0xff] %v434
              $region37: #{encoder_forward.6} parent=31 // loop_footer
                %s177 = sadd.s32 1, %s173
              $region38: #{encoder_forward.6} parent=31 // loop_footer_branch
                %172 = sbr.rel target = $region34
              $region39: #{encoder_forward.6} parent=31 // loop_exit
                _
            $region32: #{encoder_forward.6} parent=27 // pred_fallthru
              _
            // Predicated region
            $region40: #{encoder_forward.6} parent=27 // pred_check
              _
            $region41: #{encoder_forward.6} parent=27 // pred_check_branch
              %437 = sbr.rel target = $region43
            $region42: #{encoder_forward.6} parent=27 // pred_region
              _
            $region43: #{encoder_forward.6} parent=27 // pred_fallthru
              _
          $region28: #{encoder_forward.6} parent=23 // pred_fallthru
            _
          %438 = vnop
        $region24: #{encoder_forward.6} parent=19 // pred_fallthru
          _
      $region20: #{encoder_forward.6} parent=5 // pred_fallthru
        _
      %p439 = scmp.le.s32.totalorder 1, %s11
      %p440 = scmp.lt.s32.totalorder %s11, 3
      %p441 = pnand %p439, %p440
      %p442 = pneg %p441
      // Predicated region
      $region44: #{encoder_forward.6} parent=5 // pred_check
        _
      $region45: #{encoder_forward.6} parent=5 // pred_check_branch
        %444 = sbr.rel (%p441) target = $region47
      $region46: #{encoder_forward.6} parent=5 // pred_region
        %s445 = ssub.s32 %s11, 1
        %s446 = sand.u32 %s45, 1
        %s447 = sand.u32 %s45, 1
        %s448 = smul.addr %s447, 1024
        %s449 = scalar_lea.vmem [#allocation2], %s448
        // Predicated region
        $region48: #{encoder_forward.6} parent=46 // pred_check
          %p450 = pneg %p58
        $region49: #{encoder_forward.6} parent=46 // pred_check_branch
          %452 = sbr.rel (%p450) target = $region51
        $region50: #{encoder_forward.6} parent=46 // pred_region
          _
        $region51: #{encoder_forward.6} parent=46 // pred_fallthru
          _
        %p453 = pneg %p32
        %p454 = pneg %p29
        %s455 = sand.u32 %s45, 1
        %s456 = sand.u32 %s45, 1
        %s457 = smul.addr %s456, 1024
        %s458 = scalar_lea.vmem [#allocation2], %s457
        %p459 = pneg %p58
        %p460 = pneg %p55
        %p461 = pneg %p84
        %p462 = pneg %p81
        %s463 = sand.u32 %s71, 1
        %s464 = sand.u32 %s71, 1
        %s465 = smul.addr %s464, 128
        %s466 = scalar_lea.vmem [#allocation3], %s465
        %p467 = pneg %p110
        %p468 = pneg %p107
        %p469 = scmp.lt.s32.totalorder %s16, 1
        %s470 = scalar_select %p469, %s16, 1
        %s471 = smul.addr %s470, 4
        %s472 = smul.addr %s471, 8
        %s473 = scalar_lea.vmem %s3, %s472
        %p474 = pneg %p136
        %p475 = pneg %p133
        %p476 = scmp.lt.s32.totalorder %s16, 1
        %s477 = scalar_select %p476, %s16, 1
        %s478 = smul.addr %s477, 4
        %s479 = smul.addr %s478, 8
        %s480 = scalar_lea.vmem %s4, %s479
        %s481 = smul.u32 8, %s16
        %s482 = smul.u32 8, %s16
        %p483 = scmp.lt.s32.totalorder %s16, 1
        %s484 = scalar_select %p483, %s16, 1
        %s485 = smul.addr %s484, 4
        %s486 = smul.addr %s485, 8
        %s487 = scalar_lea.vmem %s3, %s486
        %p488 = scmp.lt.s32.totalorder %s16, 1
        %s489 = scalar_select %p488, %s16, 1
        %s490 = smul.addr %s489, 4
        %s491 = smul.addr %s490, 8
        %s492 = scalar_lea.vmem %s4, %s491
        %v493 = vld [vmem:[%s0] sm:$0xff]
        %v494 = vld [vmem:[%s0 + $0x8] sm:$0xff]
        %v495 = vld [vmem:[%s0 + $0x10] sm:$0xff]
        %v496 = vld [vmem:[%s0 + $0x18] sm:$0xff]
        %v497 = vld [vmem:[%s449] sm:$0xff]
        %v498 = vld [vmem:[%s449 + $0x8] sm:$0xff]
        %v499 = vld [vmem:[%s449 + $0x10] sm:$0xff]
        %v500 = vld [vmem:[%s449 + $0x18] sm:$0xff]
        %v501 = vld [vmem:[%s449 + $0x20] sm:$0xff]
        %v502 = vld [vmem:[%s449 + $0x28] sm:$0xff]
        %v503 = vld [vmem:[%s449 + $0x30] sm:$0xff]
        %v504 = vld [vmem:[%s449 + $0x38] sm:$0xff]
        %v505 = vld [vmem:[%s449 + $0x40] sm:$0xff]
        %v506 = vld [vmem:[%s449 + $0x48] sm:$0xff]
        %v507 = vld [vmem:[%s449 + $0x50] sm:$0xff]
        %v508 = vld [vmem:[%s449 + $0x58] sm:$0xff]
        %v509 = vld [vmem:[%s449 + $0x60] sm:$0xff]
        %v510 = vld [vmem:[%s449 + $0x68] sm:$0xff]
        %v511 = vld [vmem:[%s449 + $0x70] sm:$0xff]
        %v512 = vld [vmem:[%s449 + $0x78] sm:$0xff]
        %v513 = vld [vmem:[%s449 + $0x80] sm:$0xff]
        %v514 = vld [vmem:[%s449 + $0x88] sm:$0xff]
        %v515 = vld [vmem:[%s449 + $0x90] sm:$0xff]
        %v516 = vld [vmem:[%s449 + $0x98] sm:$0xff]
        %v517 = vld [vmem:[%s449 + $0xa0] sm:$0xff]
        %v518 = vld [vmem:[%s449 + $0xa8] sm:$0xff]
        %v519 = vld [vmem:[%s449 + $0xb0] sm:$0xff]
        %v520 = vld [vmem:[%s449 + $0xb8] sm:$0xff]
        %v521 = vld [vmem:[%s449 + $0xc0] sm:$0xff]
        %v522 = vld [vmem:[%s449 + $0xc8] sm:$0xff]
        %v523 = vld [vmem:[%s449 + $0xd0] sm:$0xff]
        %v524 = vld [vmem:[%s449 + $0xd8] sm:$0xff]
        %v525 = vld [vmem:[%s449 + $0xe0] sm:$0xff]
        %v526 = vld [vmem:[%s449 + $0xe8] sm:$0xff]
        %v527 = vld [vmem:[%s449 + $0xf0] sm:$0xff]
        %v528 = vld [vmem:[%s449 + $0xf8] sm:$0xff]
        %v529 = vld [vmem:[%s449 + $0x100] sm:$0xff]
        %v530 = vld [vmem:[%s449 + $0x108] sm:$0xff]
        %v531 = vld [vmem:[%s449 + $0x110] sm:$0xff]
        %v532 = vld [vmem:[%s449 + $0x118] sm:$0xff]
        %v533 = vld [vmem:[%s449 + $0x120] sm:$0xff]
        %v534 = vld [vmem:[%s449 + $0x128] sm:$0xff]
        %v535 = vld [vmem:[%s449 + $0x130] sm:$0xff]
        %v536 = vld [vmem:[%s449 + $0x138] sm:$0xff]
        %v537 = vld [vmem:[%s449 + $0x140] sm:$0xff]
        %v538 = vld [vmem:[%s449 + $0x148] sm:$0xff]
        %v539 = vld [vmem:[%s449 + $0x150] sm:$0xff]
        %v540 = vld [vmem:[%s449 + $0x158] sm:$0xff]
        %v541 = vld [vmem:[%s449 + $0x160] sm:$0xff]
        %v542 = vld [vmem:[%s449 + $0x168] sm:$0xff]
        %v543 = vld [vmem:[%s449 + $0x170] sm:$0xff]
        %v544 = vld [vmem:[%s449 + $0x178] sm:$0xff]
        %v545 = vld [vmem:[%s449 + $0x180] sm:$0xff]
        %v546 = vld [vmem:[%s449 + $0x188] sm:$0xff]
        %v547 = vld [vmem:[%s449 + $0x190] sm:$0xff]
        %v548 = vld [vmem:[%s449 + $0x198] sm:$0xff]
        %v549 = vld [vmem:[%s449 + $0x1a0] sm:$0xff]
        %v550 = vld [vmem:[%s449 + $0x1a8] sm:$0xff]
        %v551 = vld [vmem:[%s449 + $0x1b0] sm:$0xff]
        %v552 = vld [vmem:[%s449 + $0x1b8] sm:$0xff]
        %v553 = vld [vmem:[%s449 + $0x1c0] sm:$0xff]
        %v554 = vld [vmem:[%s449 + $0x1c8] sm:$0xff]
        %v555 = vld [vmem:[%s449 + $0x1d0] sm:$0xff]
        %v556 = vld [vmem:[%s449 + $0x1d8] sm:$0xff]
        %v557 = vld [vmem:[%s449 + $0x1e0] sm:$0xff]
        %v558 = vld [vmem:[%s449 + $0x1e8] sm:$0xff]
        %v559 = vld [vmem:[%s449 + $0x1f0] sm:$0xff]
        %v560 = vld [vmem:[%s449 + $0x1f8] sm:$0xff]
        %v561 = vld [vmem:[%s449 + $0x200] sm:$0xff]
        %v562 = vld [vmem:[%s449 + $0x208] sm:$0xff]
        %v563 = vld [vmem:[%s449 + $0x210] sm:$0xff]
        %v564 = vld [vmem:[%s449 + $0x218] sm:$0xff]
        %v565 = vld [vmem:[%s449 + $0x220] sm:$0xff]
        %v566 = vld [vmem:[%s449 + $0x228] sm:$0xff]
        %v567 = vld [vmem:[%s449 + $0x230] sm:$0xff]
        %v568 = vld [vmem:[%s449 + $0x238] sm:$0xff]
        %v569 = vld [vmem:[%s449 + $0x240] sm:$0xff]
        %v570 = vld [vmem:[%s449 + $0x248] sm:$0xff]
        %v571 = vld [vmem:[%s449 + $0x250] sm:$0xff]
        %v572 = vld [vmem:[%s449 + $0x258] sm:$0xff]
        %v573 = vld [vmem:[%s449 + $0x260] sm:$0xff]
        %v574 = vld [vmem:[%s449 + $0x268] sm:$0xff]
        %v575 = vld [vmem:[%s449 + $0x270] sm:$0xff]
        %v576 = vld [vmem:[%s449 + $0x278] sm:$0xff]
        %v577 = vld [vmem:[%s449 + $0x280] sm:$0xff]
        %v578 = vld [vmem:[%s449 + $0x288] sm:$0xff]
        %v579 = vld [vmem:[%s449 + $0x290] sm:$0xff]
        %v580 = vld [vmem:[%s449 + $0x298] sm:$0xff]
        %v581 = vld [vmem:[%s449 + $0x2a0] sm:$0xff]
        %v582 = vld [vmem:[%s449 + $0x2a8] sm:$0xff]
        %v583 = vld [vmem:[%s449 + $0x2b0] sm:$0xff]
        %v584 = vld [vmem:[%s449 + $0x2b8] sm:$0xff]
        %v585 = vld [vmem:[%s449 + $0x2c0] sm:$0xff]
        %v586 = vld [vmem:[%s449 + $0x2c8] sm:$0xff]
        %v587 = vld [vmem:[%s449 + $0x2d0] sm:$0xff]
        %v588 = vld [vmem:[%s449 + $0x2d8] sm:$0xff]
        %v589 = vld [vmem:[%s449 + $0x2e0] sm:$0xff]
        %v590 = vld [vmem:[%s449 + $0x2e8] sm:$0xff]
        %v591 = vld [vmem:[%s449 + $0x2f0] sm:$0xff]
        %v592 = vld [vmem:[%s449 + $0x2f8] sm:$0xff]
        %v593 = vld [vmem:[%s449 + $0x300] sm:$0xff]
        %v594 = vld [vmem:[%s449 + $0x308] sm:$0xff]
        %v595 = vld [vmem:[%s449 + $0x310] sm:$0xff]
        %v596 = vld [vmem:[%s449 + $0x318] sm:$0xff]
        %v597 = vld [vmem:[%s449 + $0x320] sm:$0xff]
        %v598 = vld [vmem:[%s449 + $0x328] sm:$0xff]
        %v599 = vld [vmem:[%s449 + $0x330] sm:$0xff]
        %v600 = vld [vmem:[%s449 + $0x338] sm:$0xff]
        %v601 = vld [vmem:[%s449 + $0x340] sm:$0xff]
        %v602 = vld [vmem:[%s449 + $0x348] sm:$0xff]
        %v603 = vld [vmem:[%s449 + $0x350] sm:$0xff]
        %v604 = vld [vmem:[%s449 + $0x358] sm:$0xff]
        %v605 = vld [vmem:[%s449 + $0x360] sm:$0xff]
        %v606 = vld [vmem:[%s449 + $0x368] sm:$0xff]
        %v607 = vld [vmem:[%s449 + $0x370] sm:$0xff]
        %v608 = vld [vmem:[%s449 + $0x378] sm:$0xff]
        %v609 = vld [vmem:[%s449 + $0x380] sm:$0xff]
        %v610 = vld [vmem:[%s449 + $0x388] sm:$0xff]
        %v611 = vld [vmem:[%s449 + $0x390] sm:$0xff]
        %v612 = vld [vmem:[%s449 + $0x398] sm:$0xff]
        %v613 = vld [vmem:[%s449 + $0x3a0] sm:$0xff]
        %v614 = vld [vmem:[%s449 + $0x3a8] sm:$0xff]
        %v615 = vld [vmem:[%s449 + $0x3b0] sm:$0xff]
        %v616 = vld [vmem:[%s449 + $0x3b8] sm:$0xff]
        %v617 = vld [vmem:[%s449 + $0x3c0] sm:$0xff]
        %v618 = vld [vmem:[%s449 + $0x3c8] sm:$0xff]
        %v619 = vld [vmem:[%s449 + $0x3d0] sm:$0xff]
        %v620 = vld [vmem:[%s449 + $0x3d8] sm:$0xff]
        %v621 = vld [vmem:[%s449 + $0x3e0] sm:$0xff]
        %v622 = vld [vmem:[%s449 + $0x3e8] sm:$0xff]
        %v623 = vld [vmem:[%s449 + $0x3f0] sm:$0xff]
        %v624 = vld [vmem:[%s449 + $0x3f8] sm:$0xff]
        %v629 = vunpack.c.l.b16 %v493
        %v630 = vunpack.c.h.b16 %v493
        %v631 = vunpack.c.l.b16 %v494
        %v632 = vunpack.c.h.b16 %v494
        %v633 = vunpack.c.l.b16 %v495
        %v634 = vunpack.c.h.b16 %v495
        %v635 = vunpack.c.l.b16 %v496
        %v636 = vunpack.c.h.b16 %v496
        %v637 = vpack.c.b16 %v631, %v629
        %v638 = vpack.c.b16 %v632, %v630
        %v639 = vpack.c.b16 %v635, %v633
        %v640 = vpack.c.b16 %v636, %v634
        %v773 = vunpack.c.l.b16 %v497
        %v774 = vunpack.c.h.b16 %v497
        %v775 = vunpack.c.l.b16 %v498
        %v776 = vunpack.c.h.b16 %v498
        %v777 = vunpack.c.l.b16 %v499
        %v778 = vunpack.c.h.b16 %v499
        %v779 = vunpack.c.l.b16 %v500
        %v780 = vunpack.c.h.b16 %v500
        %v781 = vunpack.c.l.b16 %v501
        %v782 = vunpack.c.h.b16 %v501
        %v783 = vunpack.c.l.b16 %v502
        %v784 = vunpack.c.h.b16 %v502
        %v785 = vunpack.c.l.b16 %v503
        %v786 = vunpack.c.h.b16 %v503
        %v787 = vunpack.c.l.b16 %v504
        %v788 = vunpack.c.h.b16 %v504
        %v789 = vunpack.c.l.b16 %v505
        %v790 = vunpack.c.h.b16 %v505
        %v791 = vunpack.c.l.b16 %v506
        %v792 = vunpack.c.h.b16 %v506
        %v793 = vunpack.c.l.b16 %v507
        %v794 = vunpack.c.h.b16 %v507
        %v795 = vunpack.c.l.b16 %v508
        %v796 = vunpack.c.h.b16 %v508
        %v797 = vunpack.c.l.b16 %v509
        %v798 = vunpack.c.h.b16 %v509
        %v799 = vunpack.c.l.b16 %v510
        %v800 = vunpack.c.h.b16 %v510
        %v801 = vunpack.c.l.b16 %v511
        %v802 = vunpack.c.h.b16 %v511
        %v803 = vunpack.c.l.b16 %v512
        %v804 = vunpack.c.h.b16 %v512
        %v805 = vunpack.c.l.b16 %v513
        %v806 = vunpack.c.h.b16 %v513
        %v807 = vunpack.c.l.b16 %v514
        %v808 = vunpack.c.h.b16 %v514
        %v809 = vunpack.c.l.b16 %v515
        %v810 = vunpack.c.h.b16 %v515
        %v811 = vunpack.c.l.b16 %v516
        %v812 = vunpack.c.h.b16 %v516
        %v813 = vunpack.c.l.b16 %v517
        %v814 = vunpack.c.h.b16 %v517
        %v815 = vunpack.c.l.b16 %v518
        %v816 = vunpack.c.h.b16 %v518
        %v817 = vunpack.c.l.b16 %v519
        %v818 = vunpack.c.h.b16 %v519
        %v819 = vunpack.c.l.b16 %v520
        %v820 = vunpack.c.h.b16 %v520
        %v821 = vunpack.c.l.b16 %v521
        %v822 = vunpack.c.h.b16 %v521
        %v823 = vunpack.c.l.b16 %v522
        %v824 = vunpack.c.h.b16 %v522
        %v825 = vunpack.c.l.b16 %v523
        %v826 = vunpack.c.h.b16 %v523
        %v827 = vunpack.c.l.b16 %v524
        %v828 = vunpack.c.h.b16 %v524
        %v829 = vunpack.c.l.b16 %v525
        %v830 = vunpack.c.h.b16 %v525
        %v831 = vunpack.c.l.b16 %v526
        %v832 = vunpack.c.h.b16 %v526
        %v833 = vunpack.c.l.b16 %v527
        %v834 = vunpack.c.h.b16 %v527
        %v835 = vunpack.c.l.b16 %v528
        %v836 = vunpack.c.h.b16 %v528
        %v837 = vunpack.c.l.b16 %v529
        %v838 = vunpack.c.h.b16 %v529
        %v839 = vunpack.c.l.b16 %v530
        %v840 = vunpack.c.h.b16 %v530
        %v841 = vunpack.c.l.b16 %v531
        %v842 = vunpack.c.h.b16 %v531
        %v843 = vunpack.c.l.b16 %v532
        %v844 = vunpack.c.h.b16 %v532
        %v845 = vunpack.c.l.b16 %v533
        %v846 = vunpack.c.h.b16 %v533
        %v847 = vunpack.c.l.b16 %v534
        %v848 = vunpack.c.h.b16 %v534
        %v849 = vunpack.c.l.b16 %v535
        %v850 = vunpack.c.h.b16 %v535
        %v851 = vunpack.c.l.b16 %v536
        %v852 = vunpack.c.h.b16 %v536
        %v853 = vunpack.c.l.b16 %v537
        %v854 = vunpack.c.h.b16 %v537
        %v855 = vunpack.c.l.b16 %v538
        %v856 = vunpack.c.h.b16 %v538
        %v857 = vunpack.c.l.b16 %v539
        %v858 = vunpack.c.h.b16 %v539
        %v859 = vunpack.c.l.b16 %v540
        %v860 = vunpack.c.h.b16 %v540
        %v861 = vunpack.c.l.b16 %v541
        %v862 = vunpack.c.h.b16 %v541
        %v863 = vunpack.c.l.b16 %v542
        %v864 = vunpack.c.h.b16 %v542
        %v865 = vunpack.c.l.b16 %v543
        %v866 = vunpack.c.h.b16 %v543
        %v867 = vunpack.c.l.b16 %v544
        %v868 = vunpack.c.h.b16 %v544
        %v869 = vunpack.c.l.b16 %v545
        %v870 = vunpack.c.h.b16 %v545
        %v871 = vunpack.c.l.b16 %v546
        %v872 = vunpack.c.h.b16 %v546
        %v873 = vunpack.c.l.b16 %v547
        %v874 = vunpack.c.h.b16 %v547
        %v875 = vunpack.c.l.b16 %v548
        %v876 = vunpack.c.h.b16 %v548
        %v877 = vunpack.c.l.b16 %v549
        %v878 = vunpack.c.h.b16 %v549
        %v879 = vunpack.c.l.b16 %v550
        %v880 = vunpack.c.h.b16 %v550
        %v881 = vunpack.c.l.b16 %v551
        %v882 = vunpack.c.h.b16 %v551
        %v883 = vunpack.c.l.b16 %v552
        %v884 = vunpack.c.h.b16 %v552
        %v885 = vunpack.c.l.b16 %v553
        %v886 = vunpack.c.h.b16 %v553
        %v887 = vunpack.c.l.b16 %v554
        %v888 = vunpack.c.h.b16 %v554
        %v889 = vunpack.c.l.b16 %v555
        %v890 = vunpack.c.h.b16 %v555
        %v891 = vunpack.c.l.b16 %v556
        %v892 = vunpack.c.h.b16 %v556
        %v893 = vunpack.c.l.b16 %v557
        %v894 = vunpack.c.h.b16 %v557
        %v895 = vunpack.c.l.b16 %v558
        %v896 = vunpack.c.h.b16 %v558
        %v897 = vunpack.c.l.b16 %v559
        %v898 = vunpack.c.h.b16 %v559
        %v899 = vunpack.c.l.b16 %v560
        %v900 = vunpack.c.h.b16 %v560
        %v901 = vunpack.c.l.b16 %v561
        %v902 = vunpack.c.h.b16 %v561
        %v903 = vunpack.c.l.b16 %v562
        %v904 = vunpack.c.h.b16 %v562
        %v905 = vunpack.c.l.b16 %v563
        %v906 = vunpack.c.h.b16 %v563
        %v907 = vunpack.c.l.b16 %v564
        %v908 = vunpack.c.h.b16 %v564
        %v909 = vunpack.c.l.b16 %v565
        %v910 = vunpack.c.h.b16 %v565
        %v911 = vunpack.c.l.b16 %v566
        %v912 = vunpack.c.h.b16 %v566
        %v913 = vunpack.c.l.b16 %v567
        %v914 = vunpack.c.h.b16 %v567
        %v915 = vunpack.c.l.b16 %v568
        %v916 = vunpack.c.h.b16 %v568
        %v917 = vunpack.c.l.b16 %v569
        %v918 = vunpack.c.h.b16 %v569
        %v919 = vunpack.c.l.b16 %v570
        %v920 = vunpack.c.h.b16 %v570
        %v921 = vunpack.c.l.b16 %v571
        %v922 = vunpack.c.h.b16 %v571
        %v923 = vunpack.c.l.b16 %v572
        %v924 = vunpack.c.h.b16 %v572
        %v925 = vunpack.c.l.b16 %v573
        %v926 = vunpack.c.h.b16 %v573
        %v927 = vunpack.c.l.b16 %v574
        %v928 = vunpack.c.h.b16 %v574
        %v929 = vunpack.c.l.b16 %v575
        %v930 = vunpack.c.h.b16 %v575
        %v931 = vunpack.c.l.b16 %v576
        %v932 = vunpack.c.h.b16 %v576
        %v933 = vunpack.c.l.b16 %v577
        %v934 = vunpack.c.h.b16 %v577
        %v935 = vunpack.c.l.b16 %v578
        %v936 = vunpack.c.h.b16 %v578
        %v937 = vunpack.c.l.b16 %v579
        %v938 = vunpack.c.h.b16 %v579
        %v939 = vunpack.c.l.b16 %v580
        %v940 = vunpack.c.h.b16 %v580
        %v941 = vunpack.c.l.b16 %v581
        %v942 = vunpack.c.h.b16 %v581
        %v943 = vunpack.c.l.b16 %v582
        %v944 = vunpack.c.h.b16 %v582
        %v945 = vunpack.c.l.b16 %v583
        %v946 = vunpack.c.h.b16 %v583
        %v947 = vunpack.c.l.b16 %v584
        %v948 = vunpack.c.h.b16 %v584
        %v949 = vunpack.c.l.b16 %v585
        %v950 = vunpack.c.h.b16 %v585
        %v951 = vunpack.c.l.b16 %v586
        %v952 = vunpack.c.h.b16 %v586
        %v953 = vunpack.c.l.b16 %v587
        %v954 = vunpack.c.h.b16 %v587
        %v955 = vunpack.c.l.b16 %v588
        %v956 = vunpack.c.h.b16 %v588
        %v957 = vunpack.c.l.b16 %v589
        %v958 = vunpack.c.h.b16 %v589
        %v959 = vunpack.c.l.b16 %v590
        %v960 = vunpack.c.h.b16 %v590
        %v961 = vunpack.c.l.b16 %v591
        %v962 = vunpack.c.h.b16 %v591
        %v963 = vunpack.c.l.b16 %v592
        %v964 = vunpack.c.h.b16 %v592
        %v965 = vunpack.c.l.b16 %v593
        %v966 = vunpack.c.h.b16 %v593
        %v967 = vunpack.c.l.b16 %v594
        %v968 = vunpack.c.h.b16 %v594
        %v969 = vunpack.c.l.b16 %v595
        %v970 = vunpack.c.h.b16 %v595
        %v971 = vunpack.c.l.b16 %v596
        %v972 = vunpack.c.h.b16 %v596
        %v973 = vunpack.c.l.b16 %v597
        %v974 = vunpack.c.h.b16 %v597
        %v975 = vunpack.c.l.b16 %v598
        %v976 = vunpack.c.h.b16 %v598
        %v977 = vunpack.c.l.b16 %v599
        %v978 = vunpack.c.h.b16 %v599
        %v979 = vunpack.c.l.b16 %v600
        %v980 = vunpack.c.h.b16 %v600
        %v981 = vunpack.c.l.b16 %v601
        %v982 = vunpack.c.h.b16 %v601
        %v983 = vunpack.c.l.b16 %v602
        %v984 = vunpack.c.h.b16 %v602
        %v985 = vunpack.c.l.b16 %v603
        %v986 = vunpack.c.h.b16 %v603
        %v987 = vunpack.c.l.b16 %v604
        %v988 = vunpack.c.h.b16 %v604
        %v989 = vunpack.c.l.b16 %v605
        %v990 = vunpack.c.h.b16 %v605
        %v991 = vunpack.c.l.b16 %v606
        %v992 = vunpack.c.h.b16 %v606
        %v993 = vunpack.c.l.b16 %v607
        %v994 = vunpack.c.h.b16 %v607
        %v995 = vunpack.c.l.b16 %v608
        %v996 = vunpack.c.h.b16 %v608
        %v997 = vunpack.c.l.b16 %v609
        %v998 = vunpack.c.h.b16 %v609
        %v999 = vunpack.c.l.b16 %v610
        %v1000 = vunpack.c.h.b16 %v610
        %v1001 = vunpack.c.l.b16 %v611
        %v1002 = vunpack.c.h.b16 %v611
        %v1003 = vunpack.c.l.b16 %v612
        %v1004 = vunpack.c.h.b16 %v612
        %v1005 = vunpack.c.l.b16 %v613
        %v1006 = vunpack.c.h.b16 %v613
        %v1007 = vunpack.c.l.b16 %v614
        %v1008 = vunpack.c.h.b16 %v614
        %v1009 = vunpack.c.l.b16 %v615
        %v1010 = vunpack.c.h.b16 %v615
        %v1011 = vunpack.c.l.b16 %v616
        %v1012 = vunpack.c.h.b16 %v616
        %v1013 = vunpack.c.l.b16 %v617
        %v1014 = vunpack.c.h.b16 %v617
        %v1015 = vunpack.c.l.b16 %v618
        %v1016 = vunpack.c.h.b16 %v618
        %v1017 = vunpack.c.l.b16 %v619
        %v1018 = vunpack.c.h.b16 %v619
        %v1019 = vunpack.c.l.b16 %v620
        %v1020 = vunpack.c.h.b16 %v620
        %v1021 = vunpack.c.l.b16 %v621
        %v1022 = vunpack.c.h.b16 %v621
        %v1023 = vunpack.c.l.b16 %v622
        %v1024 = vunpack.c.h.b16 %v622
        %v1025 = vunpack.c.l.b16 %v623
        %v1026 = vunpack.c.h.b16 %v623
        %v1027 = vunpack.c.l.b16 %v624
        %v1028 = vunpack.c.h.b16 %v624
        %v1029 = vpack.c.b16 %v781, %v773
        %v1030 = vpack.c.b16 %v782, %v774
        %v1031 = vpack.c.b16 %v783, %v775
        %v1032 = vpack.c.b16 %v784, %v776
        %v1033 = vpack.c.b16 %v785, %v777
        %v1034 = vpack.c.b16 %v786, %v778
        %v1035 = vpack.c.b16 %v787, %v779
        %v1036 = vpack.c.b16 %v788, %v780
        %v1037 = vpack.c.b16 %v797, %v789
        %v1038 = vpack.c.b16 %v798, %v790
        %v1039 = vpack.c.b16 %v799, %v791
        %v1040 = vpack.c.b16 %v800, %v792
        %v1041 = vpack.c.b16 %v801, %v793
        %v1042 = vpack.c.b16 %v802, %v794
        %v1043 = vpack.c.b16 %v803, %v795
        %v1044 = vpack.c.b16 %v804, %v796
        %v1045 = vpack.c.b16 %v813, %v805
        %v1046 = vpack.c.b16 %v814, %v806
        %v1047 = vpack.c.b16 %v815, %v807
        %v1048 = vpack.c.b16 %v816, %v808
        %v1049 = vpack.c.b16 %v817, %v809
        %v1050 = vpack.c.b16 %v818, %v810
        %v1051 = vpack.c.b16 %v819, %v811
        %v1052 = vpack.c.b16 %v820, %v812
        %v1053 = vpack.c.b16 %v829, %v821
        %v1054 = vpack.c.b16 %v830, %v822
        %v1055 = vpack.c.b16 %v831, %v823
        %v1056 = vpack.c.b16 %v832, %v824
        %v1057 = vpack.c.b16 %v833, %v825
        %v1058 = vpack.c.b16 %v834, %v826
        %v1059 = vpack.c.b16 %v835, %v827
        %v1060 = vpack.c.b16 %v836, %v828
        %v1061 = vpack.c.b16 %v845, %v837
        %v1062 = vpack.c.b16 %v846, %v838
        %v1063 = vpack.c.b16 %v847, %v839
        %v1064 = vpack.c.b16 %v848, %v840
        %v1065 = vpack.c.b16 %v849, %v841
        %v1066 = vpack.c.b16 %v850, %v842
        %v1067 = vpack.c.b16 %v851, %v843
        %v1068 = vpack.c.b16 %v852, %v844
        %v1069 = vpack.c.b16 %v861, %v853
        %v1070 = vpack.c.b16 %v862, %v854
        %v1071 = vpack.c.b16 %v863, %v855
        %v1072 = vpack.c.b16 %v864, %v856
        %v1073 = vpack.c.b16 %v865, %v857
        %v1074 = vpack.c.b16 %v866, %v858
        %v1075 = vpack.c.b16 %v867, %v859
        %v1076 = vpack.c.b16 %v868, %v860
        %v1077 = vpack.c.b16 %v877, %v869
        %v1078 = vpack.c.b16 %v878, %v870
        %v1079 = vpack.c.b16 %v879, %v871
        %v1080 = vpack.c.b16 %v880, %v872
        %v1081 = vpack.c.b16 %v881, %v873
        %v1082 = vpack.c.b16 %v882, %v874
        %v1083 = vpack.c.b16 %v883, %v875
        %v1084 = vpack.c.b16 %v884, %v876
        %v1085 = vpack.c.b16 %v893, %v885
        %v1086 = vpack.c.b16 %v894, %v886
        %v1087 = vpack.c.b16 %v895, %v887
        %v1088 = vpack.c.b16 %v896, %v888
        %v1089 = vpack.c.b16 %v897, %v889
        %v1090 = vpack.c.b16 %v898, %v890
        %v1091 = vpack.c.b16 %v899, %v891
        %v1092 = vpack.c.b16 %v900, %v892
        %v1093 = vpack.c.b16 %v909, %v901
        %v1094 = vpack.c.b16 %v910, %v902
        %v1095 = vpack.c.b16 %v911, %v903
        %v1096 = vpack.c.b16 %v912, %v904
        %v1097 = vpack.c.b16 %v913, %v905
        %v1098 = vpack.c.b16 %v914, %v906
        %v1099 = vpack.c.b16 %v915, %v907
        %v1100 = vpack.c.b16 %v916, %v908
        %v1101 = vpack.c.b16 %v925, %v917
        %v1102 = vpack.c.b16 %v926, %v918
        %v1103 = vpack.c.b16 %v927, %v919
        %v1104 = vpack.c.b16 %v928, %v920
        %v1105 = vpack.c.b16 %v929, %v921
        %v1106 = vpack.c.b16 %v930, %v922
        %v1107 = vpack.c.b16 %v931, %v923
        %v1108 = vpack.c.b16 %v932, %v924
        %v1109 = vpack.c.b16 %v941, %v933
        %v1110 = vpack.c.b16 %v942, %v934
        %v1111 = vpack.c.b16 %v943, %v935
        %v1112 = vpack.c.b16 %v944, %v936
        %v1113 = vpack.c.b16 %v945, %v937
        %v1114 = vpack.c.b16 %v946, %v938
        %v1115 = vpack.c.b16 %v947, %v939
        %v1116 = vpack.c.b16 %v948, %v940
        %v1117 = vpack.c.b16 %v957, %v949
        %v1118 = vpack.c.b16 %v958, %v950
        %v1119 = vpack.c.b16 %v959, %v951
        %v1120 = vpack.c.b16 %v960, %v952
        %v1121 = vpack.c.b16 %v961, %v953
        %v1122 = vpack.c.b16 %v962, %v954
        %v1123 = vpack.c.b16 %v963, %v955
        %v1124 = vpack.c.b16 %v964, %v956
        %v1125 = vpack.c.b16 %v973, %v965
        %v1126 = vpack.c.b16 %v974, %v966
        %v1127 = vpack.c.b16 %v975, %v967
        %v1128 = vpack.c.b16 %v976, %v968
        %v1129 = vpack.c.b16 %v977, %v969
        %v1130 = vpack.c.b16 %v978, %v970
        %v1131 = vpack.c.b16 %v979, %v971
        %v1132 = vpack.c.b16 %v980, %v972
        %v1133 = vpack.c.b16 %v989, %v981
        %v1134 = vpack.c.b16 %v990, %v982
        %v1135 = vpack.c.b16 %v991, %v983
        %v1136 = vpack.c.b16 %v992, %v984
        %v1137 = vpack.c.b16 %v993, %v985
        %v1138 = vpack.c.b16 %v994, %v986
        %v1139 = vpack.c.b16 %v995, %v987
        %v1140 = vpack.c.b16 %v996, %v988
        %v1141 = vpack.c.b16 %v1005, %v997
        %v1142 = vpack.c.b16 %v1006, %v998
        %v1143 = vpack.c.b16 %v1007, %v999
        %v1144 = vpack.c.b16 %v1008, %v1000
        %v1145 = vpack.c.b16 %v1009, %v1001
        %v1146 = vpack.c.b16 %v1010, %v1002
        %v1147 = vpack.c.b16 %v1011, %v1003
        %v1148 = vpack.c.b16 %v1012, %v1004
        %v1149 = vpack.c.b16 %v1021, %v1013
        %v1150 = vpack.c.b16 %v1022, %v1014
        %v1151 = vpack.c.b16 %v1023, %v1015
        %v1152 = vpack.c.b16 %v1024, %v1016
        %v1153 = vpack.c.b16 %v1025, %v1017
        %v1154 = vpack.c.b16 %v1026, %v1018
        %v1155 = vpack.c.b16 %v1027, %v1019
        %v1156 = vpack.c.b16 %v1028, %v1020
        %1285 = vmatprep.subr.bf16.mxu0 %v1030
        %1286 = vmatpush1.bf16.msra.mxu0 %v1029
        %1287 = vmatprep.subr.bf16.mxu0 %v1038
        %1288 = vmatpush1.bf16.msra.mxu0 %v1037
        %1289 = vmatprep.subr.bf16.mxu0 %v1046
        %1290 = vmatpush1.bf16.msra.mxu0 %v1045
        %1291 = vmatprep.subr.bf16.mxu0 %v1054
        %1292 = vmatpush1.bf16.msra.mxu0 %v1053
        %1293 = vmatprep.subr.bf16.mxu0 %v1062
        %1294 = vmatpush1.bf16.msra.mxu0 %v1061
        %1295 = vmatprep.subr.bf16.mxu0 %v1070
        %1296 = vmatpush1.bf16.msra.mxu0 %v1069
        %1297 = vmatprep.subr.bf16.mxu0 %v1078
        %1298 = vmatpush1.bf16.msra.mxu0 %v1077
        %1299 = vmatprep.subr.bf16.mxu0 %v1086
        %1300 = vmatpush1.bf16.msra.mxu0 %v1085
        %1301 = vmatprep.subr.bf16.mxu0 %v1094
        %1302 = vmatpush1.bf16.msra.mxu0 %v1093
        %1303 = vmatprep.subr.bf16.mxu0 %v1102
        %1304 = vmatpush1.bf16.msra.mxu0 %v1101
        %1305 = vmatprep.subr.bf16.mxu0 %v1110
        %1306 = vmatpush1.bf16.msra.mxu0 %v1109
        %1307 = vmatprep.subr.bf16.mxu0 %v1118
        %1308 = vmatpush1.bf16.msra.mxu0 %v1117
        %1309 = vmatprep.subr.bf16.mxu0 %v1126
        %1310 = vmatpush1.bf16.msra.mxu0 %v1125
        %1311 = vmatprep.subr.bf16.mxu0 %v1134
        %1312 = vmatpush1.bf16.msra.mxu0 %v1133
        %1313 = vmatprep.subr.bf16.mxu0 %v1142
        %1314 = vmatpush1.bf16.msra.mxu0 %v1141
        %1315 = vmatprep.subr.bf16.mxu0 %v1150
        %1316 = vmatpush1.bf16.msra.mxu0 %v1149
        %1317 = vmatprep.mubr.bf16.mxu0 %v638
        %1318 = vmatmul.mubr.bf16.gmra.mrb[0].mxu0 %v637
        %v1319 = vpop.f32.mrb[0].mxu0
        %v1320 = vadd.f32 0.0, %v1319
        %v1321 = vpop.f32.mrb[0].mxu0
        %v1322 = vadd.f32 0.0, %v1321
        %v1323 = vpop.f32.mrb[0].mxu0
        %v1324 = vadd.f32 0.0, %v1323
        %v1325 = vpop.f32.mrb[0].mxu0
        %v1326 = vadd.f32 0.0, %v1325
        %1327 = vmatprep.mubr.bf16.mxu0 %v640
        %1328 = vmatmul.mubr.bf16.gmra.mrb[0].mxu0 %v639
        %v1329 = vpop.f32.mrb[0].mxu0
        %v1330 = vadd.f32 0.0, %v1329
        %v1331 = vpop.f32.mrb[0].mxu0
        %v1332 = vadd.f32 0.0, %v1331
        %v1333 = vpop.f32.mrb[0].mxu0
        %v1334 = vadd.f32 0.0, %v1333
        %v1335 = vpop.f32.mrb[0].mxu0
        %v1336 = vadd.f32 0.0, %v1335
        %1337 = vdwg.mxu0
        %1338 = vmatprep.subr.bf16.mxu0 %v1032
        %1339 = vmatpush1.bf16.msra.mxu0 %v1031
        %1340 = vmatprep.subr.bf16.mxu0 %v1040
        %1341 = vmatpush1.bf16.msra.mxu0 %v1039
        %1342 = vmatprep.subr.bf16.mxu0 %v1048
        %1343 = vmatpush1.bf16.msra.mxu0 %v1047
        %1344 = vmatprep.subr.bf16.mxu0 %v1056
        %1345 = vmatpush1.bf16.msra.mxu0 %v1055
        %1346 = vmatprep.subr.bf16.mxu0 %v1064
        %1347 = vmatpush1.bf16.msra.mxu0 %v1063
        %1348 = vmatprep.subr.bf16.mxu0 %v1072
        %1349 = vmatpush1.bf16.msra.mxu0 %v1071
        %1350 = vmatprep.subr.bf16.mxu0 %v1080
        %1351 = vmatpush1.bf16.msra.mxu0 %v1079
        %1352 = vmatprep.subr.bf16.mxu0 %v1088
        %1353 = vmatpush1.bf16.msra.mxu0 %v1087
        %1354 = vmatprep.subr.bf16.mxu0 %v1096
        %1355 = vmatpush1.bf16.msra.mxu0 %v1095
        %1356 = vmatprep.subr.bf16.mxu0 %v1104
        %1357 = vmatpush1.bf16.msra.mxu0 %v1103
        %1358 = vmatprep.subr.bf16.mxu0 %v1112
        %1359 = vmatpush1.bf16.msra.mxu0 %v1111
        %1360 = vmatprep.subr.bf16.mxu0 %v1120
        %1361 = vmatpush1.bf16.msra.mxu0 %v1119
        %1362 = vmatprep.subr.bf16.mxu0 %v1128
        %1363 = vmatpush1.bf16.msra.mxu0 %v1127
        %1364 = vmatprep.subr.bf16.mxu0 %v1136
        %1365 = vmatpush1.bf16.msra.mxu0 %v1135
        %1366 = vmatprep.subr.bf16.mxu0 %v1144
        %1367 = vmatpush1.bf16.msra.mxu0 %v1143
        %1368 = vmatprep.subr.bf16.mxu0 %v1152
        %1369 = vmatpush1.bf16.msra.mxu0 %v1151
        %1370 = vmatprep.mubr.bf16.mxu0 %v638
        %1371 = vmatmul.mubr.bf16.gmra.mrb[0].mxu0 %v637
        %v1372 = vpop.f32.mrb[0].mxu0
        %v1373 = vadd.f32 0.0, %v1372
        %v1374 = vpop.f32.mrb[0].mxu0
        %v1375 = vadd.f32 0.0, %v1374
        %v1376 = vpop.f32.mrb[0].mxu0
        %v1377 = vadd.f32 0.0, %v1376
        %v1378 = vpop.f32.mrb[0].mxu0
        %v1379 = vadd.f32 0.0, %v1378
        %1380 = vmatprep.mubr.bf16.mxu0 %v640
        %1381 = vmatmul.mubr.bf16.gmra.mrb[0].mxu0 %v639
        %v1382 = vpop.f32.mrb[0].mxu0
        %v1383 = vadd.f32 0.0, %v1382
        %v1384 = vpop.f32.mrb[0].mxu0
        %v1385 = vadd.f32 0.0, %v1384
        %v1386 = vpop.f32.mrb[0].mxu0
        %v1387 = vadd.f32 0.0, %v1386
        %v1388 = vpop.f32.mrb[0].mxu0
        %v1389 = vadd.f32 0.0, %v1388
        %1390 = vdwg.mxu0
        %1391 = vmatprep.subr.bf16.mxu0 %v1034
        %1392 = vmatpush1.bf16.msra.mxu0 %v1033
        %1393 = vmatprep.subr.bf16.mxu0 %v1042
        %1394 = vmatpush1.bf16.msra.mxu0 %v1041
        %1395 = vmatprep.subr.bf16.mxu0 %v1050
        %1396 = vmatpush1.bf16.msra.mxu0 %v1049
        %1397 = vmatprep.subr.bf16.mxu0 %v1058
        %1398 = vmatpush1.bf16.msra.mxu0 %v1057
        %1399 = vmatprep.subr.bf16.mxu0 %v1066
        %1400 = vmatpush1.bf16.msra.mxu0 %v1065
        %1401 = vmatprep.subr.bf16.mxu0 %v1074
        %1402 = vmatpush1.bf16.msra.mxu0 %v1073
        %1403 = vmatprep.subr.bf16.mxu0 %v1082
        %1404 = vmatpush1.bf16.msra.mxu0 %v1081
        %1405 = vmatprep.subr.bf16.mxu0 %v1090
        %1406 = vmatpush1.bf16.msra.mxu0 %v1089
        %1407 = vmatprep.subr.bf16.mxu0 %v1098
        %1408 = vmatpush1.bf16.msra.mxu0 %v1097
        %1409 = vmatprep.subr.bf16.mxu0 %v1106
        %1410 = vmatpush1.bf16.msra.mxu0 %v1105
        %1411 = vmatprep.subr.bf16.mxu0 %v1114
        %1412 = vmatpush1.bf16.msra.mxu0 %v1113
        %1413 = vmatprep.subr.bf16.mxu0 %v1122
        %1414 = vmatpush1.bf16.msra.mxu0 %v1121
        %1415 = vmatprep.subr.bf16.mxu0 %v1130
        %1416 = vmatpush1.bf16.msra.mxu0 %v1129
        %1417 = vmatprep.subr.bf16.mxu0 %v1138
        %1418 = vmatpush1.bf16.msra.mxu0 %v1137
        %1419 = vmatprep.subr.bf16.mxu0 %v1146
        %1420 = vmatpush1.bf16.msra.mxu0 %v1145
        %1421 = vmatprep.subr.bf16.mxu0 %v1154
        %1422 = vmatpush1.bf16.msra.mxu0 %v1153
        %1423 = vmatprep.mubr.bf16.mxu0 %v638
        %1424 = vmatmul.mubr.bf16.gmra.mrb[0].mxu0 %v637
        %v1425 = vpop.f32.mrb[0].mxu0
        %v1426 = vadd.f32 0.0, %v1425
        %v1427 = vpop.f32.mrb[0].mxu0
        %v1428 = vadd.f32 0.0, %v1427
        %v1429 = vpop.f32.mrb[0].mxu0
        %v1430 = vadd.f32 0.0, %v1429
        %v1431 = vpop.f32.mrb[0].mxu0
        %v1432 = vadd.f32 0.0, %v1431
        %1433 = vmatprep.mubr.bf16.mxu0 %v640
        %1434 = vmatmul.mubr.bf16.gmra.mrb[0].mxu0 %v639
        %v1435 = vpop.f32.mrb[0].mxu0
        %v1436 = vadd.f32 0.0, %v1435
        %v1437 = vpop.f32.mrb[0].mxu0
        %v1438 = vadd.f32 0.0, %v1437
        %v1439 = vpop.f32.mrb[0].mxu0
        %v1440 = vadd.f32 0.0, %v1439
        %v1441 = vpop.f32.mrb[0].mxu0
        %v1442 = vadd.f32 0.0, %v1441
        %1443 = vdwg.mxu0
        %1444 = vmatprep.subr.bf16.mxu0 %v1036
        %1445 = vmatpush1.bf16.msra.mxu0 %v1035
        %1446 = vmatprep.subr.bf16.mxu0 %v1044
        %1447 = vmatpush1.bf16.msra.mxu0 %v1043
        %1448 = vmatprep.subr.bf16.mxu0 %v1052
        %1449 = vmatpush1.bf16.msra.mxu0 %v1051
        %1450 = vmatprep.subr.bf16.mxu0 %v1060
        %1451 = vmatpush1.bf16.msra.mxu0 %v1059
        %1452 = vmatprep.subr.bf16.mxu0 %v1068
        %1453 = vmatpush1.bf16.msra.mxu0 %v1067
        %1454 = vmatprep.subr.bf16.mxu0 %v1076
        %1455 = vmatpush1.bf16.msra.mxu0 %v1075
        %1456 = vmatprep.subr.bf16.mxu0 %v1084
        %1457 = vmatpush1.bf16.msra.mxu0 %v1083
        %1458 = vmatprep.subr.bf16.mxu0 %v1092
        %1459 = vmatpush1.bf16.msra.mxu0 %v1091
        %1460 = vmatprep.subr.bf16.mxu0 %v1100
        %1461 = vmatpush1.bf16.msra.mxu0 %v1099
        %1462 = vmatprep.subr.bf16.mxu0 %v1108
        %1463 = vmatpush1.bf16.msra.mxu0 %v1107
        %1464 = vmatprep.subr.bf16.mxu0 %v1116
        %1465 = vmatpush1.bf16.msra.mxu0 %v1115
        %1466 = vmatprep.subr.bf16.mxu0 %v1124
        %1467 = vmatpush1.bf16.msra.mxu0 %v1123
        %1468 = vmatprep.subr.bf16.mxu0 %v1132
        %1469 = vmatpush1.bf16.msra.mxu0 %v1131
        %1470 = vmatprep.subr.bf16.mxu0 %v1140
        %1471 = vmatpush1.bf16.msra.mxu0 %v1139
        %1472 = vmatprep.subr.bf16.mxu0 %v1148
        %1473 = vmatpush1.bf16.msra.mxu0 %v1147
        %1474 = vmatprep.subr.bf16.mxu0 %v1156
        %1475 = vmatpush1.bf16.msra.mxu0 %v1155
        %1476 = vmatprep.mubr.bf16.mxu0 %v638
        %1477 = vmatmul.mubr.bf16.gmra.mrb[0].mxu0 %v637
        %v1478 = vpop.f32.mrb[0].mxu0
        %v1479 = vadd.f32 0.0, %v1478
        %v1480 = vpop.f32.mrb[0].mxu0
        %v1481 = vadd.f32 0.0, %v1480
        %v1482 = vpop.f32.mrb[0].mxu0
        %v1483 = vadd.f32 0.0, %v1482
        %v1484 = vpop.f32.mrb[0].mxu0
        %v1485 = vadd.f32 0.0, %v1484
        %1486 = vmatprep.mubr.bf16.mxu0 %v640
        %1487 = vmatmul.mubr.bf16.gmra.mrb[0].mxu0 %v639
        %v1488 = vpop.f32.mrb[0].mxu0
        %v1489 = vadd.f32 0.0, %v1488
        %v1490 = vpop.f32.mrb[0].mxu0
        %v1491 = vadd.f32 0.0, %v1490
        %v1492 = vpop.f32.mrb[0].mxu0
        %v1493 = vadd.f32 0.0, %v1492
        %v1494 = vpop.f32.mrb[0].mxu0
        %v1495 = vadd.f32 0.0, %v1494
        %1496 = vdwg.mxu0
        %v1497 = vpack.c.bf16 %v1324, %v1320
        %v1498 = vpack.c.bf16 %v1326, %v1322
        %v1499 = vpack.c.bf16 %v1377, %v1373
        %v1500 = vpack.c.bf16 %v1379, %v1375
        %v1501 = vpack.c.bf16 %v1430, %v1426
        %v1502 = vpack.c.bf16 %v1432, %v1428
        %v1503 = vpack.c.bf16 %v1483, %v1479
        %v1504 = vpack.c.bf16 %v1485, %v1481
        %v1505 = vpack.c.bf16 %v1334, %v1330
        %v1506 = vpack.c.bf16 %v1336, %v1332
        %v1507 = vpack.c.bf16 %v1387, %v1383
        %v1508 = vpack.c.bf16 %v1389, %v1385
        %v1509 = vpack.c.bf16 %v1440, %v1436
        %v1510 = vpack.c.bf16 %v1442, %v1438
        %v1511 = vpack.c.bf16 %v1493, %v1489
        %v1512 = vpack.c.bf16 %v1495, %v1491
        %v1529 = vunpack.c.l.b16 %v1497
        %v1530 = vunpack.c.l.b16 %v1498
        %v1531 = vunpack.c.l.b16 %v1499
        %v1532 = vunpack.c.l.b16 %v1500
        %v1533 = vunpack.c.l.b16 %v1501
        %v1534 = vunpack.c.l.b16 %v1502
        %v1535 = vunpack.c.l.b16 %v1503
        %v1536 = vunpack.c.l.b16 %v1504
        %v1537 = vunpack.c.h.b16 %v1497
        %v1538 = vunpack.c.h.b16 %v1498
        %v1539 = vunpack.c.h.b16 %v1499
        %v1540 = vunpack.c.h.b16 %v1500
        %v1541 = vunpack.c.h.b16 %v1501
        %v1542 = vunpack.c.h.b16 %v1502
        %v1543 = vunpack.c.h.b16 %v1503
        %v1544 = vunpack.c.h.b16 %v1504
        %v1545 = vunpack.c.l.b16 %v1505
        %v1546 = vunpack.c.l.b16 %v1506
        %v1547 = vunpack.c.l.b16 %v1507
        %v1548 = vunpack.c.l.b16 %v1508
        %v1549 = vunpack.c.l.b16 %v1509
        %v1550 = vunpack.c.l.b16 %v1510
        %v1551 = vunpack.c.l.b16 %v1511
        %v1552 = vunpack.c.l.b16 %v1512
        %v1553 = vunpack.c.h.b16 %v1505
        %v1554 = vunpack.c.h.b16 %v1506
        %v1555 = vunpack.c.h.b16 %v1507
        %v1556 = vunpack.c.h.b16 %v1508
        %v1557 = vunpack.c.h.b16 %v1509
        %v1558 = vunpack.c.h.b16 %v1510
        %v1559 = vunpack.c.h.b16 %v1511
        %v1560 = vunpack.c.h.b16 %v1512
        %v1561 = vpack.c.b16 %v1530, %v1529
        %v1562 = vpack.c.b16 %v1532, %v1531
        %v1563 = vpack.c.b16 %v1534, %v1533
        %v1564 = vpack.c.b16 %v1536, %v1535
        %v1565 = vpack.c.b16 %v1538, %v1537
        %v1566 = vpack.c.b16 %v1540, %v1539
        %v1567 = vpack.c.b16 %v1542, %v1541
        %v1568 = vpack.c.b16 %v1544, %v1543
        %v1569 = vpack.c.b16 %v1546, %v1545
        %v1570 = vpack.c.b16 %v1548, %v1547
        %v1571 = vpack.c.b16 %v1550, %v1549
        %v1572 = vpack.c.b16 %v1552, %v1551
        %v1573 = vpack.c.b16 %v1554, %v1553
        %v1574 = vpack.c.b16 %v1556, %v1555
        %v1575 = vpack.c.b16 %v1558, %v1557
        %v1576 = vpack.c.b16 %v1560, %v1559
        %1593 = vst [vmem:[%s466] sm:$0xff] %v1561
        %1594 = vst [vmem:[%s466 + $0x8] sm:$0xff] %v1562
        %1595 = vst [vmem:[%s466 + $0x10] sm:$0xff] %v1563
        %1596 = vst [vmem:[%s466 + $0x18] sm:$0xff] %v1564
        %1597 = vst [vmem:[%s466 + $0x20] sm:$0xff] %v1565
        %1598 = vst [vmem:[%s466 + $0x28] sm:$0xff] %v1566
        %1599 = vst [vmem:[%s466 + $0x30] sm:$0xff] %v1567
        %1600 = vst [vmem:[%s466 + $0x38] sm:$0xff] %v1568
        %1601 = vst [vmem:[%s466 + $0x40] sm:$0xff] %v1569
        %1602 = vst [vmem:[%s466 + $0x48] sm:$0xff] %v1570
        %1603 = vst [vmem:[%s466 + $0x50] sm:$0xff] %v1571
        %1604 = vst [vmem:[%s466 + $0x58] sm:$0xff] %v1572
        %1605 = vst [vmem:[%s466 + $0x60] sm:$0xff] %v1573
        %1606 = vst [vmem:[%s466 + $0x68] sm:$0xff] %v1574
        %1607 = vst [vmem:[%s466 + $0x70] sm:$0xff] %v1575
        %1608 = vst [vmem:[%s466 + $0x78] sm:$0xff] %v1576
        %v1609 = vadd.f32 %v1320, %v1322
        %v1610 = vadd.f32 %v1609, %v1373
        %v1611 = vadd.f32 %v1610, %v1375
        %v1612 = vadd.f32 %v1611, %v1426
        %v1613 = vadd.f32 %v1612, %v1428
        %v1614 = vadd.f32 %v1613, %v1479
        %v1615 = vadd.f32 %v1614, %v1481
        %1616 = vadd.xlane.f32.xlu0 %v1615
        %v1617 = vpop.xlane.xlu0 %1616
        %v1618 = vadd.f32 %v1324, %v1326
        %v1619 = vadd.f32 %v1618, %v1377
        %v1620 = vadd.f32 %v1619, %v1379
        %v1621 = vadd.f32 %v1620, %v1430
        %v1622 = vadd.f32 %v1621, %v1432
        %v1623 = vadd.f32 %v1622, %v1483
        %v1624 = vadd.f32 %v1623, %v1485
        %1625 = vadd.xlane.f32.xlu0 %v1624
        %v1626 = vpop.xlane.xlu0 %1625
        %v1627 = vadd.f32 %v1330, %v1332
        %v1628 = vadd.f32 %v1627, %v1383
        %v1629 = vadd.f32 %v1628, %v1385
        %v1630 = vadd.f32 %v1629, %v1436
        %v1631 = vadd.f32 %v1630, %v1438
        %v1632 = vadd.f32 %v1631, %v1489
        %v1633 = vadd.f32 %v1632, %v1491
        %1634 = vadd.xlane.f32.xlu0 %v1633
        %v1635 = vpop.xlane.xlu0 %1634
        %v1636 = vadd.f32 %v1334, %v1336
        %v1637 = vadd.f32 %v1636, %v1387
        %v1638 = vadd.f32 %v1637, %v1389
        %v1639 = vadd.f32 %v1638, %v1440
        %v1640 = vadd.f32 %v1639, %v1442
        %v1641 = vadd.f32 %v1640, %v1493
        %v1642 = vadd.f32 %v1641, %v1495
        %1643 = vadd.xlane.f32.xlu0 %v1642
        %v1644 = vpop.xlane.xlu0 %1643
        %vm1645 = vcmask 7168
        %1646 = vst.msk [vmem:[%s487] sm:$0xff] %vm1645, %v1617
        %1647 = vst.msk [vmem:[%s487 + $0x8] sm:$0xff] %vm1645, %v1626
        %1648 = vst.msk [vmem:[%s487 + $0x10] sm:$0xff] %vm1645, %v1635
        %1649 = vst.msk [vmem:[%s487 + $0x18] sm:$0xff] %vm1645, %v1644
        %v1650 = vmul.f32 %v1320, %v1320
        %v1651 = vmul.f32 %v1322, %v1322
        %v1652 = vmul.f32 %v1373, %v1373
        %v1653 = vmul.f32 %v1375, %v1375
        %v1654 = vmul.f32 %v1426, %v1426
        %v1655 = vmul.f32 %v1428, %v1428
        %v1656 = vmul.f32 %v1479, %v1479
        %v1657 = vmul.f32 %v1481, %v1481
        %v1658 = vmul.f32 %v1324, %v1324
        %v1659 = vmul.f32 %v1326, %v1326
        %v1660 = vmul.f32 %v1377, %v1377
        %v1661 = vmul.f32 %v1379, %v1379
        %v1662 = vmul.f32 %v1430, %v1430
        %v1663 = vmul.f32 %v1432, %v1432
        %v1664 = vmul.f32 %v1483, %v1483
        %v1665 = vmul.f32 %v1485, %v1485
        %v1666 = vmul.f32 %v1330, %v1330
        %v1667 = vmul.f32 %v1332, %v1332
        %v1668 = vmul.f32 %v1383, %v1383
        %v1669 = vmul.f32 %v1385, %v1385
        %v1670 = vmul.f32 %v1436, %v1436
        %v1671 = vmul.f32 %v1438, %v1438
        %v1672 = vmul.f32 %v1489, %v1489
        %v1673 = vmul.f32 %v1491, %v1491
        %v1674 = vmul.f32 %v1334, %v1334
        %v1675 = vmul.f32 %v1336, %v1336
        %v1676 = vmul.f32 %v1387, %v1387
        %v1677 = vmul.f32 %v1389, %v1389
        %v1678 = vmul.f32 %v1440, %v1440
        %v1679 = vmul.f32 %v1442, %v1442
        %v1680 = vmul.f32 %v1493, %v1493
        %v1681 = vmul.f32 %v1495, %v1495
        %v1682 = vadd.f32 %v1650, %v1651
        %v1683 = vadd.f32 %v1682, %v1652
        %v1684 = vadd.f32 %v1683, %v1653
        %v1685 = vadd.f32 %v1684, %v1654
        %v1686 = vadd.f32 %v1685, %v1655
        %v1687 = vadd.f32 %v1686, %v1656
        %v1688 = vadd.f32 %v1687, %v1657
        %1689 = vadd.xlane.f32.xlu0 %v1688
        %v1690 = vpop.xlane.xlu0 %1689
        %v1691 = vadd.f32 %v1658, %v1659
        %v1692 = vadd.f32 %v1691, %v1660
        %v1693 = vadd.f32 %v1692, %v1661
        %v1694 = vadd.f32 %v1693, %v1662
        %v1695 = vadd.f32 %v1694, %v1663
        %v1696 = vadd.f32 %v1695, %v1664
        %v1697 = vadd.f32 %v1696, %v1665
        %1698 = vadd.xlane.f32.xlu0 %v1697
        %v1699 = vpop.xlane.xlu0 %1698
        %v1700 = vadd.f32 %v1666, %v1667
        %v1701 = vadd.f32 %v1700, %v1668
        %v1702 = vadd.f32 %v1701, %v1669
        %v1703 = vadd.f32 %v1702, %v1670
        %v1704 = vadd.f32 %v1703, %v1671
        %v1705 = vadd.f32 %v1704, %v1672
        %v1706 = vadd.f32 %v1705, %v1673
        %1707 = vadd.xlane.f32.xlu0 %v1706
        %v1708 = vpop.xlane.xlu0 %1707
        %v1709 = vadd.f32 %v1674, %v1675
        %v1710 = vadd.f32 %v1709, %v1676
        %v1711 = vadd.f32 %v1710, %v1677
        %v1712 = vadd.f32 %v1711, %v1678
        %v1713 = vadd.f32 %v1712, %v1679
        %v1714 = vadd.f32 %v1713, %v1680
        %v1715 = vadd.f32 %v1714, %v1681
        %1716 = vadd.xlane.f32.xlu0 %v1715
        %v1717 = vpop.xlane.xlu0 %1716
        %1718 = vst.msk [vmem:[%s492] sm:$0xff] %vm1645, %v1690
        %1719 = vst.msk [vmem:[%s492 + $0x8] sm:$0xff] %vm1645, %v1699
        %1720 = vst.msk [vmem:[%s492 + $0x10] sm:$0xff] %vm1645, %v1708
        %1721 = vst.msk [vmem:[%s492 + $0x18] sm:$0xff] %vm1645, %v1717
        %s1722 = sand.u32 %s71, 1
        %s1723 = sand.u32 %s71, 1
        %s1724 = smul.addr %s1723, 128
        %s1725 = scalar_lea.vmem [#allocation3], %s1724
        %p1726 = scmp.lt.s32.totalorder %s16, 1
        %s1727 = scalar_select %p1726, %s16, 1
        %s1728 = smul.addr %s1727, 4
        %s1729 = smul.addr %s1728, 8
        %s1730 = scalar_lea.vmem %s3, %s1729
        %p1731 = scmp.lt.s32.totalorder %s16, 1
        %s1732 = scalar_select %p1731, %s16, 1
        %s1733 = smul.addr %s1732, 4
        %s1734 = smul.addr %s1733, 8
        %s1735 = scalar_lea.vmem %s4, %s1734
        // Predicated region
        $region52: #{encoder_forward.6} parent=46 // pred_check
          %p1736 = pneg %p81
        $region53: #{encoder_forward.6} parent=46 // pred_check_branch
          %1738 = sbr.rel (%p1736) target = $region55
        $region54: #{encoder_forward.6} parent=46 // pred_region
          %s1739 = smul.u32 8, %s16
          %s1740 = smul.addr %s1739, 4
          %s1741 = scalar_lea.vmem %s2, %s1740
          // Predicated region
          $region56: #{encoder_forward.6} parent=54 // pred_check
            _
          $region57: #{encoder_forward.6} parent=54 // pred_check_branch
            %1743 = sbr.rel (0) target = $region59
          $region58: #{encoder_forward.6} parent=54 // pred_region
            // Predicated region
            $region60: #{encoder_forward.6} parent=58 // pred_check
              _
            $region61: #{encoder_forward.6} parent=58 // pred_check_branch
              %1745 = sbr.rel (0) target = $region63
            $region62: #{encoder_forward.6} parent=58 // pred_region
              loop: start=0, step=1, limit=1
              $region64: #{encoder_forward.6} parent=62 // loop_pre_header
                _
              $region65: #{encoder_forward.6} parent=62 // loop_header
                %s1747 = sphi 0, %s1751
                %p1748 = scmp.ge.s32.totalorder %s1747, 1
                %s1752 = sphi %s1725, %s1725
                %s1753 = sphi %s1741, %s1741
              $region66: #{encoder_forward.6} parent=62 // loop_header_branch
                %1750 = sbr.rel (%p1748) target = $region70
              $region67: #{encoder_forward.6} parent=62 // loop_body
                %v1754 = vld [vmem:[%s1752] sm:$0xff]
                %1755 = vst [vmem:[%s1753] sm:$0xff] %v1754
                %v1756 = vld [vmem:[%s1752 + $0x8] sm:$0xff]
                %1757 = vst [vmem:[%s1753 + $0x8] sm:$0xff] %v1756
                %v1758 = vld [vmem:[%s1752 + $0x10] sm:$0xff]
                %1759 = vst [vmem:[%s1753 + $0x10] sm:$0xff] %v1758
                %v1760 = vld [vmem:[%s1752 + $0x18] sm:$0xff]
                %1761 = vst [vmem:[%s1753 + $0x18] sm:$0xff] %v1760
                %v1762 = vld [vmem:[%s1752 + $0x20] sm:$0xff]
                %1763 = vst [vmem:[%s1753 + $0x40] sm:$0xff] %v1762
                %v1764 = vld [vmem:[%s1752 + $0x28] sm:$0xff]
                %1765 = vst [vmem:[%s1753 + $0x48] sm:$0xff] %v1764
                %v1766 = vld [vmem:[%s1752 + $0x30] sm:$0xff]
                %1767 = vst [vmem:[%s1753 + $0x50] sm:$0xff] %v1766
                %v1768 = vld [vmem:[%s1752 + $0x38] sm:$0xff]
                %1769 = vst [vmem:[%s1753 + $0x58] sm:$0xff] %v1768
                %v1770 = vld [vmem:[%s1752 + $0x40] sm:$0xff]
                %1771 = vst [vmem:[%s1753 + $0x80] sm:$0xff] %v1770
                %v1772 = vld [vmem:[%s1752 + $0x48] sm:$0xff]
                %1773 = vst [vmem:[%s1753 + $0x88] sm:$0xff] %v1772
                %v1774 = vld [vmem:[%s1752 + $0x50] sm:$0xff]
                %1775 = vst [vmem:[%s1753 + $0x90] sm:$0xff] %v1774
                %v1776 = vld [vmem:[%s1752 + $0x58] sm:$0xff]
                %1777 = vst [vmem:[%s1753 + $0x98] sm:$0xff] %v1776
                %v1778 = vld [vmem:[%s1752 + $0x60] sm:$0xff]
                %1779 = vst [vmem:[%s1753 + $0xc0] sm:$0xff] %v1778
                %v1780 = vld [vmem:[%s1752 + $0x68] sm:$0xff]
                %1781 = vst [vmem:[%s1753 + $0xc8] sm:$0xff] %v1780
                %v1782 = vld [vmem:[%s1752 + $0x70] sm:$0xff]
                %1783 = vst [vmem:[%s1753 + $0xd0] sm:$0xff] %v1782
                %v1784 = vld [vmem:[%s1752 + $0x78] sm:$0xff]
                %1785 = vst [vmem:[%s1753 + $0xd8] sm:$0xff] %v1784
              $region68: #{encoder_forward.6} parent=62 // loop_footer
                %s1751 = sadd.s32 1, %s1747
              $region69: #{encoder_forward.6} parent=62 // loop_footer_branch
                %1746 = sbr.rel target = $region65
              $region70: #{encoder_forward.6} parent=62 // loop_exit
                _
            $region63: #{encoder_forward.6} parent=58 // pred_fallthru
              _
            // Predicated region
            $region71: #{encoder_forward.6} parent=58 // pred_check
              _
            $region72: #{encoder_forward.6} parent=58 // pred_check_branch
              %1787 = sbr.rel target = $region74
            $region73: #{encoder_forward.6} parent=58 // pred_region
              _
            $region74: #{encoder_forward.6} parent=58 // pred_fallthru
              _
          $region59: #{encoder_forward.6} parent=54 // pred_fallthru
            _
          %1788 = vnop
        $region55: #{encoder_forward.6} parent=46 // pred_fallthru
          _
        // Predicated region
        $region75: #{encoder_forward.6} parent=46 // pred_check
          %p1789 = pneg %p107
        $region76: #{encoder_forward.6} parent=46 // pred_check_branch
          %1791 = sbr.rel (%p1789) target = $region78
        $region77: #{encoder_forward.6} parent=46 // pred_region
          _
        $region78: #{encoder_forward.6} parent=46 // pred_fallthru
          _
        // Predicated region
        $region79: #{encoder_forward.6} parent=46 // pred_check
          %p1792 = pneg %p133
        $region80: #{encoder_forward.6} parent=46 // pred_check_branch
          %1794 = sbr.rel (%p1792) target = $region82
        $region81: #{encoder_forward.6} parent=46 // pred_region
          _
        $region82: #{encoder_forward.6} parent=46 // pred_fallthru
          _
      $region47: #{encoder_forward.6} parent=5 // pred_fallthru
        _
      %p1795 = scmp.le.s32.totalorder 2, %s11
      // Predicated region
      $region83: #{encoder_forward.6} parent=5 // pred_check
        %p1796 = pneg %p1795
      $region84: #{encoder_forward.6} parent=5 // pred_check_branch
        %1798 = sbr.rel (%p1796) target = $region86
      $region85: #{encoder_forward.6} parent=5 // pred_region
        %s1799 = ssub.s32 %s11, 2
        // Predicated region
        $region87: #{encoder_forward.6} parent=85 // pred_check
          %p1800 = pneg %p87
        $region88: #{encoder_forward.6} parent=85 // pred_check_branch
          %1802 = sbr.rel (%p1800) target = $region90
        $region89: #{encoder_forward.6} parent=85 // pred_region
          %s1803 = sand.u32 %s72, 1
          %s1804 = sand.u32 %s72, 1
          %s1805 = smul.addr %s1804, 128
          %s1806 = scalar_lea.vmem [#allocation3], %s1805
        $region90: #{encoder_forward.6} parent=85 // pred_fallthru
          _
        // Predicated region
        $region91: #{encoder_forward.6} parent=85 // pred_check
          %p1807 = pneg %p113
        $region92: #{encoder_forward.6} parent=85 // pred_check_branch
          %1809 = sbr.rel (%p1807) target = $region94
        $region93: #{encoder_forward.6} parent=85 // pred_region
          %p1810 = scmp.lt.s32.totalorder %s17, 1
          %s1811 = scalar_select %p1810, %s17, 1
          %s1812 = smul.addr %s1811, 4
          %s1813 = smul.addr %s1812, 8
          %s1814 = scalar_lea.vmem %s3, %s1813
        $region94: #{encoder_forward.6} parent=85 // pred_fallthru
          _
        // Predicated region
        $region95: #{encoder_forward.6} parent=85 // pred_check
          %p1815 = pneg %p139
        $region96: #{encoder_forward.6} parent=85 // pred_check_branch
          %1817 = sbr.rel (%p1815) target = $region98
        $region97: #{encoder_forward.6} parent=85 // pred_region
          %p1818 = scmp.lt.s32.totalorder %s17, 1
          %s1819 = scalar_select %p1818, %s17, 1
          %s1820 = smul.addr %s1819, 4
          %s1821 = smul.addr %s1820, 8
          %s1822 = scalar_lea.vmem %s4, %s1821
        $region98: #{encoder_forward.6} parent=85 // pred_fallthru
          _
      $region86: #{encoder_forward.6} parent=5 // pred_fallthru
        _
    $region6: #{encoder_forward.6} parent=1 // loop_footer
      %s15 = sadd.s32 1, %s11
    $region7: #{encoder_forward.6} parent=1 // loop_footer_branch
      %10 = sbr.rel target = $region3
    $region8: #{encoder_forward.6} parent=1 // loop_exit
      _

// kernel: encoder_forward.7
$region0: #{encoder_forward.7}
  #allocation0 [shape = 'u32[]', space=smem, size = 0x4, offset = 0x4, fixed_abs, tag = 'smem constant byte address 0x4 - core index']
  #allocation1 [shape = 'u32[144,128]{1,0:T(1,128)}', space=vmem, size = 0x12000, scoped, tag = 'internal scratch']
  %s0 = inlined_call_operand.vmem [shape: bf16[64,512], index: 0, kind: input, shape index: {}]
  %s1 = inlined_call_operand.vmem [shape: bf16[512,512], index: 1, kind: input, shape index: {}]
  %s2 = inlined_call_operand.vmem [shape: bf16[64,512], index: 2, kind: output, shape index: {0}]
  %s3 = inlined_call_operand.vmem [shape: f32[2,64,1], index: 3, kind: output, shape index: {1}]
  %s4 = inlined_call_operand.vmem [shape: f32[2,64,1], index: 4, kind: output, shape index: {2}]
  %5 = xla_tuple %s2, %s3, %s4
  %s6 = sld [smem:[#allocation0]]
  $region129: #{encoder_forward.7} parent=0
    _
  %s8 = ssub.s32 1, %s6
  %s9 = scalar_select 0, %s8, %s6
  $region1: #{encoder_forward.7} parent=0
    #allocation2 [shape = 'u8[524288]{0}', space=vmem, size = 0x80000, scoped, tag = 'input window, operand 1']
    #allocation3 [shape = 'u8[65536]{0}', space=vmem, size = 0x10000, scoped, tag = 'output window, operand 0']
    loop: start=0, step=1, limit=4
    $region2: #{encoder_forward.7} parent=1 // loop_pre_header
      _
    $region3: #{encoder_forward.7} parent=1 // loop_header
      %s11 = sphi 0, %s15
      %p12 = scmp.ge.s32.totalorder %s11, 4
      %s19 = sphi 0, %s19
      %s21 = sphi 0, %s19
      %s22 = sphi 0, %s21
      %s36 = sphi 0, %s22
      %s42 = sphi 0, %s44
      %s45 = sphi 0, %s42
      %s46 = sphi 0, %s45
      %s62 = sphi 0, %s46
      %s68 = sphi 0, %s70
      %s71 = sphi 0, %s68
      %s72 = sphi 0, %s71
      %s88 = sphi 0, %s72
      %s94 = sphi 0, %s96
      %s97 = sphi 0, %s94
      %s98 = sphi 0, %s97
      %s114 = sphi 0, %s98
      %s120 = sphi 0, %s122
      %s123 = sphi 0, %s120
      %s124 = sphi 0, %s123
      %s140 = sphi 0, %s124
    $region4: #{encoder_forward.7} parent=1 // loop_header_branch
      %14 = sbr.rel (%p12) target = $region8
    $region5: #{encoder_forward.7} parent=1 // loop_body
      %s16 = ssub.s32 %s11, 1
      %s17 = ssub.s32 %s11, 2
      %s18 = sadd.s32 %s11, 1
      %s20 = sadd.s32 %s19, 1
      %p23 = scmp.eq.s32.totalorder %s11, 1
      %p24 = scmp.ne.s32.totalorder %s19, %s21
      %p25 = scmp.eq.s32.totalorder %s11, 0
      %p26 = por %p24, %p25
      %p27 = scmp.ne.s32.totalorder %s19, %s21
      %p28 = scmp.eq.s32.totalorder %s16, 1
      %p29 = por %p27, %p28
      %p30 = scmp.ne.s32.totalorder %s21, %s22
      %p31 = scmp.eq.s32.totalorder %s16, 0
      %p32 = por %p30, %p31
      %p33 = scmp.ne.s32.totalorder %s21, %s22
      %p34 = scmp.eq.s32.totalorder %s17, 1
      %p35 = por %p33, %p34
      %p37 = scmp.ne.s32.totalorder %s22, %s36
      %p38 = scmp.eq.s32.totalorder %s17, 0
      %p39 = por %p37, %p38
      %s40 = ssub.s32 %s11, %s18
      %p41 = scmp.eq.s32.totalorder %s40, 0
      %s43 = sadd.s32 %s42, 1
      %s44 = scalar_select %p41, %s42, %s43
      %p47 = pneg %p41
      %p48 = scmp.eq.s32.totalorder %s11, 1
      %p49 = por %p47, %p48
      %p50 = scmp.ne.s32.totalorder %s42, %s45
      %p51 = scmp.eq.s32.totalorder %s11, 0
      %p52 = por %p50, %p51
      %p53 = scmp.ne.s32.totalorder %s42, %s45
      %p54 = scmp.eq.s32.totalorder %s16, 1
      %p55 = por %p53, %p54
      %p56 = scmp.ne.s32.totalorder %s45, %s46
      %p57 = scmp.eq.s32.totalorder %s16, 0
      %p58 = por %p56, %p57
      %p59 = scmp.ne.s32.totalorder %s45, %s46
      %p60 = scmp.eq.s32.totalorder %s17, 1
      %p61 = por %p59, %p60
      %p63 = scmp.ne.s32.totalorder %s46, %s62
      %p64 = scmp.eq.s32.totalorder %s17, 0
      %p65 = por %p63, %p64
      %s66 = ssub.s32 %s11, %s18
      %p67 = scmp.eq.s32.totalorder %s66, 0
      %s69 = sadd.s32 %s68, 1
      %s70 = scalar_select %p67, %s68, %s69
      %p73 = pneg %p67
      %p74 = scmp.eq.s32.totalorder %s11, 1
      %p75 = por %p73, %p74
      %p76 = scmp.ne.s32.totalorder %s68, %s71
      %p77 = scmp.eq.s32.totalorder %s11, 0
      %p78 = por %p76, %p77
      %p79 = scmp.ne.s32.totalorder %s68, %s71
      %p80 = scmp.eq.s32.totalorder %s16, 1
      %p81 = por %p79, %p80
      %p82 = scmp.ne.s32.totalorder %s71, %s72
      %p83 = scmp.eq.s32.totalorder %s16, 0
      %p84 = por %p82, %p83
      %p85 = scmp.ne.s32.totalorder %s71, %s72
      %p86 = scmp.eq.s32.totalorder %s17, 1
      %p87 = por %p85, %p86
      %p89 = scmp.ne.s32.totalorder %s72, %s88
      %p90 = scmp.eq.s32.totalorder %s17, 0
      %p91 = por %p89, %p90
      %s92 = ssub.s32 %s11, %s18
      %p93 = scmp.eq.s32.totalorder %s92, 0
      %s95 = sadd.s32 %s94, 1
      %s96 = scalar_select %p93, %s94, %s95
      %p99 = pneg %p93
      %p100 = scmp.eq.s32.totalorder %s11, 1
      %p101 = por %p99, %p100
      %p102 = scmp.ne.s32.totalorder %s94, %s97
      %p103 = scmp.eq.s32.totalorder %s11, 0
      %p104 = por %p102, %p103
      %p105 = scmp.ne.s32.totalorder %s94, %s97
      %p106 = scmp.eq.s32.totalorder %s16, 1
      %p107 = por %p105, %p106
      %p108 = scmp.ne.s32.totalorder %s97, %s98
      %p109 = scmp.eq.s32.totalorder %s16, 0
      %p110 = por %p108, %p109
      %p111 = scmp.ne.s32.totalorder %s97, %s98
      %p112 = scmp.eq.s32.totalorder %s17, 1
      %p113 = por %p111, %p112
      %p115 = scmp.ne.s32.totalorder %s98, %s114
      %p116 = scmp.eq.s32.totalorder %s17, 0
      %p117 = por %p115, %p116
      %s118 = ssub.s32 %s11, %s18
      %p119 = scmp.eq.s32.totalorder %s118, 0
      %s121 = sadd.s32 %s120, 1
      %s122 = scalar_select %p119, %s120, %s121
      %p125 = pneg %p119
      %p126 = scmp.eq.s32.totalorder %s11, 1
      %p127 = por %p125, %p126
      %p128 = scmp.ne.s32.totalorder %s120, %s123
      %p129 = scmp.eq.s32.totalorder %s11, 0
      %p130 = por %p128, %p129
      %p131 = scmp.ne.s32.totalorder %s120, %s123
      %p132 = scmp.eq.s32.totalorder %s16, 1
      %p133 = por %p131, %p132
      %p134 = scmp.ne.s32.totalorder %s123, %s124
      %p135 = scmp.eq.s32.totalorder %s16, 0
      %p136 = por %p134, %p135
      %p137 = scmp.ne.s32.totalorder %s123, %s124
      %p138 = scmp.eq.s32.totalorder %s17, 1
      %p139 = por %p137, %p138
      %p141 = scmp.ne.s32.totalorder %s124, %s140
      %p142 = scmp.eq.s32.totalorder %s17, 0
      %p143 = por %p141, %p142
      %p144 = scmp.le.s32.totalorder 1, %s11
      %p145 = scmp.lt.s32.totalorder %s11, 3
      %p146 = pnand %p144, %p145
      %p147 = pneg %p146
      // Predicated region
      $region9: #{encoder_forward.7} parent=5 // pred_check
        _
      $region10: #{encoder_forward.7} parent=5 // pred_check_branch
        %149 = sbr.rel (%p146) target = $region12
      $region11: #{encoder_forward.7} parent=5 // pred_region
        %s150 = ssub.s32 %s11, 1
        // Predicated region
        $region13: #{encoder_forward.7} parent=11 // pred_check
          %p151 = pneg %p32
        $region14: #{encoder_forward.7} parent=11 // pred_check_branch
          %153 = sbr.rel (%p151) target = $region16
        $region15: #{encoder_forward.7} parent=11 // pred_region
          _
        $region16: #{encoder_forward.7} parent=11 // pred_fallthru
          _
      $region12: #{encoder_forward.7} parent=5 // pred_fallthru
        _
      %p154 = scmp.lt.s32.totalorder %s11, 2
      // Predicated region
      $region17: #{encoder_forward.7} parent=5 // pred_check
        %p155 = pneg %p154
      $region18: #{encoder_forward.7} parent=5 // pred_check_branch
        %157 = sbr.rel (%p155) target = $region20
      $region19: #{encoder_forward.7} parent=5 // pred_region
        // Predicated region
        $region21: #{encoder_forward.7} parent=19 // pred_check
          %p158 = pneg %p52
        $region22: #{encoder_forward.7} parent=19 // pred_check_branch
          %160 = sbr.rel (%p158) target = $region24
        $region23: #{encoder_forward.7} parent=19 // pred_region
          %s161 = sand.u32 %s42, 1
          %s162 = sand.u32 %s42, 1
          %s163 = smul.addr %s162, 512
          %s164 = scalar_lea.vmem [#allocation2], %s163
          %s165 = smul.u32 2, %s11
          %s166 = smul.addr %s165, 4
          %s167 = scalar_lea.vmem %s1, %s166
          // Predicated region
          $region25: #{encoder_forward.7} parent=23 // pred_check
            _
          $region26: #{encoder_forward.7} parent=23 // pred_check_branch
            %169 = sbr.rel (0) target = $region28
          $region27: #{encoder_forward.7} parent=23 // pred_region
            // Predicated region
            $region29: #{encoder_forward.7} parent=27 // pred_check
              _
            $region30: #{encoder_forward.7} parent=27 // pred_check_branch
              %171 = sbr.rel (0) target = $region32
            $region31: #{encoder_forward.7} parent=27 // pred_region
              // Predicated region
              $region44: #{encoder_forward.7} parent=31 // pred_check
                _
              $region45: #{encoder_forward.7} parent=31 // pred_check_branch
                %312 = sbr.rel (0) target = $region47
              $region46: #{encoder_forward.7} parent=31 // pred_region
                loop: start=0, step=1, limit=1
                $region48: #{encoder_forward.7} parent=46 // loop_pre_header
                  _
                $region49: #{encoder_forward.7} parent=46 // loop_header
                  %s314 = sphi 0, %s318
                  %p315 = scmp.ge.s32.totalorder %s314, 1
                  %s319 = sphi %s167, %s167
                  %s320 = sphi %s164, %s164
                $region50: #{encoder_forward.7} parent=46 // loop_header_branch
                  %317 = sbr.rel (%p315) target = $region54
                $region51: #{encoder_forward.7} parent=46 // loop_body
                  %v321 = vld [vmem:[%s319] sm:$0xff]
                  %322 = vst [vmem:[%s320] sm:$0xff] %v321
                  %v323 = vld [vmem:[%s319 + $0x10] sm:$0xff]
                  %324 = vst [vmem:[%s320 + $0x8] sm:$0xff] %v323
                  %v325 = vld [vmem:[%s319 + $0x20] sm:$0xff]
                  %326 = vst [vmem:[%s320 + $0x10] sm:$0xff] %v325
                  %v327 = vld [vmem:[%s319 + $0x30] sm:$0xff]
                  %328 = vst [vmem:[%s320 + $0x18] sm:$0xff] %v327
                  %v329 = vld [vmem:[%s319 + $0x40] sm:$0xff]
                  %330 = vst [vmem:[%s320 + $0x20] sm:$0xff] %v329
                  %v331 = vld [vmem:[%s319 + $0x50] sm:$0xff]
                  %332 = vst [vmem:[%s320 + $0x28] sm:$0xff] %v331
                  %v333 = vld [vmem:[%s319 + $0x60] sm:$0xff]
                  %334 = vst [vmem:[%s320 + $0x30] sm:$0xff] %v333
                  %v335 = vld [vmem:[%s319 + $0x70] sm:$0xff]
                  %336 = vst [vmem:[%s320 + $0x38] sm:$0xff] %v335
                  %v337 = vld [vmem:[%s319 + $0x80] sm:$0xff]
                  %338 = vst [vmem:[%s320 + $0x40] sm:$0xff] %v337
                  %v339 = vld [vmem:[%s319 + $0x90] sm:$0xff]
                  %340 = vst [vmem:[%s320 + $0x48] sm:$0xff] %v339
                  %v341 = vld [vmem:[%s319 + $0xa0] sm:$0xff]
                  %342 = vst [vmem:[%s320 + $0x50] sm:$0xff] %v341
                  %v343 = vld [vmem:[%s319 + $0xb0] sm:$0xff]
                  %344 = vst [vmem:[%s320 + $0x58] sm:$0xff] %v343
                  %v345 = vld [vmem:[%s319 + $0xc0] sm:$0xff]
                  %346 = vst [vmem:[%s320 + $0x60] sm:$0xff] %v345
                  %v347 = vld [vmem:[%s319 + $0xd0] sm:$0xff]
                  %348 = vst [vmem:[%s320 + $0x68] sm:$0xff] %v347
                  %v349 = vld [vmem:[%s319 + $0xe0] sm:$0xff]
                  %350 = vst [vmem:[%s320 + $0x70] sm:$0xff] %v349
                  %v351 = vld [vmem:[%s319 + $0xf0] sm:$0xff]
                  %352 = vst [vmem:[%s320 + $0x78] sm:$0xff] %v351
                  %v353 = vld [vmem:[%s319 + $0x100] sm:$0xff]
                  %354 = vst [vmem:[%s320 + $0x80] sm:$0xff] %v353
                  %v355 = vld [vmem:[%s319 + $0x110] sm:$0xff]
                  %356 = vst [vmem:[%s320 + $0x88] sm:$0xff] %v355
                  %v357 = vld [vmem:[%s319 + $0x120] sm:$0xff]
                  %358 = vst [vmem:[%s320 + $0x90] sm:$0xff] %v357
                  %v359 = vld [vmem:[%s319 + $0x130] sm:$0xff]
                  %360 = vst [vmem:[%s320 + $0x98] sm:$0xff] %v359
                  %v361 = vld [vmem:[%s319 + $0x140] sm:$0xff]
                  %362 = vst [vmem:[%s320 + $0xa0] sm:$0xff] %v361
                  %v363 = vld [vmem:[%s319 + $0x150] sm:$0xff]
                  %364 = vst [vmem:[%s320 + $0xa8] sm:$0xff] %v363
                  %v365 = vld [vmem:[%s319 + $0x160] sm:$0xff]
                  %366 = vst [vmem:[%s320 + $0xb0] sm:$0xff] %v365
                  %v367 = vld [vmem:[%s319 + $0x170] sm:$0xff]
                  %368 = vst [vmem:[%s320 + $0xb8] sm:$0xff] %v367
                  %v369 = vld [vmem:[%s319 + $0x180] sm:$0xff]
                  %370 = vst [vmem:[%s320 + $0xc0] sm:$0xff] %v369
                  %v371 = vld [vmem:[%s319 + $0x190] sm:$0xff]
                  %372 = vst [vmem:[%s320 + $0xc8] sm:$0xff] %v371
                  %v373 = vld [vmem:[%s319 + $0x1a0] sm:$0xff]
                  %374 = vst [vmem:[%s320 + $0xd0] sm:$0xff] %v373
                  %v375 = vld [vmem:[%s319 + $0x1b0] sm:$0xff]
                  %376 = vst [vmem:[%s320 + $0xd8] sm:$0xff] %v375
                  %v377 = vld [vmem:[%s319 + $0x1c0] sm:$0xff]
                  %378 = vst [vmem:[%s320 + $0xe0] sm:$0xff] %v377
                  %v379 = vld [vmem:[%s319 + $0x1d0] sm:$0xff]
                  %380 = vst [vmem:[%s320 + $0xe8] sm:$0xff] %v379
                  %v381 = vld [vmem:[%s319 + $0x1e0] sm:$0xff]
                  %382 = vst [vmem:[%s320 + $0xf0] sm:$0xff] %v381
                  %v383 = vld [vmem:[%s319 + $0x1f0] sm:$0xff]
                  %384 = vst [vmem:[%s320 + $0xf8] sm:$0xff] %v383
                  %v385 = vld [vmem:[%s319 + $0x200] sm:$0xff]
                  %386 = vst [vmem:[%s320 + $0x100] sm:$0xff] %v385
                  %v387 = vld [vmem:[%s319 + $0x210] sm:$0xff]
                  %388 = vst [vmem:[%s320 + $0x108] sm:$0xff] %v387
                  %v389 = vld [vmem:[%s319 + $0x220] sm:$0xff]
                  %390 = vst [vmem:[%s320 + $0x110] sm:$0xff] %v389
                  %v391 = vld [vmem:[%s319 + $0x230] sm:$0xff]
                  %392 = vst [vmem:[%s320 + $0x118] sm:$0xff] %v391
                  %v393 = vld [vmem:[%s319 + $0x240] sm:$0xff]
                  %394 = vst [vmem:[%s320 + $0x120] sm:$0xff] %v393
                  %v395 = vld [vmem:[%s319 + $0x250] sm:$0xff]
                  %396 = vst [vmem:[%s320 + $0x128] sm:$0xff] %v395
                  %v397 = vld [vmem:[%s319 + $0x260] sm:$0xff]
                  %398 = vst [vmem:[%s320 + $0x130] sm:$0xff] %v397
                  %v399 = vld [vmem:[%s319 + $0x270] sm:$0xff]
                  %400 = vst [vmem:[%s320 + $0x138] sm:$0xff] %v399
                  %v401 = vld [vmem:[%s319 + $0x280] sm:$0xff]
                  %402 = vst [vmem:[%s320 + $0x140] sm:$0xff] %v401
                  %v403 = vld [vmem:[%s319 + $0x290] sm:$0xff]
                  %404 = vst [vmem:[%s320 + $0x148] sm:$0xff] %v403
                  %v405 = vld [vmem:[%s319 + $0x2a0] sm:$0xff]
                  %406 = vst [vmem:[%s320 + $0x150] sm:$0xff] %v405
                  %v407 = vld [vmem:[%s319 + $0x2b0] sm:$0xff]
                  %408 = vst [vmem:[%s320 + $0x158] sm:$0xff] %v407
                  %v409 = vld [vmem:[%s319 + $0x2c0] sm:$0xff]
                  %410 = vst [vmem:[%s320 + $0x160] sm:$0xff] %v409
                  %v411 = vld [vmem:[%s319 + $0x2d0] sm:$0xff]
                  %412 = vst [vmem:[%s320 + $0x168] sm:$0xff] %v411
                  %v413 = vld [vmem:[%s319 + $0x2e0] sm:$0xff]
                  %414 = vst [vmem:[%s320 + $0x170] sm:$0xff] %v413
                  %v415 = vld [vmem:[%s319 + $0x2f0] sm:$0xff]
                  %416 = vst [vmem:[%s320 + $0x178] sm:$0xff] %v415
                  %v417 = vld [vmem:[%s319 + $0x300] sm:$0xff]
                  %418 = vst [vmem:[%s320 + $0x180] sm:$0xff] %v417
                  %v419 = vld [vmem:[%s319 + $0x310] sm:$0xff]
                  %420 = vst [vmem:[%s320 + $0x188] sm:$0xff] %v419
                  %v421 = vld [vmem:[%s319 + $0x320] sm:$0xff]
                  %422 = vst [vmem:[%s320 + $0x190] sm:$0xff] %v421
                  %v423 = vld [vmem:[%s319 + $0x330] sm:$0xff]
                  %424 = vst [vmem:[%s320 + $0x198] sm:$0xff] %v423
                  %v425 = vld [vmem:[%s319 + $0x340] sm:$0xff]
                  %426 = vst [vmem:[%s320 + $0x1a0] sm:$0xff] %v425
                  %v427 = vld [vmem:[%s319 + $0x350] sm:$0xff]
                  %428 = vst [vmem:[%s320 + $0x1a8] sm:$0xff] %v427
                  %v429 = vld [vmem:[%s319 + $0x360] sm:$0xff]
                  %430 = vst [vmem:[%s320 + $0x1b0] sm:$0xff] %v429
                  %v431 = vld [vmem:[%s319 + $0x370] sm:$0xff]
                  %432 = vst [vmem:[%s320 + $0x1b8] sm:$0xff] %v431
                  %v433 = vld [vmem:[%s319 + $0x380] sm:$0xff]
                  %434 = vst [vmem:[%s320 + $0x1c0] sm:$0xff] %v433
                  %v435 = vld [vmem:[%s319 + $0x390] sm:$0xff]
                  %436 = vst [vmem:[%s320 + $0x1c8] sm:$0xff] %v435
                  %v437 = vld [vmem:[%s319 + $0x3a0] sm:$0xff]
                  %438 = vst [vmem:[%s320 + $0x1d0] sm:$0xff] %v437
                  %v439 = vld [vmem:[%s319 + $0x3b0] sm:$0xff]
                  %440 = vst [vmem:[%s320 + $0x1d8] sm:$0xff] %v439
                  %v441 = vld [vmem:[%s319 + $0x3c0] sm:$0xff]
                  %442 = vst [vmem:[%s320 + $0x1e0] sm:$0xff] %v441
                  %v443 = vld [vmem:[%s319 + $0x3d0] sm:$0xff]
                  %444 = vst [vmem:[%s320 + $0x1e8] sm:$0xff] %v443
                  %v445 = vld [vmem:[%s319 + $0x3e0] sm:$0xff]
                  %446 = vst [vmem:[%s320 + $0x1f0] sm:$0xff] %v445
                  %v447 = vld [vmem:[%s319 + $0x3f0] sm:$0xff]
                  %448 = vst [vmem:[%s320 + $0x1f8] sm:$0xff] %v447
                $region52: #{encoder_forward.7} parent=46 // loop_footer
                  %s318 = sadd.s32 1, %s314
                $region53: #{encoder_forward.7} parent=46 // loop_footer_branch
                  %313 = sbr.rel target = $region49
                $region54: #{encoder_forward.7} parent=46 // loop_exit
                  _
              $region47: #{encoder_forward.7} parent=31 // pred_fallthru
                _
              // Predicated region
              $region55: #{encoder_forward.7} parent=31 // pred_check
                _
              $region56: #{encoder_forward.7} parent=31 // pred_check_branch
                %450 = sbr.rel target = $region58
              $region57: #{encoder_forward.7} parent=31 // pred_region
                _
              $region58: #{encoder_forward.7} parent=31 // pred_fallthru
                _
            $region32: #{encoder_forward.7} parent=27 // pred_fallthru
              _
            // Predicated region
            $region33: #{encoder_forward.7} parent=27 // pred_check
              _
            $region34: #{encoder_forward.7} parent=27 // pred_check_branch
              %173 = sbr.rel target = $region36
            $region35: #{encoder_forward.7} parent=27 // pred_region
              loop: start=0, step=1, limit=1
              $region37: #{encoder_forward.7} parent=35 // loop_pre_header
                _
              $region38: #{encoder_forward.7} parent=35 // loop_header
                %s176 = sphi 0, %s180
                %p177 = scmp.ge.s32.totalorder %s176, 1
                %s181 = sphi %s167, %s167
                %s182 = sphi %s164, %s164
              $region39: #{encoder_forward.7} parent=35 // loop_header_branch
                %179 = sbr.rel (%p177) target = $region43
              $region40: #{encoder_forward.7} parent=35 // loop_body
                %v183 = vld [vmem:[%s181] sm:$0xff]
                %184 = vst [vmem:[%s182] sm:$0xff] %v183
                %v185 = vld [vmem:[%s181 + $0x10] sm:$0xff]
                %186 = vst [vmem:[%s182 + $0x8] sm:$0xff] %v185
                %v187 = vld [vmem:[%s181 + $0x20] sm:$0xff]
                %188 = vst [vmem:[%s182 + $0x10] sm:$0xff] %v187
                %v189 = vld [vmem:[%s181 + $0x30] sm:$0xff]
                %190 = vst [vmem:[%s182 + $0x18] sm:$0xff] %v189
                %v191 = vld [vmem:[%s181 + $0x40] sm:$0xff]
                %192 = vst [vmem:[%s182 + $0x20] sm:$0xff] %v191
                %v193 = vld [vmem:[%s181 + $0x50] sm:$0xff]
                %194 = vst [vmem:[%s182 + $0x28] sm:$0xff] %v193
                %v195 = vld [vmem:[%s181 + $0x60] sm:$0xff]
                %196 = vst [vmem:[%s182 + $0x30] sm:$0xff] %v195
                %v197 = vld [vmem:[%s181 + $0x70] sm:$0xff]
                %198 = vst [vmem:[%s182 + $0x38] sm:$0xff] %v197
                %v199 = vld [vmem:[%s181 + $0x80] sm:$0xff]
                %200 = vst [vmem:[%s182 + $0x40] sm:$0xff] %v199
                %v201 = vld [vmem:[%s181 + $0x90] sm:$0xff]
                %202 = vst [vmem:[%s182 + $0x48] sm:$0xff] %v201
                %v203 = vld [vmem:[%s181 + $0xa0] sm:$0xff]
                %204 = vst [vmem:[%s182 + $0x50] sm:$0xff] %v203
                %v205 = vld [vmem:[%s181 + $0xb0] sm:$0xff]
                %206 = vst [vmem:[%s182 + $0x58] sm:$0xff] %v205
                %v207 = vld [vmem:[%s181 + $0xc0] sm:$0xff]
                %208 = vst [vmem:[%s182 + $0x60] sm:$0xff] %v207
                %v209 = vld [vmem:[%s181 + $0xd0] sm:$0xff]
                %210 = vst [vmem:[%s182 + $0x68] sm:$0xff] %v209
                %v211 = vld [vmem:[%s181 + $0xe0] sm:$0xff]
                %212 = vst [vmem:[%s182 + $0x70] sm:$0xff] %v211
                %v213 = vld [vmem:[%s181 + $0xf0] sm:$0xff]
                %214 = vst [vmem:[%s182 + $0x78] sm:$0xff] %v213
                %v215 = vld [vmem:[%s181 + $0x100] sm:$0xff]
                %216 = vst [vmem:[%s182 + $0x80] sm:$0xff] %v215
                %v217 = vld [vmem:[%s181 + $0x110] sm:$0xff]
                %218 = vst [vmem:[%s182 + $0x88] sm:$0xff] %v217
                %v219 = vld [vmem:[%s181 + $0x120] sm:$0xff]
                %220 = vst [vmem:[%s182 + $0x90] sm:$0xff] %v219
                %v221 = vld [vmem:[%s181 + $0x130] sm:$0xff]
                %222 = vst [vmem:[%s182 + $0x98] sm:$0xff] %v221
                %v223 = vld [vmem:[%s181 + $0x140] sm:$0xff]
                %224 = vst [vmem:[%s182 + $0xa0] sm:$0xff] %v223
                %v225 = vld [vmem:[%s181 + $0x150] sm:$0xff]
                %226 = vst [vmem:[%s182 + $0xa8] sm:$0xff] %v225
                %v227 = vld [vmem:[%s181 + $0x160] sm:$0xff]
                %228 = vst [vmem:[%s182 + $0xb0] sm:$0xff] %v227
                %v229 = vld [vmem:[%s181 + $0x170] sm:$0xff]
                %230 = vst [vmem:[%s182 + $0xb8] sm:$0xff] %v229
                %v231 = vld [vmem:[%s181 + $0x180] sm:$0xff]
                %232 = vst [vmem:[%s182 + $0xc0] sm:$0xff] %v231
                %v233 = vld [vmem:[%s181 + $0x190] sm:$0xff]
                %234 = vst [vmem:[%s182 + $0xc8] sm:$0xff] %v233
                %v235 = vld [vmem:[%s181 + $0x1a0] sm:$0xff]
                %236 = vst [vmem:[%s182 + $0xd0] sm:$0xff] %v235
                %v237 = vld [vmem:[%s181 + $0x1b0] sm:$0xff]
                %238 = vst [vmem:[%s182 + $0xd8] sm:$0xff] %v237
                %v239 = vld [vmem:[%s181 + $0x1c0] sm:$0xff]
                %240 = vst [vmem:[%s182 + $0xe0] sm:$0xff] %v239
                %v241 = vld [vmem:[%s181 + $0x1d0] sm:$0xff]
                %242 = vst [vmem:[%s182 + $0xe8] sm:$0xff] %v241
                %v243 = vld [vmem:[%s181 + $0x1e0] sm:$0xff]
                %244 = vst [vmem:[%s182 + $0xf0] sm:$0xff] %v243
                %v245 = vld [vmem:[%s181 + $0x1f0] sm:$0xff]
                %246 = vst [vmem:[%s182 + $0xf8] sm:$0xff] %v245
                %v247 = vld [vmem:[%s181 + $0x200] sm:$0xff]
                %248 = vst [vmem:[%s182 + $0x100] sm:$0xff] %v247
                %v249 = vld [vmem:[%s181 + $0x210] sm:$0xff]
                %250 = vst [vmem:[%s182 + $0x108] sm:$0xff] %v249
                %v251 = vld [vmem:[%s181 + $0x220] sm:$0xff]
                %252 = vst [vmem:[%s182 + $0x110] sm:$0xff] %v251
                %v253 = vld [vmem:[%s181 + $0x230] sm:$0xff]
                %254 = vst [vmem:[%s182 + $0x118] sm:$0xff] %v253
                %v255 = vld [vmem:[%s181 + $0x240] sm:$0xff]
                %256 = vst [vmem:[%s182 + $0x120] sm:$0xff] %v255
                %v257 = vld [vmem:[%s181 + $0x250] sm:$0xff]
                %258 = vst [vmem:[%s182 + $0x128] sm:$0xff] %v257
                %v259 = vld [vmem:[%s181 + $0x260] sm:$0xff]
                %260 = vst [vmem:[%s182 + $0x130] sm:$0xff] %v259
                %v261 = vld [vmem:[%s181 + $0x270] sm:$0xff]
                %262 = vst [vmem:[%s182 + $0x138] sm:$0xff] %v261
                %v263 = vld [vmem:[%s181 + $0x280] sm:$0xff]
                %264 = vst [vmem:[%s182 + $0x140] sm:$0xff] %v263
                %v265 = vld [vmem:[%s181 + $0x290] sm:$0xff]
                %266 = vst [vmem:[%s182 + $0x148] sm:$0xff] %v265
                %v267 = vld [vmem:[%s181 + $0x2a0] sm:$0xff]
                %268 = vst [vmem:[%s182 + $0x150] sm:$0xff] %v267
                %v269 = vld [vmem:[%s181 + $0x2b0] sm:$0xff]
                %270 = vst [vmem:[%s182 + $0x158] sm:$0xff] %v269
                %v271 = vld [vmem:[%s181 + $0x2c0] sm:$0xff]
                %272 = vst [vmem:[%s182 + $0x160] sm:$0xff] %v271
                %v273 = vld [vmem:[%s181 + $0x2d0] sm:$0xff]
                %274 = vst [vmem:[%s182 + $0x168] sm:$0xff] %v273
                %v275 = vld [vmem:[%s181 + $0x2e0] sm:$0xff]
                %276 = vst [vmem:[%s182 + $0x170] sm:$0xff] %v275
                %v277 = vld [vmem:[%s181 + $0x2f0] sm:$0xff]
                %278 = vst [vmem:[%s182 + $0x178] sm:$0xff] %v277
                %v279 = vld [vmem:[%s181 + $0x300] sm:$0xff]
                %280 = vst [vmem:[%s182 + $0x180] sm:$0xff] %v279
                %v281 = vld [vmem:[%s181 + $0x310] sm:$0xff]
                %282 = vst [vmem:[%s182 + $0x188] sm:$0xff] %v281
                %v283 = vld [vmem:[%s181 + $0x320] sm:$0xff]
                %284 = vst [vmem:[%s182 + $0x190] sm:$0xff] %v283
                %v285 = vld [vmem:[%s181 + $0x330] sm:$0xff]
                %286 = vst [vmem:[%s182 + $0x198] sm:$0xff] %v285
                %v287 = vld [vmem:[%s181 + $0x340] sm:$0xff]
                %288 = vst [vmem:[%s182 + $0x1a0] sm:$0xff] %v287
                %v289 = vld [vmem:[%s181 + $0x350] sm:$0xff]
                %290 = vst [vmem:[%s182 + $0x1a8] sm:$0xff] %v289
                %v291 = vld [vmem:[%s181 + $0x360] sm:$0xff]
                %292 = vst [vmem:[%s182 + $0x1b0] sm:$0xff] %v291
                %v293 = vld [vmem:[%s181 + $0x370] sm:$0xff]
                %294 = vst [vmem:[%s182 + $0x1b8] sm:$0xff] %v293
                %v295 = vld [vmem:[%s181 + $0x380] sm:$0xff]
                %296 = vst [vmem:[%s182 + $0x1c0] sm:$0xff] %v295
                %v297 = vld [vmem:[%s181 + $0x390] sm:$0xff]
                %298 = vst [vmem:[%s182 + $0x1c8] sm:$0xff] %v297
                %v299 = vld [vmem:[%s181 + $0x3a0] sm:$0xff]
                %300 = vst [vmem:[%s182 + $0x1d0] sm:$0xff] %v299
                %v301 = vld [vmem:[%s181 + $0x3b0] sm:$0xff]
                %302 = vst [vmem:[%s182 + $0x1d8] sm:$0xff] %v301
                %v303 = vld [vmem:[%s181 + $0x3c0] sm:$0xff]
                %304 = vst [vmem:[%s182 + $0x1e0] sm:$0xff] %v303
                %v305 = vld [vmem:[%s181 + $0x3d0] sm:$0xff]
                %306 = vst [vmem:[%s182 + $0x1e8] sm:$0xff] %v305
                %v307 = vld [vmem:[%s181 + $0x3e0] sm:$0xff]
                %308 = vst [vmem:[%s182 + $0x1f0] sm:$0xff] %v307
                %v309 = vld [vmem:[%s181 + $0x3f0] sm:$0xff]
                %310 = vst [vmem:[%s182 + $0x1f8] sm:$0xff] %v309
              $region41: #{encoder_forward.7} parent=35 // loop_footer
                %s180 = sadd.s32 1, %s176
              $region42: #{encoder_forward.7} parent=35 // loop_footer_branch
                %175 = sbr.rel target = $region38
              $region43: #{encoder_forward.7} parent=35 // loop_exit
                _
            $region36: #{encoder_forward.7} parent=27 // pred_fallthru
              _
          $region28: #{encoder_forward.7} parent=23 // pred_fallthru
            _
          %451 = vnop
        $region24: #{encoder_forward.7} parent=19 // pred_fallthru
          _
      $region20: #{encoder_forward.7} parent=5 // pred_fallthru
        _
      %p452 = scmp.le.s32.totalorder 1, %s11
      %p453 = scmp.lt.s32.totalorder %s11, 3
      %p454 = pnand %p452, %p453
      %p455 = pneg %p454
      // Predicated region
      $region59: #{encoder_forward.7} parent=5 // pred_check
        _
      $region60: #{encoder_forward.7} parent=5 // pred_check_branch
        %457 = sbr.rel (%p454) target = $region62
      $region61: #{encoder_forward.7} parent=5 // pred_region
        %s458 = ssub.s32 %s11, 1
        %s459 = sand.u32 %s45, 1
        %s460 = sand.u32 %s45, 1
        %s461 = smul.addr %s460, 512
        %s462 = scalar_lea.vmem [#allocation2], %s461
        // Predicated region
        $region63: #{encoder_forward.7} parent=61 // pred_check
          %p463 = pneg %p58
        $region64: #{encoder_forward.7} parent=61 // pred_check_branch
          %465 = sbr.rel (%p463) target = $region66
        $region65: #{encoder_forward.7} parent=61 // pred_region
          _
        $region66: #{encoder_forward.7} parent=61 // pred_fallthru
          _
        %p466 = pneg %p32
        %p467 = pneg %p29
        %s468 = sand.u32 %s45, 1
        %s469 = sand.u32 %s45, 1
        %s470 = smul.addr %s469, 512
        %s471 = scalar_lea.vmem [#allocation2], %s470
        %p472 = pneg %p58
        %p473 = pneg %p55
        %p474 = pneg %p84
        %p475 = pneg %p81
        %s476 = sand.u32 %s71, 1
        %s477 = sand.u32 %s71, 1
        %s478 = smul.addr %s477, 64
        %s479 = scalar_lea.vmem [#allocation3], %s478
        %p480 = pneg %p110
        %p481 = pneg %p107
        %p482 = scmp.lt.s32.totalorder %s16, 1
        %s483 = scalar_select %p482, %s16, 1
        %s484 = smul.addr %s483, 8
        %s485 = smul.addr %s484, 8
        %s486 = scalar_lea.vmem %s3, %s485
        %p487 = pneg %p136
        %p488 = pneg %p133
        %p489 = scmp.lt.s32.totalorder %s16, 1
        %s490 = scalar_select %p489, %s16, 1
        %s491 = smul.addr %s490, 8
        %s492 = smul.addr %s491, 8
        %s493 = scalar_lea.vmem %s4, %s492
        %s494 = smul.u32 2, %s16
        %s495 = smul.u32 2, %s16
        %p496 = scmp.lt.s32.totalorder %s16, 1
        %s497 = scalar_select %p496, %s16, 1
        %s498 = smul.addr %s497, 8
        %s499 = smul.addr %s498, 8
        %s500 = scalar_lea.vmem %s3, %s499
        %p501 = scmp.lt.s32.totalorder %s16, 1
        %s502 = scalar_select %p501, %s16, 1
        %s503 = smul.addr %s502, 8
        %s504 = smul.addr %s503, 8
        %s505 = scalar_lea.vmem %s4, %s504
        %v506 = vld [vmem:[%s0] sm:$0xff]
        %v507 = vld [vmem:[%s0 + $0x8] sm:$0xff]
        %v508 = vld [vmem:[%s0 + $0x10] sm:$0xff]
        %v509 = vld [vmem:[%s0 + $0x18] sm:$0xff]
        %v510 = vld [vmem:[%s0 + $0x20] sm:$0xff]
        %v511 = vld [vmem:[%s0 + $0x28] sm:$0xff]
        %v512 = vld [vmem:[%s0 + $0x30] sm:$0xff]
        %v513 = vld [vmem:[%s0 + $0x38] sm:$0xff]
        %v514 = vld [vmem:[%s0 + $0x40] sm:$0xff]
        %v515 = vld [vmem:[%s0 + $0x48] sm:$0xff]
        %v516 = vld [vmem:[%s0 + $0x50] sm:$0xff]
        %v517 = vld [vmem:[%s0 + $0x58] sm:$0xff]
        %v518 = vld [vmem:[%s0 + $0x60] sm:$0xff]
        %v519 = vld [vmem:[%s0 + $0x68] sm:$0xff]
        %v520 = vld [vmem:[%s0 + $0x70] sm:$0xff]
        %v521 = vld [vmem:[%s0 + $0x78] sm:$0xff]
        %v522 = vld [vmem:[%s462] sm:$0xff]
        %v523 = vld [vmem:[%s462 + $0x8] sm:$0xff]
        %v524 = vld [vmem:[%s462 + $0x10] sm:$0xff]
        %v525 = vld [vmem:[%s462 + $0x18] sm:$0xff]
        %v526 = vld [vmem:[%s462 + $0x20] sm:$0xff]
        %v527 = vld [vmem:[%s462 + $0x28] sm:$0xff]
        %v528 = vld [vmem:[%s462 + $0x30] sm:$0xff]
        %v529 = vld [vmem:[%s462 + $0x38] sm:$0xff]
        %v530 = vld [vmem:[%s462 + $0x40] sm:$0xff]
        %v531 = vld [vmem:[%s462 + $0x48] sm:$0xff]
        %v532 = vld [vmem:[%s462 + $0x50] sm:$0xff]
        %v533 = vld [vmem:[%s462 + $0x58] sm:$0xff]
        %v534 = vld [vmem:[%s462 + $0x60] sm:$0xff]
        %v535 = vld [vmem:[%s462 + $0x68] sm:$0xff]
        %v536 = vld [vmem:[%s462 + $0x70] sm:$0xff]
        %v537 = vld [vmem:[%s462 + $0x78] sm:$0xff]
        %v538 = vld [vmem:[%s462 + $0x80] sm:$0xff]
        %v539 = vld [vmem:[%s462 + $0x88] sm:$0xff]
        %v540 = vld [vmem:[%s462 + $0x90] sm:$0xff]
        %v541 = vld [vmem:[%s462 + $0x98] sm:$0xff]
        %v542 = vld [vmem:[%s462 + $0xa0] sm:$0xff]
        %v543 = vld [vmem:[%s462 + $0xa8] sm:$0xff]
        %v544 = vld [vmem:[%s462 + $0xb0] sm:$0xff]
        %v545 = vld [vmem:[%s462 + $0xb8] sm:$0xff]
        %v546 = vld [vmem:[%s462 + $0xc0] sm:$0xff]
        %v547 = vld [vmem:[%s462 + $0xc8] sm:$0xff]
        %v548 = vld [vmem:[%s462 + $0xd0] sm:$0xff]
        %v549 = vld [vmem:[%s462 + $0xd8] sm:$0xff]
        %v550 = vld [vmem:[%s462 + $0xe0] sm:$0xff]
        %v551 = vld [vmem:[%s462 + $0xe8] sm:$0xff]
        %v552 = vld [vmem:[%s462 + $0xf0] sm:$0xff]
        %v553 = vld [vmem:[%s462 + $0xf8] sm:$0xff]
        %v554 = vld [vmem:[%s462 + $0x100] sm:$0xff]
        %v555 = vld [vmem:[%s462 + $0x108] sm:$0xff]
        %v556 = vld [vmem:[%s462 + $0x110] sm:$0xff]
        %v557 = vld [vmem:[%s462 + $0x118] sm:$0xff]
        %v558 = vld [vmem:[%s462 + $0x120] sm:$0xff]
        %v559 = vld [vmem:[%s462 + $0x128] sm:$0xff]
        %v560 = vld [vmem:[%s462 + $0x130] sm:$0xff]
        %v561 = vld [vmem:[%s462 + $0x138] sm:$0xff]
        %v562 = vld [vmem:[%s462 + $0x140] sm:$0xff]
        %v563 = vld [vmem:[%s462 + $0x148] sm:$0xff]
        %v564 = vld [vmem:[%s462 + $0x150] sm:$0xff]
        %v565 = vld [vmem:[%s462 + $0x158] sm:$0xff]
        %v566 = vld [vmem:[%s462 + $0x160] sm:$0xff]
        %v567 = vld [vmem:[%s462 + $0x168] sm:$0xff]
        %v568 = vld [vmem:[%s462 + $0x170] sm:$0xff]
        %v569 = vld [vmem:[%s462 + $0x178] sm:$0xff]
        %v570 = vld [vmem:[%s462 + $0x180] sm:$0xff]
        %v571 = vld [vmem:[%s462 + $0x188] sm:$0xff]
        %v572 = vld [vmem:[%s462 + $0x190] sm:$0xff]
        %v573 = vld [vmem:[%s462 + $0x198] sm:$0xff]
        %v574 = vld [vmem:[%s462 + $0x1a0] sm:$0xff]
        %v575 = vld [vmem:[%s462 + $0x1a8] sm:$0xff]
        %v576 = vld [vmem:[%s462 + $0x1b0] sm:$0xff]
        %v577 = vld [vmem:[%s462 + $0x1b8] sm:$0xff]
        %v578 = vld [vmem:[%s462 + $0x1c0] sm:$0xff]
        %v579 = vld [vmem:[%s462 + $0x1c8] sm:$0xff]
        %v580 = vld [vmem:[%s462 + $0x1d0] sm:$0xff]
        %v581 = vld [vmem:[%s462 + $0x1d8] sm:$0xff]
        %v582 = vld [vmem:[%s462 + $0x1e0] sm:$0xff]
        %v583 = vld [vmem:[%s462 + $0x1e8] sm:$0xff]
        %v584 = vld [vmem:[%s462 + $0x1f0] sm:$0xff]
        %v585 = vld [vmem:[%s462 + $0x1f8] sm:$0xff]
        %v602 = vunpack.c.l.b16 %v506
        %v603 = vunpack.c.h.b16 %v506
        %v604 = vunpack.c.l.b16 %v507
        %v605 = vunpack.c.h.b16 %v507
        %v606 = vunpack.c.l.b16 %v508
        %v607 = vunpack.c.h.b16 %v508
        %v608 = vunpack.c.l.b16 %v509
        %v609 = vunpack.c.h.b16 %v509
        %v610 = vunpack.c.l.b16 %v510
        %v611 = vunpack.c.h.b16 %v510
        %v612 = vunpack.c.l.b16 %v511
        %v613 = vunpack.c.h.b16 %v511
        %v614 = vunpack.c.l.b16 %v512
        %v615 = vunpack.c.h.b16 %v512
        %v616 = vunpack.c.l.b16 %v513
        %v617 = vunpack.c.h.b16 %v513
        %v618 = vunpack.c.l.b16 %v514
        %v619 = vunpack.c.h.b16 %v514
        %v620 = vunpack.c.l.b16 %v515
        %v621 = vunpack.c.h.b16 %v515
        %v622 = vunpack.c.l.b16 %v516
        %v623 = vunpack.c.h.b16 %v516
        %v624 = vunpack.c.l.b16 %v517
        %v625 = vunpack.c.h.b16 %v517
        %v626 = vunpack.c.l.b16 %v518
        %v627 = vunpack.c.h.b16 %v518
        %v628 = vunpack.c.l.b16 %v519
        %v629 = vunpack.c.h.b16 %v519
        %v630 = vunpack.c.l.b16 %v520
        %v631 = vunpack.c.h.b16 %v520
        %v632 = vunpack.c.l.b16 %v521
        %v633 = vunpack.c.h.b16 %v521
        %v634 = vpack.c.b16 %v606, %v602
        %v635 = vpack.c.b16 %v607, %v603
        %v636 = vpack.c.b16 %v608, %v604
        %v637 = vpack.c.b16 %v609, %v605
        %v638 = vpack.c.b16 %v614, %v610
        %v639 = vpack.c.b16 %v615, %v611
        %v640 = vpack.c.b16 %v616, %v612
        %v641 = vpack.c.b16 %v617, %v613
        %v642 = vpack.c.b16 %v622, %v618
        %v643 = vpack.c.b16 %v623, %v619
        %v644 = vpack.c.b16 %v624, %v620
        %v645 = vpack.c.b16 %v625, %v621
        %v646 = vpack.c.b16 %v630, %v626
        %v647 = vpack.c.b16 %v631, %v627
        %v648 = vpack.c.b16 %v632, %v628
        %v649 = vpack.c.b16 %v633, %v629
        %v730 = vunpack.c.l.b16 %v522
        %v731 = vunpack.c.h.b16 %v522
        %v732 = vunpack.c.l.b16 %v523
        %v733 = vunpack.c.h.b16 %v523
        %v734 = vunpack.c.l.b16 %v524
        %v735 = vunpack.c.h.b16 %v524
        %v736 = vunpack.c.l.b16 %v525
        %v737 = vunpack.c.h.b16 %v525
        %v738 = vunpack.c.l.b16 %v526
        %v739 = vunpack.c.h.b16 %v526
        %v740 = vunpack.c.l.b16 %v527
        %v741 = vunpack.c.h.b16 %v527
        %v742 = vunpack.c.l.b16 %v528
        %v743 = vunpack.c.h.b16 %v528
        %v744 = vunpack.c.l.b16 %v529
        %v745 = vunpack.c.h.b16 %v529
        %v746 = vunpack.c.l.b16 %v530
        %v747 = vunpack.c.h.b16 %v530
        %v748 = vunpack.c.l.b16 %v531
        %v749 = vunpack.c.h.b16 %v531
        %v750 = vunpack.c.l.b16 %v532
        %v751 = vunpack.c.h.b16 %v532
        %v752 = vunpack.c.l.b16 %v533
        %v753 = vunpack.c.h.b16 %v533
        %v754 = vunpack.c.l.b16 %v534
        %v755 = vunpack.c.h.b16 %v534
        %v756 = vunpack.c.l.b16 %v535
        %v757 = vunpack.c.h.b16 %v535
        %v758 = vunpack.c.l.b16 %v536
        %v759 = vunpack.c.h.b16 %v536
        %v760 = vunpack.c.l.b16 %v537
        %v761 = vunpack.c.h.b16 %v537
        %v762 = vunpack.c.l.b16 %v538
        %v763 = vunpack.c.h.b16 %v538
        %v764 = vunpack.c.l.b16 %v539
        %v765 = vunpack.c.h.b16 %v539
        %v766 = vunpack.c.l.b16 %v540
        %v767 = vunpack.c.h.b16 %v540
        %v768 = vunpack.c.l.b16 %v541
        %v769 = vunpack.c.h.b16 %v541
        %v770 = vunpack.c.l.b16 %v542
        %v771 = vunpack.c.h.b16 %v542
        %v772 = vunpack.c.l.b16 %v543
        %v773 = vunpack.c.h.b16 %v543
        %v774 = vunpack.c.l.b16 %v544
        %v775 = vunpack.c.h.b16 %v544
        %v776 = vunpack.c.l.b16 %v545
        %v777 = vunpack.c.h.b16 %v545
        %v778 = vunpack.c.l.b16 %v546
        %v779 = vunpack.c.h.b16 %v546
        %v780 = vunpack.c.l.b16 %v547
        %v781 = vunpack.c.h.b16 %v547
        %v782 = vunpack.c.l.b16 %v548
        %v783 = vunpack.c.h.b16 %v548
        %v784 = vunpack.c.l.b16 %v549
        %v785 = vunpack.c.h.b16 %v549
        %v786 = vunpack.c.l.b16 %v550
        %v787 = vunpack.c.h.b16 %v550
        %v788 = vunpack.c.l.b16 %v551
        %v789 = vunpack.c.h.b16 %v551
        %v790 = vunpack.c.l.b16 %v552
        %v791 = vunpack.c.h.b16 %v552
        %v792 = vunpack.c.l.b16 %v553
        %v793 = vunpack.c.h.b16 %v553
        %v794 = vunpack.c.l.b16 %v554
        %v795 = vunpack.c.h.b16 %v554
        %v796 = vunpack.c.l.b16 %v555
        %v797 = vunpack.c.h.b16 %v555
        %v798 = vunpack.c.l.b16 %v556
        %v799 = vunpack.c.h.b16 %v556
        %v800 = vunpack.c.l.b16 %v557
        %v801 = vunpack.c.h.b16 %v557
        %v802 = vunpack.c.l.b16 %v558
        %v803 = vunpack.c.h.b16 %v558
        %v804 = vunpack.c.l.b16 %v559
        %v805 = vunpack.c.h.b16 %v559
        %v806 = vunpack.c.l.b16 %v560
        %v807 = vunpack.c.h.b16 %v560
        %v808 = vunpack.c.l.b16 %v561
        %v809 = vunpack.c.h.b16 %v561
        %v810 = vunpack.c.l.b16 %v562
        %v811 = vunpack.c.h.b16 %v562
        %v812 = vunpack.c.l.b16 %v563
        %v813 = vunpack.c.h.b16 %v563
        %v814 = vunpack.c.l.b16 %v564
        %v815 = vunpack.c.h.b16 %v564
        %v816 = vunpack.c.l.b16 %v565
        %v817 = vunpack.c.h.b16 %v565
        %v818 = vunpack.c.l.b16 %v566
        %v819 = vunpack.c.h.b16 %v566
        %v820 = vunpack.c.l.b16 %v567
        %v821 = vunpack.c.h.b16 %v567
        %v822 = vunpack.c.l.b16 %v568
        %v823 = vunpack.c.h.b16 %v568
        %v824 = vunpack.c.l.b16 %v569
        %v825 = vunpack.c.h.b16 %v569
        %v826 = vunpack.c.l.b16 %v570
        %v827 = vunpack.c.h.b16 %v570
        %v828 = vunpack.c.l.b16 %v571
        %v829 = vunpack.c.h.b16 %v571
        %v830 = vunpack.c.l.b16 %v572
        %v831 = vunpack.c.h.b16 %v572
        %v832 = vunpack.c.l.b16 %v573
        %v833 = vunpack.c.h.b16 %v573
        %v834 = vunpack.c.l.b16 %v574
        %v835 = vunpack.c.h.b16 %v574
        %v836 = vunpack.c.l.b16 %v575
        %v837 = vunpack.c.h.b16 %v575
        %v838 = vunpack.c.l.b16 %v576
        %v839 = vunpack.c.h.b16 %v576
        %v840 = vunpack.c.l.b16 %v577
        %v841 = vunpack.c.h.b16 %v577
        %v842 = vunpack.c.l.b16 %v578
        %v843 = vunpack.c.h.b16 %v578
        %v844 = vunpack.c.l.b16 %v579
        %v845 = vunpack.c.h.b16 %v579
        %v846 = vunpack.c.l.b16 %v580
        %v847 = vunpack.c.h.b16 %v580
        %v848 = vunpack.c.l.b16 %v581
        %v849 = vunpack.c.h.b16 %v581
        %v850 = vunpack.c.l.b16 %v582
        %v851 = vunpack.c.h.b16 %v582
        %v852 = vunpack.c.l.b16 %v583
        %v853 = vunpack.c.h.b16 %v583
        %v854 = vunpack.c.l.b16 %v584
        %v855 = vunpack.c.h.b16 %v584
        %v856 = vunpack.c.l.b16 %v585
        %v857 = vunpack.c.h.b16 %v585
        %v858 = vpack.c.b16 %v732, %v730
        %v859 = vpack.c.b16 %v733, %v731
        %v860 = vpack.c.b16 %v736, %v734
        %v861 = vpack.c.b16 %v737, %v735
        %v862 = vpack.c.b16 %v740, %v738
        %v863 = vpack.c.b16 %v741, %v739
        %v864 = vpack.c.b16 %v744, %v742
        %v865 = vpack.c.b16 %v745, %v743
        %v866 = vpack.c.b16 %v748, %v746
        %v867 = vpack.c.b16 %v749, %v747
        %v868 = vpack.c.b16 %v752, %v750
        %v869 = vpack.c.b16 %v753, %v751
        %v870 = vpack.c.b16 %v756, %v754
        %v871 = vpack.c.b16 %v757, %v755
        %v872 = vpack.c.b16 %v760, %v758
        %v873 = vpack.c.b16 %v761, %v759
        %v874 = vpack.c.b16 %v764, %v762
        %v875 = vpack.c.b16 %v765, %v763
        %v876 = vpack.c.b16 %v768, %v766
        %v877 = vpack.c.b16 %v769, %v767
        %v878 = vpack.c.b16 %v772, %v770
        %v879 = vpack.c.b16 %v773, %v771
        %v880 = vpack.c.b16 %v776, %v774
        %v881 = vpack.c.b16 %v777, %v775
        %v882 = vpack.c.b16 %v780, %v778
        %v883 = vpack.c.b16 %v781, %v779
        %v884 = vpack.c.b16 %v784, %v782
        %v885 = vpack.c.b16 %v785, %v783
        %v886 = vpack.c.b16 %v788, %v786
        %v887 = vpack.c.b16 %v789, %v787
        %v888 = vpack.c.b16 %v792, %v790
        %v889 = vpack.c.b16 %v793, %v791
        %v890 = vpack.c.b16 %v796, %v794
        %v891 = vpack.c.b16 %v797, %v795
        %v892 = vpack.c.b16 %v800, %v798
        %v893 = vpack.c.b16 %v801, %v799
        %v894 = vpack.c.b16 %v804, %v802
        %v895 = vpack.c.b16 %v805, %v803
        %v896 = vpack.c.b16 %v808, %v806
        %v897 = vpack.c.b16 %v809, %v807
        %v898 = vpack.c.b16 %v812, %v810
        %v899 = vpack.c.b16 %v813, %v811
        %v900 = vpack.c.b16 %v816, %v814
        %v901 = vpack.c.b16 %v817, %v815
        %v902 = vpack.c.b16 %v820, %v818
        %v903 = vpack.c.b16 %v821, %v819
        %v904 = vpack.c.b16 %v824, %v822
        %v905 = vpack.c.b16 %v825, %v823
        %v906 = vpack.c.b16 %v828, %v826
        %v907 = vpack.c.b16 %v829, %v827
        %v908 = vpack.c.b16 %v832, %v830
        %v909 = vpack.c.b16 %v833, %v831
        %v910 = vpack.c.b16 %v836, %v834
        %v911 = vpack.c.b16 %v837, %v835
        %v912 = vpack.c.b16 %v840, %v838
        %v913 = vpack.c.b16 %v841, %v839
        %v914 = vpack.c.b16 %v844, %v842
        %v915 = vpack.c.b16 %v845, %v843
        %v916 = vpack.c.b16 %v848, %v846
        %v917 = vpack.c.b16 %v849, %v847
        %v918 = vpack.c.b16 %v852, %v850
        %v919 = vpack.c.b16 %v853, %v851
        %v920 = vpack.c.b16 %v856, %v854
        %v921 = vpack.c.b16 %v857, %v855
        %986 = vmatprep.subr.bf16.mxu0 %v859
        %987 = vmatpush1.bf16.msra.mxu0 %v858
        %988 = vmatprep.subr.bf16.mxu0 %v861
        %989 = vmatpush1.bf16.msra.mxu0 %v860
        %990 = vmatprep.subr.bf16.mxu0 %v863
        %991 = vmatpush1.bf16.msra.mxu0 %v862
        %992 = vmatprep.subr.bf16.mxu0 %v865
        %993 = vmatpush1.bf16.msra.mxu0 %v864
        %994 = vmatprep.subr.bf16.mxu0 %v867
        %995 = vmatpush1.bf16.msra.mxu0 %v866
        %996 = vmatprep.subr.bf16.mxu0 %v869
        %997 = vmatpush1.bf16.msra.mxu0 %v868
        %998 = vmatprep.subr.bf16.mxu0 %v871
        %999 = vmatpush1.bf16.msra.mxu0 %v870
        %1000 = vmatprep.subr.bf16.mxu0 %v873
        %1001 = vmatpush1.bf16.msra.mxu0 %v872
        %1002 = vmatprep.subr.bf16.mxu0 %v875
        %1003 = vmatpush1.bf16.msra.mxu0 %v874
        %1004 = vmatprep.subr.bf16.mxu0 %v877
        %1005 = vmatpush1.bf16.msra.mxu0 %v876
        %1006 = vmatprep.subr.bf16.mxu0 %v879
        %1007 = vmatpush1.bf16.msra.mxu0 %v878
        %1008 = vmatprep.subr.bf16.mxu0 %v881
        %1009 = vmatpush1.bf16.msra.mxu0 %v880
        %1010 = vmatprep.subr.bf16.mxu0 %v883
        %1011 = vmatpush1.bf16.msra.mxu0 %v882
        %1012 = vmatprep.subr.bf16.mxu0 %v885
        %1013 = vmatpush1.bf16.msra.mxu0 %v884
        %1014 = vmatprep.subr.bf16.mxu0 %v887
        %1015 = vmatpush1.bf16.msra.mxu0 %v886
        %1016 = vmatprep.subr.bf16.mxu0 %v889
        %1017 = vmatpush1.bf16.msra.mxu0 %v888
        %1018 = vmatprep.mubr.bf16.mxu0 %v635
        %1019 = vmatmul.mubr.bf16.gmra.mrb[0].mxu0 %v634
        %v1020 = vpop.f32.mrb[0].mxu0
        %v1021 = vadd.f32 0.0, %v1020
        %v1022 = vpop.f32.mrb[0].mxu0
        %v1023 = vadd.f32 0.0, %v1022
        %v1024 = vpop.f32.mrb[0].mxu0
        %v1025 = vadd.f32 0.0, %v1024
        %v1026 = vpop.f32.mrb[0].mxu0
        %v1027 = vadd.f32 0.0, %v1026
        %1028 = vmatprep.mubr.bf16.mxu0 %v639
        %1029 = vmatmul.mubr.bf16.gmra.mrb[0].mxu0 %v638
        %v1030 = vpop.f32.mrb[0].mxu0
        %v1031 = vadd.f32 0.0, %v1030
        %v1032 = vpop.f32.mrb[0].mxu0
        %v1033 = vadd.f32 0.0, %v1032
        %v1034 = vpop.f32.mrb[0].mxu0
        %v1035 = vadd.f32 0.0, %v1034
        %v1036 = vpop.f32.mrb[0].mxu0
        %v1037 = vadd.f32 0.0, %v1036
        %1038 = vmatprep.mubr.bf16.mxu0 %v643
        %1039 = vmatmul.mubr.bf16.gmra.mrb[0].mxu0 %v642
        %v1040 = vpop.f32.mrb[0].mxu0
        %v1041 = vadd.f32 0.0, %v1040
        %v1042 = vpop.f32.mrb[0].mxu0
        %v1043 = vadd.f32 0.0, %v1042
        %v1044 = vpop.f32.mrb[0].mxu0
        %v1045 = vadd.f32 0.0, %v1044
        %v1046 = vpop.f32.mrb[0].mxu0
        %v1047 = vadd.f32 0.0, %v1046
        %1048 = vmatprep.mubr.bf16.mxu0 %v647
        %1049 = vmatmul.mubr.bf16.gmra.mrb[0].mxu0 %v646
        %v1050 = vpop.f32.mrb[0].mxu0
        %v1051 = vadd.f32 0.0, %v1050
        %v1052 = vpop.f32.mrb[0].mxu0
        %v1053 = vadd.f32 0.0, %v1052
        %v1054 = vpop.f32.mrb[0].mxu0
        %v1055 = vadd.f32 0.0, %v1054
        %v1056 = vpop.f32.mrb[0].mxu0
        %v1057 = vadd.f32 0.0, %v1056
        %1058 = vdwg.mxu0
        %1059 = vmatprep.subr.bf16.mxu0 %v891
        %1060 = vmatpush1.bf16.msra.mxu0 %v890
        %1061 = vmatprep.subr.bf16.mxu0 %v893
        %1062 = vmatpush1.bf16.msra.mxu0 %v892
        %1063 = vmatprep.subr.bf16.mxu0 %v895
        %1064 = vmatpush1.bf16.msra.mxu0 %v894
        %1065 = vmatprep.subr.bf16.mxu0 %v897
        %1066 = vmatpush1.bf16.msra.mxu0 %v896
        %1067 = vmatprep.subr.bf16.mxu0 %v899
        %1068 = vmatpush1.bf16.msra.mxu0 %v898
        %1069 = vmatprep.subr.bf16.mxu0 %v901
        %1070 = vmatpush1.bf16.msra.mxu0 %v900
        %1071 = vmatprep.subr.bf16.mxu0 %v903
        %1072 = vmatpush1.bf16.msra.mxu0 %v902
        %1073 = vmatprep.subr.bf16.mxu0 %v905
        %1074 = vmatpush1.bf16.msra.mxu0 %v904
        %1075 = vmatprep.subr.bf16.mxu0 %v907
        %1076 = vmatpush1.bf16.msra.mxu0 %v906
        %1077 = vmatprep.subr.bf16.mxu0 %v909
        %1078 = vmatpush1.bf16.msra.mxu0 %v908
        %1079 = vmatprep.subr.bf16.mxu0 %v911
        %1080 = vmatpush1.bf16.msra.mxu0 %v910
        %1081 = vmatprep.subr.bf16.mxu0 %v913
        %1082 = vmatpush1.bf16.msra.mxu0 %v912
        %1083 = vmatprep.subr.bf16.mxu0 %v915
        %1084 = vmatpush1.bf16.msra.mxu0 %v914
        %1085 = vmatprep.subr.bf16.mxu0 %v917
        %1086 = vmatpush1.bf16.msra.mxu0 %v916
        %1087 = vmatprep.subr.bf16.mxu0 %v919
        %1088 = vmatpush1.bf16.msra.mxu0 %v918
        %1089 = vmatprep.subr.bf16.mxu0 %v921
        %1090 = vmatpush1.bf16.msra.mxu0 %v920
        %1091 = vmatprep.mubr.bf16.mxu0 %v637
        %1092 = vmatmul.mubr.bf16.gmra.mrb[0].mxu0 %v636
        %v1093 = vpop.f32.mrb[0].mxu0
        %v1094 = vadd.f32 %v1021, %v1093
        %v1095 = vpop.f32.mrb[0].mxu0
        %v1096 = vadd.f32 %v1023, %v1095
        %v1097 = vpop.f32.mrb[0].mxu0
        %v1098 = vadd.f32 %v1025, %v1097
        %v1099 = vpop.f32.mrb[0].mxu0
        %v1100 = vadd.f32 %v1027, %v1099
        %1101 = vmatprep.mubr.bf16.mxu0 %v641
        %1102 = vmatmul.mubr.bf16.gmra.mrb[0].mxu0 %v640
        %v1103 = vpop.f32.mrb[0].mxu0
        %v1104 = vadd.f32 %v1031, %v1103
        %v1105 = vpop.f32.mrb[0].mxu0
        %v1106 = vadd.f32 %v1033, %v1105
        %v1107 = vpop.f32.mrb[0].mxu0
        %v1108 = vadd.f32 %v1035, %v1107
        %v1109 = vpop.f32.mrb[0].mxu0
        %v1110 = vadd.f32 %v1037, %v1109
        %1111 = vmatprep.mubr.bf16.mxu0 %v645
        %1112 = vmatmul.mubr.bf16.gmra.mrb[0].mxu0 %v644
        %v1113 = vpop.f32.mrb[0].mxu0
        %v1114 = vadd.f32 %v1041, %v1113
        %v1115 = vpop.f32.mrb[0].mxu0
        %v1116 = vadd.f32 %v1043, %v1115
        %v1117 = vpop.f32.mrb[0].mxu0
        %v1118 = vadd.f32 %v1045, %v1117
        %v1119 = vpop.f32.mrb[0].mxu0
        %v1120 = vadd.f32 %v1047, %v1119
        %1121 = vmatprep.mubr.bf16.mxu0 %v649
        %1122 = vmatmul.mubr.bf16.gmra.mrb[0].mxu0 %v648
        %v1123 = vpop.f32.mrb[0].mxu0
        %v1124 = vadd.f32 %v1051, %v1123
        %v1125 = vpop.f32.mrb[0].mxu0
        %v1126 = vadd.f32 %v1053, %v1125
        %v1127 = vpop.f32.mrb[0].mxu0
        %v1128 = vadd.f32 %v1055, %v1127
        %v1129 = vpop.f32.mrb[0].mxu0
        %v1130 = vadd.f32 %v1057, %v1129
        %1131 = vdwg.mxu0
        %v1132 = vpack.c.bf16 %v1098, %v1094
        %v1133 = vpack.c.bf16 %v1100, %v1096
        %v1134 = vpack.c.bf16 %v1108, %v1104
        %v1135 = vpack.c.bf16 %v1110, %v1106
        %v1136 = vpack.c.bf16 %v1118, %v1114
        %v1137 = vpack.c.bf16 %v1120, %v1116
        %v1138 = vpack.c.bf16 %v1128, %v1124
        %v1139 = vpack.c.bf16 %v1130, %v1126
        %v1148 = vunpack.c.l.b16 %v1132
        %v1149 = vunpack.c.l.b16 %v1133
        %v1150 = vunpack.c.h.b16 %v1132
        %v1151 = vunpack.c.h.b16 %v1133
        %v1152 = vunpack.c.l.b16 %v1134
        %v1153 = vunpack.c.l.b16 %v1135
        %v1154 = vunpack.c.h.b16 %v1134
        %v1155 = vunpack.c.h.b16 %v1135
        %v1156 = vunpack.c.l.b16 %v1136
        %v1157 = vunpack.c.l.b16 %v1137
        %v1158 = vunpack.c.h.b16 %v1136
        %v1159 = vunpack.c.h.b16 %v1137
        %v1160 = vunpack.c.l.b16 %v1138
        %v1161 = vunpack.c.l.b16 %v1139
        %v1162 = vunpack.c.h.b16 %v1138
        %v1163 = vunpack.c.h.b16 %v1139
        %v1164 = vpack.c.b16 %v1149, %v1148
        %v1165 = vpack.c.b16 %v1151, %v1150
        %v1166 = vpack.c.b16 %v1153, %v1152
        %v1167 = vpack.c.b16 %v1155, %v1154
        %v1168 = vpack.c.b16 %v1157, %v1156
        %v1169 = vpack.c.b16 %v1159, %v1158
        %v1170 = vpack.c.b16 %v1161, %v1160
        %v1171 = vpack.c.b16 %v1163, %v1162
        %1180 = vst [vmem:[%s479] sm:$0xff] %v1164
        %1181 = vst [vmem:[%s479 + $0x8] sm:$0xff] %v1165
        %1182 = vst [vmem:[%s479 + $0x10] sm:$0xff] %v1166
        %1183 = vst [vmem:[%s479 + $0x18] sm:$0xff] %v1167
        %1184 = vst [vmem:[%s479 + $0x20] sm:$0xff] %v1168
        %1185 = vst [vmem:[%s479 + $0x28] sm:$0xff] %v1169
        %1186 = vst [vmem:[%s479 + $0x30] sm:$0xff] %v1170
        %1187 = vst [vmem:[%s479 + $0x38] sm:$0xff] %v1171
        %v1188 = vadd.f32 %v1094, %v1096
        %1189 = vadd.xlane.f32.xlu0 %v1188
        %v1190 = vpop.xlane.xlu0 %1189
        %v1191 = vadd.f32 %v1098, %v1100
        %1192 = vadd.xlane.f32.xlu0 %v1191
        %v1193 = vpop.xlane.xlu0 %1192
        %v1194 = vadd.f32 %v1104, %v1106
        %1195 = vadd.xlane.f32.xlu0 %v1194
        %v1196 = vpop.xlane.xlu0 %1195
        %v1197 = vadd.f32 %v1108, %v1110
        %1198 = vadd.xlane.f32.xlu0 %v1197
        %v1199 = vpop.xlane.xlu0 %1198
        %v1200 = vadd.f32 %v1114, %v1116
        %1201 = vadd.xlane.f32.xlu0 %v1200
        %v1202 = vpop.xlane.xlu0 %1201
        %v1203 = vadd.f32 %v1118, %v1120
        %1204 = vadd.xlane.f32.xlu0 %v1203
        %v1205 = vpop.xlane.xlu0 %1204
        %v1206 = vadd.f32 %v1124, %v1126
        %1207 = vadd.xlane.f32.xlu0 %v1206
        %v1208 = vpop.xlane.xlu0 %1207
        %v1209 = vadd.f32 %v1128, %v1130
        %1210 = vadd.xlane.f32.xlu0 %v1209
        %v1211 = vpop.xlane.xlu0 %1210
        %vm1212 = vcmask 7168
        %1213 = vst.msk [vmem:[%s500] sm:$0xff] %vm1212, %v1190
        %1214 = vst.msk [vmem:[%s500 + $0x8] sm:$0xff] %vm1212, %v1193
        %1215 = vst.msk [vmem:[%s500 + $0x10] sm:$0xff] %vm1212, %v1196
        %1216 = vst.msk [vmem:[%s500 + $0x18] sm:$0xff] %vm1212, %v1199
        %1217 = vst.msk [vmem:[%s500 + $0x20] sm:$0xff] %vm1212, %v1202
        %1218 = vst.msk [vmem:[%s500 + $0x28] sm:$0xff] %vm1212, %v1205
        %1219 = vst.msk [vmem:[%s500 + $0x30] sm:$0xff] %vm1212, %v1208
        %1220 = vst.msk [vmem:[%s500 + $0x38] sm:$0xff] %vm1212, %v1211
        %v1221 = vmul.f32 %v1094, %v1094
        %v1222 = vmul.f32 %v1096, %v1096
        %v1223 = vmul.f32 %v1098, %v1098
        %v1224 = vmul.f32 %v1100, %v1100
        %v1225 = vmul.f32 %v1104, %v1104
        %v1226 = vmul.f32 %v1106, %v1106
        %v1227 = vmul.f32 %v1108, %v1108
        %v1228 = vmul.f32 %v1110, %v1110
        %v1229 = vmul.f32 %v1114, %v1114
        %v1230 = vmul.f32 %v1116, %v1116
        %v1231 = vmul.f32 %v1118, %v1118
        %v1232 = vmul.f32 %v1120, %v1120
        %v1233 = vmul.f32 %v1124, %v1124
        %v1234 = vmul.f32 %v1126, %v1126
        %v1235 = vmul.f32 %v1128, %v1128
        %v1236 = vmul.f32 %v1130, %v1130
        %v1237 = vadd.f32 %v1221, %v1222
        %1238 = vadd.xlane.f32.xlu0 %v1237
        %v1239 = vpop.xlane.xlu0 %1238
        %v1240 = vadd.f32 %v1223, %v1224
        %1241 = vadd.xlane.f32.xlu0 %v1240
        %v1242 = vpop.xlane.xlu0 %1241
        %v1243 = vadd.f32 %v1225, %v1226
        %1244 = vadd.xlane.f32.xlu0 %v1243
        %v1245 = vpop.xlane.xlu0 %1244
        %v1246 = vadd.f32 %v1227, %v1228
        %1247 = vadd.xlane.f32.xlu0 %v1246
        %v1248 = vpop.xlane.xlu0 %1247
        %v1249 = vadd.f32 %v1229, %v1230
        %1250 = vadd.xlane.f32.xlu0 %v1249
        %v1251 = vpop.xlane.xlu0 %1250
        %v1252 = vadd.f32 %v1231, %v1232
        %1253 = vadd.xlane.f32.xlu0 %v1252
        %v1254 = vpop.xlane.xlu0 %1253
        %v1255 = vadd.f32 %v1233, %v1234
        %1256 = vadd.xlane.f32.xlu0 %v1255
        %v1257 = vpop.xlane.xlu0 %1256
        %v1258 = vadd.f32 %v1235, %v1236
        %1259 = vadd.xlane.f32.xlu0 %v1258
        %v1260 = vpop.xlane.xlu0 %1259
        %1261 = vst.msk [vmem:[%s505] sm:$0xff] %vm1212, %v1239
        %1262 = vst.msk [vmem:[%s505 + $0x8] sm:$0xff] %vm1212, %v1242
        %1263 = vst.msk [vmem:[%s505 + $0x10] sm:$0xff] %vm1212, %v1245
        %1264 = vst.msk [vmem:[%s505 + $0x18] sm:$0xff] %vm1212, %v1248
        %1265 = vst.msk [vmem:[%s505 + $0x20] sm:$0xff] %vm1212, %v1251
        %1266 = vst.msk [vmem:[%s505 + $0x28] sm:$0xff] %vm1212, %v1254
        %1267 = vst.msk [vmem:[%s505 + $0x30] sm:$0xff] %vm1212, %v1257
        %1268 = vst.msk [vmem:[%s505 + $0x38] sm:$0xff] %vm1212, %v1260
        %s1269 = sand.u32 %s71, 1
        %s1270 = sand.u32 %s71, 1
        %s1271 = smul.addr %s1270, 64
        %s1272 = scalar_lea.vmem [#allocation3], %s1271
        %p1273 = scmp.lt.s32.totalorder %s16, 1
        %s1274 = scalar_select %p1273, %s16, 1
        %s1275 = smul.addr %s1274, 8
        %s1276 = smul.addr %s1275, 8
        %s1277 = scalar_lea.vmem %s3, %s1276
        %p1278 = scmp.lt.s32.totalorder %s16, 1
        %s1279 = scalar_select %p1278, %s16, 1
        %s1280 = smul.addr %s1279, 8
        %s1281 = smul.addr %s1280, 8
        %s1282 = scalar_lea.vmem %s4, %s1281
        // Predicated region
        $region67: #{encoder_forward.7} parent=61 // pred_check
          %p1283 = pneg %p81
        $region68: #{encoder_forward.7} parent=61 // pred_check_branch
          %1285 = sbr.rel (%p1283) target = $region70
        $region69: #{encoder_forward.7} parent=61 // pred_region
          %s1286 = smul.u32 2, %s16
          %s1287 = smul.addr %s1286, 4
          %s1288 = scalar_lea.vmem %s2, %s1287
          // Predicated region
          $region71: #{encoder_forward.7} parent=69 // pred_check
            _
          $region72: #{encoder_forward.7} parent=69 // pred_check_branch
            %1290 = sbr.rel (0) target = $region74
          $region73: #{encoder_forward.7} parent=69 // pred_region
            // Predicated region
            $region75: #{encoder_forward.7} parent=73 // pred_check
              _
            $region76: #{encoder_forward.7} parent=73 // pred_check_branch
              %1292 = sbr.rel (0) target = $region78
            $region77: #{encoder_forward.7} parent=73 // pred_region
              // Predicated region
              $region90: #{encoder_forward.7} parent=77 // pred_check
                _
              $region91: #{encoder_forward.7} parent=77 // pred_check_branch
                %1321 = sbr.rel (0) target = $region93
              $region92: #{encoder_forward.7} parent=77 // pred_region
                loop: start=0, step=1, limit=1
                $region94: #{encoder_forward.7} parent=92 // loop_pre_header
                  _
                $region95: #{encoder_forward.7} parent=92 // loop_header
                  %s1323 = sphi 0, %s1327
                  %p1324 = scmp.ge.s32.totalorder %s1323, 1
                  %s1328 = sphi %s1272, %s1272
                  %s1329 = sphi %s1288, %s1288
                $region96: #{encoder_forward.7} parent=92 // loop_header_branch
                  %1326 = sbr.rel (%p1324) target = $region100
                $region97: #{encoder_forward.7} parent=92 // loop_body
                  %v1330 = vld [vmem:[%s1328] sm:$0xff]
                  %1331 = vst [vmem:[%s1329] sm:$0xff] %v1330
                  %v1332 = vld [vmem:[%s1328 + $0x8] sm:$0xff]
                  %1333 = vst [vmem:[%s1329 + $0x10] sm:$0xff] %v1332
                  %v1334 = vld [vmem:[%s1328 + $0x10] sm:$0xff]
                  %1335 = vst [vmem:[%s1329 + $0x20] sm:$0xff] %v1334
                  %v1336 = vld [vmem:[%s1328 + $0x18] sm:$0xff]
                  %1337 = vst [vmem:[%s1329 + $0x30] sm:$0xff] %v1336
                  %v1338 = vld [vmem:[%s1328 + $0x20] sm:$0xff]
                  %1339 = vst [vmem:[%s1329 + $0x40] sm:$0xff] %v1338
                  %v1340 = vld [vmem:[%s1328 + $0x28] sm:$0xff]
                  %1341 = vst [vmem:[%s1329 + $0x50] sm:$0xff] %v1340
                  %v1342 = vld [vmem:[%s1328 + $0x30] sm:$0xff]
                  %1343 = vst [vmem:[%s1329 + $0x60] sm:$0xff] %v1342
                  %v1344 = vld [vmem:[%s1328 + $0x38] sm:$0xff]
                  %1345 = vst [vmem:[%s1329 + $0x70] sm:$0xff] %v1344
                $region98: #{encoder_forward.7} parent=92 // loop_footer
                  %s1327 = sadd.s32 1, %s1323
                $region99: #{encoder_forward.7} parent=92 // loop_footer_branch
                  %1322 = sbr.rel target = $region95
                $region100: #{encoder_forward.7} parent=92 // loop_exit
                  _
              $region93: #{encoder_forward.7} parent=77 // pred_fallthru
                _
              // Predicated region
              $region101: #{encoder_forward.7} parent=77 // pred_check
                _
              $region102: #{encoder_forward.7} parent=77 // pred_check_branch
                %1347 = sbr.rel target = $region104
              $region103: #{encoder_forward.7} parent=77 // pred_region
                _
              $region104: #{encoder_forward.7} parent=77 // pred_fallthru
                _
            $region78: #{encoder_forward.7} parent=73 // pred_fallthru
              _
            // Predicated region
            $region79: #{encoder_forward.7} parent=73 // pred_check
              _
            $region80: #{encoder_forward.7} parent=73 // pred_check_branch
              %1294 = sbr.rel target = $region82
            $region81: #{encoder_forward.7} parent=73 // pred_region
              loop: start=0, step=1, limit=1
              $region83: #{encoder_forward.7} parent=81 // loop_pre_header
                _
              $region84: #{encoder_forward.7} parent=81 // loop_header
                %s1297 = sphi 0, %s1301
                %p1298 = scmp.ge.s32.totalorder %s1297, 1
                %s1302 = sphi %s1272, %s1272
                %s1303 = sphi %s1288, %s1288
              $region85: #{encoder_forward.7} parent=81 // loop_header_branch
                %1300 = sbr.rel (%p1298) target = $region89
              $region86: #{encoder_forward.7} parent=81 // loop_body
                %v1304 = vld [vmem:[%s1302] sm:$0xff]
                %1305 = vst [vmem:[%s1303] sm:$0xff] %v1304
                %v1306 = vld [vmem:[%s1302 + $0x8] sm:$0xff]
                %1307 = vst [vmem:[%s1303 + $0x10] sm:$0xff] %v1306
                %v1308 = vld [vmem:[%s1302 + $0x10] sm:$0xff]
                %1309 = vst [vmem:[%s1303 + $0x20] sm:$0xff] %v1308
                %v1310 = vld [vmem:[%s1302 + $0x18] sm:$0xff]
                %1311 = vst [vmem:[%s1303 + $0x30] sm:$0xff] %v1310
                %v1312 = vld [vmem:[%s1302 + $0x20] sm:$0xff]
                %1313 = vst [vmem:[%s1303 + $0x40] sm:$0xff] %v1312
                %v1314 = vld [vmem:[%s1302 + $0x28] sm:$0xff]
                %1315 = vst [vmem:[%s1303 + $0x50] sm:$0xff] %v1314
                %v1316 = vld [vmem:[%s1302 + $0x30] sm:$0xff]
                %1317 = vst [vmem:[%s1303 + $0x60] sm:$0xff] %v1316
                %v1318 = vld [vmem:[%s1302 + $0x38] sm:$0xff]
                %1319 = vst [vmem:[%s1303 + $0x70] sm:$0xff] %v1318
              $region87: #{encoder_forward.7} parent=81 // loop_footer
                %s1301 = sadd.s32 1, %s1297
              $region88: #{encoder_forward.7} parent=81 // loop_footer_branch
                %1296 = sbr.rel target = $region84
              $region89: #{encoder_forward.7} parent=81 // loop_exit
                _
            $region82: #{encoder_forward.7} parent=73 // pred_fallthru
              _
          $region74: #{encoder_forward.7} parent=69 // pred_fallthru
            _
          %1348 = vnop
        $region70: #{encoder_forward.7} parent=61 // pred_fallthru
          _
        // Predicated region
        $region105: #{encoder_forward.7} parent=61 // pred_check
          %p1349 = pneg %p107
        $region106: #{encoder_forward.7} parent=61 // pred_check_branch
          %1351 = sbr.rel (%p1349) target = $region108
        $region107: #{encoder_forward.7} parent=61 // pred_region
          _
        $region108: #{encoder_forward.7} parent=61 // pred_fallthru
          _
        // Predicated region
        $region109: #{encoder_forward.7} parent=61 // pred_check
          %p1352 = pneg %p133
        $region110: #{encoder_forward.7} parent=61 // pred_check_branch
          %1354 = sbr.rel (%p1352) target = $region112
        $region111: #{encoder_forward.7} parent=61 // pred_region
          _
        $region112: #{encoder_forward.7} parent=61 // pred_fallthru
          _
      $region62: #{encoder_forward.7} parent=5 // pred_fallthru
        _
      %p1355 = scmp.le.s32.totalorder 2, %s11
      // Predicated region
      $region113: #{encoder_forward.7} parent=5 // pred_check
        %p1356 = pneg %p1355
      $region114: #{encoder_forward.7} parent=5 // pred_check_branch
        %1358 = sbr.rel (%p1356) target = $region116
      $region115: #{encoder_forward.7} parent=5 // pred_region
        %s1359 = ssub.s32 %s11, 2
        // Predicated region
        $region117: #{encoder_forward.7} parent=115 // pred_check
          %p1360 = pneg %p87
        $region118: #{encoder_forward.7} parent=115 // pred_check_branch
          %1362 = sbr.rel (%p1360) target = $region120
        $region119: #{encoder_forward.7} parent=115 // pred_region
          %s1363 = sand.u32 %s72, 1
          %s1364 = sand.u32 %s72, 1
          %s1365 = smul.addr %s1364, 64
          %s1366 = scalar_lea.vmem [#allocation3], %s1365
        $region120: #{encoder_forward.7} parent=115 // pred_fallthru
          _
        // Predicated region
        $region121: #{encoder_forward.7} parent=115 // pred_check
          %p1367 = pneg %p113
        $region122: #{encoder_forward.7} parent=115 // pred_check_branch
          %1369 = sbr.rel (%p1367) target = $region124
        $region123: #{encoder_forward.7} parent=115 // pred_region
          %p1370 = scmp.lt.s32.totalorder %s17, 1
          %s1371 = scalar_select %p1370, %s17, 1
          %s1372 = smul.addr %s1371, 8
          %s1373 = smul.addr %s1372, 8
          %s1374 = scalar_lea.vmem %s3, %s1373
        $region124: #{encoder_forward.7} parent=115 // pred_fallthru
          _
        // Predicated region
        $region125: #{encoder_forward.7} parent=115 // pred_check
          %p1375 = pneg %p139
        $region126: #{encoder_forward.7} parent=115 // pred_check_branch
          %1377 = sbr.rel (%p1375) target = $region128
        $region127: #{encoder_forward.7} parent=115 // pred_region
          %p1378 = scmp.lt.s32.totalorder %s17, 1
          %s1379 = scalar_select %p1378, %s17, 1
          %s1380 = smul.addr %s1379, 8
          %s1381 = smul.addr %s1380, 8
          %s1382 = scalar_lea.vmem %s4, %s1381
        $region128: #{encoder_forward.7} parent=115 // pred_fallthru
          _
      $region116: #{encoder_forward.7} parent=5 // pred_fallthru
        _
    $region6: #{encoder_forward.7} parent=1 // loop_footer
      %s15 = sadd.s32 1, %s11
    $region7: #{encoder_forward.7} parent=1 // loop_footer_branch
      %10 = sbr.rel target = $region3
    $region8: #{encoder_forward.7} parent=1 // loop_exit
      _

</llo_original>
